<compile_context>
chip_gen: v5e
topology: v5e:2x2
jax: 0.10.0
libtpu: 0.0.40
codegen_flags: <defaults>
</compile_context>

<pallas_src>
import functools

import jax
import jax.numpy as jnp
from jax.experimental import pallas as pl
from jax.experimental.pallas import tpu as pltpu

F32 = jnp.float32

# Per-block (hdim, hdim) weight matrices, stacked along axis 0 of w_stk:
#   0 Wg  1 Wl3  2 Wsl  3 Wc1  4 Wl2  5 Wl1  6 Wsr  7 Wc2  8 Wa  9 Wproj  10 Wci  11 Wco
N_WEIGHTS = 12
# Per-block vector-param rows: 0-4 conv biases, 5-9 gamma, 10-14 beta, 15 gate bias.
N_VROWS = 16


# ----------------------------------------------------------------------------
# Fused kernel: 3 x (5 convs + BN + ReLU + sum + gated skip) + readout head.
# ----------------------------------------------------------------------------
def make_fused_kernel(n, hdim, heads, ex_dim, n_blocks=3):
    dh = hdim // heads

    def kernel(x_ref, astk_ref, mb_ref, pool_ref, ef_ref,
               wstk_ref, attn_ref, vecp_ref, repsrc_ref,
               hw_ref, hb1_ref, hw3_ref, hb3_ref, o_ref):
        def dot(a, b):
            return jnp.dot(a, b, preferred_element_type=F32)

        a_stack = astk_ref[0]          # (5n, n): [A_gcn; A; A_mean; A_clu; diag(deg)]
        mb = mb_ref[0]                 # (heads*n, n): additive mask bias, pre-tiled per head
        rep_src = repsrc_ref[...]      # (heads*n, 2*heads): head-block row replicator

        # Per-head lane masks over the hidden dim, built once and reused by all blocks.
        lane = jax.lax.broadcasted_iota(jnp.int32, (1, hdim), 1)
        head_masks = [((lane >= hh * dh) & (lane < (hh + 1) * dh)).astype(F32)
                      for hh in range(heads)]

        def block_body(blk, h):
            base = blk * N_WEIGHTS

            def W(k):
                return wstk_ref[base + k]                 # (hdim, hdim)

            pv = vecp_ref[blk]                            # (N_VROWS, hdim)
            attn_w = attn_ref[blk]                        # (hdim, 2*heads) block-diag a_src|a_dst

            # --- all dense aggregations in one (5n,n)@(n,hdim) matmul; row blocks aligned ---
            xs = dot(a_stack, h)
            ag = xs[0 * n:1 * n]                          # A_gcn @ h
            aa = xs[1 * n:2 * n]                          # A      @ h
            am = xs[2 * n:3 * n]                          # A_mean @ h
            ac = xs[3 * n:4 * n]                          # A_clu  @ h
            dg = xs[4 * n:5 * n]                          # deg * h

            # --- GATConv: all heads in one stacked softmax ---------------------------------
            z = dot(h, W(8))                              # (n, hdim)
            sd = dot(z, attn_w)                           # (n, 2*heads): [src | dst] scores
            src2 = dot(rep_src, sd.T)                     # (heads*n, n): row block hh = src[:,hh]
            dst_col = jnp.concatenate(
                [sd[:, heads + hh:heads + hh + 1] for hh in range(heads)], axis=0)
            e = src2 + dst_col                            # e[hh*n+i, j] = a_dst.z_i + a_src.z_j
            e = jnp.where(e > 0.0, e, 0.2 * e)            # LeakyReLU(0.2)
            e = e + mb                                    # additive -1e30 mask bias
            e = e - jnp.max(e, axis=1, keepdims=True)
            p = jnp.exp(e)
            p = p / jnp.sum(p, axis=1, keepdims=True)     # exact divide (no approx reciprocal)
            w2 = dot(p, z)                                # (heads*n, hdim)
            c_gat = head_masks[0] * w2[0:n]
            for hh in range(1, heads):
                c_gat = c_gat + head_masks[hh] * w2[hh * n:(hh + 1) * n]

            # --- five conv branches, each a lane-aligned (n, hdim) tile --------------------
            convs = (
                dot(ag, W(0)),                                    # GCNConv
                c_gat,                                            # GATConv
                dot(h, W(5)) + dot(dg, W(4)) - dot(aa, W(1)),     # LEConv
                dot(am, W(2)) + dot(h, W(6)),                     # SAGEConv
                dot(ac, W(3)) + dot(h, W(7)),                     # ClusterGCNConv
            )

            # --- per-branch BatchNorm (batch stats) + ReLU, summed on the fly --------------
            hsum = jnp.zeros((n, hdim), F32)
            for k in range(5):
                c = convs[k] + pv[k:k + 1, :]
                m = jnp.mean(c, axis=0, keepdims=True)
                v = jnp.mean(jnp.square(c - m), axis=0, keepdims=True)
                bn = (c - m) * jax.lax.rsqrt(v + 1e-5) * pv[5 + k:6 + k, :] + pv[10 + k:11 + k, :]
                hsum = hsum + jnp.maximum(bn, 0.0)

            # --- GatedSkipConnection --------------------------------------------------------
            xin = dot(h, W(9))                            # W(9) == identity for blocks 2 and 3
            gate = jax.nn.sigmoid(dot(hsum, W(10)) + dot(xin, W(11)) + pv[15:16, :])
            return gate * hsum + (1.0 - gate) * xin

        h = jax.lax.fori_loop(0, n_blocks, block_body, x_ref[0].astype(F32))

        # --- readout: global_mean_pool + concat(eFeature) + fc1 + relu + fc3 ---------------
        hg = dot(pool_ref[0], h)                                       # (n_graphs, hdim)
        zf = (dot(hg, hw_ref[0:hdim, :])
              + dot(ef_ref[0], hw_ref[hdim:hdim + ex_dim, :])
              + hb1_ref[...])
        zf = jnp.maximum(zf, 0.0)
        o_ref[0] = (dot(zf, hw3_ref[...]) + hb3_ref[...]).astype(o_ref.dtype)

    return kernel


def inceptlike_gcn_forward(x, a_stack, mb, pool, ef,
                           w_stk, attn, vecp, rep_src,
                           head_w, b1, w3, b3, *, heads, out_dim, n_blocks=3):
    gb, n, hdim = x.shape
    n_graphs = pool.shape[1]
    ex_dim = ef.shape[2]

    def batch_spec(*shape):       # one mega-batch per grid point
        return pl.BlockSpec((1,) + shape, lambda b: (b,) + (0,) * len(shape))

    def shared_spec(*shape):      # parameters shared by all grid points
        return pl.BlockSpec(shape, lambda b: (0,) * len(shape))

    kernel = make_fused_kernel(n, hdim, heads, ex_dim, n_blocks)
    return pl.pallas_call(
        kernel,
        out_shape=jax.ShapeDtypeStruct((gb, n_graphs, out_dim), F32),
        grid=(gb,),
        in_specs=[
            batch_spec(n, hdim),                        # node features (zero-padded to hdim)
            batch_spec(5 * n, n),                       # stacked adjacency ops (+ diag(deg))
            batch_spec(heads * n, n),                   # additive attention mask bias (tiled)
            batch_spec(n_graphs, n),                    # global_mean_pool matrix
            batch_spec(n_graphs, ex_dim),               # eFeature
            shared_spec(n_blocks * N_WEIGHTS, hdim, hdim),
            shared_spec(n_blocks, hdim, 2 * heads),
            shared_spec(n_blocks, N_VROWS, hdim),
            shared_spec(heads * n, 2 * heads),
            shared_spec(hdim + ex_dim, hdim),
            shared_spec(1, hdim),
            shared_spec(hdim, out_dim),
            shared_spec(1, out_dim),
        ],
        out_specs=batch_spec(n_graphs, out_dim),
        compiler_params=pltpu.CompilerParams(
            dimension_semantics=("parallel",)),          # megacore / v7x second TensorCore
    )(x, a_stack, mb, pool, ef, w_stk, attn, vecp, rep_src, head_w, b1, w3, b3)
    # TODO(synk): for N >> 128, tile a_stack / mb over row-block grid axes and cast them to
    # bf16 (vmem_limit_bytes) so the fused design still fits v7x's 64 MiB VMEM.


# ----------------------------------------------------------------------------
# Host-side parameter packing
# ----------------------------------------------------------------------------
def pack_block_params(p, hdim, heads, use_proj):
    dh = hdim // heads

    def pad_in(w):   # zero-pad input-dim rows up to hdim (block 1: 8 -> 32)
        return jnp.pad(w, ((0, hdim - w.shape[0]), (0, 0)))

    wproj = pad_in(p["wproj"]) if use_proj else jnp.eye(hdim, dtype=F32)
    w_stk = jnp.stack([
        pad_in(p["wg"]), pad_in(p["wl3"]), pad_in(p["wsl"]), pad_in(p["wc1"]),
        pad_in(p["wl2"]), pad_in(p["wl1"]), pad_in(p["wsr"]), pad_in(p["wc2"]),
        pad_in(p["wa"]), wproj, p["wci"], p["wco"]])                 # (12, hdim, hdim)

    attn_w = jnp.zeros((hdim, 2 * heads), F32)                       # block-diag a_src | a_dst
    for hh in range(heads):
        attn_w = attn_w.at[hh * dh:(hh + 1) * dh, hh].set(p["asrc"][hh])
        attn_w = attn_w.at[hh * dh:(hh + 1) * dh, heads + hh].set(p["adst"][hh])

    vecp = jnp.concatenate([
        p["bg"], p["ba"], p["bl"], p["bs"], p["bc"],                 # rows 0-4: conv biases
        p["gamma"],                                                  # rows 5-9
        p["beta"],                                                   # rows 10-14
        p["bci"] + p["bco"],                                         # row 15: gate bias
    ], axis=0)                                                       # (16, hdim)
    return w_stk, attn_w, vecp


# ----------------------------------------------------------------------------
# Deterministic parameter / graph construction
# ----------------------------------------------------------------------------
def init_block_params(key, din, hdim, heads, use_proj):
    dh = hdim // heads
    ks = jax.random.split(key, 24)

    def w(k, shape, scale=0.2):
        return jax.random.normal(k, shape, F32) * scale

    p = dict(
        wg=w(ks[0], (din, hdim)), bg=w(ks[1], (1, hdim), 0.05),
        wa=w(ks[2], (din, hdim)), asrc=w(ks[3], (heads, dh)), adst=w(ks[4], (heads, dh)),
        ba=w(ks[5], (1, hdim), 0.05),
        wl1=w(ks[6], (din, hdim)), wl2=w(ks[7], (din, hdim)), wl3=w(ks[8], (din, hdim)),
        bl=w(ks[9], (1, hdim), 0.05),
        wsl=w(ks[10], (din, hdim)), wsr=w(ks[11], (din, hdim)), bs=w(ks[12], (1, hdim), 0.05),
        wc1=w(ks[13], (din, hdim)), wc2=w(ks[14], (din, hdim)), bc=w(ks[15], (1, hdim), 0.05),
        gamma=jnp.ones((5, hdim), F32) + w(ks[16], (5, hdim), 0.05),
        beta=w(ks[17], (5, hdim), 0.05),
        wci=w(ks[18], (hdim, hdim)), bci=w(ks[19], (1, hdim), 0.05),
        wco=w(ks[20], (hdim, hdim)), bco=w(ks[21], (1, hdim), 0.05),
    )
    if use_proj:
        p["wproj"] = w(ks[22], (din, hdim))
    return p


def init_head_params(key, hdim, ex_dim, out_dim):
    ks = jax.random.split(key, 5)

    def w(k, shape, scale=0.2):
        return jax.random.normal(k, shape, F32) * scale

    return dict(
        w1a=w(ks[0], (hdim, hdim)),
        w1b=w(ks[1], (ex_dim, hdim)),
        b1=w(ks[2], (1, hdim), 0.05),
        w3=w(ks[3], (hdim, out_dim)),
        b3=w(ks[4], (1, out_dim), 0.05),
    )


def build_graph_ops(key, n_graphs, nodes_per_graph, heads):
    keys = jax.random.split(key, n_graphs)
    eye_b = jnp.eye(nodes_per_graph, dtype=F32)
    blocks = []
    for g in range(n_graphs):
        blk = (jax.random.uniform(keys[g], (nodes_per_graph, nodes_per_graph)) < 0.4).astype(F32)
        blk = jnp.maximum(blk, blk.T) * (1.0 - eye_b)
        blocks.append(blk)
    adj = jax.scipy.linalg.block_diag(*blocks).astype(F32)

    n = n_graphs * nodes_per_graph
    eye = jnp.eye(n, dtype=F32)
    a_sl = adj + eye
    deg_sl = jnp.sum(a_sl, axis=1)
    dinv_sqrt = 1.0 / jnp.sqrt(deg_sl)
    a_gcn = dinv_sqrt[:, None] * a_sl * dinv_sqrt[None, :]          # GCN propagation
    deg = jnp.sum(adj, axis=1)
    a_mean = adj / jnp.maximum(deg, 1.0)[:, None]                   # SAGE mean aggregation
    a_clu = a_sl / deg_sl[:, None]                                  # ClusterGCN D^-1 (A+I)
    mask = (a_sl > 0).astype(F32)
    mask_bias = (mask - 1.0) * 1e30                                 # 0 on edges, -1e30 elsewhere

    a_stack = jnp.concatenate([a_gcn, adj, a_mean, a_clu, jnp.diag(deg)], axis=0)   # (5n, n)
    mb = jnp.tile(mask_bias, (heads, 1))                            # (heads*n, n)

    pool = jnp.zeros((n_graphs, n), F32)                            # global_mean_pool
    for g in range(n_graphs):
        pool = pool.at[g, g * nodes_per_graph:(g + 1) * nodes_per_graph].set(1.0 / nodes_per_graph)

    raw = (a_gcn, adj, a_mean, a_clu, mask, deg[:, None])
    return raw, a_stack, mb, pool


# ----------------------------------------------------------------------------
# Pure-jnp reference (mirrors the PyTorch forward) for a sanity check.
# ----------------------------------------------------------------------------
def reference_forward(x, graph_ops, pool, ef, block_params, head_params, heads):
    a_gcn, adj, a_mean, a_clu, mask, deg = graph_ops

    def bn_relu(v, g, b):
        m = jnp.mean(v, 0, keepdims=True)
        va = jnp.mean((v - m) ** 2, 0, keepdims=True)
        return jnp.maximum((v - m) * jax.lax.rsqrt(va + 1e-5) * g + b, 0.0)

    def block(h, p, use_proj):
        hdim = p["wg"].shape[1]
        dh = hdim // heads
        h_gcn = a_gcn @ (h @ p["wg"]) + p["bg"]
        z = h @ p["wa"]
        outs = []
        for hh in range(heads):
            zh = z[:, hh * dh:(hh + 1) * dh]
            s = zh @ p["asrc"][hh][:, None]
            d = zh @ p["adst"][hh][:, None]
            e = d + s.T
            e = jnp.where(e > 0, e, 0.2 * e)
            e = jnp.where(mask > 0, e, -1e30)
            e = e - jnp.max(e, 1, keepdims=True)
            pr = jnp.exp(e)
            pr = pr / jnp.sum(pr, 1, keepdims=True)
            outs.append(pr @ zh)
        h_gat = jnp.concatenate(outs, 1) + p["ba"]
        h_le = h @ p["wl1"] + deg * (h @ p["wl2"]) - adj @ (h @ p["wl3"]) + p["bl"]
        h_sage = (a_mean @ h) @ p["wsl"] + h @ p["wsr"] + p["bs"]
        h_clu = (a_clu @ h) @ p["wc1"] + h @ p["wc2"] + p["bc"]
        hsum = (bn_relu(h_gcn, p["gamma"][0], p["beta"][0])
                + bn_relu(h_gat, p["gamma"][1], p["beta"][1])
                + bn_relu(h_le, p["gamma"][2], p["beta"][2])
                + bn_relu(h_sage, p["gamma"][3], p["beta"][3])
                + bn_relu(h_clu, p["gamma"][4], p["beta"][4]))
        xin = h @ p["wproj"] if use_proj else h
        gate = jax.nn.sigmoid(hsum @ p["wci"] + p["bci"] + xin @ p["wco"] + p["bco"])
        return gate * hsum + (1.0 - gate) * xin

    h = block(x, block_params[0], True)
    h = block(h, block_params[1], False)
    h = block(h, block_params[2], False)
    hg = pool @ h
    zf = jnp.maximum(hg @ head_params["w1a"] + ef @ head_params["w1b"] + head_params["b1"], 0.0)
    return zf @ head_params["w3"] + head_params["b3"]


# ----------------------------------------------------------------------------
if __name__ == "__main__":
    # args: input_dim=8, hidden_dim=32, out_dim=4, head_num=4, ex_dim=20 (eFeature width)
    INPUT_DIM, HIDDEN_DIM, OUT_DIM, HEADS, EX_DIM = 8, 32, 4, 4, 20
    GB = 2                                   # independent graph mega-batches -> parallel grid axis
    N_GRAPHS, NODES_PER_GRAPH = 16, 8
    N = N_GRAPHS * NODES_PER_GRAPH           # 128 nodes per mega-batch: lane-dense tiles

    root = jax.random.PRNGKey(0)
    k_data, k_b1, k_b2, k_b3, k_head = jax.random.split(root, 5)

    block_params = [
        init_block_params(k_b1, INPUT_DIM, HIDDEN_DIM, HEADS, use_proj=True),
        init_block_params(k_b2, HIDDEN_DIM, HIDDEN_DIM, HEADS, use_proj=False),
        init_block_params(k_b3, HIDDEN_DIM, HIDDEN_DIM, HEADS, use_proj=False),
    ]
    head_params = init_head_params(k_head, HIDDEN_DIM, EX_DIM, OUT_DIM)

    packed = [pack_block_params(p, HIDDEN_DIM, HEADS, use_proj=("wproj" in p))
              for p in block_params]
    w_stk = jnp.concatenate([pk[0] for pk in packed], axis=0)        # (36, 32, 32)
    attn = jnp.stack([pk[1] for pk in packed])                       # (3, 32, 8)
    vecp = jnp.stack([pk[2] for pk in packed])                       # (3, 16, 32)
    head_w = jnp.concatenate([head_params["w1a"], head_params["w1b"]], axis=0)   # (52, 32)

    rep_src = jnp.zeros((HEADS * N, 2 * HEADS), F32)                 # head-block row replicator
    for hh in range(HEADS):
        rep_src = rep_src.at[hh * N:(hh + 1) * N, hh].set(1.0)

    xs, efs, astks, mbs, pools, ref_inputs = [], [], [], [], [], []
    for g in range(GB):
        kk = jax.random.fold_in(k_data, g)
        k_x, k_g, k_ef = jax.random.split(kk, 3)
        x = jax.random.normal(k_x, (N, INPUT_DIM), F32)              # g.x
        ef = jax.random.normal(k_ef, (N_GRAPHS, EX_DIM), F32)        # g.eFeature
        raw, a_stack, mb, pool = build_graph_ops(k_g, N_GRAPHS, NODES_PER_GRAPH, HEADS)
        xs.append(jnp.pad(x, ((0, 0), (0, HIDDEN_DIM - INPUT_DIM))))
        efs.append(ef); astks.append(a_stack); mbs.append(mb); pools.append(pool)
        ref_inputs.append((x, raw, pool, ef))

    x_b = jnp.stack(xs)          # (GB, 128, 32)
    astk_b = jnp.stack(astks)    # (GB, 640, 128)
    mb_b = jnp.stack(mbs)        # (GB, 512, 128)
    pool_b = jnp.stack(pools)    # (GB, 16, 128)
    ef_b = jnp.stack(efs)        # (GB, 16, 20)

    fwd = jax.jit(functools.partial(inceptlike_gcn_forward, heads=HEADS, out_dim=OUT_DIM))
    out = fwd(x_b, astk_b, mb_b, pool_b, ef_b, w_stk, attn, vecp, rep_src,
              head_w, head_params["b1"], head_params["w3"], head_params["b3"])
    out = jax.block_until_ready(out)

    with jax.default_matmul_precision("float32"):
        refs = [reference_forward(x, raw, pool, ef, block_params, head_params, HEADS)
                for (x, raw, pool, ef) in ref_inputs]
    ref = jnp.stack(refs)

    max_diff = float(jnp.max(jnp.abs(out - ref)))
    assert out.shape == (GB, N_GRAPHS, OUT_DIM), out.shape
    assert bool(jnp.all(jnp.isfinite(out)))
    # exact softmax divide now used; tolerance tightened vs the previous 1e-1
    # (residual diff is MXU f32 accumulation rounding through 3 blocks of nonlinearities)
    assert max_diff < 5e-2, f"kernel deviates from jnp reference: max|diff|={max_diff}"
    print("KERNEL_OK")
</pallas_src>

<mosaic_0001>
module attributes {stable_mosaic.version = 11 : i64} {
  func.func @kernel(%arg0: i32, %arg1: memref<1x128x32xf32, #tpu.memory_space<vmem>>, %arg2: memref<1x640x128xf32, #tpu.memory_space<vmem>>, %arg3: memref<1x512x128xf32, #tpu.memory_space<vmem>>, %arg4: memref<1x16x128xf32, #tpu.memory_space<vmem>>, %arg5: memref<1x16x20xf32, #tpu.memory_space<vmem>>, %arg6: memref<36x32x32xf32, #tpu.memory_space<vmem>>, %arg7: memref<3x32x8xf32, #tpu.memory_space<vmem>>, %arg8: memref<3x16x32xf32, #tpu.memory_space<vmem>>, %arg9: memref<512x8xf32, #tpu.memory_space<vmem>>, %arg10: memref<52x32xf32, #tpu.memory_space<vmem>>, %arg11: memref<1x32xf32, #tpu.memory_space<vmem>>, %arg12: memref<32x4xf32, #tpu.memory_space<vmem>>, %arg13: memref<1x4xf32, #tpu.memory_space<vmem>>, %arg14: memref<1x16x4xf32, #tpu.memory_space<vmem>>) attributes {dimension_semantics = [#tpu.dimension_semantics<parallel>], iteration_bounds = array<i64: 2>, scalar_prefetch = 0 : i64, scratch_operands = 0 : i64, tpu.core_type = #tpu.core_type<tc>, window_params = [{transform_indices = @transform_0, window_bounds = array<i64: 1, 128, 32>}, {transform_indices = @transform_1, window_bounds = array<i64: 1, 640, 128>}, {transform_indices = @transform_2, window_bounds = array<i64: 1, 512, 128>}, {transform_indices = @transform_3, window_bounds = array<i64: 1, 16, 128>}, {transform_indices = @transform_4, window_bounds = array<i64: 1, 16, 20>}, {pipeline_mode = #tpu.pipeline_mode<synchronous>, transform_indices = @transform_5, window_bounds = array<i64: 36, 32, 32>}, {pipeline_mode = #tpu.pipeline_mode<synchronous>, transform_indices = @transform_6, window_bounds = array<i64: 3, 32, 8>}, {pipeline_mode = #tpu.pipeline_mode<synchronous>, transform_indices = @transform_7, window_bounds = array<i64: 3, 16, 32>}, {pipeline_mode = #tpu.pipeline_mode<synchronous>, transform_indices = @transform_8, window_bounds = array<i64: 512, 8>}, {pipeline_mode = #tpu.pipeline_mode<synchronous>, transform_indices = @transform_9, window_bounds = array<i64: 52, 32>}, {pipeline_mode = #tpu.pipeline_mode<synchronous>, transform_indices = @transform_10, window_bounds = array<i64: 1, 32>}, {pipeline_mode = #tpu.pipeline_mode<synchronous>, transform_indices = @transform_11, window_bounds = array<i64: 32, 4>}, {pipeline_mode = #tpu.pipeline_mode<synchronous>, transform_indices = @transform_12, window_bounds = array<i64: 1, 4>}, {transform_indices = @transform_13, window_bounds = array<i64: 1, 16, 4>}]} {
    %c0 = arith.constant 0 : index
    %c0_0 = arith.constant 0 : index
    %c0_1 = arith.constant 0 : index
    %0 = vector.load %arg2[%c0, %c0_0, %c0_1] : memref<1x640x128xf32, #tpu.memory_space<vmem>>, vector<1x640x128xf32>
    %1 = vector.shape_cast %0 : vector<1x640x128xf32> to vector<640x128xf32>
    %c0_2 = arith.constant 0 : index
    %c0_3 = arith.constant 0 : index
    %c0_4 = arith.constant 0 : index
    %2 = vector.load %arg3[%c0_2, %c0_3, %c0_4] : memref<1x512x128xf32, #tpu.memory_space<vmem>>, vector<1x512x128xf32>
    %3 = vector.shape_cast %2 : vector<1x512x128xf32> to vector<512x128xf32>
    %c0_5 = arith.constant 0 : index
    %c0_6 = arith.constant 0 : index
    %4 = vector.load %arg9[%c0_5, %c0_6] : memref<512x8xf32, #tpu.memory_space<vmem>>, vector<512x8xf32>
    %5 = tpu.iota {dimensions = array<i32: 1>} : vector<1x32xi32>
    %c0_i32 = arith.constant 0 : i32
    %6 = vector.broadcast %c0_i32 : i32 to vector<1x32xi32>
    %7 = arith.cmpi sge, %5, %6 : vector<1x32xi32>
    %c8_i32 = arith.constant 8 : i32
    %8 = vector.broadcast %c8_i32 : i32 to vector<1x32xi32>
    %9 = arith.cmpi slt, %5, %8 : vector<1x32xi32>
    %10 = arith.andi %7, %9 : vector<1x32xi1>
    %11 = arith.extui %10 : vector<1x32xi1> to vector<1x32xi32>
    %12 = arith.sitofp %11 : vector<1x32xi32> to vector<1x32xf32>
    %c8_i32_7 = arith.constant 8 : i32
    %13 = vector.broadcast %c8_i32_7 : i32 to vector<1x32xi32>
    %14 = arith.cmpi sge, %5, %13 : vector<1x32xi32>
    %c16_i32 = arith.constant 16 : i32
    %15 = vector.broadcast %c16_i32 : i32 to vector<1x32xi32>
    %16 = arith.cmpi slt, %5, %15 : vector<1x32xi32>
    %17 = arith.andi %14, %16 : vector<1x32xi1>
    %18 = arith.extui %17 : vector<1x32xi1> to vector<1x32xi32>
    %19 = arith.sitofp %18 : vector<1x32xi32> to vector<1x32xf32>
    %c16_i32_8 = arith.constant 16 : i32
    %20 = vector.broadcast %c16_i32_8 : i32 to vector<1x32xi32>
    %21 = arith.cmpi sge, %5, %20 : vector<1x32xi32>
    %c24_i32 = arith.constant 24 : i32
    %22 = vector.broadcast %c24_i32 : i32 to vector<1x32xi32>
    %23 = arith.cmpi slt, %5, %22 : vector<1x32xi32>
    %24 = arith.andi %21, %23 : vector<1x32xi1>
    %25 = arith.extui %24 : vector<1x32xi1> to vector<1x32xi32>
    %26 = arith.sitofp %25 : vector<1x32xi32> to vector<1x32xf32>
    %c24_i32_9 = arith.constant 24 : i32
    %27 = vector.broadcast %c24_i32_9 : i32 to vector<1x32xi32>
    %28 = arith.cmpi sge, %5, %27 : vector<1x32xi32>
    %c32_i32 = arith.constant 32 : i32
    %29 = vector.broadcast %c32_i32 : i32 to vector<1x32xi32>
    %30 = arith.cmpi slt, %5, %29 : vector<1x32xi32>
    %31 = arith.andi %28, %30 : vector<1x32xi1>
    %32 = arith.extui %31 : vector<1x32xi1> to vector<1x32xi32>
    %33 = arith.sitofp %32 : vector<1x32xi32> to vector<1x32xf32>
    %c0_10 = arith.constant 0 : index
    %c0_11 = arith.constant 0 : index
    %c0_12 = arith.constant 0 : index
    %34 = vector.load %arg1[%c0_10, %c0_11, %c0_12] : memref<1x128x32xf32, #tpu.memory_space<vmem>>, vector<1x128x32xf32>
    %35 = vector.shape_cast %34 : vector<1x128x32xf32> to vector<128x32xf32>
    %c0_i32_13 = arith.constant 0 : i32
    %c3_i32 = arith.constant 3 : i32
    %36 = arith.addi %c0_i32_13, %c3_i32 : i32
    %c1_i32 = arith.constant 1 : i32
    %37 = scf.for %arg15 = %c0_i32_13 to %36 step %c1_i32 iter_args(%arg16 = %35) -> (vector<128x32xf32>)  : i32 {
      %c12_i32 = arith.constant 12 : i32
      %61 = arith.muli %arg15, %c12_i32 : i32
      %62 = arith.index_cast %arg15 : i32 to index
      %c0_37 = arith.constant 0 : index
      %c0_38 = arith.constant 0 : index
      %63 = vector.load %arg8[%62, %c0_37, %c0_38] : memref<3x16x32xf32, #tpu.memory_space<vmem>>, vector<1x16x32xf32>
      %64 = vector.shape_cast %63 : vector<1x16x32xf32> to vector<16x32xf32>
      %65 = arith.index_cast %arg15 : i32 to index
      %c0_39 = arith.constant 0 : index
      %c0_40 = arith.constant 0 : index
      %66 = vector.load %arg7[%65, %c0_39, %c0_40] : memref<3x32x8xf32, #tpu.memory_space<vmem>>, vector<1x32x8xf32>
      %67 = vector.shape_cast %66 : vector<1x32x8xf32> to vector<32x8xf32>
      %cst_41 = arith.constant dense<0.000000e+00> : vector<640x32xf32>
      %68 = tpu.matmul %1, %arg16, %cst_41 {dimension_numbers = #tpu.dot_dimension_numbers<[1], [0], [0], [1], [0, 0, 1, 1], [], []>} : vector<640x128xf32>, vector<128x32xf32>, vector<640x32xf32> -> vector<640x32xf32>
      %69 = vector.extract_strided_slice %68 {offsets = [0, 0], sizes = [128, 32], strides = [1, 1]} : vector<640x32xf32> to vector<128x32xf32>
      %70 = vector.extract_strided_slice %68 {offsets = [128, 0], sizes = [128, 32], strides = [1, 1]} : vector<640x32xf32> to vector<128x32xf32>
      %71 = vector.extract_strided_slice %68 {offsets = [256, 0], sizes = [128, 32], strides = [1, 1]} : vector<640x32xf32> to vector<128x32xf32>
      %72 = vector.extract_strided_slice %68 {offsets = [384, 0], sizes = [128, 32], strides = [1, 1]} : vector<640x32xf32> to vector<128x32xf32>
      %73 = vector.extract_strided_slice %68 {offsets = [512, 0], sizes = [128, 32], strides = [1, 1]} : vector<640x32xf32> to vector<128x32xf32>
      %c8_i32_42 = arith.constant 8 : i32
      %74 = arith.addi %61, %c8_i32_42 : i32
      %75 = arith.index_cast %74 : i32 to index
      %c0_43 = arith.constant 0 : index
      %c0_44 = arith.constant 0 : index
      %76 = vector.load %arg6[%75, %c0_43, %c0_44] : memref<36x32x32xf32, #tpu.memory_space<vmem>>, vector<1x32x32xf32>
      %77 = vector.shape_cast %76 : vector<1x32x32xf32> to vector<32x32xf32>
      %cst_45 = arith.constant dense<0.000000e+00> : vector<128x32xf32>
      %78 = tpu.matmul %arg16, %77, %cst_45 {dimension_numbers = #tpu.dot_dimension_numbers<[1], [0], [0], [1], [0, 0, 1, 1], [], []>} : vector<128x32xf32>, vector<32x32xf32>, vector<128x32xf32> -> vector<128x32xf32>
      %cst_46 = arith.constant dense<0.000000e+00> : vector<128x8xf32>
      %79 = tpu.matmul %78, %67, %cst_46 {dimension_numbers = #tpu.dot_dimension_numbers<[1], [0], [0], [1], [0, 0, 1, 1], [], []>} : vector<128x32xf32>, vector<32x8xf32>, vector<128x8xf32> -> vector<128x8xf32>
      %80 = tpu.transpose %79, [1, 0] : vector<128x8xf32> -> vector<8x128xf32>
      %cst_47 = arith.constant dense<0.000000e+00> : vector<512x128xf32>
      %81 = tpu.matmul %4, %80, %cst_47 {dimension_numbers = #tpu.dot_dimension_numbers<[1], [0], [0], [1], [0, 0, 1, 1], [], []>} : vector<512x8xf32>, vector<8x128xf32>, vector<512x128xf32> -> vector<512x128xf32>
      %82 = vector.extract_strided_slice %79 {offsets = [0, 4], sizes = [128, 1], strides = [1, 1]} : vector<128x8xf32> to vector<128x1xf32>
      %83 = vector.extract_strided_slice %79 {offsets = [0, 5], sizes = [128, 1], strides = [1, 1]} : vector<128x8xf32> to vector<128x1xf32>
      %84 = vector.extract_strided_slice %79 {offsets = [0, 6], sizes = [128, 1], strides = [1, 1]} : vector<128x8xf32> to vector<128x1xf32>
      %85 = vector.extract_strided_slice %79 {offsets = [0, 7], sizes = [128, 1], strides = [1, 1]} : vector<128x8xf32> to vector<128x1xf32>
      %86 = tpu.concatenate %82, %83, %84, %85 in 0 : vector<128x1xf32>, vector<128x1xf32>, vector<128x1xf32>, vector<128x1xf32> -> vector<512x1xf32>
      %87 = vector.broadcast %86 : vector<512x1xf32> to vector<512x128xf32>
      %88 = arith.addf %81, %87 : vector<512x128xf32>
      %cst_48 = arith.constant 0.000000e+00 : f32
      %89 = vector.broadcast %cst_48 : f32 to vector<512x128xf32>
      %90 = arith.cmpf ogt, %88, %89 : vector<512x128xf32>
      %cst_49 = arith.constant 2.000000e-01 : f32
      %91 = vector.broadcast %cst_49 : f32 to vector<512x128xf32>
      %92 = arith.mulf %91, %88 : vector<512x128xf32>
      %93 = arith.select %90, %88, %92 : vector<512x128xi1>, vector<512x128xf32>
      %94 = arith.addf %93, %3 : vector<512x128xf32>
      %cst_50 = arith.constant dense<0xFF800000> : vector<512xf32>
      %95 = vector.multi_reduction <maximumf>, %94, %cst_50 [1] : vector<512x128xf32> to vector<512xf32>
      %96 = vector.shape_cast %95 : vector<512xf32> to vector<512x1xf32>
      %97 = vector.broadcast %96 : vector<512x1xf32> to vector<512x128xf32>
      %98 = arith.subf %94, %97 : vector<512x128xf32>
      %99 = math.exp %98 : vector<512x128xf32>
      %cst_51 = arith.constant dense<0.000000e+00> : vector<512xf32>
      %100 = vector.multi_reduction <add>, %99, %cst_51 [1] : vector<512x128xf32> to vector<512xf32>
      %101 = vector.shape_cast %100 : vector<512xf32> to vector<512x1xf32>
      %102 = vector.broadcast %101 : vector<512x1xf32> to vector<512x128xf32>
      %103 = arith.divf %99, %102 : vector<512x128xf32>
      %cst_52 = arith.constant dense<0.000000e+00> : vector<512x32xf32>
      %104 = tpu.matmul %103, %78, %cst_52 {dimension_numbers = #tpu.dot_dimension_numbers<[1], [0], [0], [1], [0, 0, 1, 1], [], []>} : vector<512x128xf32>, vector<128x32xf32>, vector<512x32xf32> -> vector<512x32xf32>
      %105 = vector.extract_strided_slice %104 {offsets = [0, 0], sizes = [128, 32], strides = [1, 1]} : vector<512x32xf32> to vector<128x32xf32>
      %106 = vector.broadcast %12 : vector<1x32xf32> to vector<128x32xf32>
      %107 = arith.mulf %106, %105 : vector<128x32xf32>
      %108 = vector.extract_strided_slice %104 {offsets = [128, 0], sizes = [128, 32], strides = [1, 1]} : vector<512x32xf32> to vector<128x32xf32>
      %109 = vector.broadcast %19 : vector<1x32xf32> to vector<128x32xf32>
      %110 = arith.mulf %109, %108 : vector<128x32xf32>
      %111 = arith.addf %107, %110 : vector<128x32xf32>
      %112 = vector.extract_strided_slice %104 {offsets = [256, 0], sizes = [128, 32], strides = [1, 1]} : vector<512x32xf32> to vector<128x32xf32>
      %113 = vector.broadcast %26 : vector<1x32xf32> to vector<128x32xf32>
      %114 = arith.mulf %113, %112 : vector<128x32xf32>
      %115 = arith.addf %111, %114 : vector<128x32xf32>
      %116 = vector.extract_strided_slice %104 {offsets = [384, 0], sizes = [128, 32], strides = [1, 1]} : vector<512x32xf32> to vector<128x32xf32>
      %117 = vector.broadcast %33 : vector<1x32xf32> to vector<128x32xf32>
      %118 = arith.mulf %117, %116 : vector<128x32xf32>
      %119 = arith.addf %115, %118 : vector<128x32xf32>
      %c0_i32_53 = arith.constant 0 : i32
      %120 = arith.addi %61, %c0_i32_53 : i32
      %121 = arith.index_cast %120 : i32 to index
      %c0_54 = arith.constant 0 : index
      %c0_55 = arith.constant 0 : index
      %122 = vector.load %arg6[%121, %c0_54, %c0_55] : memref<36x32x32xf32, #tpu.memory_space<vmem>>, vector<1x32x32xf32>
      %123 = vector.shape_cast %122 : vector<1x32x32xf32> to vector<32x32xf32>
      %cst_56 = arith.constant dense<0.000000e+00> : vector<128x32xf32>
      %124 = tpu.matmul %69, %123, %cst_56 {dimension_numbers = #tpu.dot_dimension_numbers<[1], [0], [0], [1], [0, 0, 1, 1], [], []>} : vector<128x32xf32>, vector<32x32xf32>, vector<128x32xf32> -> vector<128x32xf32>
      %c5_i32 = arith.constant 5 : i32
      %125 = arith.addi %61, %c5_i32 : i32
      %126 = arith.index_cast %125 : i32 to index
      %c0_57 = arith.constant 0 : index
      %c0_58 = arith.constant 0 : index
      %127 = vector.load %arg6[%126, %c0_57, %c0_58] : memref<36x32x32xf32, #tpu.memory_space<vmem>>, vector<1x32x32xf32>
      %128 = vector.shape_cast %127 : vector<1x32x32xf32> to vector<32x32xf32>
      %cst_59 = arith.constant dense<0.000000e+00> : vector<128x32xf32>
      %129 = tpu.matmul %arg16, %128, %cst_59 {dimension_numbers = #tpu.dot_dimension_numbers<[1], [0], [0], [1], [0, 0, 1, 1], [], []>} : vector<128x32xf32>, vector<32x32xf32>, vector<128x32xf32> -> vector<128x32xf32>
      %c4_i32 = arith.constant 4 : i32
      %130 = arith.addi %61, %c4_i32 : i32
      %131 = arith.index_cast %130 : i32 to index
      %c0_60 = arith.constant 0 : index
      %c0_61 = arith.constant 0 : index
      %132 = vector.load %arg6[%131, %c0_60, %c0_61] : memref<36x32x32xf32, #tpu.memory_space<vmem>>, vector<1x32x32xf32>
      %133 = vector.shape_cast %132 : vector<1x32x32xf32> to vector<32x32xf32>
      %cst_62 = arith.constant dense<0.000000e+00> : vector<128x32xf32>
      %134 = tpu.matmul %73, %133, %cst_62 {dimension_numbers = #tpu.dot_dimension_numbers<[1], [0], [0], [1], [0, 0, 1, 1], [], []>} : vector<128x32xf32>, vector<32x32xf32>, vector<128x32xf32> -> vector<128x32xf32>
      %135 = arith.addf %129, %134 : vector<128x32xf32>
      %c1_i32_63 = arith.constant 1 : i32
      %136 = arith.addi %61, %c1_i32_63 : i32
      %137 = arith.index_cast %136 : i32 to index
      %c0_64 = arith.constant 0 : index
      %c0_65 = arith.constant 0 : index
      %138 = vector.load %arg6[%137, %c0_64, %c0_65] : memref<36x32x32xf32, #tpu.memory_space<vmem>>, vector<1x32x32xf32>
      %139 = vector.shape_cast %138 : vector<1x32x32xf32> to vector<32x32xf32>
      %cst_66 = arith.constant dense<0.000000e+00> : vector<128x32xf32>
      %140 = tpu.matmul %70, %139, %cst_66 {dimension_numbers = #tpu.dot_dimension_numbers<[1], [0], [0], [1], [0, 0, 1, 1], [], []>} : vector<128x32xf32>, vector<32x32xf32>, vector<128x32xf32> -> vector<128x32xf32>
      %141 = arith.subf %135, %140 : vector<128x32xf32>
      %c2_i32 = arith.constant 2 : i32
      %142 = arith.addi %61, %c2_i32 : i32
      %143 = arith.index_cast %142 : i32 to index
      %c0_67 = arith.constant 0 : index
      %c0_68 = arith.constant 0 : index
      %144 = vector.load %arg6[%143, %c0_67, %c0_68] : memref<36x32x32xf32, #tpu.memory_space<vmem>>, vector<1x32x32xf32>
      %145 = vector.shape_cast %144 : vector<1x32x32xf32> to vector<32x32xf32>
      %cst_69 = arith.constant dense<0.000000e+00> : vector<128x32xf32>
      %146 = tpu.matmul %71, %145, %cst_69 {dimension_numbers = #tpu.dot_dimension_numbers<[1], [0], [0], [1], [0, 0, 1, 1], [], []>} : vector<128x32xf32>, vector<32x32xf32>, vector<128x32xf32> -> vector<128x32xf32>
      %c6_i32 = arith.constant 6 : i32
      %147 = arith.addi %61, %c6_i32 : i32
      %148 = arith.index_cast %147 : i32 to index
      %c0_70 = arith.constant 0 : index
      %c0_71 = arith.constant 0 : index
      %149 = vector.load %arg6[%148, %c0_70, %c0_71] : memref<36x32x32xf32, #tpu.memory_space<vmem>>, vector<1x32x32xf32>
      %150 = vector.shape_cast %149 : vector<1x32x32xf32> to vector<32x32xf32>
      %cst_72 = arith.constant dense<0.000000e+00> : vector<128x32xf32>
      %151 = tpu.matmul %arg16, %150, %cst_72 {dimension_numbers = #tpu.dot_dimension_numbers<[1], [0], [0], [1], [0, 0, 1, 1], [], []>} : vector<128x32xf32>, vector<32x32xf32>, vector<128x32xf32> -> vector<128x32xf32>
      %152 = arith.addf %146, %151 : vector<128x32xf32>
      %c3_i32_73 = arith.constant 3 : i32
      %153 = arith.addi %61, %c3_i32_73 : i32
      %154 = arith.index_cast %153 : i32 to index
      %c0_74 = arith.constant 0 : index
      %c0_75 = arith.constant 0 : index
      %155 = vector.load %arg6[%154, %c0_74, %c0_75] : memref<36x32x32xf32, #tpu.memory_space<vmem>>, vector<1x32x32xf32>
      %156 = vector.shape_cast %155 : vector<1x32x32xf32> to vector<32x32xf32>
      %cst_76 = arith.constant dense<0.000000e+00> : vector<128x32xf32>
      %157 = tpu.matmul %72, %156, %cst_76 {dimension_numbers = #tpu.dot_dimension_numbers<[1], [0], [0], [1], [0, 0, 1, 1], [], []>} : vector<128x32xf32>, vector<32x32xf32>, vector<128x32xf32> -> vector<128x32xf32>
      %c7_i32 = arith.constant 7 : i32
      %158 = arith.addi %61, %c7_i32 : i32
      %159 = arith.index_cast %158 : i32 to index
      %c0_77 = arith.constant 0 : index
      %c0_78 = arith.constant 0 : index
      %160 = vector.load %arg6[%159, %c0_77, %c0_78] : memref<36x32x32xf32, #tpu.memory_space<vmem>>, vector<1x32x32xf32>
      %161 = vector.shape_cast %160 : vector<1x32x32xf32> to vector<32x32xf32>
      %cst_79 = arith.constant dense<0.000000e+00> : vector<128x32xf32>
      %162 = tpu.matmul %arg16, %161, %cst_79 {dimension_numbers = #tpu.dot_dimension_numbers<[1], [0], [0], [1], [0, 0, 1, 1], [], []>} : vector<128x32xf32>, vector<32x32xf32>, vector<128x32xf32> -> vector<128x32xf32>
      %163 = arith.addf %157, %162 : vector<128x32xf32>
      %cst_80 = arith.constant 0.000000e+00 : f32
      %164 = vector.broadcast %cst_80 : f32 to vector<128x32xf32>
      %165 = vector.extract_strided_slice %64 {offsets = [0, 0], sizes = [1, 32], strides = [1, 1]} : vector<16x32xf32> to vector<1x32xf32>
      %166 = vector.broadcast %165 : vector<1x32xf32> to vector<128x32xf32>
      %167 = arith.addf %124, %166 : vector<128x32xf32>
      %cst_81 = arith.constant dense<0.000000e+00> : vector<32xf32>
      %168 = vector.multi_reduction <add>, %167, %cst_81 [0] : vector<128x32xf32> to vector<32xf32>
      %169 = vector.shape_cast %168 : vector<32xf32> to vector<1x32xf32>
      %cst_82 = arith.constant 1.280000e+02 : f32
      %170 = vector.broadcast %cst_82 : f32 to vector<1x32xf32>
      %171 = arith.divf %169, %170 : vector<1x32xf32>
      %172 = vector.broadcast %171 : vector<1x32xf32> to vector<128x32xf32>
      %173 = arith.subf %167, %172 : vector<128x32xf32>
      %174 = arith.mulf %173, %173 : vector<128x32xf32>
      %cst_83 = arith.constant dense<0.000000e+00> : vector<32xf32>
      %175 = vector.multi_reduction <add>, %174, %cst_83 [0] : vector<128x32xf32> to vector<32xf32>
      %176 = vector.shape_cast %175 : vector<32xf32> to vector<1x32xf32>
      %cst_84 = arith.constant 1.280000e+02 : f32
      %177 = vector.broadcast %cst_84 : f32 to vector<1x32xf32>
      %178 = arith.divf %176, %177 : vector<1x32xf32>
      %179 = vector.broadcast %171 : vector<1x32xf32> to vector<128x32xf32>
      %180 = arith.subf %167, %179 : vector<128x32xf32>
      %cst_85 = arith.constant 9.99999974E-6 : f32
      %181 = vector.broadcast %cst_85 : f32 to vector<1x32xf32>
      %182 = arith.addf %178, %181 : vector<1x32xf32>
      %183 = math.rsqrt %182 : vector<1x32xf32>
      %184 = vector.broadcast %183 : vector<1x32xf32> to vector<128x32xf32>
      %185 = arith.mulf %180, %184 : vector<128x32xf32>
      %186 = vector.extract_strided_slice %64 {offsets = [5, 0], sizes = [1, 32], strides = [1, 1]} : vector<16x32xf32> to vector<1x32xf32>
      %187 = vector.broadcast %186 : vector<1x32xf32> to vector<128x32xf32>
      %188 = arith.mulf %185, %187 : vector<128x32xf32>
      %189 = vector.extract_strided_slice %64 {offsets = [10, 0], sizes = [1, 32], strides = [1, 1]} : vector<16x32xf32> to vector<1x32xf32>
      %190 = vector.broadcast %189 : vector<1x32xf32> to vector<128x32xf32>
      %191 = arith.addf %188, %190 : vector<128x32xf32>
      %cst_86 = arith.constant 0.000000e+00 : f32
      %192 = vector.broadcast %cst_86 : f32 to vector<128x32xf32>
      %193 = arith.maximumf %191, %192 : vector<128x32xf32>
      %194 = arith.addf %164, %193 : vector<128x32xf32>
      %195 = vector.extract_strided_slice %64 {offsets = [1, 0], sizes = [1, 32], strides = [1, 1]} : vector<16x32xf32> to vector<1x32xf32>
      %196 = vector.broadcast %195 : vector<1x32xf32> to vector<128x32xf32>
      %197 = arith.addf %119, %196 : vector<128x32xf32>
      %cst_87 = arith.constant dense<0.000000e+00> : vector<32xf32>
      %198 = vector.multi_reduction <add>, %197, %cst_87 [0] : vector<128x32xf32> to vector<32xf32>
      %199 = vector.shape_cast %198 : vector<32xf32> to vector<1x32xf32>
      %cst_88 = arith.constant 1.280000e+02 : f32
      %200 = vector.broadcast %cst_88 : f32 to vector<1x32xf32>
      %201 = arith.divf %199, %200 : vector<1x32xf32>
      %202 = vector.broadcast %201 : vector<1x32xf32> to vector<128x32xf32>
      %203 = arith.subf %197, %202 : vector<128x32xf32>
      %204 = arith.mulf %203, %203 : vector<128x32xf32>
      %cst_89 = arith.constant dense<0.000000e+00> : vector<32xf32>
      %205 = vector.multi_reduction <add>, %204, %cst_89 [0] : vector<128x32xf32> to vector<32xf32>
      %206 = vector.shape_cast %205 : vector<32xf32> to vector<1x32xf32>
      %cst_90 = arith.constant 1.280000e+02 : f32
      %207 = vector.broadcast %cst_90 : f32 to vector<1x32xf32>
      %208 = arith.divf %206, %207 : vector<1x32xf32>
      %209 = vector.broadcast %201 : vector<1x32xf32> to vector<128x32xf32>
      %210 = arith.subf %197, %209 : vector<128x32xf32>
      %cst_91 = arith.constant 9.99999974E-6 : f32
      %211 = vector.broadcast %cst_91 : f32 to vector<1x32xf32>
      %212 = arith.addf %208, %211 : vector<1x32xf32>
      %213 = math.rsqrt %212 : vector<1x32xf32>
      %214 = vector.broadcast %213 : vector<1x32xf32> to vector<128x32xf32>
      %215 = arith.mulf %210, %214 : vector<128x32xf32>
      %216 = vector.extract_strided_slice %64 {offsets = [6, 0], sizes = [1, 32], strides = [1, 1]} : vector<16x32xf32> to vector<1x32xf32>
      %217 = vector.broadcast %216 : vector<1x32xf32> to vector<128x32xf32>
      %218 = arith.mulf %215, %217 : vector<128x32xf32>
      %219 = vector.extract_strided_slice %64 {offsets = [11, 0], sizes = [1, 32], strides = [1, 1]} : vector<16x32xf32> to vector<1x32xf32>
      %220 = vector.broadcast %219 : vector<1x32xf32> to vector<128x32xf32>
      %221 = arith.addf %218, %220 : vector<128x32xf32>
      %cst_92 = arith.constant 0.000000e+00 : f32
      %222 = vector.broadcast %cst_92 : f32 to vector<128x32xf32>
      %223 = arith.maximumf %221, %222 : vector<128x32xf32>
      %224 = arith.addf %194, %223 : vector<128x32xf32>
      %225 = vector.extract_strided_slice %64 {offsets = [2, 0], sizes = [1, 32], strides = [1, 1]} : vector<16x32xf32> to vector<1x32xf32>
      %226 = vector.broadcast %225 : vector<1x32xf32> to vector<128x32xf32>
      %227 = arith.addf %141, %226 : vector<128x32xf32>
      %cst_93 = arith.constant dense<0.000000e+00> : vector<32xf32>
      %228 = vector.multi_reduction <add>, %227, %cst_93 [0] : vector<128x32xf32> to vector<32xf32>
      %229 = vector.shape_cast %228 : vector<32xf32> to vector<1x32xf32>
      %cst_94 = arith.constant 1.280000e+02 : f32
      %230 = vector.broadcast %cst_94 : f32 to vector<1x32xf32>
      %231 = arith.divf %229, %230 : vector<1x32xf32>
      %232 = vector.broadcast %231 : vector<1x32xf32> to vector<128x32xf32>
      %233 = arith.subf %227, %232 : vector<128x32xf32>
      %234 = arith.mulf %233, %233 : vector<128x32xf32>
      %cst_95 = arith.constant dense<0.000000e+00> : vector<32xf32>
      %235 = vector.multi_reduction <add>, %234, %cst_95 [0] : vector<128x32xf32> to vector<32xf32>
      %236 = vector.shape_cast %235 : vector<32xf32> to vector<1x32xf32>
      %cst_96 = arith.constant 1.280000e+02 : f32
      %237 = vector.broadcast %cst_96 : f32 to vector<1x32xf32>
      %238 = arith.divf %236, %237 : vector<1x32xf32>
      %239 = vector.broadcast %231 : vector<1x32xf32> to vector<128x32xf32>
      %240 = arith.subf %227, %239 : vector<128x32xf32>
      %cst_97 = arith.constant 9.99999974E-6 : f32
      %241 = vector.broadcast %cst_97 : f32 to vector<1x32xf32>
      %242 = arith.addf %238, %241 : vector<1x32xf32>
      %243 = math.rsqrt %242 : vector<1x32xf32>
      %244 = vector.broadcast %243 : vector<1x32xf32> to vector<128x32xf32>
      %245 = arith.mulf %240, %244 : vector<128x32xf32>
      %246 = vector.extract_strided_slice %64 {offsets = [7, 0], sizes = [1, 32], strides = [1, 1]} : vector<16x32xf32> to vector<1x32xf32>
      %247 = vector.broadcast %246 : vector<1x32xf32> to vector<128x32xf32>
      %248 = arith.mulf %245, %247 : vector<128x32xf32>
      %249 = vector.extract_strided_slice %64 {offsets = [12, 0], sizes = [1, 32], strides = [1, 1]} : vector<16x32xf32> to vector<1x32xf32>
      %250 = vector.broadcast %249 : vector<1x32xf32> to vector<128x32xf32>
      %251 = arith.addf %248, %250 : vector<128x32xf32>
      %cst_98 = arith.constant 0.000000e+00 : f32
      %252 = vector.broadcast %cst_98 : f32 to vector<128x32xf32>
      %253 = arith.maximumf %251, %252 : vector<128x32xf32>
      %254 = arith.addf %224, %253 : vector<128x32xf32>
      %255 = vector.extract_strided_slice %64 {offsets = [3, 0], sizes = [1, 32], strides = [1, 1]} : vector<16x32xf32> to vector<1x32xf32>
      %256 = vector.broadcast %255 : vector<1x32xf32> to vector<128x32xf32>
      %257 = arith.addf %152, %256 : vector<128x32xf32>
      %cst_99 = arith.constant dense<0.000000e+00> : vector<32xf32>
      %258 = vector.multi_reduction <add>, %257, %cst_99 [0] : vector<128x32xf32> to vector<32xf32>
      %259 = vector.shape_cast %258 : vector<32xf32> to vector<1x32xf32>
      %cst_100 = arith.constant 1.280000e+02 : f32
      %260 = vector.broadcast %cst_100 : f32 to vector<1x32xf32>
      %261 = arith.divf %259, %260 : vector<1x32xf32>
      %262 = vector.broadcast %261 : vector<1x32xf32> to vector<128x32xf32>
      %263 = arith.subf %257, %262 : vector<128x32xf32>
      %264 = arith.mulf %263, %263 : vector<128x32xf32>
      %cst_101 = arith.constant dense<0.000000e+00> : vector<32xf32>
      %265 = vector.multi_reduction <add>, %264, %cst_101 [0] : vector<128x32xf32> to vector<32xf32>
      %266 = vector.shape_cast %265 : vector<32xf32> to vector<1x32xf32>
      %cst_102 = arith.constant 1.280000e+02 : f32
      %267 = vector.broadcast %cst_102 : f32 to vector<1x32xf32>
      %268 = arith.divf %266, %267 : vector<1x32xf32>
      %269 = vector.broadcast %261 : vector<1x32xf32> to vector<128x32xf32>
      %270 = arith.subf %257, %269 : vector<128x32xf32>
      %cst_103 = arith.constant 9.99999974E-6 : f32
      %271 = vector.broadcast %cst_103 : f32 to vector<1x32xf32>
      %272 = arith.addf %268, %271 : vector<1x32xf32>
      %273 = math.rsqrt %272 : vector<1x32xf32>
      %274 = vector.broadcast %273 : vector<1x32xf32> to vector<128x32xf32>
      %275 = arith.mulf %270, %274 : vector<128x32xf32>
      %276 = vector.extract_strided_slice %64 {offsets = [8, 0], sizes = [1, 32], strides = [1, 1]} : vector<16x32xf32> to vector<1x32xf32>
      %277 = vector.broadcast %276 : vector<1x32xf32> to vector<128x32xf32>
      %278 = arith.mulf %275, %277 : vector<128x32xf32>
      %279 = vector.extract_strided_slice %64 {offsets = [13, 0], sizes = [1, 32], strides = [1, 1]} : vector<16x32xf32> to vector<1x32xf32>
      %280 = vector.broadcast %279 : vector<1x32xf32> to vector<128x32xf32>
      %281 = arith.addf %278, %280 : vector<128x32xf32>
      %cst_104 = arith.constant 0.000000e+00 : f32
      %282 = vector.broadcast %cst_104 : f32 to vector<128x32xf32>
      %283 = arith.maximumf %281, %282 : vector<128x32xf32>
      %284 = arith.addf %254, %283 : vector<128x32xf32>
      %285 = vector.extract_strided_slice %64 {offsets = [4, 0], sizes = [1, 32], strides = [1, 1]} : vector<16x32xf32> to vector<1x32xf32>
      %286 = vector.broadcast %285 : vector<1x32xf32> to vector<128x32xf32>
      %287 = arith.addf %163, %286 : vector<128x32xf32>
      %cst_105 = arith.constant dense<0.000000e+00> : vector<32xf32>
      %288 = vector.multi_reduction <add>, %287, %cst_105 [0] : vector<128x32xf32> to vector<32xf32>
      %289 = vector.shape_cast %288 : vector<32xf32> to vector<1x32xf32>
      %cst_106 = arith.constant 1.280000e+02 : f32
      %290 = vector.broadcast %cst_106 : f32 to vector<1x32xf32>
      %291 = arith.divf %289, %290 : vector<1x32xf32>
      %292 = vector.broadcast %291 : vector<1x32xf32> to vector<128x32xf32>
      %293 = arith.subf %287, %292 : vector<128x32xf32>
      %294 = arith.mulf %293, %293 : vector<128x32xf32>
      %cst_107 = arith.constant dense<0.000000e+00> : vector<32xf32>
      %295 = vector.multi_reduction <add>, %294, %cst_107 [0] : vector<128x32xf32> to vector<32xf32>
      %296 = vector.shape_cast %295 : vector<32xf32> to vector<1x32xf32>
      %cst_108 = arith.constant 1.280000e+02 : f32
      %297 = vector.broadcast %cst_108 : f32 to vector<1x32xf32>
      %298 = arith.divf %296, %297 : vector<1x32xf32>
      %299 = vector.broadcast %291 : vector<1x32xf32> to vector<128x32xf32>
      %300 = arith.subf %287, %299 : vector<128x32xf32>
      %cst_109 = arith.constant 9.99999974E-6 : f32
      %301 = vector.broadcast %cst_109 : f32 to vector<1x32xf32>
      %302 = arith.addf %298, %301 : vector<1x32xf32>
      %303 = math.rsqrt %302 : vector<1x32xf32>
      %304 = vector.broadcast %303 : vector<1x32xf32> to vector<128x32xf32>
      %305 = arith.mulf %300, %304 : vector<128x32xf32>
      %306 = vector.extract_strided_slice %64 {offsets = [9, 0], sizes = [1, 32], strides = [1, 1]} : vector<16x32xf32> to vector<1x32xf32>
      %307 = vector.broadcast %306 : vector<1x32xf32> to vector<128x32xf32>
      %308 = arith.mulf %305, %307 : vector<128x32xf32>
      %309 = vector.extract_strided_slice %64 {offsets = [14, 0], sizes = [1, 32], strides = [1, 1]} : vector<16x32xf32> to vector<1x32xf32>
      %310 = vector.broadcast %309 : vector<1x32xf32> to vector<128x32xf32>
      %311 = arith.addf %308, %310 : vector<128x32xf32>
      %cst_110 = arith.constant 0.000000e+00 : f32
      %312 = vector.broadcast %cst_110 : f32 to vector<128x32xf32>
      %313 = arith.maximumf %311, %312 : vector<128x32xf32>
      %314 = arith.addf %284, %313 : vector<128x32xf32>
      %c9_i32 = arith.constant 9 : i32
      %315 = arith.addi %61, %c9_i32 : i32
      %316 = arith.index_cast %315 : i32 to index
      %c0_111 = arith.constant 0 : index
      %c0_112 = arith.constant 0 : index
      %317 = vector.load %arg6[%316, %c0_111, %c0_112] : memref<36x32x32xf32, #tpu.memory_space<vmem>>, vector<1x32x32xf32>
      %318 = vector.shape_cast %317 : vector<1x32x32xf32> to vector<32x32xf32>
      %cst_113 = arith.constant dense<0.000000e+00> : vector<128x32xf32>
      %319 = tpu.matmul %arg16, %318, %cst_113 {dimension_numbers = #tpu.dot_dimension_numbers<[1], [0], [0], [1], [0, 0, 1, 1], [], []>} : vector<128x32xf32>, vector<32x32xf32>, vector<128x32xf32> -> vector<128x32xf32>
      %c10_i32 = arith.constant 10 : i32
      %320 = arith.addi %61, %c10_i32 : i32
      %321 = arith.index_cast %320 : i32 to index
      %c0_114 = arith.constant 0 : index
      %c0_115 = arith.constant 0 : index
      %322 = vector.load %arg6[%321, %c0_114, %c0_115] : memref<36x32x32xf32, #tpu.memory_space<vmem>>, vector<1x32x32xf32>
      %323 = vector.shape_cast %322 : vector<1x32x32xf32> to vector<32x32xf32>
      %cst_116 = arith.constant dense<0.000000e+00> : vector<128x32xf32>
      %324 = tpu.matmul %314, %323, %cst_116 {dimension_numbers = #tpu.dot_dimension_numbers<[1], [0], [0], [1], [0, 0, 1, 1], [], []>} : vector<128x32xf32>, vector<32x32xf32>, vector<128x32xf32> -> vector<128x32xf32>
      %c11_i32 = arith.constant 11 : i32
      %325 = arith.addi %61, %c11_i32 : i32
      %326 = arith.index_cast %325 : i32 to index
      %c0_117 = arith.constant 0 : index
      %c0_118 = arith.constant 0 : index
      %327 = vector.load %arg6[%326, %c0_117, %c0_118] : memref<36x32x32xf32, #tpu.memory_space<vmem>>, vector<1x32x32xf32>
      %328 = vector.shape_cast %327 : vector<1x32x32xf32> to vector<32x32xf32>
      %cst_119 = arith.constant dense<0.000000e+00> : vector<128x32xf32>
      %329 = tpu.matmul %319, %328, %cst_119 {dimension_numbers = #tpu.dot_dimension_numbers<[1], [0], [0], [1], [0, 0, 1, 1], [], []>} : vector<128x32xf32>, vector<32x32xf32>, vector<128x32xf32> -> vector<128x32xf32>
      %330 = arith.addf %324, %329 : vector<128x32xf32>
      %331 = vector.extract_strided_slice %64 {offsets = [15, 0], sizes = [1, 32], strides = [1, 1]} : vector<16x32xf32> to vector<1x32xf32>
      %332 = vector.broadcast %331 : vector<1x32xf32> to vector<128x32xf32>
      %333 = arith.addf %330, %332 : vector<128x32xf32>
      %334 = arith.negf %333 : vector<128x32xf32>
      %335 = math.exp %334 : vector<128x32xf32>
      %cst_120 = arith.constant 1.000000e+00 : f32
      %336 = vector.broadcast %cst_120 : f32 to vector<128x32xf32>
      %337 = arith.addf %336, %335 : vector<128x32xf32>
      %338 = arith.divf %336, %337 : vector<128x32xf32>
      %339 = arith.mulf %338, %314 : vector<128x32xf32>
      %cst_121 = arith.constant 1.000000e+00 : f32
      %340 = vector.broadcast %cst_121 : f32 to vector<128x32xf32>
      %341 = arith.subf %340, %338 : vector<128x32xf32>
      %342 = arith.mulf %341, %319 : vector<128x32xf32>
      %343 = arith.addf %339, %342 : vector<128x32xf32>
      scf.yield %343 : vector<128x32xf32>
    }
    %c3_i32_14 = arith.constant 3 : i32
    %c0_15 = arith.constant 0 : index
    %c0_16 = arith.constant 0 : index
    %c0_17 = arith.constant 0 : index
    %38 = vector.load %arg4[%c0_15, %c0_16, %c0_17] : memref<1x16x128xf32, #tpu.memory_space<vmem>>, vector<1x16x128xf32>
    %39 = vector.shape_cast %38 : vector<1x16x128xf32> to vector<16x128xf32>
    %cst = arith.constant dense<0.000000e+00> : vector<16x32xf32>
    %40 = tpu.matmul %39, %37, %cst {dimension_numbers = #tpu.dot_dimension_numbers<[1], [0], [0], [1], [0, 0, 1, 1], [], []>} : vector<16x128xf32>, vector<128x32xf32>, vector<16x32xf32> -> vector<16x32xf32>
    %c0_18 = arith.constant 0 : index
    %c0_19 = arith.constant 0 : index
    %41 = vector.load %arg10[%c0_18, %c0_19] : memref<52x32xf32, #tpu.memory_space<vmem>>, vector<32x32xf32>
    %cst_20 = arith.constant dense<0.000000e+00> : vector<16x32xf32>
    %42 = tpu.matmul %40, %41, %cst_20 {dimension_numbers = #tpu.dot_dimension_numbers<[1], [0], [0], [1], [0, 0, 1, 1], [], []>} : vector<16x32xf32>, vector<32x32xf32>, vector<16x32xf32> -> vector<16x32xf32>
    %c0_21 = arith.constant 0 : index
    %c0_22 = arith.constant 0 : index
    %c0_23 = arith.constant 0 : index
    %43 = vector.load %arg5[%c0_21, %c0_22, %c0_23] : memref<1x16x20xf32, #tpu.memory_space<vmem>>, vector<1x16x20xf32>
    %44 = vector.shape_cast %43 : vector<1x16x20xf32> to vector<16x20xf32>
    %c32 = arith.constant 32 : index
    %c0_24 = arith.constant 0 : index
    %45 = vector.load %arg10[%c32, %c0_24] : memref<52x32xf32, #tpu.memory_space<vmem>>, vector<20x32xf32>
    %cst_25 = arith.constant dense<0.000000e+00> : vector<16x32xf32>
    %46 = tpu.matmul %44, %45, %cst_25 {dimension_numbers = #tpu.dot_dimension_numbers<[1], [0], [0], [1], [0, 0, 1, 1], [], []>} : vector<16x20xf32>, vector<20x32xf32>, vector<16x32xf32> -> vector<16x32xf32>
    %47 = arith.addf %42, %46 : vector<16x32xf32>
    %c0_26 = arith.constant 0 : index
    %c0_27 = arith.constant 0 : index
    %48 = vector.load %arg11[%c0_26, %c0_27] : memref<1x32xf32, #tpu.memory_space<vmem>>, vector<1x32xf32>
    %49 = vector.broadcast %48 : vector<1x32xf32> to vector<16x32xf32>
    %50 = arith.addf %47, %49 : vector<16x32xf32>
    %cst_28 = arith.constant 0.000000e+00 : f32
    %51 = vector.broadcast %cst_28 : f32 to vector<16x32xf32>
    %52 = arith.maximumf %50, %51 : vector<16x32xf32>
    %c0_29 = arith.constant 0 : index
    %c0_30 = arith.constant 0 : index
    %53 = vector.load %arg12[%c0_29, %c0_30] : memref<32x4xf32, #tpu.memory_space<vmem>>, vector<32x4xf32>
    %cst_31 = arith.constant dense<0.000000e+00> : vector<16x4xf32>
    %54 = tpu.matmul %52, %53, %cst_31 {dimension_numbers = #tpu.dot_dimension_numbers<[1], [0], [0], [1], [0, 0, 1, 1], [], []>} : vector<16x32xf32>, vector<32x4xf32>, vector<16x4xf32> -> vector<16x4xf32>
    %c0_32 = arith.constant 0 : index
    %c0_33 = arith.constant 0 : index
    %55 = vector.load %arg13[%c0_32, %c0_33] : memref<1x4xf32, #tpu.memory_space<vmem>>, vector<1x4xf32>
    %56 = vector.broadcast %55 : vector<1x4xf32> to vector<16x4xf32>
    %57 = arith.addf %54, %56 : vector<16x4xf32>
    %c0_34 = arith.constant 0 : index
    %c0_35 = arith.constant 0 : index
    %c0_36 = arith.constant 0 : index
    %58 = vector.load %arg14[%c0_34, %c0_35, %c0_36] : memref<1x16x4xf32, #tpu.memory_space<vmem>>, vector<1x16x4xf32>
    %59 = vector.shape_cast %58 : vector<1x16x4xf32> to vector<16x4xf32>
    %60 = vector.shape_cast %57 : vector<16x4xf32> to vector<1x16x4xf32>
    tpu.vector_store %arg14[%c0_34, %c0_35, %c0_36], %60 {strides = array<i32>} : memref<1x16x4xf32, #tpu.memory_space<vmem>>, vector<1x16x4xf32>,
    return
  }
  func.func @transform_0(%arg0: i32) -> (i32, i32, i32) {
    %c0_i32 = arith.constant 0 : i32
    %c0_i32_0 = arith.constant 0 : i32
    %c0_i32_1 = arith.constant 0 : i32
    return %arg0, %c0_i32, %c0_i32_0 : i32, i32, i32
  }
  func.func @transform_1(%arg0: i32) -> (i32, i32, i32) {
    %c0_i32 = arith.constant 0 : i32
    %c0_i32_0 = arith.constant 0 : i32
    %c0_i32_1 = arith.constant 0 : i32
    return %arg0, %c0_i32, %c0_i32_0 : i32, i32, i32
  }
  func.func @transform_2(%arg0: i32) -> (i32, i32, i32) {
    %c0_i32 = arith.constant 0 : i32
    %c0_i32_0 = arith.constant 0 : i32
    %c0_i32_1 = arith.constant 0 : i32
    return %arg0, %c0_i32, %c0_i32_0 : i32, i32, i32
  }
  func.func @transform_3(%arg0: i32) -> (i32, i32, i32) {
    %c0_i32 = arith.constant 0 : i32
    %c0_i32_0 = arith.constant 0 : i32
    %c0_i32_1 = arith.constant 0 : i32
    return %arg0, %c0_i32, %c0_i32_0 : i32, i32, i32
  }
  func.func @transform_4(%arg0: i32) -> (i32, i32, i32) {
    %c0_i32 = arith.constant 0 : i32
    %c0_i32_0 = arith.constant 0 : i32
    %c0_i32_1 = arith.constant 0 : i32
    return %arg0, %c0_i32, %c0_i32_0 : i32, i32, i32
  }
  func.func @transform_5(%arg0: i32) -> (i32, i32, i32) {
    %c0_i32 = arith.constant 0 : i32
    %c0_i32_0 = arith.constant 0 : i32
    %c0_i32_1 = arith.constant 0 : i32
    %c0_i32_2 = arith.constant 0 : i32
    return %c0_i32, %c0_i32_0, %c0_i32_1 : i32, i32, i32
  }
  func.func @transform_6(%arg0: i32) -> (i32, i32, i32) {
    %c0_i32 = arith.constant 0 : i32
    %c0_i32_0 = arith.constant 0 : i32
    %c0_i32_1 = arith.constant 0 : i32
    %c0_i32_2 = arith.constant 0 : i32
    return %c0_i32, %c0_i32_0, %c0_i32_1 : i32, i32, i32
  }
  func.func @transform_7(%arg0: i32) -> (i32, i32, i32) {
    %c0_i32 = arith.constant 0 : i32
    %c0_i32_0 = arith.constant 0 : i32
    %c0_i32_1 = arith.constant 0 : i32
    %c0_i32_2 = arith.constant 0 : i32
    return %c0_i32, %c0_i32_0, %c0_i32_1 : i32, i32, i32
  }
  func.func @transform_8(%arg0: i32) -> (i32, i32) {
    %c0_i32 = arith.constant 0 : i32
    %c0_i32_0 = arith.constant 0 : i32
    %c0_i32_1 = arith.constant 0 : i32
    return %c0_i32, %c0_i32_0 : i32, i32
  }
  func.func @transform_9(%arg0: i32) -> (i32, i32) {
    %c0_i32 = arith.constant 0 : i32
    %c0_i32_0 = arith.constant 0 : i32
    %c0_i32_1 = arith.constant 0 : i32
    return %c0_i32, %c0_i32_0 : i32, i32
  }
  func.func @transform_10(%arg0: i32) -> (i32, i32) {
    %c0_i32 = arith.constant 0 : i32
    %c0_i32_0 = arith.constant 0 : i32
    %c0_i32_1 = arith.constant 0 : i32
    return %c0_i32, %c0_i32_0 : i32, i32
  }
  func.func @transform_11(%arg0: i32) -> (i32, i32) {
    %c0_i32 = arith.constant 0 : i32
    %c0_i32_0 = arith.constant 0 : i32
    %c0_i32_1 = arith.constant 0 : i32
    return %c0_i32, %c0_i32_0 : i32, i32
  }
  func.func @transform_12(%arg0: i32) -> (i32, i32) {
    %c0_i32 = arith.constant 0 : i32
    %c0_i32_0 = arith.constant 0 : i32
    %c0_i32_1 = arith.constant 0 : i32
    return %c0_i32, %c0_i32_0 : i32, i32
  }
  func.func @transform_13(%arg0: i32) -> (i32, i32, i32) {
    %c0_i32 = arith.constant 0 : i32
    %c0_i32_0 = arith.constant 0 : i32
    %c0_i32_1 = arith.constant 0 : i32
    return %arg0, %c0_i32, %c0_i32_0 : i32, i32, i32
  }
}

</mosaic_0001>

<llo_original>
// kernel: inceptlike_gcn_forward.1
$region0: #{inceptlike_gcn_forward.1}
  #allocation0 [shape = 'u32[]', space=smem, size = 0x4, offset = 0x4, fixed_abs, tag = 'smem constant byte address 0x4 - core index']
  #allocation1 [shape = 'u32[72,128]{1,0:T(1,128)}', space=vmem, size = 0x9000, scoped, tag = 'internal scratch']
  %s0 = inlined_call_operand.vmem [shape: f32[2,128,32], index: 0, kind: input, shape index: {}]
  %s1 = inlined_call_operand.vmem [shape: f32[2,640,128], index: 1, kind: input, shape index: {}]
  %s2 = inlined_call_operand.hbm [shape: f32[2,512,128], index: 2, kind: input, shape index: {}]
  %s3 = inlined_call_operand.vmem [shape: f32[2,16,128], index: 3, kind: input, shape index: {}]
  %s4 = inlined_call_operand.vmem [shape: f32[2,16,20], index: 4, kind: input, shape index: {}]
  %s5 = inlined_call_operand.vmem [shape: f32[36,32,32], index: 5, kind: input, shape index: {}]
  %s6 = inlined_call_operand.vmem [shape: f32[3,32,8], index: 6, kind: input, shape index: {}]
  %s7 = inlined_call_operand.vmem [shape: f32[3,16,32], index: 7, kind: input, shape index: {}]
  %s8 = inlined_call_operand.vmem [shape: f32[512,8], index: 8, kind: input, shape index: {}]
  %s9 = inlined_call_operand.vmem [shape: f32[52,32], index: 9, kind: input, shape index: {}]
  %s10 = inlined_call_operand.vmem [shape: f32[1,32], index: 10, kind: input, shape index: {}]
  %s11 = inlined_call_operand.vmem [shape: f32[32,4], index: 11, kind: input, shape index: {}]
  %s12 = inlined_call_operand.vmem [shape: f32[1,4], index: 12, kind: input, shape index: {}]
  %s13 = inlined_call_operand.vmem [shape: f32[2,16,4], index: 13, kind: output, shape index: {}]
  %s14 = sld [smem:[#allocation0]]
  $region96: #{inceptlike_gcn_forward.1} parent=0
    _
  %s16 = ssub.s32 1, %s14
  %s17 = scalar_select 0, %s16, %s14
  $region1: #{inceptlike_gcn_forward.1} parent=0
    #allocation2 [shape = 'u8[524288]{0}', space=vmem, size = 0x80000, scoped, tag = 'input window, operand 2']
    #allocation3 [shape = 's32[2]{0}', space=sflag, size = 0x8, scoped, tag = 'scoped memory for inceptlike_gcn_forward.1']
    %18 = vsyncpa [#allocation3], 0
    %s19 = scalar_lea.sflag [#allocation3], 1
    %20 = vsyncpa %s19, 0
    loop: start=0, step=1, limit=4
    $region2: #{inceptlike_gcn_forward.1} parent=1 // loop_pre_header
      _
    $region3: #{inceptlike_gcn_forward.1} parent=1 // loop_header
      %s22 = sphi 0, %s26
      %p23 = scmp.ge.s32.totalorder %s22, 4
      %s32 = sphi 0, %s34
      %s35 = sphi 0, %s32
      %s36 = sphi 0, %s35
      %s52 = sphi 0, %s36
      %s58 = sphi 0, %s60
      %s61 = sphi 0, %s58
      %s62 = sphi 0, %s61
      %s78 = sphi 0, %s62
      %s84 = sphi 0, %s86
      %s87 = sphi 0, %s84
      %s88 = sphi 0, %s87
      %s104 = sphi 0, %s88
      %s110 = sphi 0, %s112
      %s113 = sphi 0, %s110
      %s114 = sphi 0, %s113
      %s130 = sphi 0, %s114
      %s136 = sphi 0, %s138
      %s139 = sphi 0, %s136
      %s140 = sphi 0, %s139
      %s156 = sphi 0, %s140
      %s160 = sphi 0, %s160
      %s162 = sphi 0, %s160
      %s163 = sphi 0, %s162
      %s177 = sphi 0, %s163
      %s181 = sphi 0, %s181
      %s183 = sphi 0, %s181
      %s184 = sphi 0, %s183
      %s198 = sphi 0, %s184
      %s202 = sphi 0, %s202
      %s204 = sphi 0, %s202
      %s205 = sphi 0, %s204
      %s219 = sphi 0, %s205
      %s223 = sphi 0, %s223
      %s225 = sphi 0, %s223
      %s226 = sphi 0, %s225
      %s240 = sphi 0, %s226
      %s244 = sphi 0, %s244
      %s246 = sphi 0, %s244
      %s247 = sphi 0, %s246
      %s261 = sphi 0, %s247
      %s265 = sphi 0, %s265
      %s267 = sphi 0, %s265
      %s268 = sphi 0, %s267
      %s282 = sphi 0, %s268
      %s286 = sphi 0, %s286
      %s288 = sphi 0, %s286
      %s289 = sphi 0, %s288
      %s303 = sphi 0, %s289
      %s307 = sphi 0, %s307
      %s309 = sphi 0, %s307
      %s310 = sphi 0, %s309
      %s324 = sphi 0, %s310
      %s330 = sphi 0, %s332
      %s333 = sphi 0, %s330
      %s334 = sphi 0, %s333
      %s350 = sphi 0, %s334
    $region4: #{inceptlike_gcn_forward.1} parent=1 // loop_header_branch
      %25 = sbr.rel (%p23) target = $region8
    $region5: #{inceptlike_gcn_forward.1} parent=1 // loop_body
      %s27 = ssub.s32 %s22, 1
      %s28 = ssub.s32 %s22, 2
      %s29 = sadd.s32 %s22, 1
      %s30 = ssub.s32 %s22, %s29
      %p31 = scmp.eq.s32.totalorder %s30, 0
      %s33 = sadd.s32 %s32, 1
      %s34 = scalar_select %p31, %s32, %s33
      %p37 = pneg %p31
      %p38 = scmp.eq.s32.totalorder %s22, 1
      %p39 = por %p37, %p38
      %p40 = scmp.ne.s32.totalorder %s32, %s35
      %p41 = scmp.eq.s32.totalorder %s22, 0
      %p42 = por %p40, %p41
      %p43 = scmp.ne.s32.totalorder %s32, %s35
      %p44 = scmp.eq.s32.totalorder %s27, 1
      %p45 = por %p43, %p44
      %p46 = scmp.ne.s32.totalorder %s35, %s36
      %p47 = scmp.eq.s32.totalorder %s27, 0
      %p48 = por %p46, %p47
      %p49 = scmp.ne.s32.totalorder %s35, %s36
      %p50 = scmp.eq.s32.totalorder %s28, 1
      %p51 = por %p49, %p50
      %p53 = scmp.ne.s32.totalorder %s36, %s52
      %p54 = scmp.eq.s32.totalorder %s28, 0
      %p55 = por %p53, %p54
      %s56 = ssub.s32 %s22, %s29
      %p57 = scmp.eq.s32.totalorder %s56, 0
      %s59 = sadd.s32 %s58, 1
      %s60 = scalar_select %p57, %s58, %s59
      %p63 = pneg %p57
      %p64 = scmp.eq.s32.totalorder %s22, 1
      %p65 = por %p63, %p64
      %p66 = scmp.ne.s32.totalorder %s58, %s61
      %p67 = scmp.eq.s32.totalorder %s22, 0
      %p68 = por %p66, %p67
      %p69 = scmp.ne.s32.totalorder %s58, %s61
      %p70 = scmp.eq.s32.totalorder %s27, 1
      %p71 = por %p69, %p70
      %p72 = scmp.ne.s32.totalorder %s61, %s62
      %p73 = scmp.eq.s32.totalorder %s27, 0
      %p74 = por %p72, %p73
      %p75 = scmp.ne.s32.totalorder %s61, %s62
      %p76 = scmp.eq.s32.totalorder %s28, 1
      %p77 = por %p75, %p76
      %p79 = scmp.ne.s32.totalorder %s62, %s78
      %p80 = scmp.eq.s32.totalorder %s28, 0
      %p81 = por %p79, %p80
      %s82 = ssub.s32 %s22, %s29
      %p83 = scmp.eq.s32.totalorder %s82, 0
      %s85 = sadd.s32 %s84, 1
      %s86 = scalar_select %p83, %s84, %s85
      %p89 = pneg %p83
      %p90 = scmp.eq.s32.totalorder %s22, 1
      %p91 = por %p89, %p90
      %p92 = scmp.ne.s32.totalorder %s84, %s87
      %p93 = scmp.eq.s32.totalorder %s22, 0
      %p94 = por %p92, %p93
      %p95 = scmp.ne.s32.totalorder %s84, %s87
      %p96 = scmp.eq.s32.totalorder %s27, 1
      %p97 = por %p95, %p96
      %p98 = scmp.ne.s32.totalorder %s87, %s88
      %p99 = scmp.eq.s32.totalorder %s27, 0
      %p100 = por %p98, %p99
      %p101 = scmp.ne.s32.totalorder %s87, %s88
      %p102 = scmp.eq.s32.totalorder %s28, 1
      %p103 = por %p101, %p102
      %p105 = scmp.ne.s32.totalorder %s88, %s104
      %p106 = scmp.eq.s32.totalorder %s28, 0
      %p107 = por %p105, %p106
      %s108 = ssub.s32 %s22, %s29
      %p109 = scmp.eq.s32.totalorder %s108, 0
      %s111 = sadd.s32 %s110, 1
      %s112 = scalar_select %p109, %s110, %s111
      %p115 = pneg %p109
      %p116 = scmp.eq.s32.totalorder %s22, 1
      %p117 = por %p115, %p116
      %p118 = scmp.ne.s32.totalorder %s110, %s113
      %p119 = scmp.eq.s32.totalorder %s22, 0
      %p120 = por %p118, %p119
      %p121 = scmp.ne.s32.totalorder %s110, %s113
      %p122 = scmp.eq.s32.totalorder %s27, 1
      %p123 = por %p121, %p122
      %p124 = scmp.ne.s32.totalorder %s113, %s114
      %p125 = scmp.eq.s32.totalorder %s27, 0
      %p126 = por %p124, %p125
      %p127 = scmp.ne.s32.totalorder %s113, %s114
      %p128 = scmp.eq.s32.totalorder %s28, 1
      %p129 = por %p127, %p128
      %p131 = scmp.ne.s32.totalorder %s114, %s130
      %p132 = scmp.eq.s32.totalorder %s28, 0
      %p133 = por %p131, %p132
      %s134 = ssub.s32 %s22, %s29
      %p135 = scmp.eq.s32.totalorder %s134, 0
      %s137 = sadd.s32 %s136, 1
      %s138 = scalar_select %p135, %s136, %s137
      %p141 = pneg %p135
      %p142 = scmp.eq.s32.totalorder %s22, 1
      %p143 = por %p141, %p142
      %p144 = scmp.ne.s32.totalorder %s136, %s139
      %p145 = scmp.eq.s32.totalorder %s22, 0
      %p146 = por %p144, %p145
      %p147 = scmp.ne.s32.totalorder %s136, %s139
      %p148 = scmp.eq.s32.totalorder %s27, 1
      %p149 = por %p147, %p148
      %p150 = scmp.ne.s32.totalorder %s139, %s140
      %p151 = scmp.eq.s32.totalorder %s27, 0
      %p152 = por %p150, %p151
      %p153 = scmp.ne.s32.totalorder %s139, %s140
      %p154 = scmp.eq.s32.totalorder %s28, 1
      %p155 = por %p153, %p154
      %p157 = scmp.ne.s32.totalorder %s140, %s156
      %p158 = scmp.eq.s32.totalorder %s28, 0
      %p159 = por %p157, %p158
      %s161 = sadd.s32 %s160, 1
      %p164 = scmp.eq.s32.totalorder %s22, 1
      %p165 = scmp.ne.s32.totalorder %s160, %s162
      %p166 = scmp.eq.s32.totalorder %s22, 0
      %p167 = por %p165, %p166
      %p168 = scmp.ne.s32.totalorder %s160, %s162
      %p169 = scmp.eq.s32.totalorder %s27, 1
      %p170 = por %p168, %p169
      %p171 = scmp.ne.s32.totalorder %s162, %s163
      %p172 = scmp.eq.s32.totalorder %s27, 0
      %p173 = por %p171, %p172
      %p174 = scmp.ne.s32.totalorder %s162, %s163
      %p175 = scmp.eq.s32.totalorder %s28, 1
      %p176 = por %p174, %p175
      %p178 = scmp.ne.s32.totalorder %s163, %s177
      %p179 = scmp.eq.s32.totalorder %s28, 0
      %p180 = por %p178, %p179
      %s182 = sadd.s32 %s181, 1
      %p185 = scmp.eq.s32.totalorder %s22, 1
      %p186 = scmp.ne.s32.totalorder %s181, %s183
      %p187 = scmp.eq.s32.totalorder %s22, 0
      %p188 = por %p186, %p187
      %p189 = scmp.ne.s32.totalorder %s181, %s183
      %p190 = scmp.eq.s32.totalorder %s27, 1
      %p191 = por %p189, %p190
      %p192 = scmp.ne.s32.totalorder %s183, %s184
      %p193 = scmp.eq.s32.totalorder %s27, 0
      %p194 = por %p192, %p193
      %p195 = scmp.ne.s32.totalorder %s183, %s184
      %p196 = scmp.eq.s32.totalorder %s28, 1
      %p197 = por %p195, %p196
      %p199 = scmp.ne.s32.totalorder %s184, %s198
      %p200 = scmp.eq.s32.totalorder %s28, 0
      %p201 = por %p199, %p200
      %s203 = sadd.s32 %s202, 1
      %p206 = scmp.eq.s32.totalorder %s22, 1
      %p207 = scmp.ne.s32.totalorder %s202, %s204
      %p208 = scmp.eq.s32.totalorder %s22, 0
      %p209 = por %p207, %p208
      %p210 = scmp.ne.s32.totalorder %s202, %s204
      %p211 = scmp.eq.s32.totalorder %s27, 1
      %p212 = por %p210, %p211
      %p213 = scmp.ne.s32.totalorder %s204, %s205
      %p214 = scmp.eq.s32.totalorder %s27, 0
      %p215 = por %p213, %p214
      %p216 = scmp.ne.s32.totalorder %s204, %s205
      %p217 = scmp.eq.s32.totalorder %s28, 1
      %p218 = por %p216, %p217
      %p220 = scmp.ne.s32.totalorder %s205, %s219
      %p221 = scmp.eq.s32.totalorder %s28, 0
      %p222 = por %p220, %p221
      %s224 = sadd.s32 %s223, 1
      %p227 = scmp.eq.s32.totalorder %s22, 1
      %p228 = scmp.ne.s32.totalorder %s223, %s225
      %p229 = scmp.eq.s32.totalorder %s22, 0
      %p230 = por %p228, %p229
      %p231 = scmp.ne.s32.totalorder %s223, %s225
      %p232 = scmp.eq.s32.totalorder %s27, 1
      %p233 = por %p231, %p232
      %p234 = scmp.ne.s32.totalorder %s225, %s226
      %p235 = scmp.eq.s32.totalorder %s27, 0
      %p236 = por %p234, %p235
      %p237 = scmp.ne.s32.totalorder %s225, %s226
      %p238 = scmp.eq.s32.totalorder %s28, 1
      %p239 = por %p237, %p238
      %p241 = scmp.ne.s32.totalorder %s226, %s240
      %p242 = scmp.eq.s32.totalorder %s28, 0
      %p243 = por %p241, %p242
      %s245 = sadd.s32 %s244, 1
      %p248 = scmp.eq.s32.totalorder %s22, 1
      %p249 = scmp.ne.s32.totalorder %s244, %s246
      %p250 = scmp.eq.s32.totalorder %s22, 0
      %p251 = por %p249, %p250
      %p252 = scmp.ne.s32.totalorder %s244, %s246
      %p253 = scmp.eq.s32.totalorder %s27, 1
      %p254 = por %p252, %p253
      %p255 = scmp.ne.s32.totalorder %s246, %s247
      %p256 = scmp.eq.s32.totalorder %s27, 0
      %p257 = por %p255, %p256
      %p258 = scmp.ne.s32.totalorder %s246, %s247
      %p259 = scmp.eq.s32.totalorder %s28, 1
      %p260 = por %p258, %p259
      %p262 = scmp.ne.s32.totalorder %s247, %s261
      %p263 = scmp.eq.s32.totalorder %s28, 0
      %p264 = por %p262, %p263
      %s266 = sadd.s32 %s265, 1
      %p269 = scmp.eq.s32.totalorder %s22, 1
      %p270 = scmp.ne.s32.totalorder %s265, %s267
      %p271 = scmp.eq.s32.totalorder %s22, 0
      %p272 = por %p270, %p271
      %p273 = scmp.ne.s32.totalorder %s265, %s267
      %p274 = scmp.eq.s32.totalorder %s27, 1
      %p275 = por %p273, %p274
      %p276 = scmp.ne.s32.totalorder %s267, %s268
      %p277 = scmp.eq.s32.totalorder %s27, 0
      %p278 = por %p276, %p277
      %p279 = scmp.ne.s32.totalorder %s267, %s268
      %p280 = scmp.eq.s32.totalorder %s28, 1
      %p281 = por %p279, %p280
      %p283 = scmp.ne.s32.totalorder %s268, %s282
      %p284 = scmp.eq.s32.totalorder %s28, 0
      %p285 = por %p283, %p284
      %s287 = sadd.s32 %s286, 1
      %p290 = scmp.eq.s32.totalorder %s22, 1
      %p291 = scmp.ne.s32.totalorder %s286, %s288
      %p292 = scmp.eq.s32.totalorder %s22, 0
      %p293 = por %p291, %p292
      %p294 = scmp.ne.s32.totalorder %s286, %s288
      %p295 = scmp.eq.s32.totalorder %s27, 1
      %p296 = por %p294, %p295
      %p297 = scmp.ne.s32.totalorder %s288, %s289
      %p298 = scmp.eq.s32.totalorder %s27, 0
      %p299 = por %p297, %p298
      %p300 = scmp.ne.s32.totalorder %s288, %s289
      %p301 = scmp.eq.s32.totalorder %s28, 1
      %p302 = por %p300, %p301
      %p304 = scmp.ne.s32.totalorder %s289, %s303
      %p305 = scmp.eq.s32.totalorder %s28, 0
      %p306 = por %p304, %p305
      %s308 = sadd.s32 %s307, 1
      %p311 = scmp.eq.s32.totalorder %s22, 1
      %p312 = scmp.ne.s32.totalorder %s307, %s309
      %p313 = scmp.eq.s32.totalorder %s22, 0
      %p314 = por %p312, %p313
      %p315 = scmp.ne.s32.totalorder %s307, %s309
      %p316 = scmp.eq.s32.totalorder %s27, 1
      %p317 = por %p315, %p316
      %p318 = scmp.ne.s32.totalorder %s309, %s310
      %p319 = scmp.eq.s32.totalorder %s27, 0
      %p320 = por %p318, %p319
      %p321 = scmp.ne.s32.totalorder %s309, %s310
      %p322 = scmp.eq.s32.totalorder %s28, 1
      %p323 = por %p321, %p322
      %p325 = scmp.ne.s32.totalorder %s310, %s324
      %p326 = scmp.eq.s32.totalorder %s28, 0
      %p327 = por %p325, %p326
      %s328 = ssub.s32 %s22, %s29
      %p329 = scmp.eq.s32.totalorder %s328, 0
      %s331 = sadd.s32 %s330, 1
      %s332 = scalar_select %p329, %s330, %s331
      %p335 = pneg %p329
      %p336 = scmp.eq.s32.totalorder %s22, 1
      %p337 = por %p335, %p336
      %p338 = scmp.ne.s32.totalorder %s330, %s333
      %p339 = scmp.eq.s32.totalorder %s22, 0
      %p340 = por %p338, %p339
      %p341 = scmp.ne.s32.totalorder %s330, %s333
      %p342 = scmp.eq.s32.totalorder %s27, 1
      %p343 = por %p341, %p342
      %p344 = scmp.ne.s32.totalorder %s333, %s334
      %p345 = scmp.eq.s32.totalorder %s27, 0
      %p346 = por %p344, %p345
      %p347 = scmp.ne.s32.totalorder %s333, %s334
      %p348 = scmp.eq.s32.totalorder %s28, 1
      %p349 = por %p347, %p348
      %p351 = scmp.ne.s32.totalorder %s334, %s350
      %p352 = scmp.eq.s32.totalorder %s28, 0
      %p353 = por %p351, %p352
      %p354 = scmp.le.s32.totalorder 1, %s22
      %p355 = scmp.lt.s32.totalorder %s22, 3
      %p356 = pnand %p354, %p355
      %p357 = pneg %p356
      // Predicated region
      $region9: #{inceptlike_gcn_forward.1} parent=5 // pred_check
        _
      $region10: #{inceptlike_gcn_forward.1} parent=5 // pred_check_branch
        %359 = sbr.rel (%p356) target = $region12
      $region11: #{inceptlike_gcn_forward.1} parent=5 // pred_region
        %s360 = ssub.s32 %s22, 1
        // Predicated region
        $region13: #{inceptlike_gcn_forward.1} parent=11 // pred_check
          %p361 = pneg %p173
        $region14: #{inceptlike_gcn_forward.1} parent=11 // pred_check_branch
          %363 = sbr.rel (%p361) target = $region16
        $region15: #{inceptlike_gcn_forward.1} parent=11 // pred_region
          _
        $region16: #{inceptlike_gcn_forward.1} parent=11 // pred_fallthru
          _
        // Predicated region
        $region17: #{inceptlike_gcn_forward.1} parent=11 // pred_check
          %p364 = pneg %p194
        $region18: #{inceptlike_gcn_forward.1} parent=11 // pred_check_branch
          %366 = sbr.rel (%p364) target = $region20
        $region19: #{inceptlike_gcn_forward.1} parent=11 // pred_region
          _
        $region20: #{inceptlike_gcn_forward.1} parent=11 // pred_fallthru
          _
        // Predicated region
        $region21: #{inceptlike_gcn_forward.1} parent=11 // pred_check
          %p367 = pneg %p215
        $region22: #{inceptlike_gcn_forward.1} parent=11 // pred_check_branch
          %369 = sbr.rel (%p367) target = $region24
        $region23: #{inceptlike_gcn_forward.1} parent=11 // pred_region
          _
        $region24: #{inceptlike_gcn_forward.1} parent=11 // pred_fallthru
          _
        // Predicated region
        $region25: #{inceptlike_gcn_forward.1} parent=11 // pred_check
          %p370 = pneg %p236
        $region26: #{inceptlike_gcn_forward.1} parent=11 // pred_check_branch
          %372 = sbr.rel (%p370) target = $region28
        $region27: #{inceptlike_gcn_forward.1} parent=11 // pred_region
          _
        $region28: #{inceptlike_gcn_forward.1} parent=11 // pred_fallthru
          _
        // Predicated region
        $region29: #{inceptlike_gcn_forward.1} parent=11 // pred_check
          %p373 = pneg %p257
        $region30: #{inceptlike_gcn_forward.1} parent=11 // pred_check_branch
          %375 = sbr.rel (%p373) target = $region32
        $region31: #{inceptlike_gcn_forward.1} parent=11 // pred_region
          _
        $region32: #{inceptlike_gcn_forward.1} parent=11 // pred_fallthru
          _
        // Predicated region
        $region33: #{inceptlike_gcn_forward.1} parent=11 // pred_check
          %p376 = pneg %p278
        $region34: #{inceptlike_gcn_forward.1} parent=11 // pred_check_branch
          %378 = sbr.rel (%p376) target = $region36
        $region35: #{inceptlike_gcn_forward.1} parent=11 // pred_region
          _
        $region36: #{inceptlike_gcn_forward.1} parent=11 // pred_fallthru
          _
        // Predicated region
        $region37: #{inceptlike_gcn_forward.1} parent=11 // pred_check
          %p379 = pneg %p299
        $region38: #{inceptlike_gcn_forward.1} parent=11 // pred_check_branch
          %381 = sbr.rel (%p379) target = $region40
        $region39: #{inceptlike_gcn_forward.1} parent=11 // pred_region
          _
        $region40: #{inceptlike_gcn_forward.1} parent=11 // pred_fallthru
          _
        // Predicated region
        $region41: #{inceptlike_gcn_forward.1} parent=11 // pred_check
          %p382 = pneg %p320
        $region42: #{inceptlike_gcn_forward.1} parent=11 // pred_check_branch
          %384 = sbr.rel (%p382) target = $region44
        $region43: #{inceptlike_gcn_forward.1} parent=11 // pred_region
          _
        $region44: #{inceptlike_gcn_forward.1} parent=11 // pred_fallthru
          _
      $region12: #{inceptlike_gcn_forward.1} parent=5 // pred_fallthru
        _
      %p385 = scmp.lt.s32.totalorder %s22, 2
      // Predicated region
      $region45: #{inceptlike_gcn_forward.1} parent=5 // pred_check
        %p386 = pneg %p385
      $region46: #{inceptlike_gcn_forward.1} parent=5 // pred_check_branch
        %388 = sbr.rel (%p386) target = $region48
      $region47: #{inceptlike_gcn_forward.1} parent=5 // pred_region
        // Predicated region
        $region49: #{inceptlike_gcn_forward.1} parent=47 // pred_check
          %p389 = pneg %p42
        $region50: #{inceptlike_gcn_forward.1} parent=47 // pred_check_branch
          %391 = sbr.rel (%p389) target = $region52
        $region51: #{inceptlike_gcn_forward.1} parent=47 // pred_region
          %p392 = scmp.lt.s32.totalorder %s22, 1
          %s393 = scalar_select %p392, %s22, 1
          %s394 = smul.addr %s393, 16
          %s395 = smul.addr %s394, 8
          %s396 = scalar_lea.vmem %s0, %s395
        $region52: #{inceptlike_gcn_forward.1} parent=47 // pred_fallthru
          _
        // Predicated region
        $region53: #{inceptlike_gcn_forward.1} parent=47 // pred_check
          %p397 = pneg %p68
        $region54: #{inceptlike_gcn_forward.1} parent=47 // pred_check_branch
          %399 = sbr.rel (%p397) target = $region56
        $region55: #{inceptlike_gcn_forward.1} parent=47 // pred_region
          %p400 = scmp.lt.s32.totalorder %s22, 1
          %s401 = scalar_select %p400, %s22, 1
          %s402 = smul.addr %s401, 80
          %s403 = smul.addr %s402, 8
          %s404 = scalar_lea.vmem %s1, %s403
        $region56: #{inceptlike_gcn_forward.1} parent=47 // pred_fallthru
          _
        // Predicated region
        $region57: #{inceptlike_gcn_forward.1} parent=47 // pred_check
          %p405 = pneg %p94
        $region58: #{inceptlike_gcn_forward.1} parent=47 // pred_check_branch
          %407 = sbr.rel (%p405) target = $region60
        $region59: #{inceptlike_gcn_forward.1} parent=47 // pred_region
          %s408 = sand.u32 %s84, 1
          %s409 = scalar_lea.sflag [#allocation3], %s408
          %s410 = sand.u32 %s84, 1
          %s411 = smul.addr %s410, 512
          %s412 = scalar_lea.vmem [#allocation2], %s411
          %414 = vsyncadd %s409, 0
          %s415 = smul.addr %s22, 64
          %s416 = smul.addr %s415, 8
          %s417 = scalar_lea.hbm %s2, %s416
          %s418 = sshll.u32 %s417, 4
          %s419 = int_to_ptr.hbm [resolvable:$true] %s418
          %s420 = sshll.u32 %s412, 4
          %s421 = int_to_ptr.vmem [resolvable:$true] %s420
          %426 = dma.hbm_to_vmem [thread:$0]  %s419, 8192, %s421, %s409, 128, 128, 8
        $region60: #{inceptlike_gcn_forward.1} parent=47 // pred_fallthru
          _
        // Predicated region
        $region61: #{inceptlike_gcn_forward.1} parent=47 // pred_check
          %p427 = pneg %p120
        $region62: #{inceptlike_gcn_forward.1} parent=47 // pred_check_branch
          %429 = sbr.rel (%p427) target = $region64
        $region63: #{inceptlike_gcn_forward.1} parent=47 // pred_region
          %p430 = scmp.lt.s32.totalorder %s22, 1
          %s431 = scalar_select %p430, %s22, 1
          %s432 = smul.addr %s431, 2
          %s433 = smul.addr %s432, 8
          %s434 = scalar_lea.vmem %s3, %s433
        $region64: #{inceptlike_gcn_forward.1} parent=47 // pred_fallthru
          _
        // Predicated region
        $region65: #{inceptlike_gcn_forward.1} parent=47 // pred_check
          %p435 = pneg %p146
        $region66: #{inceptlike_gcn_forward.1} parent=47 // pred_check_branch
          %437 = sbr.rel (%p435) target = $region68
        $region67: #{inceptlike_gcn_forward.1} parent=47 // pred_region
          %p438 = scmp.lt.s32.totalorder %s22, 1
          %s439 = scalar_select %p438, %s22, 1
          %s440 = smul.addr %s439, 2
          %s441 = smul.addr %s440, 8
          %s442 = scalar_lea.vmem %s4, %s441
        $region68: #{inceptlike_gcn_forward.1} parent=47 // pred_fallthru
          _
      $region48: #{inceptlike_gcn_forward.1} parent=5 // pred_fallthru
        _
      %p443 = scmp.le.s32.totalorder 1, %s22
      %p444 = scmp.lt.s32.totalorder %s22, 3
      %p445 = pnand %p443, %p444
      %p446 = pneg %p445
      // Predicated region
      $region69: #{inceptlike_gcn_forward.1} parent=5 // pred_check
        _
      $region70: #{inceptlike_gcn_forward.1} parent=5 // pred_check_branch
        %448 = sbr.rel (%p445) target = $region72
      $region71: #{inceptlike_gcn_forward.1} parent=5 // pred_region
        %s449 = ssub.s32 %s22, 1
        %s450 = sand.u32 %s87, 1
        %s451 = scalar_lea.sflag [#allocation3], %s450
        %s452 = sand.u32 %s87, 1
        %s453 = smul.addr %s452, 512
        %s454 = scalar_lea.vmem [#allocation2], %s453
        // Predicated region
        $region73: #{inceptlike_gcn_forward.1} parent=71 // pred_check
          %p455 = pneg %p100
        $region74: #{inceptlike_gcn_forward.1} parent=71 // pred_check_branch
          %457 = sbr.rel (%p455) target = $region76
        $region75: #{inceptlike_gcn_forward.1} parent=71 // pred_region
          %459 = dma.done %s451, 8192
        $region76: #{inceptlike_gcn_forward.1} parent=71 // pred_fallthru
          _
        %p460 = scmp.lt.s32.totalorder %s27, 1
        %s461 = scalar_select %p460, %s27, 1
        %s462 = smul.addr %s461, 16
        %s463 = smul.addr %s462, 8
        %s464 = scalar_lea.vmem %s0, %s463
        %p465 = pneg %p48
        %p466 = pneg %p45
        %p467 = scmp.lt.s32.totalorder %s27, 1
        %s468 = scalar_select %p467, %s27, 1
        %s469 = smul.addr %s468, 80
        %s470 = smul.addr %s469, 8
        %s471 = scalar_lea.vmem %s1, %s470
        %p472 = pneg %p74
        %p473 = pneg %p71
        %s474 = sand.u32 %s87, 1
        %s475 = scalar_lea.sflag [#allocation3], %s474
        %s476 = sand.u32 %s87, 1
        %s477 = smul.addr %s476, 512
        %s478 = scalar_lea.vmem [#allocation2], %s477
        %p479 = pneg %p100
        %p480 = pneg %p97
        %p481 = scmp.lt.s32.totalorder %s27, 1
        %s482 = scalar_select %p481, %s27, 1
        %s483 = smul.addr %s482, 2
        %s484 = smul.addr %s483, 8
        %s485 = scalar_lea.vmem %s3, %s484
        %p486 = pneg %p126
        %p487 = pneg %p123
        %p488 = scmp.lt.s32.totalorder %s27, 1
        %s489 = scalar_select %p488, %s27, 1
        %s490 = smul.addr %s489, 2
        %s491 = smul.addr %s490, 8
        %s492 = scalar_lea.vmem %s4, %s491
        %p493 = pneg %p152
        %p494 = pneg %p149
        %p495 = pneg %p173
        %p496 = pneg %p170
        %p497 = pneg %p194
        %p498 = pneg %p191
        %p499 = pneg %p215
        %p500 = pneg %p212
        %p501 = pneg %p236
        %p502 = pneg %p233
        %p503 = pneg %p257
        %p504 = pneg %p254
        %p505 = pneg %p278
        %p506 = pneg %p275
        %p507 = pneg %p299
        %p508 = pneg %p296
        %p509 = pneg %p320
        %p510 = pneg %p317
        %p511 = pneg %p346
        %p512 = pneg %p343
        %p513 = scmp.lt.s32.totalorder %s27, 1
        %s514 = scalar_select %p513, %s27, 1
        %s515 = smul.addr %s514, 2
        %s516 = smul.addr %s515, 8
        %s517 = scalar_lea.vmem %s13, %s516
        %p518 = scmp.lt.s32.totalorder %s27, 1
        %s519 = scalar_select %p518, %s27, 1
        %s520 = smul.addr %s519, 16
        %s521 = smul.addr %s520, 8
        %s522 = scalar_lea.vmem %s0, %s521
        %p523 = scmp.lt.s32.totalorder %s27, 1
        %s524 = scalar_select %p523, %s27, 1
        %s525 = smul.addr %s524, 80
        %s526 = smul.addr %s525, 8
        %s527 = scalar_lea.vmem %s1, %s526
        %p528 = scmp.lt.s32.totalorder %s27, 1
        %s529 = scalar_select %p528, %s27, 1
        %s530 = smul.addr %s529, 2
        %s531 = smul.addr %s530, 8
        %s532 = scalar_lea.vmem %s3, %s531
        %p533 = scmp.lt.s32.totalorder %s27, 1
        %s534 = scalar_select %p533, %s27, 1
        %s535 = smul.addr %s534, 2
        %s536 = smul.addr %s535, 8
        %s537 = scalar_lea.vmem %s4, %s536
        %p538 = scmp.lt.s32.totalorder %s27, 1
        %s539 = scalar_select %p538, %s27, 1
        %s540 = smul.addr %s539, 2
        %s541 = smul.addr %s540, 8
        %s542 = scalar_lea.vmem %s13, %s541
        %v543 = vld [vmem:[%s527] sm:$0xff]
        %v544 = vld [vmem:[%s527 + $0x8] sm:$0xff]
        %v545 = vld [vmem:[%s527 + $0x10] sm:$0xff]
        %v546 = vld [vmem:[%s527 + $0x18] sm:$0xff]
        %v547 = vld [vmem:[%s527 + $0x20] sm:$0xff]
        %v548 = vld [vmem:[%s527 + $0x28] sm:$0xff]
        %v549 = vld [vmem:[%s527 + $0x30] sm:$0xff]
        %v550 = vld [vmem:[%s527 + $0x38] sm:$0xff]
        %v551 = vld [vmem:[%s527 + $0x40] sm:$0xff]
        %v552 = vld [vmem:[%s527 + $0x48] sm:$0xff]
        %v553 = vld [vmem:[%s527 + $0x50] sm:$0xff]
        %v554 = vld [vmem:[%s527 + $0x58] sm:$0xff]
        %v555 = vld [vmem:[%s527 + $0x60] sm:$0xff]
        %v556 = vld [vmem:[%s527 + $0x68] sm:$0xff]
        %v557 = vld [vmem:[%s527 + $0x70] sm:$0xff]
        %v558 = vld [vmem:[%s527 + $0x78] sm:$0xff]
        %v559 = vld [vmem:[%s527 + $0x80] sm:$0xff]
        %v560 = vld [vmem:[%s527 + $0x88] sm:$0xff]
        %v561 = vld [vmem:[%s527 + $0x90] sm:$0xff]
        %v562 = vld [vmem:[%s527 + $0x98] sm:$0xff]
        %v563 = vld [vmem:[%s527 + $0xa0] sm:$0xff]
        %v564 = vld [vmem:[%s527 + $0xa8] sm:$0xff]
        %v565 = vld [vmem:[%s527 + $0xb0] sm:$0xff]
        %v566 = vld [vmem:[%s527 + $0xb8] sm:$0xff]
        %v567 = vld [vmem:[%s527 + $0xc0] sm:$0xff]
        %v568 = vld [vmem:[%s527 + $0xc8] sm:$0xff]
        %v569 = vld [vmem:[%s527 + $0xd0] sm:$0xff]
        %v570 = vld [vmem:[%s527 + $0xd8] sm:$0xff]
        %v571 = vld [vmem:[%s527 + $0xe0] sm:$0xff]
        %v572 = vld [vmem:[%s527 + $0xe8] sm:$0xff]
        %v573 = vld [vmem:[%s527 + $0xf0] sm:$0xff]
        %v574 = vld [vmem:[%s527 + $0xf8] sm:$0xff]
        %v575 = vld [vmem:[%s527 + $0x100] sm:$0xff]
        %v576 = vld [vmem:[%s527 + $0x108] sm:$0xff]
        %v577 = vld [vmem:[%s527 + $0x110] sm:$0xff]
        %v578 = vld [vmem:[%s527 + $0x118] sm:$0xff]
        %v579 = vld [vmem:[%s527 + $0x120] sm:$0xff]
        %v580 = vld [vmem:[%s527 + $0x128] sm:$0xff]
        %v581 = vld [vmem:[%s527 + $0x130] sm:$0xff]
        %v582 = vld [vmem:[%s527 + $0x138] sm:$0xff]
        %v583 = vld [vmem:[%s527 + $0x140] sm:$0xff]
        %v584 = vld [vmem:[%s527 + $0x148] sm:$0xff]
        %v585 = vld [vmem:[%s527 + $0x150] sm:$0xff]
        %v586 = vld [vmem:[%s527 + $0x158] sm:$0xff]
        %v587 = vld [vmem:[%s527 + $0x160] sm:$0xff]
        %v588 = vld [vmem:[%s527 + $0x168] sm:$0xff]
        %v589 = vld [vmem:[%s527 + $0x170] sm:$0xff]
        %v590 = vld [vmem:[%s527 + $0x178] sm:$0xff]
        %v591 = vld [vmem:[%s527 + $0x180] sm:$0xff]
        %v592 = vld [vmem:[%s527 + $0x188] sm:$0xff]
        %v593 = vld [vmem:[%s527 + $0x190] sm:$0xff]
        %v594 = vld [vmem:[%s527 + $0x198] sm:$0xff]
        %v595 = vld [vmem:[%s527 + $0x1a0] sm:$0xff]
        %v596 = vld [vmem:[%s527 + $0x1a8] sm:$0xff]
        %v597 = vld [vmem:[%s527 + $0x1b0] sm:$0xff]
        %v598 = vld [vmem:[%s527 + $0x1b8] sm:$0xff]
        %v599 = vld [vmem:[%s527 + $0x1c0] sm:$0xff]
        %v600 = vld [vmem:[%s527 + $0x1c8] sm:$0xff]
        %v601 = vld [vmem:[%s527 + $0x1d0] sm:$0xff]
        %v602 = vld [vmem:[%s527 + $0x1d8] sm:$0xff]
        %v603 = vld [vmem:[%s527 + $0x1e0] sm:$0xff]
        %v604 = vld [vmem:[%s527 + $0x1e8] sm:$0xff]
        %v605 = vld [vmem:[%s527 + $0x1f0] sm:$0xff]
        %v606 = vld [vmem:[%s527 + $0x1f8] sm:$0xff]
        %v607 = vld [vmem:[%s527 + $0x200] sm:$0xff]
        %v608 = vld [vmem:[%s527 + $0x208] sm:$0xff]
        %v609 = vld [vmem:[%s527 + $0x210] sm:$0xff]
        %v610 = vld [vmem:[%s527 + $0x218] sm:$0xff]
        %v611 = vld [vmem:[%s527 + $0x220] sm:$0xff]
        %v612 = vld [vmem:[%s527 + $0x228] sm:$0xff]
        %v613 = vld [vmem:[%s527 + $0x230] sm:$0xff]
        %v614 = vld [vmem:[%s527 + $0x238] sm:$0xff]
        %v615 = vld [vmem:[%s527 + $0x240] sm:$0xff]
        %v616 = vld [vmem:[%s527 + $0x248] sm:$0xff]
        %v617 = vld [vmem:[%s527 + $0x250] sm:$0xff]
        %v618 = vld [vmem:[%s527 + $0x258] sm:$0xff]
        %v619 = vld [vmem:[%s527 + $0x260] sm:$0xff]
        %v620 = vld [vmem:[%s527 + $0x268] sm:$0xff]
        %v621 = vld [vmem:[%s527 + $0x270] sm:$0xff]
        %v622 = vld [vmem:[%s527 + $0x278] sm:$0xff]
        %v623 = vld [vmem:[%s454] sm:$0xff]
        %v624 = vld [vmem:[%s454 + $0x8] sm:$0xff]
        %v625 = vld [vmem:[%s454 + $0x10] sm:$0xff]
        %v626 = vld [vmem:[%s454 + $0x18] sm:$0xff]
        %v627 = vld [vmem:[%s454 + $0x20] sm:$0xff]
        %v628 = vld [vmem:[%s454 + $0x28] sm:$0xff]
        %v629 = vld [vmem:[%s454 + $0x30] sm:$0xff]
        %v630 = vld [vmem:[%s454 + $0x38] sm:$0xff]
        %v631 = vld [vmem:[%s454 + $0x40] sm:$0xff]
        %v632 = vld [vmem:[%s454 + $0x48] sm:$0xff]
        %v633 = vld [vmem:[%s454 + $0x50] sm:$0xff]
        %v634 = vld [vmem:[%s454 + $0x58] sm:$0xff]
        %v635 = vld [vmem:[%s454 + $0x60] sm:$0xff]
        %v636 = vld [vmem:[%s454 + $0x68] sm:$0xff]
        %v637 = vld [vmem:[%s454 + $0x70] sm:$0xff]
        %v638 = vld [vmem:[%s454 + $0x78] sm:$0xff]
        %v639 = vld [vmem:[%s454 + $0x80] sm:$0xff]
        %v640 = vld [vmem:[%s454 + $0x88] sm:$0xff]
        %v641 = vld [vmem:[%s454 + $0x90] sm:$0xff]
        %v642 = vld [vmem:[%s454 + $0x98] sm:$0xff]
        %v643 = vld [vmem:[%s454 + $0xa0] sm:$0xff]
        %v644 = vld [vmem:[%s454 + $0xa8] sm:$0xff]
        %v645 = vld [vmem:[%s454 + $0xb0] sm:$0xff]
        %v646 = vld [vmem:[%s454 + $0xb8] sm:$0xff]
        %v647 = vld [vmem:[%s454 + $0xc0] sm:$0xff]
        %v648 = vld [vmem:[%s454 + $0xc8] sm:$0xff]
        %v649 = vld [vmem:[%s454 + $0xd0] sm:$0xff]
        %v650 = vld [vmem:[%s454 + $0xd8] sm:$0xff]
        %v651 = vld [vmem:[%s454 + $0xe0] sm:$0xff]
        %v652 = vld [vmem:[%s454 + $0xe8] sm:$0xff]
        %v653 = vld [vmem:[%s454 + $0xf0] sm:$0xff]
        %v654 = vld [vmem:[%s454 + $0xf8] sm:$0xff]
        %v655 = vld [vmem:[%s454 + $0x100] sm:$0xff]
        %v656 = vld [vmem:[%s454 + $0x108] sm:$0xff]
        %v657 = vld [vmem:[%s454 + $0x110] sm:$0xff]
        %v658 = vld [vmem:[%s454 + $0x118] sm:$0xff]
        %v659 = vld [vmem:[%s454 + $0x120] sm:$0xff]
        %v660 = vld [vmem:[%s454 + $0x128] sm:$0xff]
        %v661 = vld [vmem:[%s454 + $0x130] sm:$0xff]
        %v662 = vld [vmem:[%s454 + $0x138] sm:$0xff]
        %v663 = vld [vmem:[%s454 + $0x140] sm:$0xff]
        %v664 = vld [vmem:[%s454 + $0x148] sm:$0xff]
        %v665 = vld [vmem:[%s454 + $0x150] sm:$0xff]
        %v666 = vld [vmem:[%s454 + $0x158] sm:$0xff]
        %v667 = vld [vmem:[%s454 + $0x160] sm:$0xff]
        %v668 = vld [vmem:[%s454 + $0x168] sm:$0xff]
        %v669 = vld [vmem:[%s454 + $0x170] sm:$0xff]
        %v670 = vld [vmem:[%s454 + $0x178] sm:$0xff]
        %v671 = vld [vmem:[%s454 + $0x180] sm:$0xff]
        %v672 = vld [vmem:[%s454 + $0x188] sm:$0xff]
        %v673 = vld [vmem:[%s454 + $0x190] sm:$0xff]
        %v674 = vld [vmem:[%s454 + $0x198] sm:$0xff]
        %v675 = vld [vmem:[%s454 + $0x1a0] sm:$0xff]
        %v676 = vld [vmem:[%s454 + $0x1a8] sm:$0xff]
        %v677 = vld [vmem:[%s454 + $0x1b0] sm:$0xff]
        %v678 = vld [vmem:[%s454 + $0x1b8] sm:$0xff]
        %v679 = vld [vmem:[%s454 + $0x1c0] sm:$0xff]
        %v680 = vld [vmem:[%s454 + $0x1c8] sm:$0xff]
        %v681 = vld [vmem:[%s454 + $0x1d0] sm:$0xff]
        %v682 = vld [vmem:[%s454 + $0x1d8] sm:$0xff]
        %v683 = vld [vmem:[%s454 + $0x1e0] sm:$0xff]
        %v684 = vld [vmem:[%s454 + $0x1e8] sm:$0xff]
        %v685 = vld [vmem:[%s454 + $0x1f0] sm:$0xff]
        %v686 = vld [vmem:[%s454 + $0x1f8] sm:$0xff]
        %v687 = vld [vmem:[%s8] sm:$0xff]
        %v688 = vld [vmem:[%s8 + $0x8] sm:$0xff]
        %v689 = vld [vmem:[%s8 + $0x10] sm:$0xff]
        %v690 = vld [vmem:[%s8 + $0x18] sm:$0xff]
        %v691 = vld [vmem:[%s8 + $0x20] sm:$0xff]
        %v692 = vld [vmem:[%s8 + $0x28] sm:$0xff]
        %v693 = vld [vmem:[%s8 + $0x30] sm:$0xff]
        %v694 = vld [vmem:[%s8 + $0x38] sm:$0xff]
        %v695 = vld [vmem:[%s8 + $0x40] sm:$0xff]
        %v696 = vld [vmem:[%s8 + $0x48] sm:$0xff]
        %v697 = vld [vmem:[%s8 + $0x50] sm:$0xff]
        %v698 = vld [vmem:[%s8 + $0x58] sm:$0xff]
        %v699 = vld [vmem:[%s8 + $0x60] sm:$0xff]
        %v700 = vld [vmem:[%s8 + $0x68] sm:$0xff]
        %v701 = vld [vmem:[%s8 + $0x70] sm:$0xff]
        %v702 = vld [vmem:[%s8 + $0x78] sm:$0xff]
        %v703 = vld [vmem:[%s8 + $0x80] sm:$0xff]
        %v704 = vld [vmem:[%s8 + $0x88] sm:$0xff]
        %v705 = vld [vmem:[%s8 + $0x90] sm:$0xff]
        %v706 = vld [vmem:[%s8 + $0x98] sm:$0xff]
        %v707 = vld [vmem:[%s8 + $0xa0] sm:$0xff]
        %v708 = vld [vmem:[%s8 + $0xa8] sm:$0xff]
        %v709 = vld [vmem:[%s8 + $0xb0] sm:$0xff]
        %v710 = vld [vmem:[%s8 + $0xb8] sm:$0xff]
        %v711 = vld [vmem:[%s8 + $0xc0] sm:$0xff]
        %v712 = vld [vmem:[%s8 + $0xc8] sm:$0xff]
        %v713 = vld [vmem:[%s8 + $0xd0] sm:$0xff]
        %v714 = vld [vmem:[%s8 + $0xd8] sm:$0xff]
        %v715 = vld [vmem:[%s8 + $0xe0] sm:$0xff]
        %v716 = vld [vmem:[%s8 + $0xe8] sm:$0xff]
        %v717 = vld [vmem:[%s8 + $0xf0] sm:$0xff]
        %v718 = vld [vmem:[%s8 + $0xf8] sm:$0xff]
        %v719 = vld [vmem:[%s8 + $0x100] sm:$0xff]
        %v720 = vld [vmem:[%s8 + $0x108] sm:$0xff]
        %v721 = vld [vmem:[%s8 + $0x110] sm:$0xff]
        %v722 = vld [vmem:[%s8 + $0x118] sm:$0xff]
        %v723 = vld [vmem:[%s8 + $0x120] sm:$0xff]
        %v724 = vld [vmem:[%s8 + $0x128] sm:$0xff]
        %v725 = vld [vmem:[%s8 + $0x130] sm:$0xff]
        %v726 = vld [vmem:[%s8 + $0x138] sm:$0xff]
        %v727 = vld [vmem:[%s8 + $0x140] sm:$0xff]
        %v728 = vld [vmem:[%s8 + $0x148] sm:$0xff]
        %v729 = vld [vmem:[%s8 + $0x150] sm:$0xff]
        %v730 = vld [vmem:[%s8 + $0x158] sm:$0xff]
        %v731 = vld [vmem:[%s8 + $0x160] sm:$0xff]
        %v732 = vld [vmem:[%s8 + $0x168] sm:$0xff]
        %v733 = vld [vmem:[%s8 + $0x170] sm:$0xff]
        %v734 = vld [vmem:[%s8 + $0x178] sm:$0xff]
        %v735 = vld [vmem:[%s8 + $0x180] sm:$0xff]
        %v736 = vld [vmem:[%s8 + $0x188] sm:$0xff]
        %v737 = vld [vmem:[%s8 + $0x190] sm:$0xff]
        %v738 = vld [vmem:[%s8 + $0x198] sm:$0xff]
        %v739 = vld [vmem:[%s8 + $0x1a0] sm:$0xff]
        %v740 = vld [vmem:[%s8 + $0x1a8] sm:$0xff]
        %v741 = vld [vmem:[%s8 + $0x1b0] sm:$0xff]
        %v742 = vld [vmem:[%s8 + $0x1b8] sm:$0xff]
        %v743 = vld [vmem:[%s8 + $0x1c0] sm:$0xff]
        %v744 = vld [vmem:[%s8 + $0x1c8] sm:$0xff]
        %v745 = vld [vmem:[%s8 + $0x1d0] sm:$0xff]
        %v746 = vld [vmem:[%s8 + $0x1d8] sm:$0xff]
        %v747 = vld [vmem:[%s8 + $0x1e0] sm:$0xff]
        %v748 = vld [vmem:[%s8 + $0x1e8] sm:$0xff]
        %v749 = vld [vmem:[%s8 + $0x1f0] sm:$0xff]
        %v750 = vld [vmem:[%s8 + $0x1f8] sm:$0xff]
        %v751 = vlaneseq
        %v752 = vand.u32 %v751, 127
        %vm753 = vcmp.ge.s32.totalorder %v752, 0
        %vm754 = vcmp.lt.s32.totalorder %v752, 8
        %vm755 = vmand %vm753, %vm754
        %v756 = vsel %vm755, 1, 0
        %v757 = vcvt.s32.f32 %v756
        %vm758 = vcmp.ge.s32.totalorder %v752, 8
        %vm759 = vcmp.lt.s32.totalorder %v752, 16
        %vm760 = vmand %vm758, %vm759
        %v761 = vsel %vm760, 1, 0
        %v762 = vcvt.s32.f32 %v761
        %vm763 = vcmp.ge.s32.totalorder %v752, 16
        %vm764 = vcmp.lt.s32.totalorder %v752, 24
        %vm765 = vmand %vm763, %vm764
        %v766 = vsel %vm765, 1, 0
        %v767 = vcvt.s32.f32 %v766
        %vm768 = vcmp.ge.s32.totalorder %v752, 24
        %vm769 = vcmp.lt.s32.totalorder %v752, 32
        %vm770 = vmand %vm768, %vm769
        %v771 = vsel %vm770, 1, 0
        %v772 = vcvt.s32.f32 %v771
        %v773 = vld [vmem:[%s522] sm:$0xff]
        %v774 = vld [vmem:[%s522 + $0x8] sm:$0xff]
        %v775 = vld [vmem:[%s522 + $0x10] sm:$0xff]
        %v776 = vld [vmem:[%s522 + $0x18] sm:$0xff]
        %v777 = vld [vmem:[%s522 + $0x20] sm:$0xff]
        %v778 = vld [vmem:[%s522 + $0x28] sm:$0xff]
        %v779 = vld [vmem:[%s522 + $0x30] sm:$0xff]
        %v780 = vld [vmem:[%s522 + $0x38] sm:$0xff]
        %v781 = vld [vmem:[%s522 + $0x40] sm:$0xff]
        %v782 = vld [vmem:[%s522 + $0x48] sm:$0xff]
        %v783 = vld [vmem:[%s522 + $0x50] sm:$0xff]
        %v784 = vld [vmem:[%s522 + $0x58] sm:$0xff]
        %v785 = vld [vmem:[%s522 + $0x60] sm:$0xff]
        %v786 = vld [vmem:[%s522 + $0x68] sm:$0xff]
        %v787 = vld [vmem:[%s522 + $0x70] sm:$0xff]
        %v788 = vld [vmem:[%s522 + $0x78] sm:$0xff]
        loop: start=0, step=1, limit=3
        $region77: #{inceptlike_gcn_forward.1} parent=71 // loop_pre_header
          _
        $region78: #{inceptlike_gcn_forward.1} parent=71 // loop_header
          %s790 = sphi 0, %s794
          %p791 = scmp.ge.s32.totalorder %s790, 3
          %v795 = vphi %v773, %v6693
          %v796 = vphi %v774, %v6694
          %v797 = vphi %v775, %v6695
          %v798 = vphi %v776, %v6696
          %v799 = vphi %v777, %v6697
          %v800 = vphi %v778, %v6698
          %v801 = vphi %v779, %v6699
          %v802 = vphi %v780, %v6700
          %v803 = vphi %v781, %v6701
          %v804 = vphi %v782, %v6702
          %v805 = vphi %v783, %v6703
          %v806 = vphi %v784, %v6704
          %v807 = vphi %v785, %v6705
          %v808 = vphi %v786, %v6706
          %v809 = vphi %v787, %v6707
          %v810 = vphi %v788, %v6708
        $region79: #{inceptlike_gcn_forward.1} parent=71 // loop_header_branch
          %793 = sbr.rel (%p791) target = $region83
        $region80: #{inceptlike_gcn_forward.1} parent=71 // loop_body
          %s811 = smul.u32 %s790, 12
          %s812 = smul.u32 %s790, 16
          %s813 = scalar_lea.vmem %s7, %s812
          %v814 = vld [vmem:[%s813] sm:$0xff]
          %v815 = vld [vmem:[%s813 + $0x8] sm:$0xff]
          %s816 = smul.u32 %s790, 32
          %s817 = scalar_lea.vmem %s6, %s816
          %v818 = vld [vmem:[%s817] sm:$0xff]
          %v819 = vld [vmem:[%s817 + $0x8] sm:$0xff]
          %v820 = vld [vmem:[%s817 + $0x10] sm:$0xff]
          %v821 = vld [vmem:[%s817 + $0x18] sm:$0xff]
          %822 = vmatpush.msra.mxu0 %v810
          %823 = vmatpush.msra.mxu0 %v809
          %824 = vmatpush.msra.mxu0 %v808
          %825 = vmatpush.msra.mxu0 %v807
          %826 = vmatpush.msra.mxu0 %v806
          %827 = vmatpush.msra.mxu0 %v805
          %828 = vmatpush.msra.mxu0 %v804
          %829 = vmatpush.msra.mxu0 %v803
          %830 = vmatpush.msra.mxu0 %v802
          %831 = vmatpush.msra.mxu0 %v801
          %832 = vmatpush.msra.mxu0 %v800
          %833 = vmatpush.msra.mxu0 %v799
          %834 = vmatpush.msra.mxu0 %v798
          %835 = vmatpush.msra.mxu0 %v797
          %836 = vmatpush.msra.mxu0 %v796
          %837 = vmatpush.msra.mxu0 %v795
          %838 = vmatmul.f32.gmra.mxu0 %v543
          %v839 = vpop.f32.mrf.mxu0
          %v840 = vadd.f32 0.0, %v839
          %841 = vmatmul.f32.gmra.mxu0 %v544
          %v842 = vpop.f32.mrf.mxu0
          %v843 = vadd.f32 0.0, %v842
          %844 = vmatmul.f32.gmra.mxu0 %v545
          %v845 = vpop.f32.mrf.mxu0
          %v846 = vadd.f32 0.0, %v845
          %847 = vmatmul.f32.gmra.mxu0 %v546
          %v848 = vpop.f32.mrf.mxu0
          %v849 = vadd.f32 0.0, %v848
          %850 = vmatmul.f32.gmra.mxu0 %v547
          %v851 = vpop.f32.mrf.mxu0
          %v852 = vadd.f32 0.0, %v851
          %853 = vmatmul.f32.gmra.mxu0 %v548
          %v854 = vpop.f32.mrf.mxu0
          %v855 = vadd.f32 0.0, %v854
          %856 = vmatmul.f32.gmra.mxu0 %v549
          %v857 = vpop.f32.mrf.mxu0
          %v858 = vadd.f32 0.0, %v857
          %859 = vmatmul.f32.gmra.mxu0 %v550
          %v860 = vpop.f32.mrf.mxu0
          %v861 = vadd.f32 0.0, %v860
          %862 = vmatmul.f32.gmra.mxu0 %v551
          %v863 = vpop.f32.mrf.mxu0
          %v864 = vadd.f32 0.0, %v863
          %865 = vmatmul.f32.gmra.mxu0 %v552
          %v866 = vpop.f32.mrf.mxu0
          %v867 = vadd.f32 0.0, %v866
          %868 = vmatmul.f32.gmra.mxu0 %v553
          %v869 = vpop.f32.mrf.mxu0
          %v870 = vadd.f32 0.0, %v869
          %871 = vmatmul.f32.gmra.mxu0 %v554
          %v872 = vpop.f32.mrf.mxu0
          %v873 = vadd.f32 0.0, %v872
          %874 = vmatmul.f32.gmra.mxu0 %v555
          %v875 = vpop.f32.mrf.mxu0
          %v876 = vadd.f32 0.0, %v875
          %877 = vmatmul.f32.gmra.mxu0 %v556
          %v878 = vpop.f32.mrf.mxu0
          %v879 = vadd.f32 0.0, %v878
          %880 = vmatmul.f32.gmra.mxu0 %v557
          %v881 = vpop.f32.mrf.mxu0
          %v882 = vadd.f32 0.0, %v881
          %883 = vmatmul.f32.gmra.mxu0 %v558
          %v884 = vpop.f32.mrf.mxu0
          %v885 = vadd.f32 0.0, %v884
          %886 = vmatmul.f32.gmra.mxu0 %v559
          %v887 = vpop.f32.mrf.mxu0
          %v888 = vadd.f32 0.0, %v887
          %889 = vmatmul.f32.gmra.mxu0 %v560
          %v890 = vpop.f32.mrf.mxu0
          %v891 = vadd.f32 0.0, %v890
          %892 = vmatmul.f32.gmra.mxu0 %v561
          %v893 = vpop.f32.mrf.mxu0
          %v894 = vadd.f32 0.0, %v893
          %895 = vmatmul.f32.gmra.mxu0 %v562
          %v896 = vpop.f32.mrf.mxu0
          %v897 = vadd.f32 0.0, %v896
          %898 = vmatmul.f32.gmra.mxu0 %v563
          %v899 = vpop.f32.mrf.mxu0
          %v900 = vadd.f32 0.0, %v899
          %901 = vmatmul.f32.gmra.mxu0 %v564
          %v902 = vpop.f32.mrf.mxu0
          %v903 = vadd.f32 0.0, %v902
          %904 = vmatmul.f32.gmra.mxu0 %v565
          %v905 = vpop.f32.mrf.mxu0
          %v906 = vadd.f32 0.0, %v905
          %907 = vmatmul.f32.gmra.mxu0 %v566
          %v908 = vpop.f32.mrf.mxu0
          %v909 = vadd.f32 0.0, %v908
          %910 = vmatmul.f32.gmra.mxu0 %v567
          %v911 = vpop.f32.mrf.mxu0
          %v912 = vadd.f32 0.0, %v911
          %913 = vmatmul.f32.gmra.mxu0 %v568
          %v914 = vpop.f32.mrf.mxu0
          %v915 = vadd.f32 0.0, %v914
          %916 = vmatmul.f32.gmra.mxu0 %v569
          %v917 = vpop.f32.mrf.mxu0
          %v918 = vadd.f32 0.0, %v917
          %919 = vmatmul.f32.gmra.mxu0 %v570
          %v920 = vpop.f32.mrf.mxu0
          %v921 = vadd.f32 0.0, %v920
          %922 = vmatmul.f32.gmra.mxu0 %v571
          %v923 = vpop.f32.mrf.mxu0
          %v924 = vadd.f32 0.0, %v923
          %925 = vmatmul.f32.gmra.mxu0 %v572
          %v926 = vpop.f32.mrf.mxu0
          %v927 = vadd.f32 0.0, %v926
          %928 = vmatmul.f32.gmra.mxu0 %v573
          %v929 = vpop.f32.mrf.mxu0
          %v930 = vadd.f32 0.0, %v929
          %931 = vmatmul.f32.gmra.mxu0 %v574
          %v932 = vpop.f32.mrf.mxu0
          %v933 = vadd.f32 0.0, %v932
          %934 = vmatmul.f32.gmra.mxu0 %v575
          %v935 = vpop.f32.mrf.mxu0
          %v936 = vadd.f32 0.0, %v935
          %937 = vmatmul.f32.gmra.mxu0 %v576
          %v938 = vpop.f32.mrf.mxu0
          %v939 = vadd.f32 0.0, %v938
          %940 = vmatmul.f32.gmra.mxu0 %v577
          %v941 = vpop.f32.mrf.mxu0
          %v942 = vadd.f32 0.0, %v941
          %943 = vmatmul.f32.gmra.mxu0 %v578
          %v944 = vpop.f32.mrf.mxu0
          %v945 = vadd.f32 0.0, %v944
          %946 = vmatmul.f32.gmra.mxu0 %v579
          %v947 = vpop.f32.mrf.mxu0
          %v948 = vadd.f32 0.0, %v947
          %949 = vmatmul.f32.gmra.mxu0 %v580
          %v950 = vpop.f32.mrf.mxu0
          %v951 = vadd.f32 0.0, %v950
          %952 = vmatmul.f32.gmra.mxu0 %v581
          %v953 = vpop.f32.mrf.mxu0
          %v954 = vadd.f32 0.0, %v953
          %955 = vmatmul.f32.gmra.mxu0 %v582
          %v956 = vpop.f32.mrf.mxu0
          %v957 = vadd.f32 0.0, %v956
          %958 = vmatmul.f32.gmra.mxu0 %v583
          %v959 = vpop.f32.mrf.mxu0
          %v960 = vadd.f32 0.0, %v959
          %961 = vmatmul.f32.gmra.mxu0 %v584
          %v962 = vpop.f32.mrf.mxu0
          %v963 = vadd.f32 0.0, %v962
          %964 = vmatmul.f32.gmra.mxu0 %v585
          %v965 = vpop.f32.mrf.mxu0
          %v966 = vadd.f32 0.0, %v965
          %967 = vmatmul.f32.gmra.mxu0 %v586
          %v968 = vpop.f32.mrf.mxu0
          %v969 = vadd.f32 0.0, %v968
          %970 = vmatmul.f32.gmra.mxu0 %v587
          %v971 = vpop.f32.mrf.mxu0
          %v972 = vadd.f32 0.0, %v971
          %973 = vmatmul.f32.gmra.mxu0 %v588
          %v974 = vpop.f32.mrf.mxu0
          %v975 = vadd.f32 0.0, %v974
          %976 = vmatmul.f32.gmra.mxu0 %v589
          %v977 = vpop.f32.mrf.mxu0
          %v978 = vadd.f32 0.0, %v977
          %979 = vmatmul.f32.gmra.mxu0 %v590
          %v980 = vpop.f32.mrf.mxu0
          %v981 = vadd.f32 0.0, %v980
          %982 = vmatmul.f32.gmra.mxu0 %v591
          %v983 = vpop.f32.mrf.mxu0
          %v984 = vadd.f32 0.0, %v983
          %985 = vmatmul.f32.gmra.mxu0 %v592
          %v986 = vpop.f32.mrf.mxu0
          %v987 = vadd.f32 0.0, %v986
          %988 = vmatmul.f32.gmra.mxu0 %v593
          %v989 = vpop.f32.mrf.mxu0
          %v990 = vadd.f32 0.0, %v989
          %991 = vmatmul.f32.gmra.mxu0 %v594
          %v992 = vpop.f32.mrf.mxu0
          %v993 = vadd.f32 0.0, %v992
          %994 = vmatmul.f32.gmra.mxu0 %v595
          %v995 = vpop.f32.mrf.mxu0
          %v996 = vadd.f32 0.0, %v995
          %997 = vmatmul.f32.gmra.mxu0 %v596
          %v998 = vpop.f32.mrf.mxu0
          %v999 = vadd.f32 0.0, %v998
          %1000 = vmatmul.f32.gmra.mxu0 %v597
          %v1001 = vpop.f32.mrf.mxu0
          %v1002 = vadd.f32 0.0, %v1001
          %1003 = vmatmul.f32.gmra.mxu0 %v598
          %v1004 = vpop.f32.mrf.mxu0
          %v1005 = vadd.f32 0.0, %v1004
          %1006 = vmatmul.f32.gmra.mxu0 %v599
          %v1007 = vpop.f32.mrf.mxu0
          %v1008 = vadd.f32 0.0, %v1007
          %1009 = vmatmul.f32.gmra.mxu0 %v600
          %v1010 = vpop.f32.mrf.mxu0
          %v1011 = vadd.f32 0.0, %v1010
          %1012 = vmatmul.f32.gmra.mxu0 %v601
          %v1013 = vpop.f32.mrf.mxu0
          %v1014 = vadd.f32 0.0, %v1013
          %1015 = vmatmul.f32.gmra.mxu0 %v602
          %v1016 = vpop.f32.mrf.mxu0
          %v1017 = vadd.f32 0.0, %v1016
          %1018 = vmatmul.f32.gmra.mxu0 %v603
          %v1019 = vpop.f32.mrf.mxu0
          %v1020 = vadd.f32 0.0, %v1019
          %1021 = vmatmul.f32.gmra.mxu0 %v604
          %v1022 = vpop.f32.mrf.mxu0
          %v1023 = vadd.f32 0.0, %v1022
          %1024 = vmatmul.f32.gmra.mxu0 %v605
          %v1025 = vpop.f32.mrf.mxu0
          %v1026 = vadd.f32 0.0, %v1025
          %1027 = vmatmul.f32.gmra.mxu0 %v606
          %v1028 = vpop.f32.mrf.mxu0
          %v1029 = vadd.f32 0.0, %v1028
          %1030 = vmatmul.f32.gmra.mxu0 %v607
          %v1031 = vpop.f32.mrf.mxu0
          %v1032 = vadd.f32 0.0, %v1031
          %1033 = vmatmul.f32.gmra.mxu0 %v608
          %v1034 = vpop.f32.mrf.mxu0
          %v1035 = vadd.f32 0.0, %v1034
          %1036 = vmatmul.f32.gmra.mxu0 %v609
          %v1037 = vpop.f32.mrf.mxu0
          %v1038 = vadd.f32 0.0, %v1037
          %1039 = vmatmul.f32.gmra.mxu0 %v610
          %v1040 = vpop.f32.mrf.mxu0
          %v1041 = vadd.f32 0.0, %v1040
          %1042 = vmatmul.f32.gmra.mxu0 %v611
          %v1043 = vpop.f32.mrf.mxu0
          %v1044 = vadd.f32 0.0, %v1043
          %1045 = vmatmul.f32.gmra.mxu0 %v612
          %v1046 = vpop.f32.mrf.mxu0
          %v1047 = vadd.f32 0.0, %v1046
          %1048 = vmatmul.f32.gmra.mxu0 %v613
          %v1049 = vpop.f32.mrf.mxu0
          %v1050 = vadd.f32 0.0, %v1049
          %1051 = vmatmul.f32.gmra.mxu0 %v614
          %v1052 = vpop.f32.mrf.mxu0
          %v1053 = vadd.f32 0.0, %v1052
          %1054 = vmatmul.f32.gmra.mxu0 %v615
          %v1055 = vpop.f32.mrf.mxu0
          %v1056 = vadd.f32 0.0, %v1055
          %1057 = vmatmul.f32.gmra.mxu0 %v616
          %v1058 = vpop.f32.mrf.mxu0
          %v1059 = vadd.f32 0.0, %v1058
          %1060 = vmatmul.f32.gmra.mxu0 %v617
          %v1061 = vpop.f32.mrf.mxu0
          %v1062 = vadd.f32 0.0, %v1061
          %1063 = vmatmul.f32.gmra.mxu0 %v618
          %v1064 = vpop.f32.mrf.mxu0
          %v1065 = vadd.f32 0.0, %v1064
          %1066 = vmatmul.f32.gmra.mxu0 %v619
          %v1067 = vpop.f32.mrf.mxu0
          %v1068 = vadd.f32 0.0, %v1067
          %1069 = vmatmul.f32.gmra.mxu0 %v620
          %v1070 = vpop.f32.mrf.mxu0
          %v1071 = vadd.f32 0.0, %v1070
          %1072 = vmatmul.f32.gmra.mxu0 %v621
          %v1073 = vpop.f32.mrf.mxu0
          %v1074 = vadd.f32 0.0, %v1073
          %1075 = vmatmul.f32.gmra.mxu0 %v622
          %v1076 = vpop.f32.mrf.mxu0
          %v1077 = vadd.f32 0.0, %v1076
          %1078 = vdwg.mxu0
          %s1079 = sadd.s32 %s811, 8
          %s1080 = smul.u32 %s1079, 32
          %s1081 = scalar_lea.vmem %s5, %s1080
          %v1082 = vld [vmem:[%s1081] sm:$0xff]
          %v1083 = vld [vmem:[%s1081 + $0x8] sm:$0xff]
          %v1084 = vld [vmem:[%s1081 + $0x10] sm:$0xff]
          %v1085 = vld [vmem:[%s1081 + $0x18] sm:$0xff]
          %vm1086 = vcmask 261120
          %v1088 = vsel %vm1086, %v795, 0
          %v1091 = vsel %vm1086, %v796, 0
          %v1094 = vsel %vm1086, %v797, 0
          %v1097 = vsel %vm1086, %v798, 0
          %v1100 = vsel %vm1086, %v799, 0
          %v1103 = vsel %vm1086, %v800, 0
          %v1106 = vsel %vm1086, %v801, 0
          %v1109 = vsel %vm1086, %v802, 0
          %v1112 = vsel %vm1086, %v803, 0
          %v1115 = vsel %vm1086, %v804, 0
          %v1118 = vsel %vm1086, %v805, 0
          %v1121 = vsel %vm1086, %v806, 0
          %v1124 = vsel %vm1086, %v807, 0
          %v1127 = vsel %vm1086, %v808, 0
          %v1130 = vsel %vm1086, %v809, 0
          %v1133 = vsel %vm1086, %v810, 0
          %1135 = vmatpush.msra.mxu0 0.0
          %1136 = vmatpush.msra.mxu0 0.0
          %1137 = vmatpush.msra.mxu0 0.0
          %1138 = vmatpush.msra.mxu0 0.0
          %1139 = vmatpush.msra.mxu0 0.0
          %1140 = vmatpush.msra.mxu0 0.0
          %1141 = vmatpush.msra.mxu0 0.0
          %1142 = vmatpush.msra.mxu0 0.0
          %1143 = vmatpush.msra.mxu0 0.0
          %1144 = vmatpush.msra.mxu0 0.0
          %1145 = vmatpush.msra.mxu0 0.0
          %1146 = vmatpush.msra.mxu0 0.0
          %1147 = vmatpush.msra.mxu0 %v1085
          %1148 = vmatpush.msra.mxu0 %v1084
          %1149 = vmatpush.msra.mxu0 %v1083
          %1150 = vmatpush.msra.mxu0 %v1082
          %1151 = vmatmul.f32.gmra.mxu0 %v1088
          %v1152 = vpop.f32.mrf.mxu0
          %v1153 = vadd.f32 0.0, %v1152
          %1154 = vmatmul.f32.gmra.mxu0 %v1091
          %v1155 = vpop.f32.mrf.mxu0
          %v1156 = vadd.f32 0.0, %v1155
          %1157 = vmatmul.f32.gmra.mxu0 %v1094
          %v1158 = vpop.f32.mrf.mxu0
          %v1159 = vadd.f32 0.0, %v1158
          %1160 = vmatmul.f32.gmra.mxu0 %v1097
          %v1161 = vpop.f32.mrf.mxu0
          %v1162 = vadd.f32 0.0, %v1161
          %1163 = vmatmul.f32.gmra.mxu0 %v1100
          %v1164 = vpop.f32.mrf.mxu0
          %v1165 = vadd.f32 0.0, %v1164
          %1166 = vmatmul.f32.gmra.mxu0 %v1103
          %v1167 = vpop.f32.mrf.mxu0
          %v1168 = vadd.f32 0.0, %v1167
          %1169 = vmatmul.f32.gmra.mxu0 %v1106
          %v1170 = vpop.f32.mrf.mxu0
          %v1171 = vadd.f32 0.0, %v1170
          %1172 = vmatmul.f32.gmra.mxu0 %v1109
          %v1173 = vpop.f32.mrf.mxu0
          %v1174 = vadd.f32 0.0, %v1173
          %1175 = vmatmul.f32.gmra.mxu0 %v1112
          %v1176 = vpop.f32.mrf.mxu0
          %v1177 = vadd.f32 0.0, %v1176
          %1178 = vmatmul.f32.gmra.mxu0 %v1115
          %v1179 = vpop.f32.mrf.mxu0
          %v1180 = vadd.f32 0.0, %v1179
          %1181 = vmatmul.f32.gmra.mxu0 %v1118
          %v1182 = vpop.f32.mrf.mxu0
          %v1183 = vadd.f32 0.0, %v1182
          %1184 = vmatmul.f32.gmra.mxu0 %v1121
          %v1185 = vpop.f32.mrf.mxu0
          %v1186 = vadd.f32 0.0, %v1185
          %1187 = vmatmul.f32.gmra.mxu0 %v1124
          %v1188 = vpop.f32.mrf.mxu0
          %v1189 = vadd.f32 0.0, %v1188
          %1190 = vmatmul.f32.gmra.mxu0 %v1127
          %v1191 = vpop.f32.mrf.mxu0
          %v1192 = vadd.f32 0.0, %v1191
          %1193 = vmatmul.f32.gmra.mxu0 %v1130
          %v1194 = vpop.f32.mrf.mxu0
          %v1195 = vadd.f32 0.0, %v1194
          %1196 = vmatmul.f32.gmra.mxu0 %v1133
          %v1197 = vpop.f32.mrf.mxu0
          %v1198 = vadd.f32 0.0, %v1197
          %1199 = vdwg.mxu0
          %v1201 = vsel %vm1086, %v1153, 0
          %v1204 = vsel %vm1086, %v1156, 0
          %v1207 = vsel %vm1086, %v1159, 0
          %v1210 = vsel %vm1086, %v1162, 0
          %v1213 = vsel %vm1086, %v1165, 0
          %v1216 = vsel %vm1086, %v1168, 0
          %v1219 = vsel %vm1086, %v1171, 0
          %v1222 = vsel %vm1086, %v1174, 0
          %v1225 = vsel %vm1086, %v1177, 0
          %v1228 = vsel %vm1086, %v1180, 0
          %v1231 = vsel %vm1086, %v1183, 0
          %v1234 = vsel %vm1086, %v1186, 0
          %v1237 = vsel %vm1086, %v1189, 0
          %v1240 = vsel %vm1086, %v1192, 0
          %v1243 = vsel %vm1086, %v1195, 0
          %v1246 = vsel %vm1086, %v1198, 0
          %1248 = vmatpush.msra.mxu0 0.0
          %1249 = vmatpush.msra.mxu0 0.0
          %1250 = vmatpush.msra.mxu0 0.0
          %1251 = vmatpush.msra.mxu0 0.0
          %1252 = vmatpush.msra.mxu0 0.0
          %1253 = vmatpush.msra.mxu0 0.0
          %1254 = vmatpush.msra.mxu0 0.0
          %1255 = vmatpush.msra.mxu0 0.0
          %1256 = vmatpush.msra.mxu0 0.0
          %1257 = vmatpush.msra.mxu0 0.0
          %1258 = vmatpush.msra.mxu0 0.0
          %1259 = vmatpush.msra.mxu0 0.0
          %1260 = vmatpush.msra.mxu0 %v821
          %1261 = vmatpush.msra.mxu0 %v820
          %1262 = vmatpush.msra.mxu0 %v819
          %1263 = vmatpush.msra.mxu0 %v818
          %1264 = vmatmul.f32.gmra.mxu0 %v1201
          %v1265 = vpop.f32.mrf.mxu0
          %v1266 = vadd.f32 0.0, %v1265
          %1267 = vmatmul.f32.gmra.mxu0 %v1204
          %v1268 = vpop.f32.mrf.mxu0
          %v1269 = vadd.f32 0.0, %v1268
          %1270 = vmatmul.f32.gmra.mxu0 %v1207
          %v1271 = vpop.f32.mrf.mxu0
          %v1272 = vadd.f32 0.0, %v1271
          %1273 = vmatmul.f32.gmra.mxu0 %v1210
          %v1274 = vpop.f32.mrf.mxu0
          %v1275 = vadd.f32 0.0, %v1274
          %1276 = vmatmul.f32.gmra.mxu0 %v1213
          %v1277 = vpop.f32.mrf.mxu0
          %v1278 = vadd.f32 0.0, %v1277
          %1279 = vmatmul.f32.gmra.mxu0 %v1216
          %v1280 = vpop.f32.mrf.mxu0
          %v1281 = vadd.f32 0.0, %v1280
          %1282 = vmatmul.f32.gmra.mxu0 %v1219
          %v1283 = vpop.f32.mrf.mxu0
          %v1284 = vadd.f32 0.0, %v1283
          %1285 = vmatmul.f32.gmra.mxu0 %v1222
          %v1286 = vpop.f32.mrf.mxu0
          %v1287 = vadd.f32 0.0, %v1286
          %1288 = vmatmul.f32.gmra.mxu0 %v1225
          %v1289 = vpop.f32.mrf.mxu0
          %v1290 = vadd.f32 0.0, %v1289
          %1291 = vmatmul.f32.gmra.mxu0 %v1228
          %v1292 = vpop.f32.mrf.mxu0
          %v1293 = vadd.f32 0.0, %v1292
          %1294 = vmatmul.f32.gmra.mxu0 %v1231
          %v1295 = vpop.f32.mrf.mxu0
          %v1296 = vadd.f32 0.0, %v1295
          %1297 = vmatmul.f32.gmra.mxu0 %v1234
          %v1298 = vpop.f32.mrf.mxu0
          %v1299 = vadd.f32 0.0, %v1298
          %1300 = vmatmul.f32.gmra.mxu0 %v1237
          %v1301 = vpop.f32.mrf.mxu0
          %v1302 = vadd.f32 0.0, %v1301
          %1303 = vmatmul.f32.gmra.mxu0 %v1240
          %v1304 = vpop.f32.mrf.mxu0
          %v1305 = vadd.f32 0.0, %v1304
          %1306 = vmatmul.f32.gmra.mxu0 %v1243
          %v1307 = vpop.f32.mrf.mxu0
          %v1308 = vadd.f32 0.0, %v1307
          %1309 = vmatmul.f32.gmra.mxu0 %v1246
          %v1310 = vpop.f32.mrf.mxu0
          %v1311 = vadd.f32 0.0, %v1310
          %1312 = vdwg.mxu0
          %1329 = vrot.lane.b32.xlu0 %v1266, 127
          %v1330 = vpop.permute.xlu0 %1329
          %1331 = vrot.lane.b32.xlu0 %v1269, 127
          %v1332 = vpop.permute.xlu0 %1331
          %1333 = vrot.lane.b32.xlu0 %v1272, 127
          %v1334 = vpop.permute.xlu0 %1333
          %1335 = vrot.lane.b32.xlu0 %v1275, 127
          %v1336 = vpop.permute.xlu0 %1335
          %1337 = vrot.lane.b32.xlu0 %v1278, 127
          %v1338 = vpop.permute.xlu0 %1337
          %1339 = vrot.lane.b32.xlu0 %v1281, 127
          %v1340 = vpop.permute.xlu0 %1339
          %1341 = vrot.lane.b32.xlu0 %v1284, 127
          %v1342 = vpop.permute.xlu0 %1341
          %1343 = vrot.lane.b32.xlu0 %v1287, 127
          %v1344 = vpop.permute.xlu0 %1343
          %1345 = vrot.lane.b32.xlu0 %v1290, 127
          %v1346 = vpop.permute.xlu0 %1345
          %1347 = vrot.lane.b32.xlu0 %v1293, 127
          %v1348 = vpop.permute.xlu0 %1347
          %1349 = vrot.lane.b32.xlu0 %v1296, 127
          %v1350 = vpop.permute.xlu0 %1349
          %1351 = vrot.lane.b32.xlu0 %v1299, 127
          %v1352 = vpop.permute.xlu0 %1351
          %1353 = vrot.lane.b32.xlu0 %v1302, 127
          %v1354 = vpop.permute.xlu0 %1353
          %1355 = vrot.lane.b32.xlu0 %v1305, 127
          %v1356 = vpop.permute.xlu0 %1355
          %1357 = vrot.lane.b32.xlu0 %v1308, 127
          %v1358 = vpop.permute.xlu0 %1357
          %1359 = vrot.lane.b32.xlu0 %v1311, 127
          %v1360 = vpop.permute.xlu0 %1359
          %1361 = vrot.lane.b32.xlu0 %v1266, 126
          %v1362 = vpop.permute.xlu0 %1361
          %1363 = vrot.lane.b32.xlu0 %v1269, 126
          %v1364 = vpop.permute.xlu0 %1363
          %1365 = vrot.lane.b32.xlu0 %v1272, 126
          %v1366 = vpop.permute.xlu0 %1365
          %1367 = vrot.lane.b32.xlu0 %v1275, 126
          %v1368 = vpop.permute.xlu0 %1367
          %1369 = vrot.lane.b32.xlu0 %v1278, 126
          %v1370 = vpop.permute.xlu0 %1369
          %1371 = vrot.lane.b32.xlu0 %v1281, 126
          %v1372 = vpop.permute.xlu0 %1371
          %1373 = vrot.lane.b32.xlu0 %v1284, 126
          %v1374 = vpop.permute.xlu0 %1373
          %1375 = vrot.lane.b32.xlu0 %v1287, 126
          %v1376 = vpop.permute.xlu0 %1375
          %1377 = vrot.lane.b32.xlu0 %v1290, 126
          %v1378 = vpop.permute.xlu0 %1377
          %1379 = vrot.lane.b32.xlu0 %v1293, 126
          %v1380 = vpop.permute.xlu0 %1379
          %1381 = vrot.lane.b32.xlu0 %v1296, 126
          %v1382 = vpop.permute.xlu0 %1381
          %1383 = vrot.lane.b32.xlu0 %v1299, 126
          %v1384 = vpop.permute.xlu0 %1383
          %1385 = vrot.lane.b32.xlu0 %v1302, 126
          %v1386 = vpop.permute.xlu0 %1385
          %1387 = vrot.lane.b32.xlu0 %v1305, 126
          %v1388 = vpop.permute.xlu0 %1387
          %1389 = vrot.lane.b32.xlu0 %v1308, 126
          %v1390 = vpop.permute.xlu0 %1389
          %1391 = vrot.lane.b32.xlu0 %v1311, 126
          %v1392 = vpop.permute.xlu0 %1391
          %1393 = vrot.lane.b32.xlu0 %v1266, 125
          %v1394 = vpop.permute.xlu0 %1393
          %1395 = vrot.lane.b32.xlu0 %v1269, 125
          %v1396 = vpop.permute.xlu0 %1395
          %1397 = vrot.lane.b32.xlu0 %v1272, 125
          %v1398 = vpop.permute.xlu0 %1397
          %1399 = vrot.lane.b32.xlu0 %v1275, 125
          %v1400 = vpop.permute.xlu0 %1399
          %1401 = vrot.lane.b32.xlu0 %v1278, 125
          %v1402 = vpop.permute.xlu0 %1401
          %1403 = vrot.lane.b32.xlu0 %v1281, 125
          %v1404 = vpop.permute.xlu0 %1403
          %1405 = vrot.lane.b32.xlu0 %v1284, 125
          %v1406 = vpop.permute.xlu0 %1405
          %1407 = vrot.lane.b32.xlu0 %v1287, 125
          %v1408 = vpop.permute.xlu0 %1407
          %1409 = vrot.lane.b32.xlu0 %v1290, 125
          %v1410 = vpop.permute.xlu0 %1409
          %1411 = vrot.lane.b32.xlu0 %v1293, 125
          %v1412 = vpop.permute.xlu0 %1411
          %1413 = vrot.lane.b32.xlu0 %v1296, 125
          %v1414 = vpop.permute.xlu0 %1413
          %1415 = vrot.lane.b32.xlu0 %v1299, 125
          %v1416 = vpop.permute.xlu0 %1415
          %1417 = vrot.lane.b32.xlu0 %v1302, 125
          %v1418 = vpop.permute.xlu0 %1417
          %1419 = vrot.lane.b32.xlu0 %v1305, 125
          %v1420 = vpop.permute.xlu0 %1419
          %1421 = vrot.lane.b32.xlu0 %v1308, 125
          %v1422 = vpop.permute.xlu0 %1421
          %1423 = vrot.lane.b32.xlu0 %v1311, 125
          %v1424 = vpop.permute.xlu0 %1423
          %1425 = vset.pattern.permute.xlu0 4
          %1426 = vperm.xlu0 %1425, %v1266
          %v1427 = vpop.permute.xlu0 %1426
          %1429 = vset.pattern.permute.xlu0 4
          %1430 = vperm.xlu0 %1429, %v1269
          %v1431 = vpop.permute.xlu0 %1430
          %1433 = vset.pattern.permute.xlu0 4
          %1434 = vperm.xlu0 %1433, %v1272
          %v1435 = vpop.permute.xlu0 %1434
          %1437 = vset.pattern.permute.xlu0 4
          %1438 = vperm.xlu0 %1437, %v1275
          %v1439 = vpop.permute.xlu0 %1438
          %1441 = vset.pattern.permute.xlu0 4
          %1442 = vperm.xlu0 %1441, %v1278
          %v1443 = vpop.permute.xlu0 %1442
          %1445 = vset.pattern.permute.xlu0 4
          %1446 = vperm.xlu0 %1445, %v1281
          %v1447 = vpop.permute.xlu0 %1446
          %1449 = vset.pattern.permute.xlu0 4
          %1450 = vperm.xlu0 %1449, %v1284
          %v1451 = vpop.permute.xlu0 %1450
          %1453 = vset.pattern.permute.xlu0 4
          %1454 = vperm.xlu0 %1453, %v1287
          %v1455 = vpop.permute.xlu0 %1454
          %1457 = vset.pattern.permute.xlu0 4
          %1458 = vperm.xlu0 %1457, %v1290
          %v1459 = vpop.permute.xlu0 %1458
          %1461 = vset.pattern.permute.xlu0 4
          %1462 = vperm.xlu0 %1461, %v1293
          %v1463 = vpop.permute.xlu0 %1462
          %1465 = vset.pattern.permute.xlu0 4
          %1466 = vperm.xlu0 %1465, %v1296
          %v1467 = vpop.permute.xlu0 %1466
          %1469 = vset.pattern.permute.xlu0 4
          %1470 = vperm.xlu0 %1469, %v1299
          %v1471 = vpop.permute.xlu0 %1470
          %1473 = vset.pattern.permute.xlu0 4
          %1474 = vperm.xlu0 %1473, %v1302
          %v1475 = vpop.permute.xlu0 %1474
          %1477 = vset.pattern.permute.xlu0 4
          %1478 = vperm.xlu0 %1477, %v1305
          %v1479 = vpop.permute.xlu0 %1478
          %1481 = vset.pattern.permute.xlu0 4
          %1482 = vperm.xlu0 %1481, %v1308
          %v1483 = vpop.permute.xlu0 %1482
          %1485 = vset.pattern.permute.xlu0 4
          %1486 = vperm.xlu0 %1485, %v1311
          %v1487 = vpop.permute.xlu0 %1486
          %1489 = vset.pattern.permute.xlu0 4
          %1490 = vperm.xlu0 %1489, %v1330
          %v1491 = vpop.permute.xlu0 %1490
          %1493 = vset.pattern.permute.xlu0 4
          %1494 = vperm.xlu0 %1493, %v1332
          %v1495 = vpop.permute.xlu0 %1494
          %1497 = vset.pattern.permute.xlu0 4
          %1498 = vperm.xlu0 %1497, %v1334
          %v1499 = vpop.permute.xlu0 %1498
          %1501 = vset.pattern.permute.xlu0 4
          %1502 = vperm.xlu0 %1501, %v1336
          %v1503 = vpop.permute.xlu0 %1502
          %1505 = vset.pattern.permute.xlu0 4
          %1506 = vperm.xlu0 %1505, %v1338
          %v1507 = vpop.permute.xlu0 %1506
          %1509 = vset.pattern.permute.xlu0 4
          %1510 = vperm.xlu0 %1509, %v1340
          %v1511 = vpop.permute.xlu0 %1510
          %1513 = vset.pattern.permute.xlu0 4
          %1514 = vperm.xlu0 %1513, %v1342
          %v1515 = vpop.permute.xlu0 %1514
          %1517 = vset.pattern.permute.xlu0 4
          %1518 = vperm.xlu0 %1517, %v1344
          %v1519 = vpop.permute.xlu0 %1518
          %1521 = vset.pattern.permute.xlu0 4
          %1522 = vperm.xlu0 %1521, %v1346
          %v1523 = vpop.permute.xlu0 %1522
          %1525 = vset.pattern.permute.xlu0 4
          %1526 = vperm.xlu0 %1525, %v1348
          %v1527 = vpop.permute.xlu0 %1526
          %1529 = vset.pattern.permute.xlu0 4
          %1530 = vperm.xlu0 %1529, %v1350
          %v1531 = vpop.permute.xlu0 %1530
          %1533 = vset.pattern.permute.xlu0 4
          %1534 = vperm.xlu0 %1533, %v1352
          %v1535 = vpop.permute.xlu0 %1534
          %1537 = vset.pattern.permute.xlu0 4
          %1538 = vperm.xlu0 %1537, %v1354
          %v1539 = vpop.permute.xlu0 %1538
          %1541 = vset.pattern.permute.xlu0 4
          %1542 = vperm.xlu0 %1541, %v1356
          %v1543 = vpop.permute.xlu0 %1542
          %1545 = vset.pattern.permute.xlu0 4
          %1546 = vperm.xlu0 %1545, %v1358
          %v1547 = vpop.permute.xlu0 %1546
          %1549 = vset.pattern.permute.xlu0 4
          %1550 = vperm.xlu0 %1549, %v1360
          %v1551 = vpop.permute.xlu0 %1550
          %1553 = vset.pattern.permute.xlu0 4
          %1554 = vperm.xlu0 %1553, %v1362
          %v1555 = vpop.permute.xlu0 %1554
          %1557 = vset.pattern.permute.xlu0 4
          %1558 = vperm.xlu0 %1557, %v1364
          %v1559 = vpop.permute.xlu0 %1558
          %1561 = vset.pattern.permute.xlu0 4
          %1562 = vperm.xlu0 %1561, %v1366
          %v1563 = vpop.permute.xlu0 %1562
          %1565 = vset.pattern.permute.xlu0 4
          %1566 = vperm.xlu0 %1565, %v1368
          %v1567 = vpop.permute.xlu0 %1566
          %1569 = vset.pattern.permute.xlu0 4
          %1570 = vperm.xlu0 %1569, %v1370
          %v1571 = vpop.permute.xlu0 %1570
          %1573 = vset.pattern.permute.xlu0 4
          %1574 = vperm.xlu0 %1573, %v1372
          %v1575 = vpop.permute.xlu0 %1574
          %1577 = vset.pattern.permute.xlu0 4
          %1578 = vperm.xlu0 %1577, %v1374
          %v1579 = vpop.permute.xlu0 %1578
          %1581 = vset.pattern.permute.xlu0 4
          %1582 = vperm.xlu0 %1581, %v1376
          %v1583 = vpop.permute.xlu0 %1582
          %1585 = vset.pattern.permute.xlu0 4
          %1586 = vperm.xlu0 %1585, %v1378
          %v1587 = vpop.permute.xlu0 %1586
          %1589 = vset.pattern.permute.xlu0 4
          %1590 = vperm.xlu0 %1589, %v1380
          %v1591 = vpop.permute.xlu0 %1590
          %1593 = vset.pattern.permute.xlu0 4
          %1594 = vperm.xlu0 %1593, %v1382
          %v1595 = vpop.permute.xlu0 %1594
          %1597 = vset.pattern.permute.xlu0 4
          %1598 = vperm.xlu0 %1597, %v1384
          %v1599 = vpop.permute.xlu0 %1598
          %1601 = vset.pattern.permute.xlu0 4
          %1602 = vperm.xlu0 %1601, %v1386
          %v1603 = vpop.permute.xlu0 %1602
          %1605 = vset.pattern.permute.xlu0 4
          %1606 = vperm.xlu0 %1605, %v1388
          %v1607 = vpop.permute.xlu0 %1606
          %1609 = vset.pattern.permute.xlu0 4
          %1610 = vperm.xlu0 %1609, %v1390
          %v1611 = vpop.permute.xlu0 %1610
          %1613 = vset.pattern.permute.xlu0 4
          %1614 = vperm.xlu0 %1613, %v1392
          %v1615 = vpop.permute.xlu0 %1614
          %1617 = vset.pattern.permute.xlu0 4
          %1618 = vperm.xlu0 %1617, %v1394
          %v1619 = vpop.permute.xlu0 %1618
          %1621 = vset.pattern.permute.xlu0 4
          %1622 = vperm.xlu0 %1621, %v1396
          %v1623 = vpop.permute.xlu0 %1622
          %1625 = vset.pattern.permute.xlu0 4
          %1626 = vperm.xlu0 %1625, %v1398
          %v1627 = vpop.permute.xlu0 %1626
          %1629 = vset.pattern.permute.xlu0 4
          %1630 = vperm.xlu0 %1629, %v1400
          %v1631 = vpop.permute.xlu0 %1630
          %1633 = vset.pattern.permute.xlu0 4
          %1634 = vperm.xlu0 %1633, %v1402
          %v1635 = vpop.permute.xlu0 %1634
          %1637 = vset.pattern.permute.xlu0 4
          %1638 = vperm.xlu0 %1637, %v1404
          %v1639 = vpop.permute.xlu0 %1638
          %1641 = vset.pattern.permute.xlu0 4
          %1642 = vperm.xlu0 %1641, %v1406
          %v1643 = vpop.permute.xlu0 %1642
          %1645 = vset.pattern.permute.xlu0 4
          %1646 = vperm.xlu0 %1645, %v1408
          %v1647 = vpop.permute.xlu0 %1646
          %1649 = vset.pattern.permute.xlu0 4
          %1650 = vperm.xlu0 %1649, %v1410
          %v1651 = vpop.permute.xlu0 %1650
          %1653 = vset.pattern.permute.xlu0 4
          %1654 = vperm.xlu0 %1653, %v1412
          %v1655 = vpop.permute.xlu0 %1654
          %1657 = vset.pattern.permute.xlu0 4
          %1658 = vperm.xlu0 %1657, %v1414
          %v1659 = vpop.permute.xlu0 %1658
          %1661 = vset.pattern.permute.xlu0 4
          %1662 = vperm.xlu0 %1661, %v1416
          %v1663 = vpop.permute.xlu0 %1662
          %1665 = vset.pattern.permute.xlu0 4
          %1666 = vperm.xlu0 %1665, %v1418
          %v1667 = vpop.permute.xlu0 %1666
          %1669 = vset.pattern.permute.xlu0 4
          %1670 = vperm.xlu0 %1669, %v1420
          %v1671 = vpop.permute.xlu0 %1670
          %1673 = vset.pattern.permute.xlu0 4
          %1674 = vperm.xlu0 %1673, %v1422
          %v1675 = vpop.permute.xlu0 %1674
          %1677 = vset.pattern.permute.xlu0 4
          %1678 = vperm.xlu0 %1677, %v1424
          %v1679 = vpop.permute.xlu0 %1678
          %vm1681 = vcmask 64512
          %v1683 = vsel %vm1681, %v687, 0
          %v1686 = vsel %vm1681, %v688, 0
          %v1689 = vsel %vm1681, %v689, 0
          %v1692 = vsel %vm1681, %v690, 0
          %v1695 = vsel %vm1681, %v691, 0
          %v1698 = vsel %vm1681, %v692, 0
          %v1701 = vsel %vm1681, %v693, 0
          %v1704 = vsel %vm1681, %v694, 0
          %v1707 = vsel %vm1681, %v695, 0
          %v1710 = vsel %vm1681, %v696, 0
          %v1713 = vsel %vm1681, %v697, 0
          %v1716 = vsel %vm1681, %v698, 0
          %v1719 = vsel %vm1681, %v699, 0
          %v1722 = vsel %vm1681, %v700, 0
          %v1725 = vsel %vm1681, %v701, 0
          %v1728 = vsel %vm1681, %v702, 0
          %v1731 = vsel %vm1681, %v703, 0
          %v1734 = vsel %vm1681, %v704, 0
          %v1737 = vsel %vm1681, %v705, 0
          %v1740 = vsel %vm1681, %v706, 0
          %v1743 = vsel %vm1681, %v707, 0
          %v1746 = vsel %vm1681, %v708, 0
          %v1749 = vsel %vm1681, %v709, 0
          %v1752 = vsel %vm1681, %v710, 0
          %v1755 = vsel %vm1681, %v711, 0
          %v1758 = vsel %vm1681, %v712, 0
          %v1761 = vsel %vm1681, %v713, 0
          %v1764 = vsel %vm1681, %v714, 0
          %v1767 = vsel %vm1681, %v715, 0
          %v1770 = vsel %vm1681, %v716, 0
          %v1773 = vsel %vm1681, %v717, 0
          %v1776 = vsel %vm1681, %v718, 0
          %v1779 = vsel %vm1681, %v719, 0
          %v1782 = vsel %vm1681, %v720, 0
          %v1785 = vsel %vm1681, %v721, 0
          %v1788 = vsel %vm1681, %v722, 0
          %v1791 = vsel %vm1681, %v723, 0
          %v1794 = vsel %vm1681, %v724, 0
          %v1797 = vsel %vm1681, %v725, 0
          %v1800 = vsel %vm1681, %v726, 0
          %v1803 = vsel %vm1681, %v727, 0
          %v1806 = vsel %vm1681, %v728, 0
          %v1809 = vsel %vm1681, %v729, 0
          %v1812 = vsel %vm1681, %v730, 0
          %v1815 = vsel %vm1681, %v731, 0
          %v1818 = vsel %vm1681, %v732, 0
          %v1821 = vsel %vm1681, %v733, 0
          %v1824 = vsel %vm1681, %v734, 0
          %v1827 = vsel %vm1681, %v735, 0
          %v1830 = vsel %vm1681, %v736, 0
          %v1833 = vsel %vm1681, %v737, 0
          %v1836 = vsel %vm1681, %v738, 0
          %v1839 = vsel %vm1681, %v739, 0
          %v1842 = vsel %vm1681, %v740, 0
          %v1845 = vsel %vm1681, %v741, 0
          %v1848 = vsel %vm1681, %v742, 0
          %v1851 = vsel %vm1681, %v743, 0
          %v1854 = vsel %vm1681, %v744, 0
          %v1857 = vsel %vm1681, %v745, 0
          %v1860 = vsel %vm1681, %v746, 0
          %v1863 = vsel %vm1681, %v747, 0
          %v1866 = vsel %vm1681, %v748, 0
          %v1869 = vsel %vm1681, %v749, 0
          %v1872 = vsel %vm1681, %v750, 0
          %v1874 = vsel %vm1681, %v1266, 0
          %v1876 = vsel %vm1681, %v1269, 0
          %v1878 = vsel %vm1681, %v1272, 0
          %v1880 = vsel %vm1681, %v1275, 0
          %v1882 = vsel %vm1681, %v1278, 0
          %v1884 = vsel %vm1681, %v1281, 0
          %v1886 = vsel %vm1681, %v1284, 0
          %v1888 = vsel %vm1681, %v1287, 0
          %v1890 = vsel %vm1681, %v1290, 0
          %v1892 = vsel %vm1681, %v1293, 0
          %v1894 = vsel %vm1681, %v1296, 0
          %v1896 = vsel %vm1681, %v1299, 0
          %v1898 = vsel %vm1681, %v1302, 0
          %v1900 = vsel %vm1681, %v1305, 0
          %v1902 = vsel %vm1681, %v1308, 0
          %v1904 = vsel %vm1681, %v1311, 0
          %1906 = vmatpush.xpose.msra.mxu0 %v1904
          %1907 = vmatpush.xpose.msra.mxu0 %v1902
          %1908 = vmatpush.xpose.msra.mxu0 %v1900
          %1909 = vmatpush.xpose.msra.mxu0 %v1898
          %1910 = vmatpush.xpose.msra.mxu0 %v1896
          %1911 = vmatpush.xpose.msra.mxu0 %v1894
          %1912 = vmatpush.xpose.msra.mxu0 %v1892
          %1913 = vmatpush.xpose.msra.mxu0 %v1890
          %1914 = vmatpush.xpose.msra.mxu0 %v1888
          %1915 = vmatpush.xpose.msra.mxu0 %v1886
          %1916 = vmatpush.xpose.msra.mxu0 %v1884
          %1917 = vmatpush.xpose.msra.mxu0 %v1882
          %1918 = vmatpush.xpose.msra.mxu0 %v1880
          %1919 = vmatpush.xpose.msra.mxu0 %v1878
          %1920 = vmatpush.xpose.msra.mxu0 %v1876
          %1921 = vmatpush.xpose.msra.mxu0 %v1874
          %1922 = vmatmul.f32.gmra.mxu0 %v1683
          %v1923 = vpop.f32.mrf.mxu0
          %v1924 = vadd.f32 %v1427, %v1923
          %1925 = vmatmul.f32.gmra.mxu0 %v1686
          %v1926 = vpop.f32.mrf.mxu0
          %v1927 = vadd.f32 %v1431, %v1926
          %1928 = vmatmul.f32.gmra.mxu0 %v1689
          %v1929 = vpop.f32.mrf.mxu0
          %v1930 = vadd.f32 %v1435, %v1929
          %1931 = vmatmul.f32.gmra.mxu0 %v1692
          %v1932 = vpop.f32.mrf.mxu0
          %v1933 = vadd.f32 %v1439, %v1932
          %1934 = vmatmul.f32.gmra.mxu0 %v1695
          %v1935 = vpop.f32.mrf.mxu0
          %v1936 = vadd.f32 %v1443, %v1935
          %1937 = vmatmul.f32.gmra.mxu0 %v1698
          %v1938 = vpop.f32.mrf.mxu0
          %v1939 = vadd.f32 %v1447, %v1938
          %1940 = vmatmul.f32.gmra.mxu0 %v1701
          %v1941 = vpop.f32.mrf.mxu0
          %v1942 = vadd.f32 %v1451, %v1941
          %1943 = vmatmul.f32.gmra.mxu0 %v1704
          %v1944 = vpop.f32.mrf.mxu0
          %v1945 = vadd.f32 %v1455, %v1944
          %1946 = vmatmul.f32.gmra.mxu0 %v1707
          %v1947 = vpop.f32.mrf.mxu0
          %v1948 = vadd.f32 %v1459, %v1947
          %1949 = vmatmul.f32.gmra.mxu0 %v1710
          %v1950 = vpop.f32.mrf.mxu0
          %v1951 = vadd.f32 %v1463, %v1950
          %1952 = vmatmul.f32.gmra.mxu0 %v1713
          %v1953 = vpop.f32.mrf.mxu0
          %v1954 = vadd.f32 %v1467, %v1953
          %1955 = vmatmul.f32.gmra.mxu0 %v1716
          %v1956 = vpop.f32.mrf.mxu0
          %v1957 = vadd.f32 %v1471, %v1956
          %1958 = vmatmul.f32.gmra.mxu0 %v1719
          %v1959 = vpop.f32.mrf.mxu0
          %v1960 = vadd.f32 %v1475, %v1959
          %1961 = vmatmul.f32.gmra.mxu0 %v1722
          %v1962 = vpop.f32.mrf.mxu0
          %v1963 = vadd.f32 %v1479, %v1962
          %1964 = vmatmul.f32.gmra.mxu0 %v1725
          %v1965 = vpop.f32.mrf.mxu0
          %v1966 = vadd.f32 %v1483, %v1965
          %1967 = vmatmul.f32.gmra.mxu0 %v1728
          %v1968 = vpop.f32.mrf.mxu0
          %v1969 = vadd.f32 %v1487, %v1968
          %1970 = vmatmul.f32.gmra.mxu0 %v1731
          %v1971 = vpop.f32.mrf.mxu0
          %v1972 = vadd.f32 %v1491, %v1971
          %1973 = vmatmul.f32.gmra.mxu0 %v1734
          %v1974 = vpop.f32.mrf.mxu0
          %v1975 = vadd.f32 %v1495, %v1974
          %1976 = vmatmul.f32.gmra.mxu0 %v1737
          %v1977 = vpop.f32.mrf.mxu0
          %v1978 = vadd.f32 %v1499, %v1977
          %1979 = vmatmul.f32.gmra.mxu0 %v1740
          %v1980 = vpop.f32.mrf.mxu0
          %v1981 = vadd.f32 %v1503, %v1980
          %1982 = vmatmul.f32.gmra.mxu0 %v1743
          %v1983 = vpop.f32.mrf.mxu0
          %v1984 = vadd.f32 %v1507, %v1983
          %1985 = vmatmul.f32.gmra.mxu0 %v1746
          %v1986 = vpop.f32.mrf.mxu0
          %v1987 = vadd.f32 %v1511, %v1986
          %1988 = vmatmul.f32.gmra.mxu0 %v1749
          %v1989 = vpop.f32.mrf.mxu0
          %v1990 = vadd.f32 %v1515, %v1989
          %1991 = vmatmul.f32.gmra.mxu0 %v1752
          %v1992 = vpop.f32.mrf.mxu0
          %v1993 = vadd.f32 %v1519, %v1992
          %1994 = vmatmul.f32.gmra.mxu0 %v1755
          %v1995 = vpop.f32.mrf.mxu0
          %v1996 = vadd.f32 %v1523, %v1995
          %1997 = vmatmul.f32.gmra.mxu0 %v1758
          %v1998 = vpop.f32.mrf.mxu0
          %v1999 = vadd.f32 %v1527, %v1998
          %2000 = vmatmul.f32.gmra.mxu0 %v1761
          %v2001 = vpop.f32.mrf.mxu0
          %v2002 = vadd.f32 %v1531, %v2001
          %2003 = vmatmul.f32.gmra.mxu0 %v1764
          %v2004 = vpop.f32.mrf.mxu0
          %v2005 = vadd.f32 %v1535, %v2004
          %2006 = vmatmul.f32.gmra.mxu0 %v1767
          %v2007 = vpop.f32.mrf.mxu0
          %v2008 = vadd.f32 %v1539, %v2007
          %2009 = vmatmul.f32.gmra.mxu0 %v1770
          %v2010 = vpop.f32.mrf.mxu0
          %v2011 = vadd.f32 %v1543, %v2010
          %2012 = vmatmul.f32.gmra.mxu0 %v1773
          %v2013 = vpop.f32.mrf.mxu0
          %v2014 = vadd.f32 %v1547, %v2013
          %2015 = vmatmul.f32.gmra.mxu0 %v1776
          %v2016 = vpop.f32.mrf.mxu0
          %v2017 = vadd.f32 %v1551, %v2016
          %2018 = vmatmul.f32.gmra.mxu0 %v1779
          %v2019 = vpop.f32.mrf.mxu0
          %v2020 = vadd.f32 %v1555, %v2019
          %2021 = vmatmul.f32.gmra.mxu0 %v1782
          %v2022 = vpop.f32.mrf.mxu0
          %v2023 = vadd.f32 %v1559, %v2022
          %2024 = vmatmul.f32.gmra.mxu0 %v1785
          %v2025 = vpop.f32.mrf.mxu0
          %v2026 = vadd.f32 %v1563, %v2025
          %2027 = vmatmul.f32.gmra.mxu0 %v1788
          %v2028 = vpop.f32.mrf.mxu0
          %v2029 = vadd.f32 %v1567, %v2028
          %2030 = vmatmul.f32.gmra.mxu0 %v1791
          %v2031 = vpop.f32.mrf.mxu0
          %v2032 = vadd.f32 %v1571, %v2031
          %2033 = vmatmul.f32.gmra.mxu0 %v1794
          %v2034 = vpop.f32.mrf.mxu0
          %v2035 = vadd.f32 %v1575, %v2034
          %2036 = vmatmul.f32.gmra.mxu0 %v1797
          %v2037 = vpop.f32.mrf.mxu0
          %v2038 = vadd.f32 %v1579, %v2037
          %2039 = vmatmul.f32.gmra.mxu0 %v1800
          %v2040 = vpop.f32.mrf.mxu0
          %v2041 = vadd.f32 %v1583, %v2040
          %2042 = vmatmul.f32.gmra.mxu0 %v1803
          %v2043 = vpop.f32.mrf.mxu0
          %v2044 = vadd.f32 %v1587, %v2043
          %2045 = vmatmul.f32.gmra.mxu0 %v1806
          %v2046 = vpop.f32.mrf.mxu0
          %v2047 = vadd.f32 %v1591, %v2046
          %2048 = vmatmul.f32.gmra.mxu0 %v1809
          %v2049 = vpop.f32.mrf.mxu0
          %v2050 = vadd.f32 %v1595, %v2049
          %2051 = vmatmul.f32.gmra.mxu0 %v1812
          %v2052 = vpop.f32.mrf.mxu0
          %v2053 = vadd.f32 %v1599, %v2052
          %2054 = vmatmul.f32.gmra.mxu0 %v1815
          %v2055 = vpop.f32.mrf.mxu0
          %v2056 = vadd.f32 %v1603, %v2055
          %2057 = vmatmul.f32.gmra.mxu0 %v1818
          %v2058 = vpop.f32.mrf.mxu0
          %v2059 = vadd.f32 %v1607, %v2058
          %2060 = vmatmul.f32.gmra.mxu0 %v1821
          %v2061 = vpop.f32.mrf.mxu0
          %v2062 = vadd.f32 %v1611, %v2061
          %2063 = vmatmul.f32.gmra.mxu0 %v1824
          %v2064 = vpop.f32.mrf.mxu0
          %v2065 = vadd.f32 %v1615, %v2064
          %2066 = vmatmul.f32.gmra.mxu0 %v1827
          %v2067 = vpop.f32.mrf.mxu0
          %v2068 = vadd.f32 %v1619, %v2067
          %2069 = vmatmul.f32.gmra.mxu0 %v1830
          %v2070 = vpop.f32.mrf.mxu0
          %v2071 = vadd.f32 %v1623, %v2070
          %2072 = vmatmul.f32.gmra.mxu0 %v1833
          %v2073 = vpop.f32.mrf.mxu0
          %v2074 = vadd.f32 %v1627, %v2073
          %2075 = vmatmul.f32.gmra.mxu0 %v1836
          %v2076 = vpop.f32.mrf.mxu0
          %v2077 = vadd.f32 %v1631, %v2076
          %2078 = vmatmul.f32.gmra.mxu0 %v1839
          %v2079 = vpop.f32.mrf.mxu0
          %v2080 = vadd.f32 %v1635, %v2079
          %2081 = vmatmul.f32.gmra.mxu0 %v1842
          %v2082 = vpop.f32.mrf.mxu0
          %v2083 = vadd.f32 %v1639, %v2082
          %2084 = vmatmul.f32.gmra.mxu0 %v1845
          %v2085 = vpop.f32.mrf.mxu0
          %v2086 = vadd.f32 %v1643, %v2085
          %2087 = vmatmul.f32.gmra.mxu0 %v1848
          %v2088 = vpop.f32.mrf.mxu0
          %v2089 = vadd.f32 %v1647, %v2088
          %2090 = vmatmul.f32.gmra.mxu0 %v1851
          %v2091 = vpop.f32.mrf.mxu0
          %v2092 = vadd.f32 %v1651, %v2091
          %2093 = vmatmul.f32.gmra.mxu0 %v1854
          %v2094 = vpop.f32.mrf.mxu0
          %v2095 = vadd.f32 %v1655, %v2094
          %2096 = vmatmul.f32.gmra.mxu0 %v1857
          %v2097 = vpop.f32.mrf.mxu0
          %v2098 = vadd.f32 %v1659, %v2097
          %2099 = vmatmul.f32.gmra.mxu0 %v1860
          %v2100 = vpop.f32.mrf.mxu0
          %v2101 = vadd.f32 %v1663, %v2100
          %2102 = vmatmul.f32.gmra.mxu0 %v1863
          %v2103 = vpop.f32.mrf.mxu0
          %v2104 = vadd.f32 %v1667, %v2103
          %2105 = vmatmul.f32.gmra.mxu0 %v1866
          %v2106 = vpop.f32.mrf.mxu0
          %v2107 = vadd.f32 %v1671, %v2106
          %2108 = vmatmul.f32.gmra.mxu0 %v1869
          %v2109 = vpop.f32.mrf.mxu0
          %v2110 = vadd.f32 %v1675, %v2109
          %2111 = vmatmul.f32.gmra.mxu0 %v1872
          %v2112 = vpop.f32.mrf.mxu0
          %v2113 = vadd.f32 %v1679, %v2112
          %2114 = vdwg.mxu0
          %vm2115 = vcmp.gt.f32.partialorder %v1924, 0.0
          %vm2116 = vcmp.gt.f32.partialorder %v1927, 0.0
          %vm2117 = vcmp.gt.f32.partialorder %v1930, 0.0
          %vm2118 = vcmp.gt.f32.partialorder %v1933, 0.0
          %vm2119 = vcmp.gt.f32.partialorder %v1936, 0.0
          %vm2120 = vcmp.gt.f32.partialorder %v1939, 0.0
          %vm2121 = vcmp.gt.f32.partialorder %v1942, 0.0
          %vm2122 = vcmp.gt.f32.partialorder %v1945, 0.0
          %vm2123 = vcmp.gt.f32.partialorder %v1948, 0.0
          %vm2124 = vcmp.gt.f32.partialorder %v1951, 0.0
          %vm2125 = vcmp.gt.f32.partialorder %v1954, 0.0
          %vm2126 = vcmp.gt.f32.partialorder %v1957, 0.0
          %vm2127 = vcmp.gt.f32.partialorder %v1960, 0.0
          %vm2128 = vcmp.gt.f32.partialorder %v1963, 0.0
          %vm2129 = vcmp.gt.f32.partialorder %v1966, 0.0
          %vm2130 = vcmp.gt.f32.partialorder %v1969, 0.0
          %vm2131 = vcmp.gt.f32.partialorder %v1972, 0.0
          %vm2132 = vcmp.gt.f32.partialorder %v1975, 0.0
          %vm2133 = vcmp.gt.f32.partialorder %v1978, 0.0
          %vm2134 = vcmp.gt.f32.partialorder %v1981, 0.0
          %vm2135 = vcmp.gt.f32.partialorder %v1984, 0.0
          %vm2136 = vcmp.gt.f32.partialorder %v1987, 0.0
          %vm2137 = vcmp.gt.f32.partialorder %v1990, 0.0
          %vm2138 = vcmp.gt.f32.partialorder %v1993, 0.0
          %vm2139 = vcmp.gt.f32.partialorder %v1996, 0.0
          %vm2140 = vcmp.gt.f32.partialorder %v1999, 0.0
          %vm2141 = vcmp.gt.f32.partialorder %v2002, 0.0
          %vm2142 = vcmp.gt.f32.partialorder %v2005, 0.0
          %vm2143 = vcmp.gt.f32.partialorder %v2008, 0.0
          %vm2144 = vcmp.gt.f32.partialorder %v2011, 0.0
          %vm2145 = vcmp.gt.f32.partialorder %v2014, 0.0
          %vm2146 = vcmp.gt.f32.partialorder %v2017, 0.0
          %vm2147 = vcmp.gt.f32.partialorder %v2020, 0.0
          %vm2148 = vcmp.gt.f32.partialorder %v2023, 0.0
          %vm2149 = vcmp.gt.f32.partialorder %v2026, 0.0
          %vm2150 = vcmp.gt.f32.partialorder %v2029, 0.0
          %vm2151 = vcmp.gt.f32.partialorder %v2032, 0.0
          %vm2152 = vcmp.gt.f32.partialorder %v2035, 0.0
          %vm2153 = vcmp.gt.f32.partialorder %v2038, 0.0
          %vm2154 = vcmp.gt.f32.partialorder %v2041, 0.0
          %vm2155 = vcmp.gt.f32.partialorder %v2044, 0.0
          %vm2156 = vcmp.gt.f32.partialorder %v2047, 0.0
          %vm2157 = vcmp.gt.f32.partialorder %v2050, 0.0
          %vm2158 = vcmp.gt.f32.partialorder %v2053, 0.0
          %vm2159 = vcmp.gt.f32.partialorder %v2056, 0.0
          %vm2160 = vcmp.gt.f32.partialorder %v2059, 0.0
          %vm2161 = vcmp.gt.f32.partialorder %v2062, 0.0
          %vm2162 = vcmp.gt.f32.partialorder %v2065, 0.0
          %vm2163 = vcmp.gt.f32.partialorder %v2068, 0.0
          %vm2164 = vcmp.gt.f32.partialorder %v2071, 0.0
          %vm2165 = vcmp.gt.f32.partialorder %v2074, 0.0
          %vm2166 = vcmp.gt.f32.partialorder %v2077, 0.0
          %vm2167 = vcmp.gt.f32.partialorder %v2080, 0.0
          %vm2168 = vcmp.gt.f32.partialorder %v2083, 0.0
          %vm2169 = vcmp.gt.f32.partialorder %v2086, 0.0
          %vm2170 = vcmp.gt.f32.partialorder %v2089, 0.0
          %vm2171 = vcmp.gt.f32.partialorder %v2092, 0.0
          %vm2172 = vcmp.gt.f32.partialorder %v2095, 0.0
          %vm2173 = vcmp.gt.f32.partialorder %v2098, 0.0
          %vm2174 = vcmp.gt.f32.partialorder %v2101, 0.0
          %vm2175 = vcmp.gt.f32.partialorder %v2104, 0.0
          %vm2176 = vcmp.gt.f32.partialorder %v2107, 0.0
          %vm2177 = vcmp.gt.f32.partialorder %v2110, 0.0
          %vm2178 = vcmp.gt.f32.partialorder %v2113, 0.0
          %v2179 = vmul.f32 %v1924, 0.2
          %v2180 = vmul.f32 %v1927, 0.2
          %v2181 = vmul.f32 %v1930, 0.2
          %v2182 = vmul.f32 %v1933, 0.2
          %v2183 = vmul.f32 %v1936, 0.2
          %v2184 = vmul.f32 %v1939, 0.2
          %v2185 = vmul.f32 %v1942, 0.2
          %v2186 = vmul.f32 %v1945, 0.2
          %v2187 = vmul.f32 %v1948, 0.2
          %v2188 = vmul.f32 %v1951, 0.2
          %v2189 = vmul.f32 %v1954, 0.2
          %v2190 = vmul.f32 %v1957, 0.2
          %v2191 = vmul.f32 %v1960, 0.2
          %v2192 = vmul.f32 %v1963, 0.2
          %v2193 = vmul.f32 %v1966, 0.2
          %v2194 = vmul.f32 %v1969, 0.2
          %v2195 = vmul.f32 %v1972, 0.2
          %v2196 = vmul.f32 %v1975, 0.2
          %v2197 = vmul.f32 %v1978, 0.2
          %v2198 = vmul.f32 %v1981, 0.2
          %v2199 = vmul.f32 %v1984, 0.2
          %v2200 = vmul.f32 %v1987, 0.2
          %v2201 = vmul.f32 %v1990, 0.2
          %v2202 = vmul.f32 %v1993, 0.2
          %v2203 = vmul.f32 %v1996, 0.2
          %v2204 = vmul.f32 %v1999, 0.2
          %v2205 = vmul.f32 %v2002, 0.2
          %v2206 = vmul.f32 %v2005, 0.2
          %v2207 = vmul.f32 %v2008, 0.2
          %v2208 = vmul.f32 %v2011, 0.2
          %v2209 = vmul.f32 %v2014, 0.2
          %v2210 = vmul.f32 %v2017, 0.2
          %v2211 = vmul.f32 %v2020, 0.2
          %v2212 = vmul.f32 %v2023, 0.2
          %v2213 = vmul.f32 %v2026, 0.2
          %v2214 = vmul.f32 %v2029, 0.2
          %v2215 = vmul.f32 %v2032, 0.2
          %v2216 = vmul.f32 %v2035, 0.2
          %v2217 = vmul.f32 %v2038, 0.2
          %v2218 = vmul.f32 %v2041, 0.2
          %v2219 = vmul.f32 %v2044, 0.2
          %v2220 = vmul.f32 %v2047, 0.2
          %v2221 = vmul.f32 %v2050, 0.2
          %v2222 = vmul.f32 %v2053, 0.2
          %v2223 = vmul.f32 %v2056, 0.2
          %v2224 = vmul.f32 %v2059, 0.2
          %v2225 = vmul.f32 %v2062, 0.2
          %v2226 = vmul.f32 %v2065, 0.2
          %v2227 = vmul.f32 %v2068, 0.2
          %v2228 = vmul.f32 %v2071, 0.2
          %v2229 = vmul.f32 %v2074, 0.2
          %v2230 = vmul.f32 %v2077, 0.2
          %v2231 = vmul.f32 %v2080, 0.2
          %v2232 = vmul.f32 %v2083, 0.2
          %v2233 = vmul.f32 %v2086, 0.2
          %v2234 = vmul.f32 %v2089, 0.2
          %v2235 = vmul.f32 %v2092, 0.2
          %v2236 = vmul.f32 %v2095, 0.2
          %v2237 = vmul.f32 %v2098, 0.2
          %v2238 = vmul.f32 %v2101, 0.2
          %v2239 = vmul.f32 %v2104, 0.2
          %v2240 = vmul.f32 %v2107, 0.2
          %v2241 = vmul.f32 %v2110, 0.2
          %v2242 = vmul.f32 %v2113, 0.2
          %v2243 = vsel %vm2115, %v1924, %v2179
          %v2244 = vsel %vm2116, %v1927, %v2180
          %v2245 = vsel %vm2117, %v1930, %v2181
          %v2246 = vsel %vm2118, %v1933, %v2182
          %v2247 = vsel %vm2119, %v1936, %v2183
          %v2248 = vsel %vm2120, %v1939, %v2184
          %v2249 = vsel %vm2121, %v1942, %v2185
          %v2250 = vsel %vm2122, %v1945, %v2186
          %v2251 = vsel %vm2123, %v1948, %v2187
          %v2252 = vsel %vm2124, %v1951, %v2188
          %v2253 = vsel %vm2125, %v1954, %v2189
          %v2254 = vsel %vm2126, %v1957, %v2190
          %v2255 = vsel %vm2127, %v1960, %v2191
          %v2256 = vsel %vm2128, %v1963, %v2192
          %v2257 = vsel %vm2129, %v1966, %v2193
          %v2258 = vsel %vm2130, %v1969, %v2194
          %v2259 = vsel %vm2131, %v1972, %v2195
          %v2260 = vsel %vm2132, %v1975, %v2196
          %v2261 = vsel %vm2133, %v1978, %v2197
          %v2262 = vsel %vm2134, %v1981, %v2198
          %v2263 = vsel %vm2135, %v1984, %v2199
          %v2264 = vsel %vm2136, %v1987, %v2200
          %v2265 = vsel %vm2137, %v1990, %v2201
          %v2266 = vsel %vm2138, %v1993, %v2202
          %v2267 = vsel %vm2139, %v1996, %v2203
          %v2268 = vsel %vm2140, %v1999, %v2204
          %v2269 = vsel %vm2141, %v2002, %v2205
          %v2270 = vsel %vm2142, %v2005, %v2206
          %v2271 = vsel %vm2143, %v2008, %v2207
          %v2272 = vsel %vm2144, %v2011, %v2208
          %v2273 = vsel %vm2145, %v2014, %v2209
          %v2274 = vsel %vm2146, %v2017, %v2210
          %v2275 = vsel %vm2147, %v2020, %v2211
          %v2276 = vsel %vm2148, %v2023, %v2212
          %v2277 = vsel %vm2149, %v2026, %v2213
          %v2278 = vsel %vm2150, %v2029, %v2214
          %v2279 = vsel %vm2151, %v2032, %v2215
          %v2280 = vsel %vm2152, %v2035, %v2216
          %v2281 = vsel %vm2153, %v2038, %v2217
          %v2282 = vsel %vm2154, %v2041, %v2218
          %v2283 = vsel %vm2155, %v2044, %v2219
          %v2284 = vsel %vm2156, %v2047, %v2220
          %v2285 = vsel %vm2157, %v2050, %v2221
          %v2286 = vsel %vm2158, %v2053, %v2222
          %v2287 = vsel %vm2159, %v2056, %v2223
          %v2288 = vsel %vm2160, %v2059, %v2224
          %v2289 = vsel %vm2161, %v2062, %v2225
          %v2290 = vsel %vm2162, %v2065, %v2226
          %v2291 = vsel %vm2163, %v2068, %v2227
          %v2292 = vsel %vm2164, %v2071, %v2228
          %v2293 = vsel %vm2165, %v2074, %v2229
          %v2294 = vsel %vm2166, %v2077, %v2230
          %v2295 = vsel %vm2167, %v2080, %v2231
          %v2296 = vsel %vm2168, %v2083, %v2232
          %v2297 = vsel %vm2169, %v2086, %v2233
          %v2298 = vsel %vm2170, %v2089, %v2234
          %v2299 = vsel %vm2171, %v2092, %v2235
          %v2300 = vsel %vm2172, %v2095, %v2236
          %v2301 = vsel %vm2173, %v2098, %v2237
          %v2302 = vsel %vm2174, %v2101, %v2238
          %v2303 = vsel %vm2175, %v2104, %v2239
          %v2304 = vsel %vm2176, %v2107, %v2240
          %v2305 = vsel %vm2177, %v2110, %v2241
          %v2306 = vsel %vm2178, %v2113, %v2242
          %v2307 = vadd.f32 %v2243, %v623
          %v2308 = vadd.f32 %v2244, %v624
          %v2309 = vadd.f32 %v2245, %v625
          %v2310 = vadd.f32 %v2246, %v626
          %v2311 = vadd.f32 %v2247, %v627
          %v2312 = vadd.f32 %v2248, %v628
          %v2313 = vadd.f32 %v2249, %v629
          %v2314 = vadd.f32 %v2250, %v630
          %v2315 = vadd.f32 %v2251, %v631
          %v2316 = vadd.f32 %v2252, %v632
          %v2317 = vadd.f32 %v2253, %v633
          %v2318 = vadd.f32 %v2254, %v634
          %v2319 = vadd.f32 %v2255, %v635
          %v2320 = vadd.f32 %v2256, %v636
          %v2321 = vadd.f32 %v2257, %v637
          %v2322 = vadd.f32 %v2258, %v638
          %v2323 = vadd.f32 %v2259, %v639
          %v2324 = vadd.f32 %v2260, %v640
          %v2325 = vadd.f32 %v2261, %v641
          %v2326 = vadd.f32 %v2262, %v642
          %v2327 = vadd.f32 %v2263, %v643
          %v2328 = vadd.f32 %v2264, %v644
          %v2329 = vadd.f32 %v2265, %v645
          %v2330 = vadd.f32 %v2266, %v646
          %v2331 = vadd.f32 %v2267, %v647
          %v2332 = vadd.f32 %v2268, %v648
          %v2333 = vadd.f32 %v2269, %v649
          %v2334 = vadd.f32 %v2270, %v650
          %v2335 = vadd.f32 %v2271, %v651
          %v2336 = vadd.f32 %v2272, %v652
          %v2337 = vadd.f32 %v2273, %v653
          %v2338 = vadd.f32 %v2274, %v654
          %v2339 = vadd.f32 %v2275, %v655
          %v2340 = vadd.f32 %v2276, %v656
          %v2341 = vadd.f32 %v2277, %v657
          %v2342 = vadd.f32 %v2278, %v658
          %v2343 = vadd.f32 %v2279, %v659
          %v2344 = vadd.f32 %v2280, %v660
          %v2345 = vadd.f32 %v2281, %v661
          %v2346 = vadd.f32 %v2282, %v662
          %v2347 = vadd.f32 %v2283, %v663
          %v2348 = vadd.f32 %v2284, %v664
          %v2349 = vadd.f32 %v2285, %v665
          %v2350 = vadd.f32 %v2286, %v666
          %v2351 = vadd.f32 %v2287, %v667
          %v2352 = vadd.f32 %v2288, %v668
          %v2353 = vadd.f32 %v2289, %v669
          %v2354 = vadd.f32 %v2290, %v670
          %v2355 = vadd.f32 %v2291, %v671
          %v2356 = vadd.f32 %v2292, %v672
          %v2357 = vadd.f32 %v2293, %v673
          %v2358 = vadd.f32 %v2294, %v674
          %v2359 = vadd.f32 %v2295, %v675
          %v2360 = vadd.f32 %v2296, %v676
          %v2361 = vadd.f32 %v2297, %v677
          %v2362 = vadd.f32 %v2298, %v678
          %v2363 = vadd.f32 %v2299, %v679
          %v2364 = vadd.f32 %v2300, %v680
          %v2365 = vadd.f32 %v2301, %v681
          %v2366 = vadd.f32 %v2302, %v682
          %v2367 = vadd.f32 %v2303, %v683
          %v2368 = vadd.f32 %v2304, %v684
          %v2369 = vadd.f32 %v2305, %v685
          %v2370 = vadd.f32 %v2306, %v686
          %2371 = vmax.xlane.f32.xlu0 %v2307
          %v2372 = vpop.xlane.xlu0 %2371
          %2373 = vmax.xlane.f32.xlu0 %v2308
          %v2374 = vpop.xlane.xlu0 %2373
          %2375 = vmax.xlane.f32.xlu0 %v2309
          %v2376 = vpop.xlane.xlu0 %2375
          %2377 = vmax.xlane.f32.xlu0 %v2310
          %v2378 = vpop.xlane.xlu0 %2377
          %2379 = vmax.xlane.f32.xlu0 %v2311
          %v2380 = vpop.xlane.xlu0 %2379
          %2381 = vmax.xlane.f32.xlu0 %v2312
          %v2382 = vpop.xlane.xlu0 %2381
          %2383 = vmax.xlane.f32.xlu0 %v2313
          %v2384 = vpop.xlane.xlu0 %2383
          %2385 = vmax.xlane.f32.xlu0 %v2314
          %v2386 = vpop.xlane.xlu0 %2385
          %2387 = vmax.xlane.f32.xlu0 %v2315
          %v2388 = vpop.xlane.xlu0 %2387
          %2389 = vmax.xlane.f32.xlu0 %v2316
          %v2390 = vpop.xlane.xlu0 %2389
          %2391 = vmax.xlane.f32.xlu0 %v2317
          %v2392 = vpop.xlane.xlu0 %2391
          %2393 = vmax.xlane.f32.xlu0 %v2318
          %v2394 = vpop.xlane.xlu0 %2393
          %2395 = vmax.xlane.f32.xlu0 %v2319
          %v2396 = vpop.xlane.xlu0 %2395
          %2397 = vmax.xlane.f32.xlu0 %v2320
          %v2398 = vpop.xlane.xlu0 %2397
          %2399 = vmax.xlane.f32.xlu0 %v2321
          %v2400 = vpop.xlane.xlu0 %2399
          %2401 = vmax.xlane.f32.xlu0 %v2322
          %v2402 = vpop.xlane.xlu0 %2401
          %2403 = vmax.xlane.f32.xlu0 %v2323
          %v2404 = vpop.xlane.xlu0 %2403
          %2405 = vmax.xlane.f32.xlu0 %v2324
          %v2406 = vpop.xlane.xlu0 %2405
          %2407 = vmax.xlane.f32.xlu0 %v2325
          %v2408 = vpop.xlane.xlu0 %2407
          %2409 = vmax.xlane.f32.xlu0 %v2326
          %v2410 = vpop.xlane.xlu0 %2409
          %2411 = vmax.xlane.f32.xlu0 %v2327
          %v2412 = vpop.xlane.xlu0 %2411
          %2413 = vmax.xlane.f32.xlu0 %v2328
          %v2414 = vpop.xlane.xlu0 %2413
          %2415 = vmax.xlane.f32.xlu0 %v2329
          %v2416 = vpop.xlane.xlu0 %2415
          %2417 = vmax.xlane.f32.xlu0 %v2330
          %v2418 = vpop.xlane.xlu0 %2417
          %2419 = vmax.xlane.f32.xlu0 %v2331
          %v2420 = vpop.xlane.xlu0 %2419
          %2421 = vmax.xlane.f32.xlu0 %v2332
          %v2422 = vpop.xlane.xlu0 %2421
          %2423 = vmax.xlane.f32.xlu0 %v2333
          %v2424 = vpop.xlane.xlu0 %2423
          %2425 = vmax.xlane.f32.xlu0 %v2334
          %v2426 = vpop.xlane.xlu0 %2425
          %2427 = vmax.xlane.f32.xlu0 %v2335
          %v2428 = vpop.xlane.xlu0 %2427
          %2429 = vmax.xlane.f32.xlu0 %v2336
          %v2430 = vpop.xlane.xlu0 %2429
          %2431 = vmax.xlane.f32.xlu0 %v2337
          %v2432 = vpop.xlane.xlu0 %2431
          %2433 = vmax.xlane.f32.xlu0 %v2338
          %v2434 = vpop.xlane.xlu0 %2433
          %2435 = vmax.xlane.f32.xlu0 %v2339
          %v2436 = vpop.xlane.xlu0 %2435
          %2437 = vmax.xlane.f32.xlu0 %v2340
          %v2438 = vpop.xlane.xlu0 %2437
          %2439 = vmax.xlane.f32.xlu0 %v2341
          %v2440 = vpop.xlane.xlu0 %2439
          %2441 = vmax.xlane.f32.xlu0 %v2342
          %v2442 = vpop.xlane.xlu0 %2441
          %2443 = vmax.xlane.f32.xlu0 %v2343
          %v2444 = vpop.xlane.xlu0 %2443
          %2445 = vmax.xlane.f32.xlu0 %v2344
          %v2446 = vpop.xlane.xlu0 %2445
          %2447 = vmax.xlane.f32.xlu0 %v2345
          %v2448 = vpop.xlane.xlu0 %2447
          %2449 = vmax.xlane.f32.xlu0 %v2346
          %v2450 = vpop.xlane.xlu0 %2449
          %2451 = vmax.xlane.f32.xlu0 %v2347
          %v2452 = vpop.xlane.xlu0 %2451
          %2453 = vmax.xlane.f32.xlu0 %v2348
          %v2454 = vpop.xlane.xlu0 %2453
          %2455 = vmax.xlane.f32.xlu0 %v2349
          %v2456 = vpop.xlane.xlu0 %2455
          %2457 = vmax.xlane.f32.xlu0 %v2350
          %v2458 = vpop.xlane.xlu0 %2457
          %2459 = vmax.xlane.f32.xlu0 %v2351
          %v2460 = vpop.xlane.xlu0 %2459
          %2461 = vmax.xlane.f32.xlu0 %v2352
          %v2462 = vpop.xlane.xlu0 %2461
          %2463 = vmax.xlane.f32.xlu0 %v2353
          %v2464 = vpop.xlane.xlu0 %2463
          %2465 = vmax.xlane.f32.xlu0 %v2354
          %v2466 = vpop.xlane.xlu0 %2465
          %2467 = vmax.xlane.f32.xlu0 %v2355
          %v2468 = vpop.xlane.xlu0 %2467
          %2469 = vmax.xlane.f32.xlu0 %v2356
          %v2470 = vpop.xlane.xlu0 %2469
          %2471 = vmax.xlane.f32.xlu0 %v2357
          %v2472 = vpop.xlane.xlu0 %2471
          %2473 = vmax.xlane.f32.xlu0 %v2358
          %v2474 = vpop.xlane.xlu0 %2473
          %2475 = vmax.xlane.f32.xlu0 %v2359
          %v2476 = vpop.xlane.xlu0 %2475
          %2477 = vmax.xlane.f32.xlu0 %v2360
          %v2478 = vpop.xlane.xlu0 %2477
          %2479 = vmax.xlane.f32.xlu0 %v2361
          %v2480 = vpop.xlane.xlu0 %2479
          %2481 = vmax.xlane.f32.xlu0 %v2362
          %v2482 = vpop.xlane.xlu0 %2481
          %2483 = vmax.xlane.f32.xlu0 %v2363
          %v2484 = vpop.xlane.xlu0 %2483
          %2485 = vmax.xlane.f32.xlu0 %v2364
          %v2486 = vpop.xlane.xlu0 %2485
          %2487 = vmax.xlane.f32.xlu0 %v2365
          %v2488 = vpop.xlane.xlu0 %2487
          %2489 = vmax.xlane.f32.xlu0 %v2366
          %v2490 = vpop.xlane.xlu0 %2489
          %2491 = vmax.xlane.f32.xlu0 %v2367
          %v2492 = vpop.xlane.xlu0 %2491
          %2493 = vmax.xlane.f32.xlu0 %v2368
          %v2494 = vpop.xlane.xlu0 %2493
          %2495 = vmax.xlane.f32.xlu0 %v2369
          %v2496 = vpop.xlane.xlu0 %2495
          %2497 = vmax.xlane.f32.xlu0 %v2370
          %v2498 = vpop.xlane.xlu0 %2497
          %v2499 = vsub.f32 %v2307, %v2372
          %v2500 = vsub.f32 %v2308, %v2374
          %v2501 = vsub.f32 %v2309, %v2376
          %v2502 = vsub.f32 %v2310, %v2378
          %v2503 = vsub.f32 %v2311, %v2380
          %v2504 = vsub.f32 %v2312, %v2382
          %v2505 = vsub.f32 %v2313, %v2384
          %v2506 = vsub.f32 %v2314, %v2386
          %v2507 = vsub.f32 %v2315, %v2388
          %v2508 = vsub.f32 %v2316, %v2390
          %v2509 = vsub.f32 %v2317, %v2392
          %v2510 = vsub.f32 %v2318, %v2394
          %v2511 = vsub.f32 %v2319, %v2396
          %v2512 = vsub.f32 %v2320, %v2398
          %v2513 = vsub.f32 %v2321, %v2400
          %v2514 = vsub.f32 %v2322, %v2402
          %v2515 = vsub.f32 %v2323, %v2404
          %v2516 = vsub.f32 %v2324, %v2406
          %v2517 = vsub.f32 %v2325, %v2408
          %v2518 = vsub.f32 %v2326, %v2410
          %v2519 = vsub.f32 %v2327, %v2412
          %v2520 = vsub.f32 %v2328, %v2414
          %v2521 = vsub.f32 %v2329, %v2416
          %v2522 = vsub.f32 %v2330, %v2418
          %v2523 = vsub.f32 %v2331, %v2420
          %v2524 = vsub.f32 %v2332, %v2422
          %v2525 = vsub.f32 %v2333, %v2424
          %v2526 = vsub.f32 %v2334, %v2426
          %v2527 = vsub.f32 %v2335, %v2428
          %v2528 = vsub.f32 %v2336, %v2430
          %v2529 = vsub.f32 %v2337, %v2432
          %v2530 = vsub.f32 %v2338, %v2434
          %v2531 = vsub.f32 %v2339, %v2436
          %v2532 = vsub.f32 %v2340, %v2438
          %v2533 = vsub.f32 %v2341, %v2440
          %v2534 = vsub.f32 %v2342, %v2442
          %v2535 = vsub.f32 %v2343, %v2444
          %v2536 = vsub.f32 %v2344, %v2446
          %v2537 = vsub.f32 %v2345, %v2448
          %v2538 = vsub.f32 %v2346, %v2450
          %v2539 = vsub.f32 %v2347, %v2452
          %v2540 = vsub.f32 %v2348, %v2454
          %v2541 = vsub.f32 %v2349, %v2456
          %v2542 = vsub.f32 %v2350, %v2458
          %v2543 = vsub.f32 %v2351, %v2460
          %v2544 = vsub.f32 %v2352, %v2462
          %v2545 = vsub.f32 %v2353, %v2464
          %v2546 = vsub.f32 %v2354, %v2466
          %v2547 = vsub.f32 %v2355, %v2468
          %v2548 = vsub.f32 %v2356, %v2470
          %v2549 = vsub.f32 %v2357, %v2472
          %v2550 = vsub.f32 %v2358, %v2474
          %v2551 = vsub.f32 %v2359, %v2476
          %v2552 = vsub.f32 %v2360, %v2478
          %v2553 = vsub.f32 %v2361, %v2480
          %v2554 = vsub.f32 %v2362, %v2482
          %v2555 = vsub.f32 %v2363, %v2484
          %v2556 = vsub.f32 %v2364, %v2486
          %v2557 = vsub.f32 %v2365, %v2488
          %v2558 = vsub.f32 %v2366, %v2490
          %v2559 = vsub.f32 %v2367, %v2492
          %v2560 = vsub.f32 %v2368, %v2494
          %v2561 = vsub.f32 %v2369, %v2496
          %v2562 = vsub.f32 %v2370, %v2498
          %v2563 = vmul.f32 %v2499, 1.442695
          %v2564 = vpow.pop %v2563
          %v2565 = vmul.f32 %v2500, 1.442695
          %v2566 = vpow.pop %v2565
          %v2567 = vmul.f32 %v2501, 1.442695
          %v2568 = vpow.pop %v2567
          %v2569 = vmul.f32 %v2502, 1.442695
          %v2570 = vpow.pop %v2569
          %v2571 = vmul.f32 %v2503, 1.442695
          %v2572 = vpow.pop %v2571
          %v2573 = vmul.f32 %v2504, 1.442695
          %v2574 = vpow.pop %v2573
          %v2575 = vmul.f32 %v2505, 1.442695
          %v2576 = vpow.pop %v2575
          %v2577 = vmul.f32 %v2506, 1.442695
          %v2578 = vpow.pop %v2577
          %v2579 = vmul.f32 %v2507, 1.442695
          %v2580 = vpow.pop %v2579
          %v2581 = vmul.f32 %v2508, 1.442695
          %v2582 = vpow.pop %v2581
          %v2583 = vmul.f32 %v2509, 1.442695
          %v2584 = vpow.pop %v2583
          %v2585 = vmul.f32 %v2510, 1.442695
          %v2586 = vpow.pop %v2585
          %v2587 = vmul.f32 %v2511, 1.442695
          %v2588 = vpow.pop %v2587
          %v2589 = vmul.f32 %v2512, 1.442695
          %v2590 = vpow.pop %v2589
          %v2591 = vmul.f32 %v2513, 1.442695
          %v2592 = vpow.pop %v2591
          %v2593 = vmul.f32 %v2514, 1.442695
          %v2594 = vpow.pop %v2593
          %v2595 = vmul.f32 %v2515, 1.442695
          %v2596 = vpow.pop %v2595
          %v2597 = vmul.f32 %v2516, 1.442695
          %v2598 = vpow.pop %v2597
          %v2599 = vmul.f32 %v2517, 1.442695
          %v2600 = vpow.pop %v2599
          %v2601 = vmul.f32 %v2518, 1.442695
          %v2602 = vpow.pop %v2601
          %v2603 = vmul.f32 %v2519, 1.442695
          %v2604 = vpow.pop %v2603
          %v2605 = vmul.f32 %v2520, 1.442695
          %v2606 = vpow.pop %v2605
          %v2607 = vmul.f32 %v2521, 1.442695
          %v2608 = vpow.pop %v2607
          %v2609 = vmul.f32 %v2522, 1.442695
          %v2610 = vpow.pop %v2609
          %v2611 = vmul.f32 %v2523, 1.442695
          %v2612 = vpow.pop %v2611
          %v2613 = vmul.f32 %v2524, 1.442695
          %v2614 = vpow.pop %v2613
          %v2615 = vmul.f32 %v2525, 1.442695
          %v2616 = vpow.pop %v2615
          %v2617 = vmul.f32 %v2526, 1.442695
          %v2618 = vpow.pop %v2617
          %v2619 = vmul.f32 %v2527, 1.442695
          %v2620 = vpow.pop %v2619
          %v2621 = vmul.f32 %v2528, 1.442695
          %v2622 = vpow.pop %v2621
          %v2623 = vmul.f32 %v2529, 1.442695
          %v2624 = vpow.pop %v2623
          %v2625 = vmul.f32 %v2530, 1.442695
          %v2626 = vpow.pop %v2625
          %v2627 = vmul.f32 %v2531, 1.442695
          %v2628 = vpow.pop %v2627
          %v2629 = vmul.f32 %v2532, 1.442695
          %v2630 = vpow.pop %v2629
          %v2631 = vmul.f32 %v2533, 1.442695
          %v2632 = vpow.pop %v2631
          %v2633 = vmul.f32 %v2534, 1.442695
          %v2634 = vpow.pop %v2633
          %v2635 = vmul.f32 %v2535, 1.442695
          %v2636 = vpow.pop %v2635
          %v2637 = vmul.f32 %v2536, 1.442695
          %v2638 = vpow.pop %v2637
          %v2639 = vmul.f32 %v2537, 1.442695
          %v2640 = vpow.pop %v2639
          %v2641 = vmul.f32 %v2538, 1.442695
          %v2642 = vpow.pop %v2641
          %v2643 = vmul.f32 %v2539, 1.442695
          %v2644 = vpow.pop %v2643
          %v2645 = vmul.f32 %v2540, 1.442695
          %v2646 = vpow.pop %v2645
          %v2647 = vmul.f32 %v2541, 1.442695
          %v2648 = vpow.pop %v2647
          %v2649 = vmul.f32 %v2542, 1.442695
          %v2650 = vpow.pop %v2649
          %v2651 = vmul.f32 %v2543, 1.442695
          %v2652 = vpow.pop %v2651
          %v2653 = vmul.f32 %v2544, 1.442695
          %v2654 = vpow.pop %v2653
          %v2655 = vmul.f32 %v2545, 1.442695
          %v2656 = vpow.pop %v2655
          %v2657 = vmul.f32 %v2546, 1.442695
          %v2658 = vpow.pop %v2657
          %v2659 = vmul.f32 %v2547, 1.442695
          %v2660 = vpow.pop %v2659
          %v2661 = vmul.f32 %v2548, 1.442695
          %v2662 = vpow.pop %v2661
          %v2663 = vmul.f32 %v2549, 1.442695
          %v2664 = vpow.pop %v2663
          %v2665 = vmul.f32 %v2550, 1.442695
          %v2666 = vpow.pop %v2665
          %v2667 = vmul.f32 %v2551, 1.442695
          %v2668 = vpow.pop %v2667
          %v2669 = vmul.f32 %v2552, 1.442695
          %v2670 = vpow.pop %v2669
          %v2671 = vmul.f32 %v2553, 1.442695
          %v2672 = vpow.pop %v2671
          %v2673 = vmul.f32 %v2554, 1.442695
          %v2674 = vpow.pop %v2673
          %v2675 = vmul.f32 %v2555, 1.442695
          %v2676 = vpow.pop %v2675
          %v2677 = vmul.f32 %v2556, 1.442695
          %v2678 = vpow.pop %v2677
          %v2679 = vmul.f32 %v2557, 1.442695
          %v2680 = vpow.pop %v2679
          %v2681 = vmul.f32 %v2558, 1.442695
          %v2682 = vpow.pop %v2681
          %v2683 = vmul.f32 %v2559, 1.442695
          %v2684 = vpow.pop %v2683
          %v2685 = vmul.f32 %v2560, 1.442695
          %v2686 = vpow.pop %v2685
          %v2687 = vmul.f32 %v2561, 1.442695
          %v2688 = vpow.pop %v2687
          %v2689 = vmul.f32 %v2562, 1.442695
          %v2690 = vpow.pop %v2689
          %2691 = vadd.xlane.f32.xlu0 %v2564
          %v2692 = vpop.xlane.xlu0 %2691
          %2693 = vadd.xlane.f32.xlu0 %v2566
          %v2694 = vpop.xlane.xlu0 %2693
          %2695 = vadd.xlane.f32.xlu0 %v2568
          %v2696 = vpop.xlane.xlu0 %2695
          %2697 = vadd.xlane.f32.xlu0 %v2570
          %v2698 = vpop.xlane.xlu0 %2697
          %2699 = vadd.xlane.f32.xlu0 %v2572
          %v2700 = vpop.xlane.xlu0 %2699
          %2701 = vadd.xlane.f32.xlu0 %v2574
          %v2702 = vpop.xlane.xlu0 %2701
          %2703 = vadd.xlane.f32.xlu0 %v2576
          %v2704 = vpop.xlane.xlu0 %2703
          %2705 = vadd.xlane.f32.xlu0 %v2578
          %v2706 = vpop.xlane.xlu0 %2705
          %2707 = vadd.xlane.f32.xlu0 %v2580
          %v2708 = vpop.xlane.xlu0 %2707
          %2709 = vadd.xlane.f32.xlu0 %v2582
          %v2710 = vpop.xlane.xlu0 %2709
          %2711 = vadd.xlane.f32.xlu0 %v2584
          %v2712 = vpop.xlane.xlu0 %2711
          %2713 = vadd.xlane.f32.xlu0 %v2586
          %v2714 = vpop.xlane.xlu0 %2713
          %2715 = vadd.xlane.f32.xlu0 %v2588
          %v2716 = vpop.xlane.xlu0 %2715
          %2717 = vadd.xlane.f32.xlu0 %v2590
          %v2718 = vpop.xlane.xlu0 %2717
          %2719 = vadd.xlane.f32.xlu0 %v2592
          %v2720 = vpop.xlane.xlu0 %2719
          %2721 = vadd.xlane.f32.xlu0 %v2594
          %v2722 = vpop.xlane.xlu0 %2721
          %2723 = vadd.xlane.f32.xlu0 %v2596
          %v2724 = vpop.xlane.xlu0 %2723
          %2725 = vadd.xlane.f32.xlu0 %v2598
          %v2726 = vpop.xlane.xlu0 %2725
          %2727 = vadd.xlane.f32.xlu0 %v2600
          %v2728 = vpop.xlane.xlu0 %2727
          %2729 = vadd.xlane.f32.xlu0 %v2602
          %v2730 = vpop.xlane.xlu0 %2729
          %2731 = vadd.xlane.f32.xlu0 %v2604
          %v2732 = vpop.xlane.xlu0 %2731
          %2733 = vadd.xlane.f32.xlu0 %v2606
          %v2734 = vpop.xlane.xlu0 %2733
          %2735 = vadd.xlane.f32.xlu0 %v2608
          %v2736 = vpop.xlane.xlu0 %2735
          %2737 = vadd.xlane.f32.xlu0 %v2610
          %v2738 = vpop.xlane.xlu0 %2737
          %2739 = vadd.xlane.f32.xlu0 %v2612
          %v2740 = vpop.xlane.xlu0 %2739
          %2741 = vadd.xlane.f32.xlu0 %v2614
          %v2742 = vpop.xlane.xlu0 %2741
          %2743 = vadd.xlane.f32.xlu0 %v2616
          %v2744 = vpop.xlane.xlu0 %2743
          %2745 = vadd.xlane.f32.xlu0 %v2618
          %v2746 = vpop.xlane.xlu0 %2745
          %2747 = vadd.xlane.f32.xlu0 %v2620
          %v2748 = vpop.xlane.xlu0 %2747
          %2749 = vadd.xlane.f32.xlu0 %v2622
          %v2750 = vpop.xlane.xlu0 %2749
          %2751 = vadd.xlane.f32.xlu0 %v2624
          %v2752 = vpop.xlane.xlu0 %2751
          %2753 = vadd.xlane.f32.xlu0 %v2626
          %v2754 = vpop.xlane.xlu0 %2753
          %2755 = vadd.xlane.f32.xlu0 %v2628
          %v2756 = vpop.xlane.xlu0 %2755
          %2757 = vadd.xlane.f32.xlu0 %v2630
          %v2758 = vpop.xlane.xlu0 %2757
          %2759 = vadd.xlane.f32.xlu0 %v2632
          %v2760 = vpop.xlane.xlu0 %2759
          %2761 = vadd.xlane.f32.xlu0 %v2634
          %v2762 = vpop.xlane.xlu0 %2761
          %2763 = vadd.xlane.f32.xlu0 %v2636
          %v2764 = vpop.xlane.xlu0 %2763
          %2765 = vadd.xlane.f32.xlu0 %v2638
          %v2766 = vpop.xlane.xlu0 %2765
          %2767 = vadd.xlane.f32.xlu0 %v2640
          %v2768 = vpop.xlane.xlu0 %2767
          %2769 = vadd.xlane.f32.xlu0 %v2642
          %v2770 = vpop.xlane.xlu0 %2769
          %2771 = vadd.xlane.f32.xlu0 %v2644
          %v2772 = vpop.xlane.xlu0 %2771
          %2773 = vadd.xlane.f32.xlu0 %v2646
          %v2774 = vpop.xlane.xlu0 %2773
          %2775 = vadd.xlane.f32.xlu0 %v2648
          %v2776 = vpop.xlane.xlu0 %2775
          %2777 = vadd.xlane.f32.xlu0 %v2650
          %v2778 = vpop.xlane.xlu0 %2777
          %2779 = vadd.xlane.f32.xlu0 %v2652
          %v2780 = vpop.xlane.xlu0 %2779
          %2781 = vadd.xlane.f32.xlu0 %v2654
          %v2782 = vpop.xlane.xlu0 %2781
          %2783 = vadd.xlane.f32.xlu0 %v2656
          %v2784 = vpop.xlane.xlu0 %2783
          %2785 = vadd.xlane.f32.xlu0 %v2658
          %v2786 = vpop.xlane.xlu0 %2785
          %2787 = vadd.xlane.f32.xlu0 %v2660
          %v2788 = vpop.xlane.xlu0 %2787
          %2789 = vadd.xlane.f32.xlu0 %v2662
          %v2790 = vpop.xlane.xlu0 %2789
          %2791 = vadd.xlane.f32.xlu0 %v2664
          %v2792 = vpop.xlane.xlu0 %2791
          %2793 = vadd.xlane.f32.xlu0 %v2666
          %v2794 = vpop.xlane.xlu0 %2793
          %2795 = vadd.xlane.f32.xlu0 %v2668
          %v2796 = vpop.xlane.xlu0 %2795
          %2797 = vadd.xlane.f32.xlu0 %v2670
          %v2798 = vpop.xlane.xlu0 %2797
          %2799 = vadd.xlane.f32.xlu0 %v2672
          %v2800 = vpop.xlane.xlu0 %2799
          %2801 = vadd.xlane.f32.xlu0 %v2674
          %v2802 = vpop.xlane.xlu0 %2801
          %2803 = vadd.xlane.f32.xlu0 %v2676
          %v2804 = vpop.xlane.xlu0 %2803
          %2805 = vadd.xlane.f32.xlu0 %v2678
          %v2806 = vpop.xlane.xlu0 %2805
          %2807 = vadd.xlane.f32.xlu0 %v2680
          %v2808 = vpop.xlane.xlu0 %2807
          %2809 = vadd.xlane.f32.xlu0 %v2682
          %v2810 = vpop.xlane.xlu0 %2809
          %2811 = vadd.xlane.f32.xlu0 %v2684
          %v2812 = vpop.xlane.xlu0 %2811
          %2813 = vadd.xlane.f32.xlu0 %v2686
          %v2814 = vpop.xlane.xlu0 %2813
          %2815 = vadd.xlane.f32.xlu0 %v2688
          %v2816 = vpop.xlane.xlu0 %2815
          %2817 = vadd.xlane.f32.xlu0 %v2690
          %v2818 = vpop.xlane.xlu0 %2817
          %v2819 = vrcp.pop %v2692
          %v2820 = vmul.f32 %v2692, %v2819
          %v2821 = vsub.f32 1.0, %v2820
          %v2822 = vmul.f32 %v2819, %v2821
          %v2823 = vadd.f32 %v2819, %v2822
          %vm2824 = vweird.f32 %v2692
          %vm2825 = vweird.f32 %v2819
          %vm2826 = vmor %vm2824, %vm2825
          %v2827 = vsel %vm2826, %v2819, %v2823
          %v2828 = vand.u32 2147483647, %v2692
          %vm2829 = vcmp.eq.f32.partialorder %v2828, 8.507059e+37
          %v2830 = vand.u32 %v2692, 2147483648
          %v2831 = vor.u32 1.1754944e-38, %v2830
          %v2832 = vsel %vm2829, %v2831, %v2827
          %v2833 = vmul.f32 %v2564, %v2832
          %v2834 = vrcp.pop %v2694
          %v2835 = vmul.f32 %v2694, %v2834
          %v2836 = vsub.f32 1.0, %v2835
          %v2837 = vmul.f32 %v2834, %v2836
          %v2838 = vadd.f32 %v2834, %v2837
          %vm2839 = vweird.f32 %v2694
          %vm2840 = vweird.f32 %v2834
          %vm2841 = vmor %vm2839, %vm2840
          %v2842 = vsel %vm2841, %v2834, %v2838
          %v2843 = vand.u32 2147483647, %v2694
          %vm2844 = vcmp.eq.f32.partialorder %v2843, 8.507059e+37
          %v2845 = vand.u32 %v2694, 2147483648
          %v2846 = vor.u32 1.1754944e-38, %v2845
          %v2847 = vsel %vm2844, %v2846, %v2842
          %v2848 = vmul.f32 %v2566, %v2847
          %v2849 = vrcp.pop %v2696
          %v2850 = vmul.f32 %v2696, %v2849
          %v2851 = vsub.f32 1.0, %v2850
          %v2852 = vmul.f32 %v2849, %v2851
          %v2853 = vadd.f32 %v2849, %v2852
          %vm2854 = vweird.f32 %v2696
          %vm2855 = vweird.f32 %v2849
          %vm2856 = vmor %vm2854, %vm2855
          %v2857 = vsel %vm2856, %v2849, %v2853
          %v2858 = vand.u32 2147483647, %v2696
          %vm2859 = vcmp.eq.f32.partialorder %v2858, 8.507059e+37
          %v2860 = vand.u32 %v2696, 2147483648
          %v2861 = vor.u32 1.1754944e-38, %v2860
          %v2862 = vsel %vm2859, %v2861, %v2857
          %v2863 = vmul.f32 %v2568, %v2862
          %v2864 = vrcp.pop %v2698
          %v2865 = vmul.f32 %v2698, %v2864
          %v2866 = vsub.f32 1.0, %v2865
          %v2867 = vmul.f32 %v2864, %v2866
          %v2868 = vadd.f32 %v2864, %v2867
          %vm2869 = vweird.f32 %v2698
          %vm2870 = vweird.f32 %v2864
          %vm2871 = vmor %vm2869, %vm2870
          %v2872 = vsel %vm2871, %v2864, %v2868
          %v2873 = vand.u32 2147483647, %v2698
          %vm2874 = vcmp.eq.f32.partialorder %v2873, 8.507059e+37
          %v2875 = vand.u32 %v2698, 2147483648
          %v2876 = vor.u32 1.1754944e-38, %v2875
          %v2877 = vsel %vm2874, %v2876, %v2872
          %v2878 = vmul.f32 %v2570, %v2877
          %v2879 = vrcp.pop %v2700
          %v2880 = vmul.f32 %v2700, %v2879
          %v2881 = vsub.f32 1.0, %v2880
          %v2882 = vmul.f32 %v2879, %v2881
          %v2883 = vadd.f32 %v2879, %v2882
          %vm2884 = vweird.f32 %v2700
          %vm2885 = vweird.f32 %v2879
          %vm2886 = vmor %vm2884, %vm2885
          %v2887 = vsel %vm2886, %v2879, %v2883
          %v2888 = vand.u32 2147483647, %v2700
          %vm2889 = vcmp.eq.f32.partialorder %v2888, 8.507059e+37
          %v2890 = vand.u32 %v2700, 2147483648
          %v2891 = vor.u32 1.1754944e-38, %v2890
          %v2892 = vsel %vm2889, %v2891, %v2887
          %v2893 = vmul.f32 %v2572, %v2892
          %v2894 = vrcp.pop %v2702
          %v2895 = vmul.f32 %v2702, %v2894
          %v2896 = vsub.f32 1.0, %v2895
          %v2897 = vmul.f32 %v2894, %v2896
          %v2898 = vadd.f32 %v2894, %v2897
          %vm2899 = vweird.f32 %v2702
          %vm2900 = vweird.f32 %v2894
          %vm2901 = vmor %vm2899, %vm2900
          %v2902 = vsel %vm2901, %v2894, %v2898
          %v2903 = vand.u32 2147483647, %v2702
          %vm2904 = vcmp.eq.f32.partialorder %v2903, 8.507059e+37
          %v2905 = vand.u32 %v2702, 2147483648
          %v2906 = vor.u32 1.1754944e-38, %v2905
          %v2907 = vsel %vm2904, %v2906, %v2902
          %v2908 = vmul.f32 %v2574, %v2907
          %v2909 = vrcp.pop %v2704
          %v2910 = vmul.f32 %v2704, %v2909
          %v2911 = vsub.f32 1.0, %v2910
          %v2912 = vmul.f32 %v2909, %v2911
          %v2913 = vadd.f32 %v2909, %v2912
          %vm2914 = vweird.f32 %v2704
          %vm2915 = vweird.f32 %v2909
          %vm2916 = vmor %vm2914, %vm2915
          %v2917 = vsel %vm2916, %v2909, %v2913
          %v2918 = vand.u32 2147483647, %v2704
          %vm2919 = vcmp.eq.f32.partialorder %v2918, 8.507059e+37
          %v2920 = vand.u32 %v2704, 2147483648
          %v2921 = vor.u32 1.1754944e-38, %v2920
          %v2922 = vsel %vm2919, %v2921, %v2917
          %v2923 = vmul.f32 %v2576, %v2922
          %v2924 = vrcp.pop %v2706
          %v2925 = vmul.f32 %v2706, %v2924
          %v2926 = vsub.f32 1.0, %v2925
          %v2927 = vmul.f32 %v2924, %v2926
          %v2928 = vadd.f32 %v2924, %v2927
          %vm2929 = vweird.f32 %v2706
          %vm2930 = vweird.f32 %v2924
          %vm2931 = vmor %vm2929, %vm2930
          %v2932 = vsel %vm2931, %v2924, %v2928
          %v2933 = vand.u32 2147483647, %v2706
          %vm2934 = vcmp.eq.f32.partialorder %v2933, 8.507059e+37
          %v2935 = vand.u32 %v2706, 2147483648
          %v2936 = vor.u32 1.1754944e-38, %v2935
          %v2937 = vsel %vm2934, %v2936, %v2932
          %v2938 = vmul.f32 %v2578, %v2937
          %v2939 = vrcp.pop %v2708
          %v2940 = vmul.f32 %v2708, %v2939
          %v2941 = vsub.f32 1.0, %v2940
          %v2942 = vmul.f32 %v2939, %v2941
          %v2943 = vadd.f32 %v2939, %v2942
          %vm2944 = vweird.f32 %v2708
          %vm2945 = vweird.f32 %v2939
          %vm2946 = vmor %vm2944, %vm2945
          %v2947 = vsel %vm2946, %v2939, %v2943
          %v2948 = vand.u32 2147483647, %v2708
          %vm2949 = vcmp.eq.f32.partialorder %v2948, 8.507059e+37
          %v2950 = vand.u32 %v2708, 2147483648
          %v2951 = vor.u32 1.1754944e-38, %v2950
          %v2952 = vsel %vm2949, %v2951, %v2947
          %v2953 = vmul.f32 %v2580, %v2952
          %v2954 = vrcp.pop %v2710
          %v2955 = vmul.f32 %v2710, %v2954
          %v2956 = vsub.f32 1.0, %v2955
          %v2957 = vmul.f32 %v2954, %v2956
          %v2958 = vadd.f32 %v2954, %v2957
          %vm2959 = vweird.f32 %v2710
          %vm2960 = vweird.f32 %v2954
          %vm2961 = vmor %vm2959, %vm2960
          %v2962 = vsel %vm2961, %v2954, %v2958
          %v2963 = vand.u32 2147483647, %v2710
          %vm2964 = vcmp.eq.f32.partialorder %v2963, 8.507059e+37
          %v2965 = vand.u32 %v2710, 2147483648
          %v2966 = vor.u32 1.1754944e-38, %v2965
          %v2967 = vsel %vm2964, %v2966, %v2962
          %v2968 = vmul.f32 %v2582, %v2967
          %v2969 = vrcp.pop %v2712
          %v2970 = vmul.f32 %v2712, %v2969
          %v2971 = vsub.f32 1.0, %v2970
          %v2972 = vmul.f32 %v2969, %v2971
          %v2973 = vadd.f32 %v2969, %v2972
          %vm2974 = vweird.f32 %v2712
          %vm2975 = vweird.f32 %v2969
          %vm2976 = vmor %vm2974, %vm2975
          %v2977 = vsel %vm2976, %v2969, %v2973
          %v2978 = vand.u32 2147483647, %v2712
          %vm2979 = vcmp.eq.f32.partialorder %v2978, 8.507059e+37
          %v2980 = vand.u32 %v2712, 2147483648
          %v2981 = vor.u32 1.1754944e-38, %v2980
          %v2982 = vsel %vm2979, %v2981, %v2977
          %v2983 = vmul.f32 %v2584, %v2982
          %v2984 = vrcp.pop %v2714
          %v2985 = vmul.f32 %v2714, %v2984
          %v2986 = vsub.f32 1.0, %v2985
          %v2987 = vmul.f32 %v2984, %v2986
          %v2988 = vadd.f32 %v2984, %v2987
          %vm2989 = vweird.f32 %v2714
          %vm2990 = vweird.f32 %v2984
          %vm2991 = vmor %vm2989, %vm2990
          %v2992 = vsel %vm2991, %v2984, %v2988
          %v2993 = vand.u32 2147483647, %v2714
          %vm2994 = vcmp.eq.f32.partialorder %v2993, 8.507059e+37
          %v2995 = vand.u32 %v2714, 2147483648
          %v2996 = vor.u32 1.1754944e-38, %v2995
          %v2997 = vsel %vm2994, %v2996, %v2992
          %v2998 = vmul.f32 %v2586, %v2997
          %v2999 = vrcp.pop %v2716
          %v3000 = vmul.f32 %v2716, %v2999
          %v3001 = vsub.f32 1.0, %v3000
          %v3002 = vmul.f32 %v2999, %v3001
          %v3003 = vadd.f32 %v2999, %v3002
          %vm3004 = vweird.f32 %v2716
          %vm3005 = vweird.f32 %v2999
          %vm3006 = vmor %vm3004, %vm3005
          %v3007 = vsel %vm3006, %v2999, %v3003
          %v3008 = vand.u32 2147483647, %v2716
          %vm3009 = vcmp.eq.f32.partialorder %v3008, 8.507059e+37
          %v3010 = vand.u32 %v2716, 2147483648
          %v3011 = vor.u32 1.1754944e-38, %v3010
          %v3012 = vsel %vm3009, %v3011, %v3007
          %v3013 = vmul.f32 %v2588, %v3012
          %v3014 = vrcp.pop %v2718
          %v3015 = vmul.f32 %v2718, %v3014
          %v3016 = vsub.f32 1.0, %v3015
          %v3017 = vmul.f32 %v3014, %v3016
          %v3018 = vadd.f32 %v3014, %v3017
          %vm3019 = vweird.f32 %v2718
          %vm3020 = vweird.f32 %v3014
          %vm3021 = vmor %vm3019, %vm3020
          %v3022 = vsel %vm3021, %v3014, %v3018
          %v3023 = vand.u32 2147483647, %v2718
          %vm3024 = vcmp.eq.f32.partialorder %v3023, 8.507059e+37
          %v3025 = vand.u32 %v2718, 2147483648
          %v3026 = vor.u32 1.1754944e-38, %v3025
          %v3027 = vsel %vm3024, %v3026, %v3022
          %v3028 = vmul.f32 %v2590, %v3027
          %v3029 = vrcp.pop %v2720
          %v3030 = vmul.f32 %v2720, %v3029
          %v3031 = vsub.f32 1.0, %v3030
          %v3032 = vmul.f32 %v3029, %v3031
          %v3033 = vadd.f32 %v3029, %v3032
          %vm3034 = vweird.f32 %v2720
          %vm3035 = vweird.f32 %v3029
          %vm3036 = vmor %vm3034, %vm3035
          %v3037 = vsel %vm3036, %v3029, %v3033
          %v3038 = vand.u32 2147483647, %v2720
          %vm3039 = vcmp.eq.f32.partialorder %v3038, 8.507059e+37
          %v3040 = vand.u32 %v2720, 2147483648
          %v3041 = vor.u32 1.1754944e-38, %v3040
          %v3042 = vsel %vm3039, %v3041, %v3037
          %v3043 = vmul.f32 %v2592, %v3042
          %v3044 = vrcp.pop %v2722
          %v3045 = vmul.f32 %v2722, %v3044
          %v3046 = vsub.f32 1.0, %v3045
          %v3047 = vmul.f32 %v3044, %v3046
          %v3048 = vadd.f32 %v3044, %v3047
          %vm3049 = vweird.f32 %v2722
          %vm3050 = vweird.f32 %v3044
          %vm3051 = vmor %vm3049, %vm3050
          %v3052 = vsel %vm3051, %v3044, %v3048
          %v3053 = vand.u32 2147483647, %v2722
          %vm3054 = vcmp.eq.f32.partialorder %v3053, 8.507059e+37
          %v3055 = vand.u32 %v2722, 2147483648
          %v3056 = vor.u32 1.1754944e-38, %v3055
          %v3057 = vsel %vm3054, %v3056, %v3052
          %v3058 = vmul.f32 %v2594, %v3057
          %v3059 = vrcp.pop %v2724
          %v3060 = vmul.f32 %v2724, %v3059
          %v3061 = vsub.f32 1.0, %v3060
          %v3062 = vmul.f32 %v3059, %v3061
          %v3063 = vadd.f32 %v3059, %v3062
          %vm3064 = vweird.f32 %v2724
          %vm3065 = vweird.f32 %v3059
          %vm3066 = vmor %vm3064, %vm3065
          %v3067 = vsel %vm3066, %v3059, %v3063
          %v3068 = vand.u32 2147483647, %v2724
          %vm3069 = vcmp.eq.f32.partialorder %v3068, 8.507059e+37
          %v3070 = vand.u32 %v2724, 2147483648
          %v3071 = vor.u32 1.1754944e-38, %v3070
          %v3072 = vsel %vm3069, %v3071, %v3067
          %v3073 = vmul.f32 %v2596, %v3072
          %v3074 = vrcp.pop %v2726
          %v3075 = vmul.f32 %v2726, %v3074
          %v3076 = vsub.f32 1.0, %v3075
          %v3077 = vmul.f32 %v3074, %v3076
          %v3078 = vadd.f32 %v3074, %v3077
          %vm3079 = vweird.f32 %v2726
          %vm3080 = vweird.f32 %v3074
          %vm3081 = vmor %vm3079, %vm3080
          %v3082 = vsel %vm3081, %v3074, %v3078
          %v3083 = vand.u32 2147483647, %v2726
          %vm3084 = vcmp.eq.f32.partialorder %v3083, 8.507059e+37
          %v3085 = vand.u32 %v2726, 2147483648
          %v3086 = vor.u32 1.1754944e-38, %v3085
          %v3087 = vsel %vm3084, %v3086, %v3082
          %v3088 = vmul.f32 %v2598, %v3087
          %v3089 = vrcp.pop %v2728
          %v3090 = vmul.f32 %v2728, %v3089
          %v3091 = vsub.f32 1.0, %v3090
          %v3092 = vmul.f32 %v3089, %v3091
          %v3093 = vadd.f32 %v3089, %v3092
          %vm3094 = vweird.f32 %v2728
          %vm3095 = vweird.f32 %v3089
          %vm3096 = vmor %vm3094, %vm3095
          %v3097 = vsel %vm3096, %v3089, %v3093
          %v3098 = vand.u32 2147483647, %v2728
          %vm3099 = vcmp.eq.f32.partialorder %v3098, 8.507059e+37
          %v3100 = vand.u32 %v2728, 2147483648
          %v3101 = vor.u32 1.1754944e-38, %v3100
          %v3102 = vsel %vm3099, %v3101, %v3097
          %v3103 = vmul.f32 %v2600, %v3102
          %v3104 = vrcp.pop %v2730
          %v3105 = vmul.f32 %v2730, %v3104
          %v3106 = vsub.f32 1.0, %v3105
          %v3107 = vmul.f32 %v3104, %v3106
          %v3108 = vadd.f32 %v3104, %v3107
          %vm3109 = vweird.f32 %v2730
          %vm3110 = vweird.f32 %v3104
          %vm3111 = vmor %vm3109, %vm3110
          %v3112 = vsel %vm3111, %v3104, %v3108
          %v3113 = vand.u32 2147483647, %v2730
          %vm3114 = vcmp.eq.f32.partialorder %v3113, 8.507059e+37
          %v3115 = vand.u32 %v2730, 2147483648
          %v3116 = vor.u32 1.1754944e-38, %v3115
          %v3117 = vsel %vm3114, %v3116, %v3112
          %v3118 = vmul.f32 %v2602, %v3117
          %v3119 = vrcp.pop %v2732
          %v3120 = vmul.f32 %v2732, %v3119
          %v3121 = vsub.f32 1.0, %v3120
          %v3122 = vmul.f32 %v3119, %v3121
          %v3123 = vadd.f32 %v3119, %v3122
          %vm3124 = vweird.f32 %v2732
          %vm3125 = vweird.f32 %v3119
          %vm3126 = vmor %vm3124, %vm3125
          %v3127 = vsel %vm3126, %v3119, %v3123
          %v3128 = vand.u32 2147483647, %v2732
          %vm3129 = vcmp.eq.f32.partialorder %v3128, 8.507059e+37
          %v3130 = vand.u32 %v2732, 2147483648
          %v3131 = vor.u32 1.1754944e-38, %v3130
          %v3132 = vsel %vm3129, %v3131, %v3127
          %v3133 = vmul.f32 %v2604, %v3132
          %v3134 = vrcp.pop %v2734
          %v3135 = vmul.f32 %v2734, %v3134
          %v3136 = vsub.f32 1.0, %v3135
          %v3137 = vmul.f32 %v3134, %v3136
          %v3138 = vadd.f32 %v3134, %v3137
          %vm3139 = vweird.f32 %v2734
          %vm3140 = vweird.f32 %v3134
          %vm3141 = vmor %vm3139, %vm3140
          %v3142 = vsel %vm3141, %v3134, %v3138
          %v3143 = vand.u32 2147483647, %v2734
          %vm3144 = vcmp.eq.f32.partialorder %v3143, 8.507059e+37
          %v3145 = vand.u32 %v2734, 2147483648
          %v3146 = vor.u32 1.1754944e-38, %v3145
          %v3147 = vsel %vm3144, %v3146, %v3142
          %v3148 = vmul.f32 %v2606, %v3147
          %v3149 = vrcp.pop %v2736
          %v3150 = vmul.f32 %v2736, %v3149
          %v3151 = vsub.f32 1.0, %v3150
          %v3152 = vmul.f32 %v3149, %v3151
          %v3153 = vadd.f32 %v3149, %v3152
          %vm3154 = vweird.f32 %v2736
          %vm3155 = vweird.f32 %v3149
          %vm3156 = vmor %vm3154, %vm3155
          %v3157 = vsel %vm3156, %v3149, %v3153
          %v3158 = vand.u32 2147483647, %v2736
          %vm3159 = vcmp.eq.f32.partialorder %v3158, 8.507059e+37
          %v3160 = vand.u32 %v2736, 2147483648
          %v3161 = vor.u32 1.1754944e-38, %v3160
          %v3162 = vsel %vm3159, %v3161, %v3157
          %v3163 = vmul.f32 %v2608, %v3162
          %v3164 = vrcp.pop %v2738
          %v3165 = vmul.f32 %v2738, %v3164
          %v3166 = vsub.f32 1.0, %v3165
          %v3167 = vmul.f32 %v3164, %v3166
          %v3168 = vadd.f32 %v3164, %v3167
          %vm3169 = vweird.f32 %v2738
          %vm3170 = vweird.f32 %v3164
          %vm3171 = vmor %vm3169, %vm3170
          %v3172 = vsel %vm3171, %v3164, %v3168
          %v3173 = vand.u32 2147483647, %v2738
          %vm3174 = vcmp.eq.f32.partialorder %v3173, 8.507059e+37
          %v3175 = vand.u32 %v2738, 2147483648
          %v3176 = vor.u32 1.1754944e-38, %v3175
          %v3177 = vsel %vm3174, %v3176, %v3172
          %v3178 = vmul.f32 %v2610, %v3177
          %v3179 = vrcp.pop %v2740
          %v3180 = vmul.f32 %v2740, %v3179
          %v3181 = vsub.f32 1.0, %v3180
          %v3182 = vmul.f32 %v3179, %v3181
          %v3183 = vadd.f32 %v3179, %v3182
          %vm3184 = vweird.f32 %v2740
          %vm3185 = vweird.f32 %v3179
          %vm3186 = vmor %vm3184, %vm3185
          %v3187 = vsel %vm3186, %v3179, %v3183
          %v3188 = vand.u32 2147483647, %v2740
          %vm3189 = vcmp.eq.f32.partialorder %v3188, 8.507059e+37
          %v3190 = vand.u32 %v2740, 2147483648
          %v3191 = vor.u32 1.1754944e-38, %v3190
          %v3192 = vsel %vm3189, %v3191, %v3187
          %v3193 = vmul.f32 %v2612, %v3192
          %v3194 = vrcp.pop %v2742
          %v3195 = vmul.f32 %v2742, %v3194
          %v3196 = vsub.f32 1.0, %v3195
          %v3197 = vmul.f32 %v3194, %v3196
          %v3198 = vadd.f32 %v3194, %v3197
          %vm3199 = vweird.f32 %v2742
          %vm3200 = vweird.f32 %v3194
          %vm3201 = vmor %vm3199, %vm3200
          %v3202 = vsel %vm3201, %v3194, %v3198
          %v3203 = vand.u32 2147483647, %v2742
          %vm3204 = vcmp.eq.f32.partialorder %v3203, 8.507059e+37
          %v3205 = vand.u32 %v2742, 2147483648
          %v3206 = vor.u32 1.1754944e-38, %v3205
          %v3207 = vsel %vm3204, %v3206, %v3202
          %v3208 = vmul.f32 %v2614, %v3207
          %v3209 = vrcp.pop %v2744
          %v3210 = vmul.f32 %v2744, %v3209
          %v3211 = vsub.f32 1.0, %v3210
          %v3212 = vmul.f32 %v3209, %v3211
          %v3213 = vadd.f32 %v3209, %v3212
          %vm3214 = vweird.f32 %v2744
          %vm3215 = vweird.f32 %v3209
          %vm3216 = vmor %vm3214, %vm3215
          %v3217 = vsel %vm3216, %v3209, %v3213
          %v3218 = vand.u32 2147483647, %v2744
          %vm3219 = vcmp.eq.f32.partialorder %v3218, 8.507059e+37
          %v3220 = vand.u32 %v2744, 2147483648
          %v3221 = vor.u32 1.1754944e-38, %v3220
          %v3222 = vsel %vm3219, %v3221, %v3217
          %v3223 = vmul.f32 %v2616, %v3222
          %v3224 = vrcp.pop %v2746
          %v3225 = vmul.f32 %v2746, %v3224
          %v3226 = vsub.f32 1.0, %v3225
          %v3227 = vmul.f32 %v3224, %v3226
          %v3228 = vadd.f32 %v3224, %v3227
          %vm3229 = vweird.f32 %v2746
          %vm3230 = vweird.f32 %v3224
          %vm3231 = vmor %vm3229, %vm3230
          %v3232 = vsel %vm3231, %v3224, %v3228
          %v3233 = vand.u32 2147483647, %v2746
          %vm3234 = vcmp.eq.f32.partialorder %v3233, 8.507059e+37
          %v3235 = vand.u32 %v2746, 2147483648
          %v3236 = vor.u32 1.1754944e-38, %v3235
          %v3237 = vsel %vm3234, %v3236, %v3232
          %v3238 = vmul.f32 %v2618, %v3237
          %v3239 = vrcp.pop %v2748
          %v3240 = vmul.f32 %v2748, %v3239
          %v3241 = vsub.f32 1.0, %v3240
          %v3242 = vmul.f32 %v3239, %v3241
          %v3243 = vadd.f32 %v3239, %v3242
          %vm3244 = vweird.f32 %v2748
          %vm3245 = vweird.f32 %v3239
          %vm3246 = vmor %vm3244, %vm3245
          %v3247 = vsel %vm3246, %v3239, %v3243
          %v3248 = vand.u32 2147483647, %v2748
          %vm3249 = vcmp.eq.f32.partialorder %v3248, 8.507059e+37
          %v3250 = vand.u32 %v2748, 2147483648
          %v3251 = vor.u32 1.1754944e-38, %v3250
          %v3252 = vsel %vm3249, %v3251, %v3247
          %v3253 = vmul.f32 %v2620, %v3252
          %v3254 = vrcp.pop %v2750
          %v3255 = vmul.f32 %v2750, %v3254
          %v3256 = vsub.f32 1.0, %v3255
          %v3257 = vmul.f32 %v3254, %v3256
          %v3258 = vadd.f32 %v3254, %v3257
          %vm3259 = vweird.f32 %v2750
          %vm3260 = vweird.f32 %v3254
          %vm3261 = vmor %vm3259, %vm3260
          %v3262 = vsel %vm3261, %v3254, %v3258
          %v3263 = vand.u32 2147483647, %v2750
          %vm3264 = vcmp.eq.f32.partialorder %v3263, 8.507059e+37
          %v3265 = vand.u32 %v2750, 2147483648
          %v3266 = vor.u32 1.1754944e-38, %v3265
          %v3267 = vsel %vm3264, %v3266, %v3262
          %v3268 = vmul.f32 %v2622, %v3267
          %v3269 = vrcp.pop %v2752
          %v3270 = vmul.f32 %v2752, %v3269
          %v3271 = vsub.f32 1.0, %v3270
          %v3272 = vmul.f32 %v3269, %v3271
          %v3273 = vadd.f32 %v3269, %v3272
          %vm3274 = vweird.f32 %v2752
          %vm3275 = vweird.f32 %v3269
          %vm3276 = vmor %vm3274, %vm3275
          %v3277 = vsel %vm3276, %v3269, %v3273
          %v3278 = vand.u32 2147483647, %v2752
          %vm3279 = vcmp.eq.f32.partialorder %v3278, 8.507059e+37
          %v3280 = vand.u32 %v2752, 2147483648
          %v3281 = vor.u32 1.1754944e-38, %v3280
          %v3282 = vsel %vm3279, %v3281, %v3277
          %v3283 = vmul.f32 %v2624, %v3282
          %v3284 = vrcp.pop %v2754
          %v3285 = vmul.f32 %v2754, %v3284
          %v3286 = vsub.f32 1.0, %v3285
          %v3287 = vmul.f32 %v3284, %v3286
          %v3288 = vadd.f32 %v3284, %v3287
          %vm3289 = vweird.f32 %v2754
          %vm3290 = vweird.f32 %v3284
          %vm3291 = vmor %vm3289, %vm3290
          %v3292 = vsel %vm3291, %v3284, %v3288
          %v3293 = vand.u32 2147483647, %v2754
          %vm3294 = vcmp.eq.f32.partialorder %v3293, 8.507059e+37
          %v3295 = vand.u32 %v2754, 2147483648
          %v3296 = vor.u32 1.1754944e-38, %v3295
          %v3297 = vsel %vm3294, %v3296, %v3292
          %v3298 = vmul.f32 %v2626, %v3297
          %v3299 = vrcp.pop %v2756
          %v3300 = vmul.f32 %v2756, %v3299
          %v3301 = vsub.f32 1.0, %v3300
          %v3302 = vmul.f32 %v3299, %v3301
          %v3303 = vadd.f32 %v3299, %v3302
          %vm3304 = vweird.f32 %v2756
          %vm3305 = vweird.f32 %v3299
          %vm3306 = vmor %vm3304, %vm3305
          %v3307 = vsel %vm3306, %v3299, %v3303
          %v3308 = vand.u32 2147483647, %v2756
          %vm3309 = vcmp.eq.f32.partialorder %v3308, 8.507059e+37
          %v3310 = vand.u32 %v2756, 2147483648
          %v3311 = vor.u32 1.1754944e-38, %v3310
          %v3312 = vsel %vm3309, %v3311, %v3307
          %v3313 = vmul.f32 %v2628, %v3312
          %v3314 = vrcp.pop %v2758
          %v3315 = vmul.f32 %v2758, %v3314
          %v3316 = vsub.f32 1.0, %v3315
          %v3317 = vmul.f32 %v3314, %v3316
          %v3318 = vadd.f32 %v3314, %v3317
          %vm3319 = vweird.f32 %v2758
          %vm3320 = vweird.f32 %v3314
          %vm3321 = vmor %vm3319, %vm3320
          %v3322 = vsel %vm3321, %v3314, %v3318
          %v3323 = vand.u32 2147483647, %v2758
          %vm3324 = vcmp.eq.f32.partialorder %v3323, 8.507059e+37
          %v3325 = vand.u32 %v2758, 2147483648
          %v3326 = vor.u32 1.1754944e-38, %v3325
          %v3327 = vsel %vm3324, %v3326, %v3322
          %v3328 = vmul.f32 %v2630, %v3327
          %v3329 = vrcp.pop %v2760
          %v3330 = vmul.f32 %v2760, %v3329
          %v3331 = vsub.f32 1.0, %v3330
          %v3332 = vmul.f32 %v3329, %v3331
          %v3333 = vadd.f32 %v3329, %v3332
          %vm3334 = vweird.f32 %v2760
          %vm3335 = vweird.f32 %v3329
          %vm3336 = vmor %vm3334, %vm3335
          %v3337 = vsel %vm3336, %v3329, %v3333
          %v3338 = vand.u32 2147483647, %v2760
          %vm3339 = vcmp.eq.f32.partialorder %v3338, 8.507059e+37
          %v3340 = vand.u32 %v2760, 2147483648
          %v3341 = vor.u32 1.1754944e-38, %v3340
          %v3342 = vsel %vm3339, %v3341, %v3337
          %v3343 = vmul.f32 %v2632, %v3342
          %v3344 = vrcp.pop %v2762
          %v3345 = vmul.f32 %v2762, %v3344
          %v3346 = vsub.f32 1.0, %v3345
          %v3347 = vmul.f32 %v3344, %v3346
          %v3348 = vadd.f32 %v3344, %v3347
          %vm3349 = vweird.f32 %v2762
          %vm3350 = vweird.f32 %v3344
          %vm3351 = vmor %vm3349, %vm3350
          %v3352 = vsel %vm3351, %v3344, %v3348
          %v3353 = vand.u32 2147483647, %v2762
          %vm3354 = vcmp.eq.f32.partialorder %v3353, 8.507059e+37
          %v3355 = vand.u32 %v2762, 2147483648
          %v3356 = vor.u32 1.1754944e-38, %v3355
          %v3357 = vsel %vm3354, %v3356, %v3352
          %v3358 = vmul.f32 %v2634, %v3357
          %v3359 = vrcp.pop %v2764
          %v3360 = vmul.f32 %v2764, %v3359
          %v3361 = vsub.f32 1.0, %v3360
          %v3362 = vmul.f32 %v3359, %v3361
          %v3363 = vadd.f32 %v3359, %v3362
          %vm3364 = vweird.f32 %v2764
          %vm3365 = vweird.f32 %v3359
          %vm3366 = vmor %vm3364, %vm3365
          %v3367 = vsel %vm3366, %v3359, %v3363
          %v3368 = vand.u32 2147483647, %v2764
          %vm3369 = vcmp.eq.f32.partialorder %v3368, 8.507059e+37
          %v3370 = vand.u32 %v2764, 2147483648
          %v3371 = vor.u32 1.1754944e-38, %v3370
          %v3372 = vsel %vm3369, %v3371, %v3367
          %v3373 = vmul.f32 %v2636, %v3372
          %v3374 = vrcp.pop %v2766
          %v3375 = vmul.f32 %v2766, %v3374
          %v3376 = vsub.f32 1.0, %v3375
          %v3377 = vmul.f32 %v3374, %v3376
          %v3378 = vadd.f32 %v3374, %v3377
          %vm3379 = vweird.f32 %v2766
          %vm3380 = vweird.f32 %v3374
          %vm3381 = vmor %vm3379, %vm3380
          %v3382 = vsel %vm3381, %v3374, %v3378
          %v3383 = vand.u32 2147483647, %v2766
          %vm3384 = vcmp.eq.f32.partialorder %v3383, 8.507059e+37
          %v3385 = vand.u32 %v2766, 2147483648
          %v3386 = vor.u32 1.1754944e-38, %v3385
          %v3387 = vsel %vm3384, %v3386, %v3382
          %v3388 = vmul.f32 %v2638, %v3387
          %v3389 = vrcp.pop %v2768
          %v3390 = vmul.f32 %v2768, %v3389
          %v3391 = vsub.f32 1.0, %v3390
          %v3392 = vmul.f32 %v3389, %v3391
          %v3393 = vadd.f32 %v3389, %v3392
          %vm3394 = vweird.f32 %v2768
          %vm3395 = vweird.f32 %v3389
          %vm3396 = vmor %vm3394, %vm3395
          %v3397 = vsel %vm3396, %v3389, %v3393
          %v3398 = vand.u32 2147483647, %v2768
          %vm3399 = vcmp.eq.f32.partialorder %v3398, 8.507059e+37
          %v3400 = vand.u32 %v2768, 2147483648
          %v3401 = vor.u32 1.1754944e-38, %v3400
          %v3402 = vsel %vm3399, %v3401, %v3397
          %v3403 = vmul.f32 %v2640, %v3402
          %v3404 = vrcp.pop %v2770
          %v3405 = vmul.f32 %v2770, %v3404
          %v3406 = vsub.f32 1.0, %v3405
          %v3407 = vmul.f32 %v3404, %v3406
          %v3408 = vadd.f32 %v3404, %v3407
          %vm3409 = vweird.f32 %v2770
          %vm3410 = vweird.f32 %v3404
          %vm3411 = vmor %vm3409, %vm3410
          %v3412 = vsel %vm3411, %v3404, %v3408
          %v3413 = vand.u32 2147483647, %v2770
          %vm3414 = vcmp.eq.f32.partialorder %v3413, 8.507059e+37
          %v3415 = vand.u32 %v2770, 2147483648
          %v3416 = vor.u32 1.1754944e-38, %v3415
          %v3417 = vsel %vm3414, %v3416, %v3412
          %v3418 = vmul.f32 %v2642, %v3417
          %v3419 = vrcp.pop %v2772
          %v3420 = vmul.f32 %v2772, %v3419
          %v3421 = vsub.f32 1.0, %v3420
          %v3422 = vmul.f32 %v3419, %v3421
          %v3423 = vadd.f32 %v3419, %v3422
          %vm3424 = vweird.f32 %v2772
          %vm3425 = vweird.f32 %v3419
          %vm3426 = vmor %vm3424, %vm3425
          %v3427 = vsel %vm3426, %v3419, %v3423
          %v3428 = vand.u32 2147483647, %v2772
          %vm3429 = vcmp.eq.f32.partialorder %v3428, 8.507059e+37
          %v3430 = vand.u32 %v2772, 2147483648
          %v3431 = vor.u32 1.1754944e-38, %v3430
          %v3432 = vsel %vm3429, %v3431, %v3427
          %v3433 = vmul.f32 %v2644, %v3432
          %v3434 = vrcp.pop %v2774
          %v3435 = vmul.f32 %v2774, %v3434
          %v3436 = vsub.f32 1.0, %v3435
          %v3437 = vmul.f32 %v3434, %v3436
          %v3438 = vadd.f32 %v3434, %v3437
          %vm3439 = vweird.f32 %v2774
          %vm3440 = vweird.f32 %v3434
          %vm3441 = vmor %vm3439, %vm3440
          %v3442 = vsel %vm3441, %v3434, %v3438
          %v3443 = vand.u32 2147483647, %v2774
          %vm3444 = vcmp.eq.f32.partialorder %v3443, 8.507059e+37
          %v3445 = vand.u32 %v2774, 2147483648
          %v3446 = vor.u32 1.1754944e-38, %v3445
          %v3447 = vsel %vm3444, %v3446, %v3442
          %v3448 = vmul.f32 %v2646, %v3447
          %v3449 = vrcp.pop %v2776
          %v3450 = vmul.f32 %v2776, %v3449
          %v3451 = vsub.f32 1.0, %v3450
          %v3452 = vmul.f32 %v3449, %v3451
          %v3453 = vadd.f32 %v3449, %v3452
          %vm3454 = vweird.f32 %v2776
          %vm3455 = vweird.f32 %v3449
          %vm3456 = vmor %vm3454, %vm3455
          %v3457 = vsel %vm3456, %v3449, %v3453
          %v3458 = vand.u32 2147483647, %v2776
          %vm3459 = vcmp.eq.f32.partialorder %v3458, 8.507059e+37
          %v3460 = vand.u32 %v2776, 2147483648
          %v3461 = vor.u32 1.1754944e-38, %v3460
          %v3462 = vsel %vm3459, %v3461, %v3457
          %v3463 = vmul.f32 %v2648, %v3462
          %v3464 = vrcp.pop %v2778
          %v3465 = vmul.f32 %v2778, %v3464
          %v3466 = vsub.f32 1.0, %v3465
          %v3467 = vmul.f32 %v3464, %v3466
          %v3468 = vadd.f32 %v3464, %v3467
          %vm3469 = vweird.f32 %v2778
          %vm3470 = vweird.f32 %v3464
          %vm3471 = vmor %vm3469, %vm3470
          %v3472 = vsel %vm3471, %v3464, %v3468
          %v3473 = vand.u32 2147483647, %v2778
          %vm3474 = vcmp.eq.f32.partialorder %v3473, 8.507059e+37
          %v3475 = vand.u32 %v2778, 2147483648
          %v3476 = vor.u32 1.1754944e-38, %v3475
          %v3477 = vsel %vm3474, %v3476, %v3472
          %v3478 = vmul.f32 %v2650, %v3477
          %v3479 = vrcp.pop %v2780
          %v3480 = vmul.f32 %v2780, %v3479
          %v3481 = vsub.f32 1.0, %v3480
          %v3482 = vmul.f32 %v3479, %v3481
          %v3483 = vadd.f32 %v3479, %v3482
          %vm3484 = vweird.f32 %v2780
          %vm3485 = vweird.f32 %v3479
          %vm3486 = vmor %vm3484, %vm3485
          %v3487 = vsel %vm3486, %v3479, %v3483
          %v3488 = vand.u32 2147483647, %v2780
          %vm3489 = vcmp.eq.f32.partialorder %v3488, 8.507059e+37
          %v3490 = vand.u32 %v2780, 2147483648
          %v3491 = vor.u32 1.1754944e-38, %v3490
          %v3492 = vsel %vm3489, %v3491, %v3487
          %v3493 = vmul.f32 %v2652, %v3492
          %v3494 = vrcp.pop %v2782
          %v3495 = vmul.f32 %v2782, %v3494
          %v3496 = vsub.f32 1.0, %v3495
          %v3497 = vmul.f32 %v3494, %v3496
          %v3498 = vadd.f32 %v3494, %v3497
          %vm3499 = vweird.f32 %v2782
          %vm3500 = vweird.f32 %v3494
          %vm3501 = vmor %vm3499, %vm3500
          %v3502 = vsel %vm3501, %v3494, %v3498
          %v3503 = vand.u32 2147483647, %v2782
          %vm3504 = vcmp.eq.f32.partialorder %v3503, 8.507059e+37
          %v3505 = vand.u32 %v2782, 2147483648
          %v3506 = vor.u32 1.1754944e-38, %v3505
          %v3507 = vsel %vm3504, %v3506, %v3502
          %v3508 = vmul.f32 %v2654, %v3507
          %v3509 = vrcp.pop %v2784
          %v3510 = vmul.f32 %v2784, %v3509
          %v3511 = vsub.f32 1.0, %v3510
          %v3512 = vmul.f32 %v3509, %v3511
          %v3513 = vadd.f32 %v3509, %v3512
          %vm3514 = vweird.f32 %v2784
          %vm3515 = vweird.f32 %v3509
          %vm3516 = vmor %vm3514, %vm3515
          %v3517 = vsel %vm3516, %v3509, %v3513
          %v3518 = vand.u32 2147483647, %v2784
          %vm3519 = vcmp.eq.f32.partialorder %v3518, 8.507059e+37
          %v3520 = vand.u32 %v2784, 2147483648
          %v3521 = vor.u32 1.1754944e-38, %v3520
          %v3522 = vsel %vm3519, %v3521, %v3517
          %v3523 = vmul.f32 %v2656, %v3522
          %v3524 = vrcp.pop %v2786
          %v3525 = vmul.f32 %v2786, %v3524
          %v3526 = vsub.f32 1.0, %v3525
          %v3527 = vmul.f32 %v3524, %v3526
          %v3528 = vadd.f32 %v3524, %v3527
          %vm3529 = vweird.f32 %v2786
          %vm3530 = vweird.f32 %v3524
          %vm3531 = vmor %vm3529, %vm3530
          %v3532 = vsel %vm3531, %v3524, %v3528
          %v3533 = vand.u32 2147483647, %v2786
          %vm3534 = vcmp.eq.f32.partialorder %v3533, 8.507059e+37
          %v3535 = vand.u32 %v2786, 2147483648
          %v3536 = vor.u32 1.1754944e-38, %v3535
          %v3537 = vsel %vm3534, %v3536, %v3532
          %v3538 = vmul.f32 %v2658, %v3537
          %v3539 = vrcp.pop %v2788
          %v3540 = vmul.f32 %v2788, %v3539
          %v3541 = vsub.f32 1.0, %v3540
          %v3542 = vmul.f32 %v3539, %v3541
          %v3543 = vadd.f32 %v3539, %v3542
          %vm3544 = vweird.f32 %v2788
          %vm3545 = vweird.f32 %v3539
          %vm3546 = vmor %vm3544, %vm3545
          %v3547 = vsel %vm3546, %v3539, %v3543
          %v3548 = vand.u32 2147483647, %v2788
          %vm3549 = vcmp.eq.f32.partialorder %v3548, 8.507059e+37
          %v3550 = vand.u32 %v2788, 2147483648
          %v3551 = vor.u32 1.1754944e-38, %v3550
          %v3552 = vsel %vm3549, %v3551, %v3547
          %v3553 = vmul.f32 %v2660, %v3552
          %v3554 = vrcp.pop %v2790
          %v3555 = vmul.f32 %v2790, %v3554
          %v3556 = vsub.f32 1.0, %v3555
          %v3557 = vmul.f32 %v3554, %v3556
          %v3558 = vadd.f32 %v3554, %v3557
          %vm3559 = vweird.f32 %v2790
          %vm3560 = vweird.f32 %v3554
          %vm3561 = vmor %vm3559, %vm3560
          %v3562 = vsel %vm3561, %v3554, %v3558
          %v3563 = vand.u32 2147483647, %v2790
          %vm3564 = vcmp.eq.f32.partialorder %v3563, 8.507059e+37
          %v3565 = vand.u32 %v2790, 2147483648
          %v3566 = vor.u32 1.1754944e-38, %v3565
          %v3567 = vsel %vm3564, %v3566, %v3562
          %v3568 = vmul.f32 %v2662, %v3567
          %v3569 = vrcp.pop %v2792
          %v3570 = vmul.f32 %v2792, %v3569
          %v3571 = vsub.f32 1.0, %v3570
          %v3572 = vmul.f32 %v3569, %v3571
          %v3573 = vadd.f32 %v3569, %v3572
          %vm3574 = vweird.f32 %v2792
          %vm3575 = vweird.f32 %v3569
          %vm3576 = vmor %vm3574, %vm3575
          %v3577 = vsel %vm3576, %v3569, %v3573
          %v3578 = vand.u32 2147483647, %v2792
          %vm3579 = vcmp.eq.f32.partialorder %v3578, 8.507059e+37
          %v3580 = vand.u32 %v2792, 2147483648
          %v3581 = vor.u32 1.1754944e-38, %v3580
          %v3582 = vsel %vm3579, %v3581, %v3577
          %v3583 = vmul.f32 %v2664, %v3582
          %v3584 = vrcp.pop %v2794
          %v3585 = vmul.f32 %v2794, %v3584
          %v3586 = vsub.f32 1.0, %v3585
          %v3587 = vmul.f32 %v3584, %v3586
          %v3588 = vadd.f32 %v3584, %v3587
          %vm3589 = vweird.f32 %v2794
          %vm3590 = vweird.f32 %v3584
          %vm3591 = vmor %vm3589, %vm3590
          %v3592 = vsel %vm3591, %v3584, %v3588
          %v3593 = vand.u32 2147483647, %v2794
          %vm3594 = vcmp.eq.f32.partialorder %v3593, 8.507059e+37
          %v3595 = vand.u32 %v2794, 2147483648
          %v3596 = vor.u32 1.1754944e-38, %v3595
          %v3597 = vsel %vm3594, %v3596, %v3592
          %v3598 = vmul.f32 %v2666, %v3597
          %v3599 = vrcp.pop %v2796
          %v3600 = vmul.f32 %v2796, %v3599
          %v3601 = vsub.f32 1.0, %v3600
          %v3602 = vmul.f32 %v3599, %v3601
          %v3603 = vadd.f32 %v3599, %v3602
          %vm3604 = vweird.f32 %v2796
          %vm3605 = vweird.f32 %v3599
          %vm3606 = vmor %vm3604, %vm3605
          %v3607 = vsel %vm3606, %v3599, %v3603
          %v3608 = vand.u32 2147483647, %v2796
          %vm3609 = vcmp.eq.f32.partialorder %v3608, 8.507059e+37
          %v3610 = vand.u32 %v2796, 2147483648
          %v3611 = vor.u32 1.1754944e-38, %v3610
          %v3612 = vsel %vm3609, %v3611, %v3607
          %v3613 = vmul.f32 %v2668, %v3612
          %v3614 = vrcp.pop %v2798
          %v3615 = vmul.f32 %v2798, %v3614
          %v3616 = vsub.f32 1.0, %v3615
          %v3617 = vmul.f32 %v3614, %v3616
          %v3618 = vadd.f32 %v3614, %v3617
          %vm3619 = vweird.f32 %v2798
          %vm3620 = vweird.f32 %v3614
          %vm3621 = vmor %vm3619, %vm3620
          %v3622 = vsel %vm3621, %v3614, %v3618
          %v3623 = vand.u32 2147483647, %v2798
          %vm3624 = vcmp.eq.f32.partialorder %v3623, 8.507059e+37
          %v3625 = vand.u32 %v2798, 2147483648
          %v3626 = vor.u32 1.1754944e-38, %v3625
          %v3627 = vsel %vm3624, %v3626, %v3622
          %v3628 = vmul.f32 %v2670, %v3627
          %v3629 = vrcp.pop %v2800
          %v3630 = vmul.f32 %v2800, %v3629
          %v3631 = vsub.f32 1.0, %v3630
          %v3632 = vmul.f32 %v3629, %v3631
          %v3633 = vadd.f32 %v3629, %v3632
          %vm3634 = vweird.f32 %v2800
          %vm3635 = vweird.f32 %v3629
          %vm3636 = vmor %vm3634, %vm3635
          %v3637 = vsel %vm3636, %v3629, %v3633
          %v3638 = vand.u32 2147483647, %v2800
          %vm3639 = vcmp.eq.f32.partialorder %v3638, 8.507059e+37
          %v3640 = vand.u32 %v2800, 2147483648
          %v3641 = vor.u32 1.1754944e-38, %v3640
          %v3642 = vsel %vm3639, %v3641, %v3637
          %v3643 = vmul.f32 %v2672, %v3642
          %v3644 = vrcp.pop %v2802
          %v3645 = vmul.f32 %v2802, %v3644
          %v3646 = vsub.f32 1.0, %v3645
          %v3647 = vmul.f32 %v3644, %v3646
          %v3648 = vadd.f32 %v3644, %v3647
          %vm3649 = vweird.f32 %v2802
          %vm3650 = vweird.f32 %v3644
          %vm3651 = vmor %vm3649, %vm3650
          %v3652 = vsel %vm3651, %v3644, %v3648
          %v3653 = vand.u32 2147483647, %v2802
          %vm3654 = vcmp.eq.f32.partialorder %v3653, 8.507059e+37
          %v3655 = vand.u32 %v2802, 2147483648
          %v3656 = vor.u32 1.1754944e-38, %v3655
          %v3657 = vsel %vm3654, %v3656, %v3652
          %v3658 = vmul.f32 %v2674, %v3657
          %v3659 = vrcp.pop %v2804
          %v3660 = vmul.f32 %v2804, %v3659
          %v3661 = vsub.f32 1.0, %v3660
          %v3662 = vmul.f32 %v3659, %v3661
          %v3663 = vadd.f32 %v3659, %v3662
          %vm3664 = vweird.f32 %v2804
          %vm3665 = vweird.f32 %v3659
          %vm3666 = vmor %vm3664, %vm3665
          %v3667 = vsel %vm3666, %v3659, %v3663
          %v3668 = vand.u32 2147483647, %v2804
          %vm3669 = vcmp.eq.f32.partialorder %v3668, 8.507059e+37
          %v3670 = vand.u32 %v2804, 2147483648
          %v3671 = vor.u32 1.1754944e-38, %v3670
          %v3672 = vsel %vm3669, %v3671, %v3667
          %v3673 = vmul.f32 %v2676, %v3672
          %v3674 = vrcp.pop %v2806
          %v3675 = vmul.f32 %v2806, %v3674
          %v3676 = vsub.f32 1.0, %v3675
          %v3677 = vmul.f32 %v3674, %v3676
          %v3678 = vadd.f32 %v3674, %v3677
          %vm3679 = vweird.f32 %v2806
          %vm3680 = vweird.f32 %v3674
          %vm3681 = vmor %vm3679, %vm3680
          %v3682 = vsel %vm3681, %v3674, %v3678
          %v3683 = vand.u32 2147483647, %v2806
          %vm3684 = vcmp.eq.f32.partialorder %v3683, 8.507059e+37
          %v3685 = vand.u32 %v2806, 2147483648
          %v3686 = vor.u32 1.1754944e-38, %v3685
          %v3687 = vsel %vm3684, %v3686, %v3682
          %v3688 = vmul.f32 %v2678, %v3687
          %v3689 = vrcp.pop %v2808
          %v3690 = vmul.f32 %v2808, %v3689
          %v3691 = vsub.f32 1.0, %v3690
          %v3692 = vmul.f32 %v3689, %v3691
          %v3693 = vadd.f32 %v3689, %v3692
          %vm3694 = vweird.f32 %v2808
          %vm3695 = vweird.f32 %v3689
          %vm3696 = vmor %vm3694, %vm3695
          %v3697 = vsel %vm3696, %v3689, %v3693
          %v3698 = vand.u32 2147483647, %v2808
          %vm3699 = vcmp.eq.f32.partialorder %v3698, 8.507059e+37
          %v3700 = vand.u32 %v2808, 2147483648
          %v3701 = vor.u32 1.1754944e-38, %v3700
          %v3702 = vsel %vm3699, %v3701, %v3697
          %v3703 = vmul.f32 %v2680, %v3702
          %v3704 = vrcp.pop %v2810
          %v3705 = vmul.f32 %v2810, %v3704
          %v3706 = vsub.f32 1.0, %v3705
          %v3707 = vmul.f32 %v3704, %v3706
          %v3708 = vadd.f32 %v3704, %v3707
          %vm3709 = vweird.f32 %v2810
          %vm3710 = vweird.f32 %v3704
          %vm3711 = vmor %vm3709, %vm3710
          %v3712 = vsel %vm3711, %v3704, %v3708
          %v3713 = vand.u32 2147483647, %v2810
          %vm3714 = vcmp.eq.f32.partialorder %v3713, 8.507059e+37
          %v3715 = vand.u32 %v2810, 2147483648
          %v3716 = vor.u32 1.1754944e-38, %v3715
          %v3717 = vsel %vm3714, %v3716, %v3712
          %v3718 = vmul.f32 %v2682, %v3717
          %v3719 = vrcp.pop %v2812
          %v3720 = vmul.f32 %v2812, %v3719
          %v3721 = vsub.f32 1.0, %v3720
          %v3722 = vmul.f32 %v3719, %v3721
          %v3723 = vadd.f32 %v3719, %v3722
          %vm3724 = vweird.f32 %v2812
          %vm3725 = vweird.f32 %v3719
          %vm3726 = vmor %vm3724, %vm3725
          %v3727 = vsel %vm3726, %v3719, %v3723
          %v3728 = vand.u32 2147483647, %v2812
          %vm3729 = vcmp.eq.f32.partialorder %v3728, 8.507059e+37
          %v3730 = vand.u32 %v2812, 2147483648
          %v3731 = vor.u32 1.1754944e-38, %v3730
          %v3732 = vsel %vm3729, %v3731, %v3727
          %v3733 = vmul.f32 %v2684, %v3732
          %v3734 = vrcp.pop %v2814
          %v3735 = vmul.f32 %v2814, %v3734
          %v3736 = vsub.f32 1.0, %v3735
          %v3737 = vmul.f32 %v3734, %v3736
          %v3738 = vadd.f32 %v3734, %v3737
          %vm3739 = vweird.f32 %v2814
          %vm3740 = vweird.f32 %v3734
          %vm3741 = vmor %vm3739, %vm3740
          %v3742 = vsel %vm3741, %v3734, %v3738
          %v3743 = vand.u32 2147483647, %v2814
          %vm3744 = vcmp.eq.f32.partialorder %v3743, 8.507059e+37
          %v3745 = vand.u32 %v2814, 2147483648
          %v3746 = vor.u32 1.1754944e-38, %v3745
          %v3747 = vsel %vm3744, %v3746, %v3742
          %v3748 = vmul.f32 %v2686, %v3747
          %v3749 = vrcp.pop %v2816
          %v3750 = vmul.f32 %v2816, %v3749
          %v3751 = vsub.f32 1.0, %v3750
          %v3752 = vmul.f32 %v3749, %v3751
          %v3753 = vadd.f32 %v3749, %v3752
          %vm3754 = vweird.f32 %v2816
          %vm3755 = vweird.f32 %v3749
          %vm3756 = vmor %vm3754, %vm3755
          %v3757 = vsel %vm3756, %v3749, %v3753
          %v3758 = vand.u32 2147483647, %v2816
          %vm3759 = vcmp.eq.f32.partialorder %v3758, 8.507059e+37
          %v3760 = vand.u32 %v2816, 2147483648
          %v3761 = vor.u32 1.1754944e-38, %v3760
          %v3762 = vsel %vm3759, %v3761, %v3757
          %v3763 = vmul.f32 %v2688, %v3762
          %v3764 = vrcp.pop %v2818
          %v3765 = vmul.f32 %v2818, %v3764
          %v3766 = vsub.f32 1.0, %v3765
          %v3767 = vmul.f32 %v3764, %v3766
          %v3768 = vadd.f32 %v3764, %v3767
          %vm3769 = vweird.f32 %v2818
          %vm3770 = vweird.f32 %v3764
          %vm3771 = vmor %vm3769, %vm3770
          %v3772 = vsel %vm3771, %v3764, %v3768
          %v3773 = vand.u32 2147483647, %v2818
          %vm3774 = vcmp.eq.f32.partialorder %v3773, 8.507059e+37
          %v3775 = vand.u32 %v2818, 2147483648
          %v3776 = vor.u32 1.1754944e-38, %v3775
          %v3777 = vsel %vm3774, %v3776, %v3772
          %v3778 = vmul.f32 %v2690, %v3777
          %3779 = vmatpush.msra.mxu0 %v1198
          %3780 = vmatpush.msra.mxu0 %v1195
          %3781 = vmatpush.msra.mxu0 %v1192
          %3782 = vmatpush.msra.mxu0 %v1189
          %3783 = vmatpush.msra.mxu0 %v1186
          %3784 = vmatpush.msra.mxu0 %v1183
          %3785 = vmatpush.msra.mxu0 %v1180
          %3786 = vmatpush.msra.mxu0 %v1177
          %3787 = vmatpush.msra.mxu0 %v1174
          %3788 = vmatpush.msra.mxu0 %v1171
          %3789 = vmatpush.msra.mxu0 %v1168
          %3790 = vmatpush.msra.mxu0 %v1165
          %3791 = vmatpush.msra.mxu0 %v1162
          %3792 = vmatpush.msra.mxu0 %v1159
          %3793 = vmatpush.msra.mxu0 %v1156
          %3794 = vmatpush.msra.mxu0 %v1153
          %3795 = vmatmul.f32.gmra.mxu0 %v2833
          %v3796 = vpop.f32.mrf.mxu0
          %v3797 = vadd.f32 0.0, %v3796
          %3798 = vmatmul.f32.gmra.mxu0 %v2848
          %v3799 = vpop.f32.mrf.mxu0
          %v3800 = vadd.f32 0.0, %v3799
          %3801 = vmatmul.f32.gmra.mxu0 %v2863
          %v3802 = vpop.f32.mrf.mxu0
          %v3803 = vadd.f32 0.0, %v3802
          %3804 = vmatmul.f32.gmra.mxu0 %v2878
          %v3805 = vpop.f32.mrf.mxu0
          %v3806 = vadd.f32 0.0, %v3805
          %3807 = vmatmul.f32.gmra.mxu0 %v2893
          %v3808 = vpop.f32.mrf.mxu0
          %v3809 = vadd.f32 0.0, %v3808
          %3810 = vmatmul.f32.gmra.mxu0 %v2908
          %v3811 = vpop.f32.mrf.mxu0
          %v3812 = vadd.f32 0.0, %v3811
          %3813 = vmatmul.f32.gmra.mxu0 %v2923
          %v3814 = vpop.f32.mrf.mxu0
          %v3815 = vadd.f32 0.0, %v3814
          %3816 = vmatmul.f32.gmra.mxu0 %v2938
          %v3817 = vpop.f32.mrf.mxu0
          %v3818 = vadd.f32 0.0, %v3817
          %3819 = vmatmul.f32.gmra.mxu0 %v2953
          %v3820 = vpop.f32.mrf.mxu0
          %v3821 = vadd.f32 0.0, %v3820
          %3822 = vmatmul.f32.gmra.mxu0 %v2968
          %v3823 = vpop.f32.mrf.mxu0
          %v3824 = vadd.f32 0.0, %v3823
          %3825 = vmatmul.f32.gmra.mxu0 %v2983
          %v3826 = vpop.f32.mrf.mxu0
          %v3827 = vadd.f32 0.0, %v3826
          %3828 = vmatmul.f32.gmra.mxu0 %v2998
          %v3829 = vpop.f32.mrf.mxu0
          %v3830 = vadd.f32 0.0, %v3829
          %3831 = vmatmul.f32.gmra.mxu0 %v3013
          %v3832 = vpop.f32.mrf.mxu0
          %v3833 = vadd.f32 0.0, %v3832
          %3834 = vmatmul.f32.gmra.mxu0 %v3028
          %v3835 = vpop.f32.mrf.mxu0
          %v3836 = vadd.f32 0.0, %v3835
          %3837 = vmatmul.f32.gmra.mxu0 %v3043
          %v3838 = vpop.f32.mrf.mxu0
          %v3839 = vadd.f32 0.0, %v3838
          %3840 = vmatmul.f32.gmra.mxu0 %v3058
          %v3841 = vpop.f32.mrf.mxu0
          %v3842 = vadd.f32 0.0, %v3841
          %3843 = vmatmul.f32.gmra.mxu0 %v3073
          %v3844 = vpop.f32.mrf.mxu0
          %v3845 = vadd.f32 0.0, %v3844
          %3846 = vmatmul.f32.gmra.mxu0 %v3088
          %v3847 = vpop.f32.mrf.mxu0
          %v3848 = vadd.f32 0.0, %v3847
          %3849 = vmatmul.f32.gmra.mxu0 %v3103
          %v3850 = vpop.f32.mrf.mxu0
          %v3851 = vadd.f32 0.0, %v3850
          %3852 = vmatmul.f32.gmra.mxu0 %v3118
          %v3853 = vpop.f32.mrf.mxu0
          %v3854 = vadd.f32 0.0, %v3853
          %3855 = vmatmul.f32.gmra.mxu0 %v3133
          %v3856 = vpop.f32.mrf.mxu0
          %v3857 = vadd.f32 0.0, %v3856
          %3858 = vmatmul.f32.gmra.mxu0 %v3148
          %v3859 = vpop.f32.mrf.mxu0
          %v3860 = vadd.f32 0.0, %v3859
          %3861 = vmatmul.f32.gmra.mxu0 %v3163
          %v3862 = vpop.f32.mrf.mxu0
          %v3863 = vadd.f32 0.0, %v3862
          %3864 = vmatmul.f32.gmra.mxu0 %v3178
          %v3865 = vpop.f32.mrf.mxu0
          %v3866 = vadd.f32 0.0, %v3865
          %3867 = vmatmul.f32.gmra.mxu0 %v3193
          %v3868 = vpop.f32.mrf.mxu0
          %v3869 = vadd.f32 0.0, %v3868
          %3870 = vmatmul.f32.gmra.mxu0 %v3208
          %v3871 = vpop.f32.mrf.mxu0
          %v3872 = vadd.f32 0.0, %v3871
          %3873 = vmatmul.f32.gmra.mxu0 %v3223
          %v3874 = vpop.f32.mrf.mxu0
          %v3875 = vadd.f32 0.0, %v3874
          %3876 = vmatmul.f32.gmra.mxu0 %v3238
          %v3877 = vpop.f32.mrf.mxu0
          %v3878 = vadd.f32 0.0, %v3877
          %3879 = vmatmul.f32.gmra.mxu0 %v3253
          %v3880 = vpop.f32.mrf.mxu0
          %v3881 = vadd.f32 0.0, %v3880
          %3882 = vmatmul.f32.gmra.mxu0 %v3268
          %v3883 = vpop.f32.mrf.mxu0
          %v3884 = vadd.f32 0.0, %v3883
          %3885 = vmatmul.f32.gmra.mxu0 %v3283
          %v3886 = vpop.f32.mrf.mxu0
          %v3887 = vadd.f32 0.0, %v3886
          %3888 = vmatmul.f32.gmra.mxu0 %v3298
          %v3889 = vpop.f32.mrf.mxu0
          %v3890 = vadd.f32 0.0, %v3889
          %3891 = vmatmul.f32.gmra.mxu0 %v3313
          %v3892 = vpop.f32.mrf.mxu0
          %v3893 = vadd.f32 0.0, %v3892
          %3894 = vmatmul.f32.gmra.mxu0 %v3328
          %v3895 = vpop.f32.mrf.mxu0
          %v3896 = vadd.f32 0.0, %v3895
          %3897 = vmatmul.f32.gmra.mxu0 %v3343
          %v3898 = vpop.f32.mrf.mxu0
          %v3899 = vadd.f32 0.0, %v3898
          %3900 = vmatmul.f32.gmra.mxu0 %v3358
          %v3901 = vpop.f32.mrf.mxu0
          %v3902 = vadd.f32 0.0, %v3901
          %3903 = vmatmul.f32.gmra.mxu0 %v3373
          %v3904 = vpop.f32.mrf.mxu0
          %v3905 = vadd.f32 0.0, %v3904
          %3906 = vmatmul.f32.gmra.mxu0 %v3388
          %v3907 = vpop.f32.mrf.mxu0
          %v3908 = vadd.f32 0.0, %v3907
          %3909 = vmatmul.f32.gmra.mxu0 %v3403
          %v3910 = vpop.f32.mrf.mxu0
          %v3911 = vadd.f32 0.0, %v3910
          %3912 = vmatmul.f32.gmra.mxu0 %v3418
          %v3913 = vpop.f32.mrf.mxu0
          %v3914 = vadd.f32 0.0, %v3913
          %3915 = vmatmul.f32.gmra.mxu0 %v3433
          %v3916 = vpop.f32.mrf.mxu0
          %v3917 = vadd.f32 0.0, %v3916
          %3918 = vmatmul.f32.gmra.mxu0 %v3448
          %v3919 = vpop.f32.mrf.mxu0
          %v3920 = vadd.f32 0.0, %v3919
          %3921 = vmatmul.f32.gmra.mxu0 %v3463
          %v3922 = vpop.f32.mrf.mxu0
          %v3923 = vadd.f32 0.0, %v3922
          %3924 = vmatmul.f32.gmra.mxu0 %v3478
          %v3925 = vpop.f32.mrf.mxu0
          %v3926 = vadd.f32 0.0, %v3925
          %3927 = vmatmul.f32.gmra.mxu0 %v3493
          %v3928 = vpop.f32.mrf.mxu0
          %v3929 = vadd.f32 0.0, %v3928
          %3930 = vmatmul.f32.gmra.mxu0 %v3508
          %v3931 = vpop.f32.mrf.mxu0
          %v3932 = vadd.f32 0.0, %v3931
          %3933 = vmatmul.f32.gmra.mxu0 %v3523
          %v3934 = vpop.f32.mrf.mxu0
          %v3935 = vadd.f32 0.0, %v3934
          %3936 = vmatmul.f32.gmra.mxu0 %v3538
          %v3937 = vpop.f32.mrf.mxu0
          %v3938 = vadd.f32 0.0, %v3937
          %3939 = vmatmul.f32.gmra.mxu0 %v3553
          %v3940 = vpop.f32.mrf.mxu0
          %v3941 = vadd.f32 0.0, %v3940
          %3942 = vmatmul.f32.gmra.mxu0 %v3568
          %v3943 = vpop.f32.mrf.mxu0
          %v3944 = vadd.f32 0.0, %v3943
          %3945 = vmatmul.f32.gmra.mxu0 %v3583
          %v3946 = vpop.f32.mrf.mxu0
          %v3947 = vadd.f32 0.0, %v3946
          %3948 = vmatmul.f32.gmra.mxu0 %v3598
          %v3949 = vpop.f32.mrf.mxu0
          %v3950 = vadd.f32 0.0, %v3949
          %3951 = vmatmul.f32.gmra.mxu0 %v3613
          %v3952 = vpop.f32.mrf.mxu0
          %v3953 = vadd.f32 0.0, %v3952
          %3954 = vmatmul.f32.gmra.mxu0 %v3628
          %v3955 = vpop.f32.mrf.mxu0
          %v3956 = vadd.f32 0.0, %v3955
          %3957 = vmatmul.f32.gmra.mxu0 %v3643
          %v3958 = vpop.f32.mrf.mxu0
          %v3959 = vadd.f32 0.0, %v3958
          %3960 = vmatmul.f32.gmra.mxu0 %v3658
          %v3961 = vpop.f32.mrf.mxu0
          %v3962 = vadd.f32 0.0, %v3961
          %3963 = vmatmul.f32.gmra.mxu0 %v3673
          %v3964 = vpop.f32.mrf.mxu0
          %v3965 = vadd.f32 0.0, %v3964
          %3966 = vmatmul.f32.gmra.mxu0 %v3688
          %v3967 = vpop.f32.mrf.mxu0
          %v3968 = vadd.f32 0.0, %v3967
          %3969 = vmatmul.f32.gmra.mxu0 %v3703
          %v3970 = vpop.f32.mrf.mxu0
          %v3971 = vadd.f32 0.0, %v3970
          %3972 = vmatmul.f32.gmra.mxu0 %v3718
          %v3973 = vpop.f32.mrf.mxu0
          %v3974 = vadd.f32 0.0, %v3973
          %3975 = vmatmul.f32.gmra.mxu0 %v3733
          %v3976 = vpop.f32.mrf.mxu0
          %v3977 = vadd.f32 0.0, %v3976
          %3978 = vmatmul.f32.gmra.mxu0 %v3748
          %v3979 = vpop.f32.mrf.mxu0
          %v3980 = vadd.f32 0.0, %v3979
          %3981 = vmatmul.f32.gmra.mxu0 %v3763
          %v3982 = vpop.f32.mrf.mxu0
          %v3983 = vadd.f32 0.0, %v3982
          %3984 = vmatmul.f32.gmra.mxu0 %v3778
          %v3985 = vpop.f32.mrf.mxu0
          %v3986 = vadd.f32 0.0, %v3985
          %3987 = vdwg.mxu0
          %v3988 = vmul.f32 %v757, %v3797
          %v3989 = vmul.f32 %v757, %v3800
          %v3990 = vmul.f32 %v757, %v3803
          %v3991 = vmul.f32 %v757, %v3806
          %v3992 = vmul.f32 %v757, %v3809
          %v3993 = vmul.f32 %v757, %v3812
          %v3994 = vmul.f32 %v757, %v3815
          %v3995 = vmul.f32 %v757, %v3818
          %v3996 = vmul.f32 %v757, %v3821
          %v3997 = vmul.f32 %v757, %v3824
          %v3998 = vmul.f32 %v757, %v3827
          %v3999 = vmul.f32 %v757, %v3830
          %v4000 = vmul.f32 %v757, %v3833
          %v4001 = vmul.f32 %v757, %v3836
          %v4002 = vmul.f32 %v757, %v3839
          %v4003 = vmul.f32 %v757, %v3842
          %v4004 = vmul.f32 %v762, %v3845
          %v4005 = vmul.f32 %v762, %v3848
          %v4006 = vmul.f32 %v762, %v3851
          %v4007 = vmul.f32 %v762, %v3854
          %v4008 = vmul.f32 %v762, %v3857
          %v4009 = vmul.f32 %v762, %v3860
          %v4010 = vmul.f32 %v762, %v3863
          %v4011 = vmul.f32 %v762, %v3866
          %v4012 = vmul.f32 %v762, %v3869
          %v4013 = vmul.f32 %v762, %v3872
          %v4014 = vmul.f32 %v762, %v3875
          %v4015 = vmul.f32 %v762, %v3878
          %v4016 = vmul.f32 %v762, %v3881
          %v4017 = vmul.f32 %v762, %v3884
          %v4018 = vmul.f32 %v762, %v3887
          %v4019 = vmul.f32 %v762, %v3890
          %v4020 = vadd.f32 %v3988, %v4004
          %v4021 = vadd.f32 %v3989, %v4005
          %v4022 = vadd.f32 %v3990, %v4006
          %v4023 = vadd.f32 %v3991, %v4007
          %v4024 = vadd.f32 %v3992, %v4008
          %v4025 = vadd.f32 %v3993, %v4009
          %v4026 = vadd.f32 %v3994, %v4010
          %v4027 = vadd.f32 %v3995, %v4011
          %v4028 = vadd.f32 %v3996, %v4012
          %v4029 = vadd.f32 %v3997, %v4013
          %v4030 = vadd.f32 %v3998, %v4014
          %v4031 = vadd.f32 %v3999, %v4015
          %v4032 = vadd.f32 %v4000, %v4016
          %v4033 = vadd.f32 %v4001, %v4017
          %v4034 = vadd.f32 %v4002, %v4018
          %v4035 = vadd.f32 %v4003, %v4019
          %v4036 = vmul.f32 %v767, %v3893
          %v4037 = vmul.f32 %v767, %v3896
          %v4038 = vmul.f32 %v767, %v3899
          %v4039 = vmul.f32 %v767, %v3902
          %v4040 = vmul.f32 %v767, %v3905
          %v4041 = vmul.f32 %v767, %v3908
          %v4042 = vmul.f32 %v767, %v3911
          %v4043 = vmul.f32 %v767, %v3914
          %v4044 = vmul.f32 %v767, %v3917
          %v4045 = vmul.f32 %v767, %v3920
          %v4046 = vmul.f32 %v767, %v3923
          %v4047 = vmul.f32 %v767, %v3926
          %v4048 = vmul.f32 %v767, %v3929
          %v4049 = vmul.f32 %v767, %v3932
          %v4050 = vmul.f32 %v767, %v3935
          %v4051 = vmul.f32 %v767, %v3938
          %v4052 = vadd.f32 %v4020, %v4036
          %v4053 = vadd.f32 %v4021, %v4037
          %v4054 = vadd.f32 %v4022, %v4038
          %v4055 = vadd.f32 %v4023, %v4039
          %v4056 = vadd.f32 %v4024, %v4040
          %v4057 = vadd.f32 %v4025, %v4041
          %v4058 = vadd.f32 %v4026, %v4042
          %v4059 = vadd.f32 %v4027, %v4043
          %v4060 = vadd.f32 %v4028, %v4044
          %v4061 = vadd.f32 %v4029, %v4045
          %v4062 = vadd.f32 %v4030, %v4046
          %v4063 = vadd.f32 %v4031, %v4047
          %v4064 = vadd.f32 %v4032, %v4048
          %v4065 = vadd.f32 %v4033, %v4049
          %v4066 = vadd.f32 %v4034, %v4050
          %v4067 = vadd.f32 %v4035, %v4051
          %v4068 = vmul.f32 %v772, %v3941
          %v4069 = vmul.f32 %v772, %v3944
          %v4070 = vmul.f32 %v772, %v3947
          %v4071 = vmul.f32 %v772, %v3950
          %v4072 = vmul.f32 %v772, %v3953
          %v4073 = vmul.f32 %v772, %v3956
          %v4074 = vmul.f32 %v772, %v3959
          %v4075 = vmul.f32 %v772, %v3962
          %v4076 = vmul.f32 %v772, %v3965
          %v4077 = vmul.f32 %v772, %v3968
          %v4078 = vmul.f32 %v772, %v3971
          %v4079 = vmul.f32 %v772, %v3974
          %v4080 = vmul.f32 %v772, %v3977
          %v4081 = vmul.f32 %v772, %v3980
          %v4082 = vmul.f32 %v772, %v3983
          %v4083 = vmul.f32 %v772, %v3986
          %v4084 = vadd.f32 %v4052, %v4068
          %v4085 = vadd.f32 %v4053, %v4069
          %v4086 = vadd.f32 %v4054, %v4070
          %v4087 = vadd.f32 %v4055, %v4071
          %v4088 = vadd.f32 %v4056, %v4072
          %v4089 = vadd.f32 %v4057, %v4073
          %v4090 = vadd.f32 %v4058, %v4074
          %v4091 = vadd.f32 %v4059, %v4075
          %v4092 = vadd.f32 %v4060, %v4076
          %v4093 = vadd.f32 %v4061, %v4077
          %v4094 = vadd.f32 %v4062, %v4078
          %v4095 = vadd.f32 %v4063, %v4079
          %v4096 = vadd.f32 %v4064, %v4080
          %v4097 = vadd.f32 %v4065, %v4081
          %v4098 = vadd.f32 %v4066, %v4082
          %v4099 = vadd.f32 %v4067, %v4083
          %s4100 = smul.u32 %s811, 32
          %s4101 = scalar_lea.vmem %s5, %s4100
          %v4102 = vld [vmem:[%s4101] sm:$0xff]
          %v4103 = vld [vmem:[%s4101 + $0x8] sm:$0xff]
          %v4104 = vld [vmem:[%s4101 + $0x10] sm:$0xff]
          %v4105 = vld [vmem:[%s4101 + $0x18] sm:$0xff]
          %s4106 = sadd.s32 %s811, 5
          %s4107 = smul.u32 %s4106, 32
          %s4108 = scalar_lea.vmem %s5, %s4107
          %v4109 = vld [vmem:[%s4108] sm:$0xff]
          %v4110 = vld [vmem:[%s4108 + $0x8] sm:$0xff]
          %v4111 = vld [vmem:[%s4108 + $0x10] sm:$0xff]
          %v4112 = vld [vmem:[%s4108 + $0x18] sm:$0xff]
          %s4113 = sadd.s32 %s811, 4
          %s4114 = smul.u32 %s4113, 32
          %s4115 = scalar_lea.vmem %s5, %s4114
          %v4116 = vld [vmem:[%s4115] sm:$0xff]
          %v4117 = vld [vmem:[%s4115 + $0x8] sm:$0xff]
          %v4118 = vld [vmem:[%s4115 + $0x10] sm:$0xff]
          %v4119 = vld [vmem:[%s4115 + $0x18] sm:$0xff]
          %v4121 = vsel %vm1086, %v1032, 0
          %v4124 = vsel %vm1086, %v1035, 0
          %v4127 = vsel %vm1086, %v1038, 0
          %v4130 = vsel %vm1086, %v1041, 0
          %v4133 = vsel %vm1086, %v1044, 0
          %v4136 = vsel %vm1086, %v1047, 0
          %v4139 = vsel %vm1086, %v1050, 0
          %v4142 = vsel %vm1086, %v1053, 0
          %v4145 = vsel %vm1086, %v1056, 0
          %v4148 = vsel %vm1086, %v1059, 0
          %v4151 = vsel %vm1086, %v1062, 0
          %v4154 = vsel %vm1086, %v1065, 0
          %v4157 = vsel %vm1086, %v1068, 0
          %v4160 = vsel %vm1086, %v1071, 0
          %v4163 = vsel %vm1086, %v1074, 0
          %v4166 = vsel %vm1086, %v1077, 0
          %4168 = vmatpush.msra.mxu0 0.0
          %4169 = vmatpush.msra.mxu0 0.0
          %4170 = vmatpush.msra.mxu0 0.0
          %4171 = vmatpush.msra.mxu0 0.0
          %4172 = vmatpush.msra.mxu0 0.0
          %4173 = vmatpush.msra.mxu0 0.0
          %4174 = vmatpush.msra.mxu0 0.0
          %4175 = vmatpush.msra.mxu0 0.0
          %4176 = vmatpush.msra.mxu0 0.0
          %4177 = vmatpush.msra.mxu0 0.0
          %4178 = vmatpush.msra.mxu0 0.0
          %4179 = vmatpush.msra.mxu0 0.0
          %4180 = vmatpush.msra.mxu0 %v4119
          %4181 = vmatpush.msra.mxu0 %v4118
          %4182 = vmatpush.msra.mxu0 %v4117
          %4183 = vmatpush.msra.mxu0 %v4116
          %4184 = vmatmul.f32.gmra.mxu0 %v4121
          %v4185 = vpop.f32.mrf.mxu0
          %v4186 = vadd.f32 0.0, %v4185
          %4187 = vmatmul.f32.gmra.mxu0 %v4124
          %v4188 = vpop.f32.mrf.mxu0
          %v4189 = vadd.f32 0.0, %v4188
          %4190 = vmatmul.f32.gmra.mxu0 %v4127
          %v4191 = vpop.f32.mrf.mxu0
          %v4192 = vadd.f32 0.0, %v4191
          %4193 = vmatmul.f32.gmra.mxu0 %v4130
          %v4194 = vpop.f32.mrf.mxu0
          %v4195 = vadd.f32 0.0, %v4194
          %4196 = vmatmul.f32.gmra.mxu0 %v4133
          %v4197 = vpop.f32.mrf.mxu0
          %v4198 = vadd.f32 0.0, %v4197
          %4199 = vmatmul.f32.gmra.mxu0 %v4136
          %v4200 = vpop.f32.mrf.mxu0
          %v4201 = vadd.f32 0.0, %v4200
          %4202 = vmatmul.f32.gmra.mxu0 %v4139
          %v4203 = vpop.f32.mrf.mxu0
          %v4204 = vadd.f32 0.0, %v4203
          %4205 = vmatmul.f32.gmra.mxu0 %v4142
          %v4206 = vpop.f32.mrf.mxu0
          %v4207 = vadd.f32 0.0, %v4206
          %4208 = vmatmul.f32.gmra.mxu0 %v4145
          %v4209 = vpop.f32.mrf.mxu0
          %v4210 = vadd.f32 0.0, %v4209
          %4211 = vmatmul.f32.gmra.mxu0 %v4148
          %v4212 = vpop.f32.mrf.mxu0
          %v4213 = vadd.f32 0.0, %v4212
          %4214 = vmatmul.f32.gmra.mxu0 %v4151
          %v4215 = vpop.f32.mrf.mxu0
          %v4216 = vadd.f32 0.0, %v4215
          %4217 = vmatmul.f32.gmra.mxu0 %v4154
          %v4218 = vpop.f32.mrf.mxu0
          %v4219 = vadd.f32 0.0, %v4218
          %4220 = vmatmul.f32.gmra.mxu0 %v4157
          %v4221 = vpop.f32.mrf.mxu0
          %v4222 = vadd.f32 0.0, %v4221
          %4223 = vmatmul.f32.gmra.mxu0 %v4160
          %v4224 = vpop.f32.mrf.mxu0
          %v4225 = vadd.f32 0.0, %v4224
          %4226 = vmatmul.f32.gmra.mxu0 %v4163
          %v4227 = vpop.f32.mrf.mxu0
          %v4228 = vadd.f32 0.0, %v4227
          %4229 = vmatmul.f32.gmra.mxu0 %v4166
          %v4230 = vpop.f32.mrf.mxu0
          %v4231 = vadd.f32 0.0, %v4230
          %4232 = vdwg.mxu0
          %4233 = vmatpush.msra.mxu0 0.0
          %4234 = vmatpush.msra.mxu0 0.0
          %4235 = vmatpush.msra.mxu0 0.0
          %4236 = vmatpush.msra.mxu0 0.0
          %4237 = vmatpush.msra.mxu0 0.0
          %4238 = vmatpush.msra.mxu0 0.0
          %4239 = vmatpush.msra.mxu0 0.0
          %4240 = vmatpush.msra.mxu0 0.0
          %4241 = vmatpush.msra.mxu0 0.0
          %4242 = vmatpush.msra.mxu0 0.0
          %4243 = vmatpush.msra.mxu0 0.0
          %4244 = vmatpush.msra.mxu0 0.0
          %4245 = vmatpush.msra.mxu0 %v4112
          %4246 = vmatpush.msra.mxu0 %v4111
          %4247 = vmatpush.msra.mxu0 %v4110
          %4248 = vmatpush.msra.mxu0 %v4109
          %4249 = vmatmul.f32.gmra.mxu0 %v1088
          %v4250 = vpop.f32.mrf.mxu0
          %v4251 = vadd.f32 %v4186, %v4250
          %4252 = vmatmul.f32.gmra.mxu0 %v1091
          %v4253 = vpop.f32.mrf.mxu0
          %v4254 = vadd.f32 %v4189, %v4253
          %4255 = vmatmul.f32.gmra.mxu0 %v1094
          %v4256 = vpop.f32.mrf.mxu0
          %v4257 = vadd.f32 %v4192, %v4256
          %4258 = vmatmul.f32.gmra.mxu0 %v1097
          %v4259 = vpop.f32.mrf.mxu0
          %v4260 = vadd.f32 %v4195, %v4259
          %4261 = vmatmul.f32.gmra.mxu0 %v1100
          %v4262 = vpop.f32.mrf.mxu0
          %v4263 = vadd.f32 %v4198, %v4262
          %4264 = vmatmul.f32.gmra.mxu0 %v1103
          %v4265 = vpop.f32.mrf.mxu0
          %v4266 = vadd.f32 %v4201, %v4265
          %4267 = vmatmul.f32.gmra.mxu0 %v1106
          %v4268 = vpop.f32.mrf.mxu0
          %v4269 = vadd.f32 %v4204, %v4268
          %4270 = vmatmul.f32.gmra.mxu0 %v1109
          %v4271 = vpop.f32.mrf.mxu0
          %v4272 = vadd.f32 %v4207, %v4271
          %4273 = vmatmul.f32.gmra.mxu0 %v1112
          %v4274 = vpop.f32.mrf.mxu0
          %v4275 = vadd.f32 %v4210, %v4274
          %4276 = vmatmul.f32.gmra.mxu0 %v1115
          %v4277 = vpop.f32.mrf.mxu0
          %v4278 = vadd.f32 %v4213, %v4277
          %4279 = vmatmul.f32.gmra.mxu0 %v1118
          %v4280 = vpop.f32.mrf.mxu0
          %v4281 = vadd.f32 %v4216, %v4280
          %4282 = vmatmul.f32.gmra.mxu0 %v1121
          %v4283 = vpop.f32.mrf.mxu0
          %v4284 = vadd.f32 %v4219, %v4283
          %4285 = vmatmul.f32.gmra.mxu0 %v1124
          %v4286 = vpop.f32.mrf.mxu0
          %v4287 = vadd.f32 %v4222, %v4286
          %4288 = vmatmul.f32.gmra.mxu0 %v1127
          %v4289 = vpop.f32.mrf.mxu0
          %v4290 = vadd.f32 %v4225, %v4289
          %4291 = vmatmul.f32.gmra.mxu0 %v1130
          %v4292 = vpop.f32.mrf.mxu0
          %v4293 = vadd.f32 %v4228, %v4292
          %4294 = vmatmul.f32.gmra.mxu0 %v1133
          %v4295 = vpop.f32.mrf.mxu0
          %v4296 = vadd.f32 %v4231, %v4295
          %4297 = vdwg.mxu0
          %s4298 = sadd.s32 %s811, 1
          %s4299 = smul.u32 %s4298, 32
          %s4300 = scalar_lea.vmem %s5, %s4299
          %v4301 = vld [vmem:[%s4300] sm:$0xff]
          %v4302 = vld [vmem:[%s4300 + $0x8] sm:$0xff]
          %v4303 = vld [vmem:[%s4300 + $0x10] sm:$0xff]
          %v4304 = vld [vmem:[%s4300 + $0x18] sm:$0xff]
          %v4306 = vsel %vm1086, %v888, 0
          %v4309 = vsel %vm1086, %v891, 0
          %v4312 = vsel %vm1086, %v894, 0
          %v4315 = vsel %vm1086, %v897, 0
          %v4318 = vsel %vm1086, %v900, 0
          %v4321 = vsel %vm1086, %v903, 0
          %v4324 = vsel %vm1086, %v906, 0
          %v4327 = vsel %vm1086, %v909, 0
          %v4330 = vsel %vm1086, %v912, 0
          %v4333 = vsel %vm1086, %v915, 0
          %v4336 = vsel %vm1086, %v918, 0
          %v4339 = vsel %vm1086, %v921, 0
          %v4342 = vsel %vm1086, %v924, 0
          %v4345 = vsel %vm1086, %v927, 0
          %v4348 = vsel %vm1086, %v930, 0
          %v4351 = vsel %vm1086, %v933, 0
          %4353 = vmatpush.msra.mxu0 0.0
          %4354 = vmatpush.msra.mxu0 0.0
          %4355 = vmatpush.msra.mxu0 0.0
          %4356 = vmatpush.msra.mxu0 0.0
          %4357 = vmatpush.msra.mxu0 0.0
          %4358 = vmatpush.msra.mxu0 0.0
          %4359 = vmatpush.msra.mxu0 0.0
          %4360 = vmatpush.msra.mxu0 0.0
          %4361 = vmatpush.msra.mxu0 0.0
          %4362 = vmatpush.msra.mxu0 0.0
          %4363 = vmatpush.msra.mxu0 0.0
          %4364 = vmatpush.msra.mxu0 0.0
          %4365 = vmatpush.msra.mxu0 %v4304
          %4366 = vmatpush.msra.mxu0 %v4303
          %4367 = vmatpush.msra.mxu0 %v4302
          %4368 = vmatpush.msra.mxu0 %v4301
          %4369 = vmatmul.f32.gmra.mxu0 %v4306
          %v4370 = vpop.f32.mrf.mxu0
          %v4371 = vadd.f32 0.0, %v4370
          %4372 = vmatmul.f32.gmra.mxu0 %v4309
          %v4373 = vpop.f32.mrf.mxu0
          %v4374 = vadd.f32 0.0, %v4373
          %4375 = vmatmul.f32.gmra.mxu0 %v4312
          %v4376 = vpop.f32.mrf.mxu0
          %v4377 = vadd.f32 0.0, %v4376
          %4378 = vmatmul.f32.gmra.mxu0 %v4315
          %v4379 = vpop.f32.mrf.mxu0
          %v4380 = vadd.f32 0.0, %v4379
          %4381 = vmatmul.f32.gmra.mxu0 %v4318
          %v4382 = vpop.f32.mrf.mxu0
          %v4383 = vadd.f32 0.0, %v4382
          %4384 = vmatmul.f32.gmra.mxu0 %v4321
          %v4385 = vpop.f32.mrf.mxu0
          %v4386 = vadd.f32 0.0, %v4385
          %4387 = vmatmul.f32.gmra.mxu0 %v4324
          %v4388 = vpop.f32.mrf.mxu0
          %v4389 = vadd.f32 0.0, %v4388
          %4390 = vmatmul.f32.gmra.mxu0 %v4327
          %v4391 = vpop.f32.mrf.mxu0
          %v4392 = vadd.f32 0.0, %v4391
          %4393 = vmatmul.f32.gmra.mxu0 %v4330
          %v4394 = vpop.f32.mrf.mxu0
          %v4395 = vadd.f32 0.0, %v4394
          %4396 = vmatmul.f32.gmra.mxu0 %v4333
          %v4397 = vpop.f32.mrf.mxu0
          %v4398 = vadd.f32 0.0, %v4397
          %4399 = vmatmul.f32.gmra.mxu0 %v4336
          %v4400 = vpop.f32.mrf.mxu0
          %v4401 = vadd.f32 0.0, %v4400
          %4402 = vmatmul.f32.gmra.mxu0 %v4339
          %v4403 = vpop.f32.mrf.mxu0
          %v4404 = vadd.f32 0.0, %v4403
          %4405 = vmatmul.f32.gmra.mxu0 %v4342
          %v4406 = vpop.f32.mrf.mxu0
          %v4407 = vadd.f32 0.0, %v4406
          %4408 = vmatmul.f32.gmra.mxu0 %v4345
          %v4409 = vpop.f32.mrf.mxu0
          %v4410 = vadd.f32 0.0, %v4409
          %4411 = vmatmul.f32.gmra.mxu0 %v4348
          %v4412 = vpop.f32.mrf.mxu0
          %v4413 = vadd.f32 0.0, %v4412
          %4414 = vmatmul.f32.gmra.mxu0 %v4351
          %v4415 = vpop.f32.mrf.mxu0
          %v4416 = vadd.f32 0.0, %v4415
          %4417 = vdwg.mxu0
          %v4418 = vsub.f32 %v4251, %v4371
          %v4419 = vsub.f32 %v4254, %v4374
          %v4420 = vsub.f32 %v4257, %v4377
          %v4421 = vsub.f32 %v4260, %v4380
          %v4422 = vsub.f32 %v4263, %v4383
          %v4423 = vsub.f32 %v4266, %v4386
          %v4424 = vsub.f32 %v4269, %v4389
          %v4425 = vsub.f32 %v4272, %v4392
          %v4426 = vsub.f32 %v4275, %v4395
          %v4427 = vsub.f32 %v4278, %v4398
          %v4428 = vsub.f32 %v4281, %v4401
          %v4429 = vsub.f32 %v4284, %v4404
          %v4430 = vsub.f32 %v4287, %v4407
          %v4431 = vsub.f32 %v4290, %v4410
          %v4432 = vsub.f32 %v4293, %v4413
          %v4433 = vsub.f32 %v4296, %v4416
          %s4434 = sadd.s32 %s811, 2
          %s4435 = smul.u32 %s4434, 32
          %s4436 = scalar_lea.vmem %s5, %s4435
          %v4437 = vld [vmem:[%s4436] sm:$0xff]
          %v4438 = vld [vmem:[%s4436 + $0x8] sm:$0xff]
          %v4439 = vld [vmem:[%s4436 + $0x10] sm:$0xff]
          %v4440 = vld [vmem:[%s4436 + $0x18] sm:$0xff]
          %s4441 = sadd.s32 %s811, 6
          %s4442 = smul.u32 %s4441, 32
          %s4443 = scalar_lea.vmem %s5, %s4442
          %v4444 = vld [vmem:[%s4443] sm:$0xff]
          %v4445 = vld [vmem:[%s4443 + $0x8] sm:$0xff]
          %v4446 = vld [vmem:[%s4443 + $0x10] sm:$0xff]
          %v4447 = vld [vmem:[%s4443 + $0x18] sm:$0xff]
          %4448 = vmatpush.msra.mxu0 0.0
          %4449 = vmatpush.msra.mxu0 0.0
          %4450 = vmatpush.msra.mxu0 0.0
          %4451 = vmatpush.msra.mxu0 0.0
          %4452 = vmatpush.msra.mxu0 0.0
          %4453 = vmatpush.msra.mxu0 0.0
          %4454 = vmatpush.msra.mxu0 0.0
          %4455 = vmatpush.msra.mxu0 0.0
          %4456 = vmatpush.msra.mxu0 0.0
          %4457 = vmatpush.msra.mxu0 0.0
          %4458 = vmatpush.msra.mxu0 0.0
          %4459 = vmatpush.msra.mxu0 0.0
          %4460 = vmatpush.msra.mxu0 %v4447
          %4461 = vmatpush.msra.mxu0 %v4446
          %4462 = vmatpush.msra.mxu0 %v4445
          %4463 = vmatpush.msra.mxu0 %v4444
          %4464 = vmatmul.f32.gmra.mxu0 %v1088
          %v4465 = vpop.f32.mrf.mxu0
          %v4466 = vadd.f32 0.0, %v4465
          %4467 = vmatmul.f32.gmra.mxu0 %v1091
          %v4468 = vpop.f32.mrf.mxu0
          %v4469 = vadd.f32 0.0, %v4468
          %4470 = vmatmul.f32.gmra.mxu0 %v1094
          %v4471 = vpop.f32.mrf.mxu0
          %v4472 = vadd.f32 0.0, %v4471
          %4473 = vmatmul.f32.gmra.mxu0 %v1097
          %v4474 = vpop.f32.mrf.mxu0
          %v4475 = vadd.f32 0.0, %v4474
          %4476 = vmatmul.f32.gmra.mxu0 %v1100
          %v4477 = vpop.f32.mrf.mxu0
          %v4478 = vadd.f32 0.0, %v4477
          %4479 = vmatmul.f32.gmra.mxu0 %v1103
          %v4480 = vpop.f32.mrf.mxu0
          %v4481 = vadd.f32 0.0, %v4480
          %4482 = vmatmul.f32.gmra.mxu0 %v1106
          %v4483 = vpop.f32.mrf.mxu0
          %v4484 = vadd.f32 0.0, %v4483
          %4485 = vmatmul.f32.gmra.mxu0 %v1109
          %v4486 = vpop.f32.mrf.mxu0
          %v4487 = vadd.f32 0.0, %v4486
          %4488 = vmatmul.f32.gmra.mxu0 %v1112
          %v4489 = vpop.f32.mrf.mxu0
          %v4490 = vadd.f32 0.0, %v4489
          %4491 = vmatmul.f32.gmra.mxu0 %v1115
          %v4492 = vpop.f32.mrf.mxu0
          %v4493 = vadd.f32 0.0, %v4492
          %4494 = vmatmul.f32.gmra.mxu0 %v1118
          %v4495 = vpop.f32.mrf.mxu0
          %v4496 = vadd.f32 0.0, %v4495
          %4497 = vmatmul.f32.gmra.mxu0 %v1121
          %v4498 = vpop.f32.mrf.mxu0
          %v4499 = vadd.f32 0.0, %v4498
          %4500 = vmatmul.f32.gmra.mxu0 %v1124
          %v4501 = vpop.f32.mrf.mxu0
          %v4502 = vadd.f32 0.0, %v4501
          %4503 = vmatmul.f32.gmra.mxu0 %v1127
          %v4504 = vpop.f32.mrf.mxu0
          %v4505 = vadd.f32 0.0, %v4504
          %4506 = vmatmul.f32.gmra.mxu0 %v1130
          %v4507 = vpop.f32.mrf.mxu0
          %v4508 = vadd.f32 0.0, %v4507
          %4509 = vmatmul.f32.gmra.mxu0 %v1133
          %v4510 = vpop.f32.mrf.mxu0
          %v4511 = vadd.f32 0.0, %v4510
          %4512 = vdwg.mxu0
          %v4514 = vsel %vm1086, %v936, 0
          %v4517 = vsel %vm1086, %v939, 0
          %v4520 = vsel %vm1086, %v942, 0
          %v4523 = vsel %vm1086, %v945, 0
          %v4526 = vsel %vm1086, %v948, 0
          %v4529 = vsel %vm1086, %v951, 0
          %v4532 = vsel %vm1086, %v954, 0
          %v4535 = vsel %vm1086, %v957, 0
          %v4538 = vsel %vm1086, %v960, 0
          %v4541 = vsel %vm1086, %v963, 0
          %v4544 = vsel %vm1086, %v966, 0
          %v4547 = vsel %vm1086, %v969, 0
          %v4550 = vsel %vm1086, %v972, 0
          %v4553 = vsel %vm1086, %v975, 0
          %v4556 = vsel %vm1086, %v978, 0
          %v4559 = vsel %vm1086, %v981, 0
          %4561 = vmatpush.msra.mxu0 0.0
          %4562 = vmatpush.msra.mxu0 0.0
          %4563 = vmatpush.msra.mxu0 0.0
          %4564 = vmatpush.msra.mxu0 0.0
          %4565 = vmatpush.msra.mxu0 0.0
          %4566 = vmatpush.msra.mxu0 0.0
          %4567 = vmatpush.msra.mxu0 0.0
          %4568 = vmatpush.msra.mxu0 0.0
          %4569 = vmatpush.msra.mxu0 0.0
          %4570 = vmatpush.msra.mxu0 0.0
          %4571 = vmatpush.msra.mxu0 0.0
          %4572 = vmatpush.msra.mxu0 0.0
          %4573 = vmatpush.msra.mxu0 %v4440
          %4574 = vmatpush.msra.mxu0 %v4439
          %4575 = vmatpush.msra.mxu0 %v4438
          %4576 = vmatpush.msra.mxu0 %v4437
          %4577 = vmatmul.f32.gmra.mxu0 %v4514
          %v4578 = vpop.f32.mrf.mxu0
          %v4579 = vadd.f32 %v4466, %v4578
          %4580 = vmatmul.f32.gmra.mxu0 %v4517
          %v4581 = vpop.f32.mrf.mxu0
          %v4582 = vadd.f32 %v4469, %v4581
          %4583 = vmatmul.f32.gmra.mxu0 %v4520
          %v4584 = vpop.f32.mrf.mxu0
          %v4585 = vadd.f32 %v4472, %v4584
          %4586 = vmatmul.f32.gmra.mxu0 %v4523
          %v4587 = vpop.f32.mrf.mxu0
          %v4588 = vadd.f32 %v4475, %v4587
          %4589 = vmatmul.f32.gmra.mxu0 %v4526
          %v4590 = vpop.f32.mrf.mxu0
          %v4591 = vadd.f32 %v4478, %v4590
          %4592 = vmatmul.f32.gmra.mxu0 %v4529
          %v4593 = vpop.f32.mrf.mxu0
          %v4594 = vadd.f32 %v4481, %v4593
          %4595 = vmatmul.f32.gmra.mxu0 %v4532
          %v4596 = vpop.f32.mrf.mxu0
          %v4597 = vadd.f32 %v4484, %v4596
          %4598 = vmatmul.f32.gmra.mxu0 %v4535
          %v4599 = vpop.f32.mrf.mxu0
          %v4600 = vadd.f32 %v4487, %v4599
          %4601 = vmatmul.f32.gmra.mxu0 %v4538
          %v4602 = vpop.f32.mrf.mxu0
          %v4603 = vadd.f32 %v4490, %v4602
          %4604 = vmatmul.f32.gmra.mxu0 %v4541
          %v4605 = vpop.f32.mrf.mxu0
          %v4606 = vadd.f32 %v4493, %v4605
          %4607 = vmatmul.f32.gmra.mxu0 %v4544
          %v4608 = vpop.f32.mrf.mxu0
          %v4609 = vadd.f32 %v4496, %v4608
          %4610 = vmatmul.f32.gmra.mxu0 %v4547
          %v4611 = vpop.f32.mrf.mxu0
          %v4612 = vadd.f32 %v4499, %v4611
          %4613 = vmatmul.f32.gmra.mxu0 %v4550
          %v4614 = vpop.f32.mrf.mxu0
          %v4615 = vadd.f32 %v4502, %v4614
          %4616 = vmatmul.f32.gmra.mxu0 %v4553
          %v4617 = vpop.f32.mrf.mxu0
          %v4618 = vadd.f32 %v4505, %v4617
          %4619 = vmatmul.f32.gmra.mxu0 %v4556
          %v4620 = vpop.f32.mrf.mxu0
          %v4621 = vadd.f32 %v4508, %v4620
          %4622 = vmatmul.f32.gmra.mxu0 %v4559
          %v4623 = vpop.f32.mrf.mxu0
          %v4624 = vadd.f32 %v4511, %v4623
          %4625 = vdwg.mxu0
          %s4626 = sadd.s32 %s811, 3
          %s4627 = smul.u32 %s4626, 32
          %s4628 = scalar_lea.vmem %s5, %s4627
          %v4629 = vld [vmem:[%s4628] sm:$0xff]
          %v4630 = vld [vmem:[%s4628 + $0x8] sm:$0xff]
          %v4631 = vld [vmem:[%s4628 + $0x10] sm:$0xff]
          %v4632 = vld [vmem:[%s4628 + $0x18] sm:$0xff]
          %s4633 = sadd.s32 %s811, 7
          %s4634 = smul.u32 %s4633, 32
          %s4635 = scalar_lea.vmem %s5, %s4634
          %v4636 = vld [vmem:[%s4635] sm:$0xff]
          %v4637 = vld [vmem:[%s4635 + $0x8] sm:$0xff]
          %v4638 = vld [vmem:[%s4635 + $0x10] sm:$0xff]
          %v4639 = vld [vmem:[%s4635 + $0x18] sm:$0xff]
          %4640 = vmatpush.msra.mxu0 0.0
          %4641 = vmatpush.msra.mxu0 0.0
          %4642 = vmatpush.msra.mxu0 0.0
          %4643 = vmatpush.msra.mxu0 0.0
          %4644 = vmatpush.msra.mxu0 0.0
          %4645 = vmatpush.msra.mxu0 0.0
          %4646 = vmatpush.msra.mxu0 0.0
          %4647 = vmatpush.msra.mxu0 0.0
          %4648 = vmatpush.msra.mxu0 0.0
          %4649 = vmatpush.msra.mxu0 0.0
          %4650 = vmatpush.msra.mxu0 0.0
          %4651 = vmatpush.msra.mxu0 0.0
          %4652 = vmatpush.msra.mxu0 %v4639
          %4653 = vmatpush.msra.mxu0 %v4638
          %4654 = vmatpush.msra.mxu0 %v4637
          %4655 = vmatpush.msra.mxu0 %v4636
          %4656 = vmatmul.f32.gmra.mxu0 %v1088
          %v4657 = vpop.f32.mrf.mxu0
          %v4658 = vadd.f32 0.0, %v4657
          %4659 = vmatmul.f32.gmra.mxu0 %v1091
          %v4660 = vpop.f32.mrf.mxu0
          %v4661 = vadd.f32 0.0, %v4660
          %4662 = vmatmul.f32.gmra.mxu0 %v1094
          %v4663 = vpop.f32.mrf.mxu0
          %v4664 = vadd.f32 0.0, %v4663
          %4665 = vmatmul.f32.gmra.mxu0 %v1097
          %v4666 = vpop.f32.mrf.mxu0
          %v4667 = vadd.f32 0.0, %v4666
          %4668 = vmatmul.f32.gmra.mxu0 %v1100
          %v4669 = vpop.f32.mrf.mxu0
          %v4670 = vadd.f32 0.0, %v4669
          %4671 = vmatmul.f32.gmra.mxu0 %v1103
          %v4672 = vpop.f32.mrf.mxu0
          %v4673 = vadd.f32 0.0, %v4672
          %4674 = vmatmul.f32.gmra.mxu0 %v1106
          %v4675 = vpop.f32.mrf.mxu0
          %v4676 = vadd.f32 0.0, %v4675
          %4677 = vmatmul.f32.gmra.mxu0 %v1109
          %v4678 = vpop.f32.mrf.mxu0
          %v4679 = vadd.f32 0.0, %v4678
          %4680 = vmatmul.f32.gmra.mxu0 %v1112
          %v4681 = vpop.f32.mrf.mxu0
          %v4682 = vadd.f32 0.0, %v4681
          %4683 = vmatmul.f32.gmra.mxu0 %v1115
          %v4684 = vpop.f32.mrf.mxu0
          %v4685 = vadd.f32 0.0, %v4684
          %4686 = vmatmul.f32.gmra.mxu0 %v1118
          %v4687 = vpop.f32.mrf.mxu0
          %v4688 = vadd.f32 0.0, %v4687
          %4689 = vmatmul.f32.gmra.mxu0 %v1121
          %v4690 = vpop.f32.mrf.mxu0
          %v4691 = vadd.f32 0.0, %v4690
          %4692 = vmatmul.f32.gmra.mxu0 %v1124
          %v4693 = vpop.f32.mrf.mxu0
          %v4694 = vadd.f32 0.0, %v4693
          %4695 = vmatmul.f32.gmra.mxu0 %v1127
          %v4696 = vpop.f32.mrf.mxu0
          %v4697 = vadd.f32 0.0, %v4696
          %4698 = vmatmul.f32.gmra.mxu0 %v1130
          %v4699 = vpop.f32.mrf.mxu0
          %v4700 = vadd.f32 0.0, %v4699
          %4701 = vmatmul.f32.gmra.mxu0 %v1133
          %v4702 = vpop.f32.mrf.mxu0
          %v4703 = vadd.f32 0.0, %v4702
          %4704 = vdwg.mxu0
          %v4706 = vsel %vm1086, %v984, 0
          %v4709 = vsel %vm1086, %v987, 0
          %v4712 = vsel %vm1086, %v990, 0
          %v4715 = vsel %vm1086, %v993, 0
          %v4718 = vsel %vm1086, %v996, 0
          %v4721 = vsel %vm1086, %v999, 0
          %v4724 = vsel %vm1086, %v1002, 0
          %v4727 = vsel %vm1086, %v1005, 0
          %v4730 = vsel %vm1086, %v1008, 0
          %v4733 = vsel %vm1086, %v1011, 0
          %v4736 = vsel %vm1086, %v1014, 0
          %v4739 = vsel %vm1086, %v1017, 0
          %v4742 = vsel %vm1086, %v1020, 0
          %v4745 = vsel %vm1086, %v1023, 0
          %v4748 = vsel %vm1086, %v1026, 0
          %v4751 = vsel %vm1086, %v1029, 0
          %4753 = vmatpush.msra.mxu0 0.0
          %4754 = vmatpush.msra.mxu0 0.0
          %4755 = vmatpush.msra.mxu0 0.0
          %4756 = vmatpush.msra.mxu0 0.0
          %4757 = vmatpush.msra.mxu0 0.0
          %4758 = vmatpush.msra.mxu0 0.0
          %4759 = vmatpush.msra.mxu0 0.0
          %4760 = vmatpush.msra.mxu0 0.0
          %4761 = vmatpush.msra.mxu0 0.0
          %4762 = vmatpush.msra.mxu0 0.0
          %4763 = vmatpush.msra.mxu0 0.0
          %4764 = vmatpush.msra.mxu0 0.0
          %4765 = vmatpush.msra.mxu0 %v4632
          %4766 = vmatpush.msra.mxu0 %v4631
          %4767 = vmatpush.msra.mxu0 %v4630
          %4768 = vmatpush.msra.mxu0 %v4629
          %4769 = vmatmul.f32.gmra.mxu0 %v4706
          %v4770 = vpop.f32.mrf.mxu0
          %v4771 = vadd.f32 %v4658, %v4770
          %4772 = vmatmul.f32.gmra.mxu0 %v4709
          %v4773 = vpop.f32.mrf.mxu0
          %v4774 = vadd.f32 %v4661, %v4773
          %4775 = vmatmul.f32.gmra.mxu0 %v4712
          %v4776 = vpop.f32.mrf.mxu0
          %v4777 = vadd.f32 %v4664, %v4776
          %4778 = vmatmul.f32.gmra.mxu0 %v4715
          %v4779 = vpop.f32.mrf.mxu0
          %v4780 = vadd.f32 %v4667, %v4779
          %4781 = vmatmul.f32.gmra.mxu0 %v4718
          %v4782 = vpop.f32.mrf.mxu0
          %v4783 = vadd.f32 %v4670, %v4782
          %4784 = vmatmul.f32.gmra.mxu0 %v4721
          %v4785 = vpop.f32.mrf.mxu0
          %v4786 = vadd.f32 %v4673, %v4785
          %4787 = vmatmul.f32.gmra.mxu0 %v4724
          %v4788 = vpop.f32.mrf.mxu0
          %v4789 = vadd.f32 %v4676, %v4788
          %4790 = vmatmul.f32.gmra.mxu0 %v4727
          %v4791 = vpop.f32.mrf.mxu0
          %v4792 = vadd.f32 %v4679, %v4791
          %4793 = vmatmul.f32.gmra.mxu0 %v4730
          %v4794 = vpop.f32.mrf.mxu0
          %v4795 = vadd.f32 %v4682, %v4794
          %4796 = vmatmul.f32.gmra.mxu0 %v4733
          %v4797 = vpop.f32.mrf.mxu0
          %v4798 = vadd.f32 %v4685, %v4797
          %4799 = vmatmul.f32.gmra.mxu0 %v4736
          %v4800 = vpop.f32.mrf.mxu0
          %v4801 = vadd.f32 %v4688, %v4800
          %4802 = vmatmul.f32.gmra.mxu0 %v4739
          %v4803 = vpop.f32.mrf.mxu0
          %v4804 = vadd.f32 %v4691, %v4803
          %4805 = vmatmul.f32.gmra.mxu0 %v4742
          %v4806 = vpop.f32.mrf.mxu0
          %v4807 = vadd.f32 %v4694, %v4806
          %4808 = vmatmul.f32.gmra.mxu0 %v4745
          %v4809 = vpop.f32.mrf.mxu0
          %v4810 = vadd.f32 %v4697, %v4809
          %4811 = vmatmul.f32.gmra.mxu0 %v4748
          %v4812 = vpop.f32.mrf.mxu0
          %v4813 = vadd.f32 %v4700, %v4812
          %4814 = vmatmul.f32.gmra.mxu0 %v4751
          %v4815 = vpop.f32.mrf.mxu0
          %v4816 = vadd.f32 %v4703, %v4815
          %4817 = vdwg.mxu0
          %v4818 = vperm.slane %v814, 0
          %v4820 = vsel %vm1086, %v840, 0
          %v4823 = vsel %vm1086, %v843, 0
          %v4826 = vsel %vm1086, %v846, 0
          %v4829 = vsel %vm1086, %v849, 0
          %v4832 = vsel %vm1086, %v852, 0
          %v4835 = vsel %vm1086, %v855, 0
          %v4838 = vsel %vm1086, %v858, 0
          %v4841 = vsel %vm1086, %v861, 0
          %v4844 = vsel %vm1086, %v864, 0
          %v4847 = vsel %vm1086, %v867, 0
          %v4850 = vsel %vm1086, %v870, 0
          %v4853 = vsel %vm1086, %v873, 0
          %v4856 = vsel %vm1086, %v876, 0
          %v4859 = vsel %vm1086, %v879, 0
          %v4862 = vsel %vm1086, %v882, 0
          %v4865 = vsel %vm1086, %v885, 0
          %4867 = vmatpush.msra.mxu0 0.0
          %4868 = vmatpush.msra.mxu0 0.0
          %4869 = vmatpush.msra.mxu0 0.0
          %4870 = vmatpush.msra.mxu0 0.0
          %4871 = vmatpush.msra.mxu0 0.0
          %4872 = vmatpush.msra.mxu0 0.0
          %4873 = vmatpush.msra.mxu0 0.0
          %4874 = vmatpush.msra.mxu0 0.0
          %4875 = vmatpush.msra.mxu0 0.0
          %4876 = vmatpush.msra.mxu0 0.0
          %4877 = vmatpush.msra.mxu0 0.0
          %4878 = vmatpush.msra.mxu0 0.0
          %4879 = vmatpush.msra.mxu0 %v4105
          %4880 = vmatpush.msra.mxu0 %v4104
          %4881 = vmatpush.msra.mxu0 %v4103
          %4882 = vmatpush.msra.mxu0 %v4102
          %4883 = vmatmul.f32.gmra.mxu0 %v4820
          %v4884 = vpop.f32.mrf.mxu0
          %v4885 = vadd.f32 %v4818, %v4884
          %4886 = vmatmul.f32.gmra.mxu0 %v4823
          %v4887 = vpop.f32.mrf.mxu0
          %v4888 = vadd.f32 %v4818, %v4887
          %4889 = vmatmul.f32.gmra.mxu0 %v4826
          %v4890 = vpop.f32.mrf.mxu0
          %v4891 = vadd.f32 %v4818, %v4890
          %4892 = vmatmul.f32.gmra.mxu0 %v4829
          %v4893 = vpop.f32.mrf.mxu0
          %v4894 = vadd.f32 %v4818, %v4893
          %4895 = vmatmul.f32.gmra.mxu0 %v4832
          %v4896 = vpop.f32.mrf.mxu0
          %v4897 = vadd.f32 %v4818, %v4896
          %4898 = vmatmul.f32.gmra.mxu0 %v4835
          %v4899 = vpop.f32.mrf.mxu0
          %v4900 = vadd.f32 %v4818, %v4899
          %4901 = vmatmul.f32.gmra.mxu0 %v4838
          %v4902 = vpop.f32.mrf.mxu0
          %v4903 = vadd.f32 %v4818, %v4902
          %4904 = vmatmul.f32.gmra.mxu0 %v4841
          %v4905 = vpop.f32.mrf.mxu0
          %v4906 = vadd.f32 %v4818, %v4905
          %4907 = vmatmul.f32.gmra.mxu0 %v4844
          %v4908 = vpop.f32.mrf.mxu0
          %v4909 = vadd.f32 %v4818, %v4908
          %4910 = vmatmul.f32.gmra.mxu0 %v4847
          %v4911 = vpop.f32.mrf.mxu0
          %v4912 = vadd.f32 %v4818, %v4911
          %4913 = vmatmul.f32.gmra.mxu0 %v4850
          %v4914 = vpop.f32.mrf.mxu0
          %v4915 = vadd.f32 %v4818, %v4914
          %4916 = vmatmul.f32.gmra.mxu0 %v4853
          %v4917 = vpop.f32.mrf.mxu0
          %v4918 = vadd.f32 %v4818, %v4917
          %4919 = vmatmul.f32.gmra.mxu0 %v4856
          %v4920 = vpop.f32.mrf.mxu0
          %v4921 = vadd.f32 %v4818, %v4920
          %4922 = vmatmul.f32.gmra.mxu0 %v4859
          %v4923 = vpop.f32.mrf.mxu0
          %v4924 = vadd.f32 %v4818, %v4923
          %4925 = vmatmul.f32.gmra.mxu0 %v4862
          %v4926 = vpop.f32.mrf.mxu0
          %v4927 = vadd.f32 %v4818, %v4926
          %4928 = vmatmul.f32.gmra.mxu0 %v4865
          %v4929 = vpop.f32.mrf.mxu0
          %v4930 = vadd.f32 %v4818, %v4929
          %4931 = vdwg.mxu0
          %v4932 = vsel %vm1086, %v4885, 0.0
          %v4933 = vsel %vm1086, %v4888, 0.0
          %v4934 = vadd.f32 %v4932, %v4933
          %v4935 = vsel %vm1086, %v4891, 0.0
          %v4936 = vadd.f32 %v4934, %v4935
          %v4937 = vsel %vm1086, %v4894, 0.0
          %v4938 = vadd.f32 %v4936, %v4937
          %v4939 = vsel %vm1086, %v4897, 0.0
          %v4940 = vadd.f32 %v4938, %v4939
          %v4941 = vsel %vm1086, %v4900, 0.0
          %v4942 = vadd.f32 %v4940, %v4941
          %v4943 = vsel %vm1086, %v4903, 0.0
          %v4944 = vadd.f32 %v4942, %v4943
          %v4945 = vsel %vm1086, %v4906, 0.0
          %v4946 = vadd.f32 %v4944, %v4945
          %v4947 = vsel %vm1086, %v4909, 0.0
          %v4948 = vadd.f32 %v4946, %v4947
          %v4949 = vsel %vm1086, %v4912, 0.0
          %v4950 = vadd.f32 %v4948, %v4949
          %v4951 = vsel %vm1086, %v4915, 0.0
          %v4952 = vadd.f32 %v4950, %v4951
          %v4953 = vsel %vm1086, %v4918, 0.0
          %v4954 = vadd.f32 %v4952, %v4953
          %v4955 = vsel %vm1086, %v4921, 0.0
          %v4956 = vadd.f32 %v4954, %v4955
          %v4957 = vsel %vm1086, %v4924, 0.0
          %v4958 = vadd.f32 %v4956, %v4957
          %v4959 = vsel %vm1086, %v4927, 0.0
          %v4960 = vadd.f32 %v4958, %v4959
          %v4961 = vsel %vm1086, %v4930, 0.0
          %v4962 = vadd.f32 %v4960, %v4961
          %v4963 = vrot.slane %v4962, 4
          %v4964 = vadd.f32 %v4962, %v4963
          %v4965 = vrot.slane %v4964, 2
          %v4966 = vadd.f32 %v4964, %v4965
          %v4967 = vrot.slane %v4966, 1
          %v4968 = vadd.f32 %v4966, %v4967
          %v4969 = vrcp.pop 128.0
          %v4970 = vmul.f32 128.0, %v4969
          %v4971 = vsub.f32 1.0, %v4970
          %v4972 = vmul.f32 %v4969, %v4971
          %v4973 = vadd.f32 %v4969, %v4972
          %vm4974 = vweird.f32 %v4969
          %v4975 = vsel %vm4974, %v4969, %v4973
          %v4976 = vmul.f32 %v4968, %v4975
          %v4977 = vsub.f32 %v4885, %v4976
          %v4978 = vsub.f32 %v4888, %v4976
          %v4979 = vsub.f32 %v4891, %v4976
          %v4980 = vsub.f32 %v4894, %v4976
          %v4981 = vsub.f32 %v4897, %v4976
          %v4982 = vsub.f32 %v4900, %v4976
          %v4983 = vsub.f32 %v4903, %v4976
          %v4984 = vsub.f32 %v4906, %v4976
          %v4985 = vsub.f32 %v4909, %v4976
          %v4986 = vsub.f32 %v4912, %v4976
          %v4987 = vsub.f32 %v4915, %v4976
          %v4988 = vsub.f32 %v4918, %v4976
          %v4989 = vsub.f32 %v4921, %v4976
          %v4990 = vsub.f32 %v4924, %v4976
          %v4991 = vsub.f32 %v4927, %v4976
          %v4992 = vsub.f32 %v4930, %v4976
          %v4993 = vmul.f32 %v4977, %v4977
          %v4994 = vmul.f32 %v4978, %v4978
          %v4995 = vmul.f32 %v4979, %v4979
          %v4996 = vmul.f32 %v4980, %v4980
          %v4997 = vmul.f32 %v4981, %v4981
          %v4998 = vmul.f32 %v4982, %v4982
          %v4999 = vmul.f32 %v4983, %v4983
          %v5000 = vmul.f32 %v4984, %v4984
          %v5001 = vmul.f32 %v4985, %v4985
          %v5002 = vmul.f32 %v4986, %v4986
          %v5003 = vmul.f32 %v4987, %v4987
          %v5004 = vmul.f32 %v4988, %v4988
          %v5005 = vmul.f32 %v4989, %v4989
          %v5006 = vmul.f32 %v4990, %v4990
          %v5007 = vmul.f32 %v4991, %v4991
          %v5008 = vmul.f32 %v4992, %v4992
          %v5009 = vsel %vm1086, %v4993, 0.0
          %v5010 = vsel %vm1086, %v4994, 0.0
          %v5011 = vadd.f32 %v5009, %v5010
          %v5012 = vsel %vm1086, %v4995, 0.0
          %v5013 = vadd.f32 %v5011, %v5012
          %v5014 = vsel %vm1086, %v4996, 0.0
          %v5015 = vadd.f32 %v5013, %v5014
          %v5016 = vsel %vm1086, %v4997, 0.0
          %v5017 = vadd.f32 %v5015, %v5016
          %v5018 = vsel %vm1086, %v4998, 0.0
          %v5019 = vadd.f32 %v5017, %v5018
          %v5020 = vsel %vm1086, %v4999, 0.0
          %v5021 = vadd.f32 %v5019, %v5020
          %v5022 = vsel %vm1086, %v5000, 0.0
          %v5023 = vadd.f32 %v5021, %v5022
          %v5024 = vsel %vm1086, %v5001, 0.0
          %v5025 = vadd.f32 %v5023, %v5024
          %v5026 = vsel %vm1086, %v5002, 0.0
          %v5027 = vadd.f32 %v5025, %v5026
          %v5028 = vsel %vm1086, %v5003, 0.0
          %v5029 = vadd.f32 %v5027, %v5028
          %v5030 = vsel %vm1086, %v5004, 0.0
          %v5031 = vadd.f32 %v5029, %v5030
          %v5032 = vsel %vm1086, %v5005, 0.0
          %v5033 = vadd.f32 %v5031, %v5032
          %v5034 = vsel %vm1086, %v5006, 0.0
          %v5035 = vadd.f32 %v5033, %v5034
          %v5036 = vsel %vm1086, %v5007, 0.0
          %v5037 = vadd.f32 %v5035, %v5036
          %v5038 = vsel %vm1086, %v5008, 0.0
          %v5039 = vadd.f32 %v5037, %v5038
          %v5040 = vrot.slane %v5039, 4
          %v5041 = vadd.f32 %v5039, %v5040
          %v5042 = vrot.slane %v5041, 2
          %v5043 = vadd.f32 %v5041, %v5042
          %v5044 = vrot.slane %v5043, 1
          %v5045 = vadd.f32 %v5043, %v5044
          %v5046 = vmul.f32 %v5045, %v4975
          %v5047 = vadd.f32 %v5046, 1e-05
          %v5048 = vrsqrt.pop %v5047
          %v5049 = vmul.f32 %v5048, %v5047
          %v5050 = vmul.f32 %v5049, %v5048
          %v5051 = vmul.f32 0.5, %v5050
          %v5052 = vsub.f32 1.5, %v5051
          %v5053 = vmul.f32 %v5048, %v5052
          %vm5054 = vweird.f32 %v5047
          %vm5055 = vweird.f32 %v5048
          %vm5056 = vmor %vm5054, %vm5055
          %v5057 = vsel %vm5056, %v5048, %v5053
          %v5058 = vmul.f32 %v4977, %v5057
          %v5059 = vmul.f32 %v4978, %v5057
          %v5060 = vmul.f32 %v4979, %v5057
          %v5061 = vmul.f32 %v4980, %v5057
          %v5062 = vmul.f32 %v4981, %v5057
          %v5063 = vmul.f32 %v4982, %v5057
          %v5064 = vmul.f32 %v4983, %v5057
          %v5065 = vmul.f32 %v4984, %v5057
          %v5066 = vmul.f32 %v4985, %v5057
          %v5067 = vmul.f32 %v4986, %v5057
          %v5068 = vmul.f32 %v4987, %v5057
          %v5069 = vmul.f32 %v4988, %v5057
          %v5070 = vmul.f32 %v4989, %v5057
          %v5071 = vmul.f32 %v4990, %v5057
          %v5072 = vmul.f32 %v4991, %v5057
          %v5073 = vmul.f32 %v4992, %v5057
          %v5074 = vperm.slane %v814, 5
          %v5075 = vmul.f32 %v5058, %v5074
          %v5076 = vmul.f32 %v5059, %v5074
          %v5077 = vmul.f32 %v5060, %v5074
          %v5078 = vmul.f32 %v5061, %v5074
          %v5079 = vmul.f32 %v5062, %v5074
          %v5080 = vmul.f32 %v5063, %v5074
          %v5081 = vmul.f32 %v5064, %v5074
          %v5082 = vmul.f32 %v5065, %v5074
          %v5083 = vmul.f32 %v5066, %v5074
          %v5084 = vmul.f32 %v5067, %v5074
          %v5085 = vmul.f32 %v5068, %v5074
          %v5086 = vmul.f32 %v5069, %v5074
          %v5087 = vmul.f32 %v5070, %v5074
          %v5088 = vmul.f32 %v5071, %v5074
          %v5089 = vmul.f32 %v5072, %v5074
          %v5090 = vmul.f32 %v5073, %v5074
          %v5091 = vperm.slane %v815, 2
          %v5092 = vadd.f32 %v5075, %v5091
          %v5093 = vadd.f32 %v5076, %v5091
          %v5094 = vadd.f32 %v5077, %v5091
          %v5095 = vadd.f32 %v5078, %v5091
          %v5096 = vadd.f32 %v5079, %v5091
          %v5097 = vadd.f32 %v5080, %v5091
          %v5098 = vadd.f32 %v5081, %v5091
          %v5099 = vadd.f32 %v5082, %v5091
          %v5100 = vadd.f32 %v5083, %v5091
          %v5101 = vadd.f32 %v5084, %v5091
          %v5102 = vadd.f32 %v5085, %v5091
          %v5103 = vadd.f32 %v5086, %v5091
          %v5104 = vadd.f32 %v5087, %v5091
          %v5105 = vadd.f32 %v5088, %v5091
          %v5106 = vadd.f32 %v5089, %v5091
          %v5107 = vadd.f32 %v5090, %v5091
          %v5108 = vmax.f32 %v5092, 0.0
          %v5109 = vmax.f32 %v5093, 0.0
          %v5110 = vmax.f32 %v5094, 0.0
          %v5111 = vmax.f32 %v5095, 0.0
          %v5112 = vmax.f32 %v5096, 0.0
          %v5113 = vmax.f32 %v5097, 0.0
          %v5114 = vmax.f32 %v5098, 0.0
          %v5115 = vmax.f32 %v5099, 0.0
          %v5116 = vmax.f32 %v5100, 0.0
          %v5117 = vmax.f32 %v5101, 0.0
          %v5118 = vmax.f32 %v5102, 0.0
          %v5119 = vmax.f32 %v5103, 0.0
          %v5120 = vmax.f32 %v5104, 0.0
          %v5121 = vmax.f32 %v5105, 0.0
          %v5122 = vmax.f32 %v5106, 0.0
          %v5123 = vmax.f32 %v5107, 0.0
          %v5124 = vadd.f32 %v5108, 0.0
          %v5125 = vadd.f32 %v5109, 0.0
          %v5126 = vadd.f32 %v5110, 0.0
          %v5127 = vadd.f32 %v5111, 0.0
          %v5128 = vadd.f32 %v5112, 0.0
          %v5129 = vadd.f32 %v5113, 0.0
          %v5130 = vadd.f32 %v5114, 0.0
          %v5131 = vadd.f32 %v5115, 0.0
          %v5132 = vadd.f32 %v5116, 0.0
          %v5133 = vadd.f32 %v5117, 0.0
          %v5134 = vadd.f32 %v5118, 0.0
          %v5135 = vadd.f32 %v5119, 0.0
          %v5136 = vadd.f32 %v5120, 0.0
          %v5137 = vadd.f32 %v5121, 0.0
          %v5138 = vadd.f32 %v5122, 0.0
          %v5139 = vadd.f32 %v5123, 0.0
          %v5140 = vperm.slane %v814, 1
          %v5141 = vadd.f32 %v4084, %v5140
          %v5142 = vadd.f32 %v4085, %v5140
          %v5143 = vadd.f32 %v4086, %v5140
          %v5144 = vadd.f32 %v4087, %v5140
          %v5145 = vadd.f32 %v4088, %v5140
          %v5146 = vadd.f32 %v4089, %v5140
          %v5147 = vadd.f32 %v4090, %v5140
          %v5148 = vadd.f32 %v4091, %v5140
          %v5149 = vadd.f32 %v4092, %v5140
          %v5150 = vadd.f32 %v4093, %v5140
          %v5151 = vadd.f32 %v4094, %v5140
          %v5152 = vadd.f32 %v4095, %v5140
          %v5153 = vadd.f32 %v4096, %v5140
          %v5154 = vadd.f32 %v4097, %v5140
          %v5155 = vadd.f32 %v4098, %v5140
          %v5156 = vadd.f32 %v4099, %v5140
          %v5157 = vsel %vm1086, %v5141, 0.0
          %v5158 = vsel %vm1086, %v5142, 0.0
          %v5159 = vadd.f32 %v5157, %v5158
          %v5160 = vsel %vm1086, %v5143, 0.0
          %v5161 = vadd.f32 %v5159, %v5160
          %v5162 = vsel %vm1086, %v5144, 0.0
          %v5163 = vadd.f32 %v5161, %v5162
          %v5164 = vsel %vm1086, %v5145, 0.0
          %v5165 = vadd.f32 %v5163, %v5164
          %v5166 = vsel %vm1086, %v5146, 0.0
          %v5167 = vadd.f32 %v5165, %v5166
          %v5168 = vsel %vm1086, %v5147, 0.0
          %v5169 = vadd.f32 %v5167, %v5168
          %v5170 = vsel %vm1086, %v5148, 0.0
          %v5171 = vadd.f32 %v5169, %v5170
          %v5172 = vsel %vm1086, %v5149, 0.0
          %v5173 = vadd.f32 %v5171, %v5172
          %v5174 = vsel %vm1086, %v5150, 0.0
          %v5175 = vadd.f32 %v5173, %v5174
          %v5176 = vsel %vm1086, %v5151, 0.0
          %v5177 = vadd.f32 %v5175, %v5176
          %v5178 = vsel %vm1086, %v5152, 0.0
          %v5179 = vadd.f32 %v5177, %v5178
          %v5180 = vsel %vm1086, %v5153, 0.0
          %v5181 = vadd.f32 %v5179, %v5180
          %v5182 = vsel %vm1086, %v5154, 0.0
          %v5183 = vadd.f32 %v5181, %v5182
          %v5184 = vsel %vm1086, %v5155, 0.0
          %v5185 = vadd.f32 %v5183, %v5184
          %v5186 = vsel %vm1086, %v5156, 0.0
          %v5187 = vadd.f32 %v5185, %v5186
          %v5188 = vrot.slane %v5187, 4
          %v5189 = vadd.f32 %v5187, %v5188
          %v5190 = vrot.slane %v5189, 2
          %v5191 = vadd.f32 %v5189, %v5190
          %v5192 = vrot.slane %v5191, 1
          %v5193 = vadd.f32 %v5191, %v5192
          %v5194 = vmul.f32 %v5193, %v4975
          %v5195 = vsub.f32 %v5141, %v5194
          %v5196 = vsub.f32 %v5142, %v5194
          %v5197 = vsub.f32 %v5143, %v5194
          %v5198 = vsub.f32 %v5144, %v5194
          %v5199 = vsub.f32 %v5145, %v5194
          %v5200 = vsub.f32 %v5146, %v5194
          %v5201 = vsub.f32 %v5147, %v5194
          %v5202 = vsub.f32 %v5148, %v5194
          %v5203 = vsub.f32 %v5149, %v5194
          %v5204 = vsub.f32 %v5150, %v5194
          %v5205 = vsub.f32 %v5151, %v5194
          %v5206 = vsub.f32 %v5152, %v5194
          %v5207 = vsub.f32 %v5153, %v5194
          %v5208 = vsub.f32 %v5154, %v5194
          %v5209 = vsub.f32 %v5155, %v5194
          %v5210 = vsub.f32 %v5156, %v5194
          %v5211 = vmul.f32 %v5195, %v5195
          %v5212 = vmul.f32 %v5196, %v5196
          %v5213 = vmul.f32 %v5197, %v5197
          %v5214 = vmul.f32 %v5198, %v5198
          %v5215 = vmul.f32 %v5199, %v5199
          %v5216 = vmul.f32 %v5200, %v5200
          %v5217 = vmul.f32 %v5201, %v5201
          %v5218 = vmul.f32 %v5202, %v5202
          %v5219 = vmul.f32 %v5203, %v5203
          %v5220 = vmul.f32 %v5204, %v5204
          %v5221 = vmul.f32 %v5205, %v5205
          %v5222 = vmul.f32 %v5206, %v5206
          %v5223 = vmul.f32 %v5207, %v5207
          %v5224 = vmul.f32 %v5208, %v5208
          %v5225 = vmul.f32 %v5209, %v5209
          %v5226 = vmul.f32 %v5210, %v5210
          %v5227 = vsel %vm1086, %v5211, 0.0
          %v5228 = vsel %vm1086, %v5212, 0.0
          %v5229 = vadd.f32 %v5227, %v5228
          %v5230 = vsel %vm1086, %v5213, 0.0
          %v5231 = vadd.f32 %v5229, %v5230
          %v5232 = vsel %vm1086, %v5214, 0.0
          %v5233 = vadd.f32 %v5231, %v5232
          %v5234 = vsel %vm1086, %v5215, 0.0
          %v5235 = vadd.f32 %v5233, %v5234
          %v5236 = vsel %vm1086, %v5216, 0.0
          %v5237 = vadd.f32 %v5235, %v5236
          %v5238 = vsel %vm1086, %v5217, 0.0
          %v5239 = vadd.f32 %v5237, %v5238
          %v5240 = vsel %vm1086, %v5218, 0.0
          %v5241 = vadd.f32 %v5239, %v5240
          %v5242 = vsel %vm1086, %v5219, 0.0
          %v5243 = vadd.f32 %v5241, %v5242
          %v5244 = vsel %vm1086, %v5220, 0.0
          %v5245 = vadd.f32 %v5243, %v5244
          %v5246 = vsel %vm1086, %v5221, 0.0
          %v5247 = vadd.f32 %v5245, %v5246
          %v5248 = vsel %vm1086, %v5222, 0.0
          %v5249 = vadd.f32 %v5247, %v5248
          %v5250 = vsel %vm1086, %v5223, 0.0
          %v5251 = vadd.f32 %v5249, %v5250
          %v5252 = vsel %vm1086, %v5224, 0.0
          %v5253 = vadd.f32 %v5251, %v5252
          %v5254 = vsel %vm1086, %v5225, 0.0
          %v5255 = vadd.f32 %v5253, %v5254
          %v5256 = vsel %vm1086, %v5226, 0.0
          %v5257 = vadd.f32 %v5255, %v5256
          %v5258 = vrot.slane %v5257, 4
          %v5259 = vadd.f32 %v5257, %v5258
          %v5260 = vrot.slane %v5259, 2
          %v5261 = vadd.f32 %v5259, %v5260
          %v5262 = vrot.slane %v5261, 1
          %v5263 = vadd.f32 %v5261, %v5262
          %v5264 = vmul.f32 %v5263, %v4975
          %v5265 = vadd.f32 %v5264, 1e-05
          %v5266 = vrsqrt.pop %v5265
          %v5267 = vmul.f32 %v5266, %v5265
          %v5268 = vmul.f32 %v5267, %v5266
          %v5269 = vmul.f32 0.5, %v5268
          %v5270 = vsub.f32 1.5, %v5269
          %v5271 = vmul.f32 %v5266, %v5270
          %vm5272 = vweird.f32 %v5265
          %vm5273 = vweird.f32 %v5266
          %vm5274 = vmor %vm5272, %vm5273
          %v5275 = vsel %vm5274, %v5266, %v5271
          %v5276 = vmul.f32 %v5195, %v5275
          %v5277 = vmul.f32 %v5196, %v5275
          %v5278 = vmul.f32 %v5197, %v5275
          %v5279 = vmul.f32 %v5198, %v5275
          %v5280 = vmul.f32 %v5199, %v5275
          %v5281 = vmul.f32 %v5200, %v5275
          %v5282 = vmul.f32 %v5201, %v5275
          %v5283 = vmul.f32 %v5202, %v5275
          %v5284 = vmul.f32 %v5203, %v5275
          %v5285 = vmul.f32 %v5204, %v5275
          %v5286 = vmul.f32 %v5205, %v5275
          %v5287 = vmul.f32 %v5206, %v5275
          %v5288 = vmul.f32 %v5207, %v5275
          %v5289 = vmul.f32 %v5208, %v5275
          %v5290 = vmul.f32 %v5209, %v5275
          %v5291 = vmul.f32 %v5210, %v5275
          %v5292 = vperm.slane %v814, 6
          %v5293 = vmul.f32 %v5276, %v5292
          %v5294 = vmul.f32 %v5277, %v5292
          %v5295 = vmul.f32 %v5278, %v5292
          %v5296 = vmul.f32 %v5279, %v5292
          %v5297 = vmul.f32 %v5280, %v5292
          %v5298 = vmul.f32 %v5281, %v5292
          %v5299 = vmul.f32 %v5282, %v5292
          %v5300 = vmul.f32 %v5283, %v5292
          %v5301 = vmul.f32 %v5284, %v5292
          %v5302 = vmul.f32 %v5285, %v5292
          %v5303 = vmul.f32 %v5286, %v5292
          %v5304 = vmul.f32 %v5287, %v5292
          %v5305 = vmul.f32 %v5288, %v5292
          %v5306 = vmul.f32 %v5289, %v5292
          %v5307 = vmul.f32 %v5290, %v5292
          %v5308 = vmul.f32 %v5291, %v5292
          %v5309 = vperm.slane %v815, 3
          %v5310 = vadd.f32 %v5293, %v5309
          %v5311 = vadd.f32 %v5294, %v5309
          %v5312 = vadd.f32 %v5295, %v5309
          %v5313 = vadd.f32 %v5296, %v5309
          %v5314 = vadd.f32 %v5297, %v5309
          %v5315 = vadd.f32 %v5298, %v5309
          %v5316 = vadd.f32 %v5299, %v5309
          %v5317 = vadd.f32 %v5300, %v5309
          %v5318 = vadd.f32 %v5301, %v5309
          %v5319 = vadd.f32 %v5302, %v5309
          %v5320 = vadd.f32 %v5303, %v5309
          %v5321 = vadd.f32 %v5304, %v5309
          %v5322 = vadd.f32 %v5305, %v5309
          %v5323 = vadd.f32 %v5306, %v5309
          %v5324 = vadd.f32 %v5307, %v5309
          %v5325 = vadd.f32 %v5308, %v5309
          %v5326 = vmax.f32 %v5310, 0.0
          %v5327 = vmax.f32 %v5311, 0.0
          %v5328 = vmax.f32 %v5312, 0.0
          %v5329 = vmax.f32 %v5313, 0.0
          %v5330 = vmax.f32 %v5314, 0.0
          %v5331 = vmax.f32 %v5315, 0.0
          %v5332 = vmax.f32 %v5316, 0.0
          %v5333 = vmax.f32 %v5317, 0.0
          %v5334 = vmax.f32 %v5318, 0.0
          %v5335 = vmax.f32 %v5319, 0.0
          %v5336 = vmax.f32 %v5320, 0.0
          %v5337 = vmax.f32 %v5321, 0.0
          %v5338 = vmax.f32 %v5322, 0.0
          %v5339 = vmax.f32 %v5323, 0.0
          %v5340 = vmax.f32 %v5324, 0.0
          %v5341 = vmax.f32 %v5325, 0.0
          %v5342 = vadd.f32 %v5124, %v5326
          %v5343 = vadd.f32 %v5125, %v5327
          %v5344 = vadd.f32 %v5126, %v5328
          %v5345 = vadd.f32 %v5127, %v5329
          %v5346 = vadd.f32 %v5128, %v5330
          %v5347 = vadd.f32 %v5129, %v5331
          %v5348 = vadd.f32 %v5130, %v5332
          %v5349 = vadd.f32 %v5131, %v5333
          %v5350 = vadd.f32 %v5132, %v5334
          %v5351 = vadd.f32 %v5133, %v5335
          %v5352 = vadd.f32 %v5134, %v5336
          %v5353 = vadd.f32 %v5135, %v5337
          %v5354 = vadd.f32 %v5136, %v5338
          %v5355 = vadd.f32 %v5137, %v5339
          %v5356 = vadd.f32 %v5138, %v5340
          %v5357 = vadd.f32 %v5139, %v5341
          %v5358 = vperm.slane %v814, 2
          %v5359 = vadd.f32 %v4418, %v5358
          %v5360 = vadd.f32 %v4419, %v5358
          %v5361 = vadd.f32 %v4420, %v5358
          %v5362 = vadd.f32 %v4421, %v5358
          %v5363 = vadd.f32 %v4422, %v5358
          %v5364 = vadd.f32 %v4423, %v5358
          %v5365 = vadd.f32 %v4424, %v5358
          %v5366 = vadd.f32 %v4425, %v5358
          %v5367 = vadd.f32 %v4426, %v5358
          %v5368 = vadd.f32 %v4427, %v5358
          %v5369 = vadd.f32 %v4428, %v5358
          %v5370 = vadd.f32 %v4429, %v5358
          %v5371 = vadd.f32 %v4430, %v5358
          %v5372 = vadd.f32 %v4431, %v5358
          %v5373 = vadd.f32 %v4432, %v5358
          %v5374 = vadd.f32 %v4433, %v5358
          %v5375 = vsel %vm1086, %v5359, 0.0
          %v5376 = vsel %vm1086, %v5360, 0.0
          %v5377 = vadd.f32 %v5375, %v5376
          %v5378 = vsel %vm1086, %v5361, 0.0
          %v5379 = vadd.f32 %v5377, %v5378
          %v5380 = vsel %vm1086, %v5362, 0.0
          %v5381 = vadd.f32 %v5379, %v5380
          %v5382 = vsel %vm1086, %v5363, 0.0
          %v5383 = vadd.f32 %v5381, %v5382
          %v5384 = vsel %vm1086, %v5364, 0.0
          %v5385 = vadd.f32 %v5383, %v5384
          %v5386 = vsel %vm1086, %v5365, 0.0
          %v5387 = vadd.f32 %v5385, %v5386
          %v5388 = vsel %vm1086, %v5366, 0.0
          %v5389 = vadd.f32 %v5387, %v5388
          %v5390 = vsel %vm1086, %v5367, 0.0
          %v5391 = vadd.f32 %v5389, %v5390
          %v5392 = vsel %vm1086, %v5368, 0.0
          %v5393 = vadd.f32 %v5391, %v5392
          %v5394 = vsel %vm1086, %v5369, 0.0
          %v5395 = vadd.f32 %v5393, %v5394
          %v5396 = vsel %vm1086, %v5370, 0.0
          %v5397 = vadd.f32 %v5395, %v5396
          %v5398 = vsel %vm1086, %v5371, 0.0
          %v5399 = vadd.f32 %v5397, %v5398
          %v5400 = vsel %vm1086, %v5372, 0.0
          %v5401 = vadd.f32 %v5399, %v5400
          %v5402 = vsel %vm1086, %v5373, 0.0
          %v5403 = vadd.f32 %v5401, %v5402
          %v5404 = vsel %vm1086, %v5374, 0.0
          %v5405 = vadd.f32 %v5403, %v5404
          %v5406 = vrot.slane %v5405, 4
          %v5407 = vadd.f32 %v5405, %v5406
          %v5408 = vrot.slane %v5407, 2
          %v5409 = vadd.f32 %v5407, %v5408
          %v5410 = vrot.slane %v5409, 1
          %v5411 = vadd.f32 %v5409, %v5410
          %v5412 = vmul.f32 %v5411, %v4975
          %v5413 = vsub.f32 %v5359, %v5412
          %v5414 = vsub.f32 %v5360, %v5412
          %v5415 = vsub.f32 %v5361, %v5412
          %v5416 = vsub.f32 %v5362, %v5412
          %v5417 = vsub.f32 %v5363, %v5412
          %v5418 = vsub.f32 %v5364, %v5412
          %v5419 = vsub.f32 %v5365, %v5412
          %v5420 = vsub.f32 %v5366, %v5412
          %v5421 = vsub.f32 %v5367, %v5412
          %v5422 = vsub.f32 %v5368, %v5412
          %v5423 = vsub.f32 %v5369, %v5412
          %v5424 = vsub.f32 %v5370, %v5412
          %v5425 = vsub.f32 %v5371, %v5412
          %v5426 = vsub.f32 %v5372, %v5412
          %v5427 = vsub.f32 %v5373, %v5412
          %v5428 = vsub.f32 %v5374, %v5412
          %v5429 = vmul.f32 %v5413, %v5413
          %v5430 = vmul.f32 %v5414, %v5414
          %v5431 = vmul.f32 %v5415, %v5415
          %v5432 = vmul.f32 %v5416, %v5416
          %v5433 = vmul.f32 %v5417, %v5417
          %v5434 = vmul.f32 %v5418, %v5418
          %v5435 = vmul.f32 %v5419, %v5419
          %v5436 = vmul.f32 %v5420, %v5420
          %v5437 = vmul.f32 %v5421, %v5421
          %v5438 = vmul.f32 %v5422, %v5422
          %v5439 = vmul.f32 %v5423, %v5423
          %v5440 = vmul.f32 %v5424, %v5424
          %v5441 = vmul.f32 %v5425, %v5425
          %v5442 = vmul.f32 %v5426, %v5426
          %v5443 = vmul.f32 %v5427, %v5427
          %v5444 = vmul.f32 %v5428, %v5428
          %v5445 = vsel %vm1086, %v5429, 0.0
          %v5446 = vsel %vm1086, %v5430, 0.0
          %v5447 = vadd.f32 %v5445, %v5446
          %v5448 = vsel %vm1086, %v5431, 0.0
          %v5449 = vadd.f32 %v5447, %v5448
          %v5450 = vsel %vm1086, %v5432, 0.0
          %v5451 = vadd.f32 %v5449, %v5450
          %v5452 = vsel %vm1086, %v5433, 0.0
          %v5453 = vadd.f32 %v5451, %v5452
          %v5454 = vsel %vm1086, %v5434, 0.0
          %v5455 = vadd.f32 %v5453, %v5454
          %v5456 = vsel %vm1086, %v5435, 0.0
          %v5457 = vadd.f32 %v5455, %v5456
          %v5458 = vsel %vm1086, %v5436, 0.0
          %v5459 = vadd.f32 %v5457, %v5458
          %v5460 = vsel %vm1086, %v5437, 0.0
          %v5461 = vadd.f32 %v5459, %v5460
          %v5462 = vsel %vm1086, %v5438, 0.0
          %v5463 = vadd.f32 %v5461, %v5462
          %v5464 = vsel %vm1086, %v5439, 0.0
          %v5465 = vadd.f32 %v5463, %v5464
          %v5466 = vsel %vm1086, %v5440, 0.0
          %v5467 = vadd.f32 %v5465, %v5466
          %v5468 = vsel %vm1086, %v5441, 0.0
          %v5469 = vadd.f32 %v5467, %v5468
          %v5470 = vsel %vm1086, %v5442, 0.0
          %v5471 = vadd.f32 %v5469, %v5470
          %v5472 = vsel %vm1086, %v5443, 0.0
          %v5473 = vadd.f32 %v5471, %v5472
          %v5474 = vsel %vm1086, %v5444, 0.0
          %v5475 = vadd.f32 %v5473, %v5474
          %v5476 = vrot.slane %v5475, 4
          %v5477 = vadd.f32 %v5475, %v5476
          %v5478 = vrot.slane %v5477, 2
          %v5479 = vadd.f32 %v5477, %v5478
          %v5480 = vrot.slane %v5479, 1
          %v5481 = vadd.f32 %v5479, %v5480
          %v5482 = vmul.f32 %v5481, %v4975
          %v5483 = vadd.f32 %v5482, 1e-05
          %v5484 = vrsqrt.pop %v5483
          %v5485 = vmul.f32 %v5484, %v5483
          %v5486 = vmul.f32 %v5485, %v5484
          %v5487 = vmul.f32 0.5, %v5486
          %v5488 = vsub.f32 1.5, %v5487
          %v5489 = vmul.f32 %v5484, %v5488
          %vm5490 = vweird.f32 %v5483
          %vm5491 = vweird.f32 %v5484
          %vm5492 = vmor %vm5490, %vm5491
          %v5493 = vsel %vm5492, %v5484, %v5489
          %v5494 = vmul.f32 %v5413, %v5493
          %v5495 = vmul.f32 %v5414, %v5493
          %v5496 = vmul.f32 %v5415, %v5493
          %v5497 = vmul.f32 %v5416, %v5493
          %v5498 = vmul.f32 %v5417, %v5493
          %v5499 = vmul.f32 %v5418, %v5493
          %v5500 = vmul.f32 %v5419, %v5493
          %v5501 = vmul.f32 %v5420, %v5493
          %v5502 = vmul.f32 %v5421, %v5493
          %v5503 = vmul.f32 %v5422, %v5493
          %v5504 = vmul.f32 %v5423, %v5493
          %v5505 = vmul.f32 %v5424, %v5493
          %v5506 = vmul.f32 %v5425, %v5493
          %v5507 = vmul.f32 %v5426, %v5493
          %v5508 = vmul.f32 %v5427, %v5493
          %v5509 = vmul.f32 %v5428, %v5493
          %v5510 = vperm.slane %v814, 7
          %v5511 = vmul.f32 %v5494, %v5510
          %v5512 = vmul.f32 %v5495, %v5510
          %v5513 = vmul.f32 %v5496, %v5510
          %v5514 = vmul.f32 %v5497, %v5510
          %v5515 = vmul.f32 %v5498, %v5510
          %v5516 = vmul.f32 %v5499, %v5510
          %v5517 = vmul.f32 %v5500, %v5510
          %v5518 = vmul.f32 %v5501, %v5510
          %v5519 = vmul.f32 %v5502, %v5510
          %v5520 = vmul.f32 %v5503, %v5510
          %v5521 = vmul.f32 %v5504, %v5510
          %v5522 = vmul.f32 %v5505, %v5510
          %v5523 = vmul.f32 %v5506, %v5510
          %v5524 = vmul.f32 %v5507, %v5510
          %v5525 = vmul.f32 %v5508, %v5510
          %v5526 = vmul.f32 %v5509, %v5510
          %v5527 = vperm.slane %v815, 4
          %v5528 = vadd.f32 %v5511, %v5527
          %v5529 = vadd.f32 %v5512, %v5527
          %v5530 = vadd.f32 %v5513, %v5527
          %v5531 = vadd.f32 %v5514, %v5527
          %v5532 = vadd.f32 %v5515, %v5527
          %v5533 = vadd.f32 %v5516, %v5527
          %v5534 = vadd.f32 %v5517, %v5527
          %v5535 = vadd.f32 %v5518, %v5527
          %v5536 = vadd.f32 %v5519, %v5527
          %v5537 = vadd.f32 %v5520, %v5527
          %v5538 = vadd.f32 %v5521, %v5527
          %v5539 = vadd.f32 %v5522, %v5527
          %v5540 = vadd.f32 %v5523, %v5527
          %v5541 = vadd.f32 %v5524, %v5527
          %v5542 = vadd.f32 %v5525, %v5527
          %v5543 = vadd.f32 %v5526, %v5527
          %v5544 = vmax.f32 %v5528, 0.0
          %v5545 = vmax.f32 %v5529, 0.0
          %v5546 = vmax.f32 %v5530, 0.0
          %v5547 = vmax.f32 %v5531, 0.0
          %v5548 = vmax.f32 %v5532, 0.0
          %v5549 = vmax.f32 %v5533, 0.0
          %v5550 = vmax.f32 %v5534, 0.0
          %v5551 = vmax.f32 %v5535, 0.0
          %v5552 = vmax.f32 %v5536, 0.0
          %v5553 = vmax.f32 %v5537, 0.0
          %v5554 = vmax.f32 %v5538, 0.0
          %v5555 = vmax.f32 %v5539, 0.0
          %v5556 = vmax.f32 %v5540, 0.0
          %v5557 = vmax.f32 %v5541, 0.0
          %v5558 = vmax.f32 %v5542, 0.0
          %v5559 = vmax.f32 %v5543, 0.0
          %v5560 = vadd.f32 %v5342, %v5544
          %v5561 = vadd.f32 %v5343, %v5545
          %v5562 = vadd.f32 %v5344, %v5546
          %v5563 = vadd.f32 %v5345, %v5547
          %v5564 = vadd.f32 %v5346, %v5548
          %v5565 = vadd.f32 %v5347, %v5549
          %v5566 = vadd.f32 %v5348, %v5550
          %v5567 = vadd.f32 %v5349, %v5551
          %v5568 = vadd.f32 %v5350, %v5552
          %v5569 = vadd.f32 %v5351, %v5553
          %v5570 = vadd.f32 %v5352, %v5554
          %v5571 = vadd.f32 %v5353, %v5555
          %v5572 = vadd.f32 %v5354, %v5556
          %v5573 = vadd.f32 %v5355, %v5557
          %v5574 = vadd.f32 %v5356, %v5558
          %v5575 = vadd.f32 %v5357, %v5559
          %v5576 = vperm.slane %v814, 3
          %v5577 = vadd.f32 %v4579, %v5576
          %v5578 = vadd.f32 %v4582, %v5576
          %v5579 = vadd.f32 %v4585, %v5576
          %v5580 = vadd.f32 %v4588, %v5576
          %v5581 = vadd.f32 %v4591, %v5576
          %v5582 = vadd.f32 %v4594, %v5576
          %v5583 = vadd.f32 %v4597, %v5576
          %v5584 = vadd.f32 %v4600, %v5576
          %v5585 = vadd.f32 %v4603, %v5576
          %v5586 = vadd.f32 %v4606, %v5576
          %v5587 = vadd.f32 %v4609, %v5576
          %v5588 = vadd.f32 %v4612, %v5576
          %v5589 = vadd.f32 %v4615, %v5576
          %v5590 = vadd.f32 %v4618, %v5576
          %v5591 = vadd.f32 %v4621, %v5576
          %v5592 = vadd.f32 %v4624, %v5576
          %v5593 = vsel %vm1086, %v5577, 0.0
          %v5594 = vsel %vm1086, %v5578, 0.0
          %v5595 = vadd.f32 %v5593, %v5594
          %v5596 = vsel %vm1086, %v5579, 0.0
          %v5597 = vadd.f32 %v5595, %v5596
          %v5598 = vsel %vm1086, %v5580, 0.0
          %v5599 = vadd.f32 %v5597, %v5598
          %v5600 = vsel %vm1086, %v5581, 0.0
          %v5601 = vadd.f32 %v5599, %v5600
          %v5602 = vsel %vm1086, %v5582, 0.0
          %v5603 = vadd.f32 %v5601, %v5602
          %v5604 = vsel %vm1086, %v5583, 0.0
          %v5605 = vadd.f32 %v5603, %v5604
          %v5606 = vsel %vm1086, %v5584, 0.0
          %v5607 = vadd.f32 %v5605, %v5606
          %v5608 = vsel %vm1086, %v5585, 0.0
          %v5609 = vadd.f32 %v5607, %v5608
          %v5610 = vsel %vm1086, %v5586, 0.0
          %v5611 = vadd.f32 %v5609, %v5610
          %v5612 = vsel %vm1086, %v5587, 0.0
          %v5613 = vadd.f32 %v5611, %v5612
          %v5614 = vsel %vm1086, %v5588, 0.0
          %v5615 = vadd.f32 %v5613, %v5614
          %v5616 = vsel %vm1086, %v5589, 0.0
          %v5617 = vadd.f32 %v5615, %v5616
          %v5618 = vsel %vm1086, %v5590, 0.0
          %v5619 = vadd.f32 %v5617, %v5618
          %v5620 = vsel %vm1086, %v5591, 0.0
          %v5621 = vadd.f32 %v5619, %v5620
          %v5622 = vsel %vm1086, %v5592, 0.0
          %v5623 = vadd.f32 %v5621, %v5622
          %v5624 = vrot.slane %v5623, 4
          %v5625 = vadd.f32 %v5623, %v5624
          %v5626 = vrot.slane %v5625, 2
          %v5627 = vadd.f32 %v5625, %v5626
          %v5628 = vrot.slane %v5627, 1
          %v5629 = vadd.f32 %v5627, %v5628
          %v5630 = vmul.f32 %v5629, %v4975
          %v5631 = vsub.f32 %v5577, %v5630
          %v5632 = vsub.f32 %v5578, %v5630
          %v5633 = vsub.f32 %v5579, %v5630
          %v5634 = vsub.f32 %v5580, %v5630
          %v5635 = vsub.f32 %v5581, %v5630
          %v5636 = vsub.f32 %v5582, %v5630
          %v5637 = vsub.f32 %v5583, %v5630
          %v5638 = vsub.f32 %v5584, %v5630
          %v5639 = vsub.f32 %v5585, %v5630
          %v5640 = vsub.f32 %v5586, %v5630
          %v5641 = vsub.f32 %v5587, %v5630
          %v5642 = vsub.f32 %v5588, %v5630
          %v5643 = vsub.f32 %v5589, %v5630
          %v5644 = vsub.f32 %v5590, %v5630
          %v5645 = vsub.f32 %v5591, %v5630
          %v5646 = vsub.f32 %v5592, %v5630
          %v5647 = vmul.f32 %v5631, %v5631
          %v5648 = vmul.f32 %v5632, %v5632
          %v5649 = vmul.f32 %v5633, %v5633
          %v5650 = vmul.f32 %v5634, %v5634
          %v5651 = vmul.f32 %v5635, %v5635
          %v5652 = vmul.f32 %v5636, %v5636
          %v5653 = vmul.f32 %v5637, %v5637
          %v5654 = vmul.f32 %v5638, %v5638
          %v5655 = vmul.f32 %v5639, %v5639
          %v5656 = vmul.f32 %v5640, %v5640
          %v5657 = vmul.f32 %v5641, %v5641
          %v5658 = vmul.f32 %v5642, %v5642
          %v5659 = vmul.f32 %v5643, %v5643
          %v5660 = vmul.f32 %v5644, %v5644
          %v5661 = vmul.f32 %v5645, %v5645
          %v5662 = vmul.f32 %v5646, %v5646
          %v5663 = vsel %vm1086, %v5647, 0.0
          %v5664 = vsel %vm1086, %v5648, 0.0
          %v5665 = vadd.f32 %v5663, %v5664
          %v5666 = vsel %vm1086, %v5649, 0.0
          %v5667 = vadd.f32 %v5665, %v5666
          %v5668 = vsel %vm1086, %v5650, 0.0
          %v5669 = vadd.f32 %v5667, %v5668
          %v5670 = vsel %vm1086, %v5651, 0.0
          %v5671 = vadd.f32 %v5669, %v5670
          %v5672 = vsel %vm1086, %v5652, 0.0
          %v5673 = vadd.f32 %v5671, %v5672
          %v5674 = vsel %vm1086, %v5653, 0.0
          %v5675 = vadd.f32 %v5673, %v5674
          %v5676 = vsel %vm1086, %v5654, 0.0
          %v5677 = vadd.f32 %v5675, %v5676
          %v5678 = vsel %vm1086, %v5655, 0.0
          %v5679 = vadd.f32 %v5677, %v5678
          %v5680 = vsel %vm1086, %v5656, 0.0
          %v5681 = vadd.f32 %v5679, %v5680
          %v5682 = vsel %vm1086, %v5657, 0.0
          %v5683 = vadd.f32 %v5681, %v5682
          %v5684 = vsel %vm1086, %v5658, 0.0
          %v5685 = vadd.f32 %v5683, %v5684
          %v5686 = vsel %vm1086, %v5659, 0.0
          %v5687 = vadd.f32 %v5685, %v5686
          %v5688 = vsel %vm1086, %v5660, 0.0
          %v5689 = vadd.f32 %v5687, %v5688
          %v5690 = vsel %vm1086, %v5661, 0.0
          %v5691 = vadd.f32 %v5689, %v5690
          %v5692 = vsel %vm1086, %v5662, 0.0
          %v5693 = vadd.f32 %v5691, %v5692
          %v5694 = vrot.slane %v5693, 4
          %v5695 = vadd.f32 %v5693, %v5694
          %v5696 = vrot.slane %v5695, 2
          %v5697 = vadd.f32 %v5695, %v5696
          %v5698 = vrot.slane %v5697, 1
          %v5699 = vadd.f32 %v5697, %v5698
          %v5700 = vmul.f32 %v5699, %v4975
          %v5701 = vadd.f32 %v5700, 1e-05
          %v5702 = vrsqrt.pop %v5701
          %v5703 = vmul.f32 %v5702, %v5701
          %v5704 = vmul.f32 %v5703, %v5702
          %v5705 = vmul.f32 0.5, %v5704
          %v5706 = vsub.f32 1.5, %v5705
          %v5707 = vmul.f32 %v5702, %v5706
          %vm5708 = vweird.f32 %v5701
          %vm5709 = vweird.f32 %v5702
          %vm5710 = vmor %vm5708, %vm5709
          %v5711 = vsel %vm5710, %v5702, %v5707
          %v5712 = vmul.f32 %v5631, %v5711
          %v5713 = vmul.f32 %v5632, %v5711
          %v5714 = vmul.f32 %v5633, %v5711
          %v5715 = vmul.f32 %v5634, %v5711
          %v5716 = vmul.f32 %v5635, %v5711
          %v5717 = vmul.f32 %v5636, %v5711
          %v5718 = vmul.f32 %v5637, %v5711
          %v5719 = vmul.f32 %v5638, %v5711
          %v5720 = vmul.f32 %v5639, %v5711
          %v5721 = vmul.f32 %v5640, %v5711
          %v5722 = vmul.f32 %v5641, %v5711
          %v5723 = vmul.f32 %v5642, %v5711
          %v5724 = vmul.f32 %v5643, %v5711
          %v5725 = vmul.f32 %v5644, %v5711
          %v5726 = vmul.f32 %v5645, %v5711
          %v5727 = vmul.f32 %v5646, %v5711
          %v5728 = vperm.slane %v815, 0
          %v5729 = vmul.f32 %v5712, %v5728
          %v5730 = vmul.f32 %v5713, %v5728
          %v5731 = vmul.f32 %v5714, %v5728
          %v5732 = vmul.f32 %v5715, %v5728
          %v5733 = vmul.f32 %v5716, %v5728
          %v5734 = vmul.f32 %v5717, %v5728
          %v5735 = vmul.f32 %v5718, %v5728
          %v5736 = vmul.f32 %v5719, %v5728
          %v5737 = vmul.f32 %v5720, %v5728
          %v5738 = vmul.f32 %v5721, %v5728
          %v5739 = vmul.f32 %v5722, %v5728
          %v5740 = vmul.f32 %v5723, %v5728
          %v5741 = vmul.f32 %v5724, %v5728
          %v5742 = vmul.f32 %v5725, %v5728
          %v5743 = vmul.f32 %v5726, %v5728
          %v5744 = vmul.f32 %v5727, %v5728
          %v5745 = vperm.slane %v815, 5
          %v5746 = vadd.f32 %v5729, %v5745
          %v5747 = vadd.f32 %v5730, %v5745
          %v5748 = vadd.f32 %v5731, %v5745
          %v5749 = vadd.f32 %v5732, %v5745
          %v5750 = vadd.f32 %v5733, %v5745
          %v5751 = vadd.f32 %v5734, %v5745
          %v5752 = vadd.f32 %v5735, %v5745
          %v5753 = vadd.f32 %v5736, %v5745
          %v5754 = vadd.f32 %v5737, %v5745
          %v5755 = vadd.f32 %v5738, %v5745
          %v5756 = vadd.f32 %v5739, %v5745
          %v5757 = vadd.f32 %v5740, %v5745
          %v5758 = vadd.f32 %v5741, %v5745
          %v5759 = vadd.f32 %v5742, %v5745
          %v5760 = vadd.f32 %v5743, %v5745
          %v5761 = vadd.f32 %v5744, %v5745
          %v5762 = vmax.f32 %v5746, 0.0
          %v5763 = vmax.f32 %v5747, 0.0
          %v5764 = vmax.f32 %v5748, 0.0
          %v5765 = vmax.f32 %v5749, 0.0
          %v5766 = vmax.f32 %v5750, 0.0
          %v5767 = vmax.f32 %v5751, 0.0
          %v5768 = vmax.f32 %v5752, 0.0
          %v5769 = vmax.f32 %v5753, 0.0
          %v5770 = vmax.f32 %v5754, 0.0
          %v5771 = vmax.f32 %v5755, 0.0
          %v5772 = vmax.f32 %v5756, 0.0
          %v5773 = vmax.f32 %v5757, 0.0
          %v5774 = vmax.f32 %v5758, 0.0
          %v5775 = vmax.f32 %v5759, 0.0
          %v5776 = vmax.f32 %v5760, 0.0
          %v5777 = vmax.f32 %v5761, 0.0
          %v5778 = vadd.f32 %v5560, %v5762
          %v5779 = vadd.f32 %v5561, %v5763
          %v5780 = vadd.f32 %v5562, %v5764
          %v5781 = vadd.f32 %v5563, %v5765
          %v5782 = vadd.f32 %v5564, %v5766
          %v5783 = vadd.f32 %v5565, %v5767
          %v5784 = vadd.f32 %v5566, %v5768
          %v5785 = vadd.f32 %v5567, %v5769
          %v5786 = vadd.f32 %v5568, %v5770
          %v5787 = vadd.f32 %v5569, %v5771
          %v5788 = vadd.f32 %v5570, %v5772
          %v5789 = vadd.f32 %v5571, %v5773
          %v5790 = vadd.f32 %v5572, %v5774
          %v5791 = vadd.f32 %v5573, %v5775
          %v5792 = vadd.f32 %v5574, %v5776
          %v5793 = vadd.f32 %v5575, %v5777
          %v5794 = vperm.slane %v814, 4
          %v5795 = vadd.f32 %v4771, %v5794
          %v5796 = vadd.f32 %v4774, %v5794
          %v5797 = vadd.f32 %v4777, %v5794
          %v5798 = vadd.f32 %v4780, %v5794
          %v5799 = vadd.f32 %v4783, %v5794
          %v5800 = vadd.f32 %v4786, %v5794
          %v5801 = vadd.f32 %v4789, %v5794
          %v5802 = vadd.f32 %v4792, %v5794
          %v5803 = vadd.f32 %v4795, %v5794
          %v5804 = vadd.f32 %v4798, %v5794
          %v5805 = vadd.f32 %v4801, %v5794
          %v5806 = vadd.f32 %v4804, %v5794
          %v5807 = vadd.f32 %v4807, %v5794
          %v5808 = vadd.f32 %v4810, %v5794
          %v5809 = vadd.f32 %v4813, %v5794
          %v5810 = vadd.f32 %v4816, %v5794
          %v5811 = vsel %vm1086, %v5795, 0.0
          %v5812 = vsel %vm1086, %v5796, 0.0
          %v5813 = vadd.f32 %v5811, %v5812
          %v5814 = vsel %vm1086, %v5797, 0.0
          %v5815 = vadd.f32 %v5813, %v5814
          %v5816 = vsel %vm1086, %v5798, 0.0
          %v5817 = vadd.f32 %v5815, %v5816
          %v5818 = vsel %vm1086, %v5799, 0.0
          %v5819 = vadd.f32 %v5817, %v5818
          %v5820 = vsel %vm1086, %v5800, 0.0
          %v5821 = vadd.f32 %v5819, %v5820
          %v5822 = vsel %vm1086, %v5801, 0.0
          %v5823 = vadd.f32 %v5821, %v5822
          %v5824 = vsel %vm1086, %v5802, 0.0
          %v5825 = vadd.f32 %v5823, %v5824
          %v5826 = vsel %vm1086, %v5803, 0.0
          %v5827 = vadd.f32 %v5825, %v5826
          %v5828 = vsel %vm1086, %v5804, 0.0
          %v5829 = vadd.f32 %v5827, %v5828
          %v5830 = vsel %vm1086, %v5805, 0.0
          %v5831 = vadd.f32 %v5829, %v5830
          %v5832 = vsel %vm1086, %v5806, 0.0
          %v5833 = vadd.f32 %v5831, %v5832
          %v5834 = vsel %vm1086, %v5807, 0.0
          %v5835 = vadd.f32 %v5833, %v5834
          %v5836 = vsel %vm1086, %v5808, 0.0
          %v5837 = vadd.f32 %v5835, %v5836
          %v5838 = vsel %vm1086, %v5809, 0.0
          %v5839 = vadd.f32 %v5837, %v5838
          %v5840 = vsel %vm1086, %v5810, 0.0
          %v5841 = vadd.f32 %v5839, %v5840
          %v5842 = vrot.slane %v5841, 4
          %v5843 = vadd.f32 %v5841, %v5842
          %v5844 = vrot.slane %v5843, 2
          %v5845 = vadd.f32 %v5843, %v5844
          %v5846 = vrot.slane %v5845, 1
          %v5847 = vadd.f32 %v5845, %v5846
          %v5848 = vmul.f32 %v5847, %v4975
          %v5849 = vsub.f32 %v5795, %v5848
          %v5850 = vsub.f32 %v5796, %v5848
          %v5851 = vsub.f32 %v5797, %v5848
          %v5852 = vsub.f32 %v5798, %v5848
          %v5853 = vsub.f32 %v5799, %v5848
          %v5854 = vsub.f32 %v5800, %v5848
          %v5855 = vsub.f32 %v5801, %v5848
          %v5856 = vsub.f32 %v5802, %v5848
          %v5857 = vsub.f32 %v5803, %v5848
          %v5858 = vsub.f32 %v5804, %v5848
          %v5859 = vsub.f32 %v5805, %v5848
          %v5860 = vsub.f32 %v5806, %v5848
          %v5861 = vsub.f32 %v5807, %v5848
          %v5862 = vsub.f32 %v5808, %v5848
          %v5863 = vsub.f32 %v5809, %v5848
          %v5864 = vsub.f32 %v5810, %v5848
          %v5865 = vmul.f32 %v5849, %v5849
          %v5866 = vmul.f32 %v5850, %v5850
          %v5867 = vmul.f32 %v5851, %v5851
          %v5868 = vmul.f32 %v5852, %v5852
          %v5869 = vmul.f32 %v5853, %v5853
          %v5870 = vmul.f32 %v5854, %v5854
          %v5871 = vmul.f32 %v5855, %v5855
          %v5872 = vmul.f32 %v5856, %v5856
          %v5873 = vmul.f32 %v5857, %v5857
          %v5874 = vmul.f32 %v5858, %v5858
          %v5875 = vmul.f32 %v5859, %v5859
          %v5876 = vmul.f32 %v5860, %v5860
          %v5877 = vmul.f32 %v5861, %v5861
          %v5878 = vmul.f32 %v5862, %v5862
          %v5879 = vmul.f32 %v5863, %v5863
          %v5880 = vmul.f32 %v5864, %v5864
          %v5881 = vsel %vm1086, %v5865, 0.0
          %v5882 = vsel %vm1086, %v5866, 0.0
          %v5883 = vadd.f32 %v5881, %v5882
          %v5884 = vsel %vm1086, %v5867, 0.0
          %v5885 = vadd.f32 %v5883, %v5884
          %v5886 = vsel %vm1086, %v5868, 0.0
          %v5887 = vadd.f32 %v5885, %v5886
          %v5888 = vsel %vm1086, %v5869, 0.0
          %v5889 = vadd.f32 %v5887, %v5888
          %v5890 = vsel %vm1086, %v5870, 0.0
          %v5891 = vadd.f32 %v5889, %v5890
          %v5892 = vsel %vm1086, %v5871, 0.0
          %v5893 = vadd.f32 %v5891, %v5892
          %v5894 = vsel %vm1086, %v5872, 0.0
          %v5895 = vadd.f32 %v5893, %v5894
          %v5896 = vsel %vm1086, %v5873, 0.0
          %v5897 = vadd.f32 %v5895, %v5896
          %v5898 = vsel %vm1086, %v5874, 0.0
          %v5899 = vadd.f32 %v5897, %v5898
          %v5900 = vsel %vm1086, %v5875, 0.0
          %v5901 = vadd.f32 %v5899, %v5900
          %v5902 = vsel %vm1086, %v5876, 0.0
          %v5903 = vadd.f32 %v5901, %v5902
          %v5904 = vsel %vm1086, %v5877, 0.0
          %v5905 = vadd.f32 %v5903, %v5904
          %v5906 = vsel %vm1086, %v5878, 0.0
          %v5907 = vadd.f32 %v5905, %v5906
          %v5908 = vsel %vm1086, %v5879, 0.0
          %v5909 = vadd.f32 %v5907, %v5908
          %v5910 = vsel %vm1086, %v5880, 0.0
          %v5911 = vadd.f32 %v5909, %v5910
          %v5912 = vrot.slane %v5911, 4
          %v5913 = vadd.f32 %v5911, %v5912
          %v5914 = vrot.slane %v5913, 2
          %v5915 = vadd.f32 %v5913, %v5914
          %v5916 = vrot.slane %v5915, 1
          %v5917 = vadd.f32 %v5915, %v5916
          %v5918 = vmul.f32 %v5917, %v4975
          %v5919 = vadd.f32 %v5918, 1e-05
          %v5920 = vrsqrt.pop %v5919
          %v5921 = vmul.f32 %v5920, %v5919
          %v5922 = vmul.f32 %v5921, %v5920
          %v5923 = vmul.f32 0.5, %v5922
          %v5924 = vsub.f32 1.5, %v5923
          %v5925 = vmul.f32 %v5920, %v5924
          %vm5926 = vweird.f32 %v5919
          %vm5927 = vweird.f32 %v5920
          %vm5928 = vmor %vm5926, %vm5927
          %v5929 = vsel %vm5928, %v5920, %v5925
          %v5930 = vmul.f32 %v5849, %v5929
          %v5931 = vmul.f32 %v5850, %v5929
          %v5932 = vmul.f32 %v5851, %v5929
          %v5933 = vmul.f32 %v5852, %v5929
          %v5934 = vmul.f32 %v5853, %v5929
          %v5935 = vmul.f32 %v5854, %v5929
          %v5936 = vmul.f32 %v5855, %v5929
          %v5937 = vmul.f32 %v5856, %v5929
          %v5938 = vmul.f32 %v5857, %v5929
          %v5939 = vmul.f32 %v5858, %v5929
          %v5940 = vmul.f32 %v5859, %v5929
          %v5941 = vmul.f32 %v5860, %v5929
          %v5942 = vmul.f32 %v5861, %v5929
          %v5943 = vmul.f32 %v5862, %v5929
          %v5944 = vmul.f32 %v5863, %v5929
          %v5945 = vmul.f32 %v5864, %v5929
          %v5946 = vperm.slane %v815, 1
          %v5947 = vmul.f32 %v5930, %v5946
          %v5948 = vmul.f32 %v5931, %v5946
          %v5949 = vmul.f32 %v5932, %v5946
          %v5950 = vmul.f32 %v5933, %v5946
          %v5951 = vmul.f32 %v5934, %v5946
          %v5952 = vmul.f32 %v5935, %v5946
          %v5953 = vmul.f32 %v5936, %v5946
          %v5954 = vmul.f32 %v5937, %v5946
          %v5955 = vmul.f32 %v5938, %v5946
          %v5956 = vmul.f32 %v5939, %v5946
          %v5957 = vmul.f32 %v5940, %v5946
          %v5958 = vmul.f32 %v5941, %v5946
          %v5959 = vmul.f32 %v5942, %v5946
          %v5960 = vmul.f32 %v5943, %v5946
          %v5961 = vmul.f32 %v5944, %v5946
          %v5962 = vmul.f32 %v5945, %v5946
          %v5963 = vperm.slane %v815, 6
          %v5964 = vadd.f32 %v5947, %v5963
          %v5965 = vadd.f32 %v5948, %v5963
          %v5966 = vadd.f32 %v5949, %v5963
          %v5967 = vadd.f32 %v5950, %v5963
          %v5968 = vadd.f32 %v5951, %v5963
          %v5969 = vadd.f32 %v5952, %v5963
          %v5970 = vadd.f32 %v5953, %v5963
          %v5971 = vadd.f32 %v5954, %v5963
          %v5972 = vadd.f32 %v5955, %v5963
          %v5973 = vadd.f32 %v5956, %v5963
          %v5974 = vadd.f32 %v5957, %v5963
          %v5975 = vadd.f32 %v5958, %v5963
          %v5976 = vadd.f32 %v5959, %v5963
          %v5977 = vadd.f32 %v5960, %v5963
          %v5978 = vadd.f32 %v5961, %v5963
          %v5979 = vadd.f32 %v5962, %v5963
          %v5980 = vmax.f32 %v5964, 0.0
          %v5981 = vmax.f32 %v5965, 0.0
          %v5982 = vmax.f32 %v5966, 0.0
          %v5983 = vmax.f32 %v5967, 0.0
          %v5984 = vmax.f32 %v5968, 0.0
          %v5985 = vmax.f32 %v5969, 0.0
          %v5986 = vmax.f32 %v5970, 0.0
          %v5987 = vmax.f32 %v5971, 0.0
          %v5988 = vmax.f32 %v5972, 0.0
          %v5989 = vmax.f32 %v5973, 0.0
          %v5990 = vmax.f32 %v5974, 0.0
          %v5991 = vmax.f32 %v5975, 0.0
          %v5992 = vmax.f32 %v5976, 0.0
          %v5993 = vmax.f32 %v5977, 0.0
          %v5994 = vmax.f32 %v5978, 0.0
          %v5995 = vmax.f32 %v5979, 0.0
          %v5996 = vadd.f32 %v5778, %v5980
          %v5997 = vadd.f32 %v5779, %v5981
          %v5998 = vadd.f32 %v5780, %v5982
          %v5999 = vadd.f32 %v5781, %v5983
          %v6000 = vadd.f32 %v5782, %v5984
          %v6001 = vadd.f32 %v5783, %v5985
          %v6002 = vadd.f32 %v5784, %v5986
          %v6003 = vadd.f32 %v5785, %v5987
          %v6004 = vadd.f32 %v5786, %v5988
          %v6005 = vadd.f32 %v5787, %v5989
          %v6006 = vadd.f32 %v5788, %v5990
          %v6007 = vadd.f32 %v5789, %v5991
          %v6008 = vadd.f32 %v5790, %v5992
          %v6009 = vadd.f32 %v5791, %v5993
          %v6010 = vadd.f32 %v5792, %v5994
          %v6011 = vadd.f32 %v5793, %v5995
          %s6012 = sadd.s32 %s811, 9
          %s6013 = smul.u32 %s6012, 32
          %s6014 = scalar_lea.vmem %s5, %s6013
          %v6015 = vld [vmem:[%s6014] sm:$0xff]
          %v6016 = vld [vmem:[%s6014 + $0x8] sm:$0xff]
          %v6017 = vld [vmem:[%s6014 + $0x10] sm:$0xff]
          %v6018 = vld [vmem:[%s6014 + $0x18] sm:$0xff]
          %6019 = vmatpush.msra.mxu0 0.0
          %6020 = vmatpush.msra.mxu0 0.0
          %6021 = vmatpush.msra.mxu0 0.0
          %6022 = vmatpush.msra.mxu0 0.0
          %6023 = vmatpush.msra.mxu0 0.0
          %6024 = vmatpush.msra.mxu0 0.0
          %6025 = vmatpush.msra.mxu0 0.0
          %6026 = vmatpush.msra.mxu0 0.0
          %6027 = vmatpush.msra.mxu0 0.0
          %6028 = vmatpush.msra.mxu0 0.0
          %6029 = vmatpush.msra.mxu0 0.0
          %6030 = vmatpush.msra.mxu0 0.0
          %6031 = vmatpush.msra.mxu0 %v6018
          %6032 = vmatpush.msra.mxu0 %v6017
          %6033 = vmatpush.msra.mxu0 %v6016
          %6034 = vmatpush.msra.mxu0 %v6015
          %6035 = vmatmul.f32.gmra.mxu0 %v1088
          %v6036 = vpop.f32.mrf.mxu0
          %v6037 = vadd.f32 0.0, %v6036
          %6038 = vmatmul.f32.gmra.mxu0 %v1091
          %v6039 = vpop.f32.mrf.mxu0
          %v6040 = vadd.f32 0.0, %v6039
          %6041 = vmatmul.f32.gmra.mxu0 %v1094
          %v6042 = vpop.f32.mrf.mxu0
          %v6043 = vadd.f32 0.0, %v6042
          %6044 = vmatmul.f32.gmra.mxu0 %v1097
          %v6045 = vpop.f32.mrf.mxu0
          %v6046 = vadd.f32 0.0, %v6045
          %6047 = vmatmul.f32.gmra.mxu0 %v1100
          %v6048 = vpop.f32.mrf.mxu0
          %v6049 = vadd.f32 0.0, %v6048
          %6050 = vmatmul.f32.gmra.mxu0 %v1103
          %v6051 = vpop.f32.mrf.mxu0
          %v6052 = vadd.f32 0.0, %v6051
          %6053 = vmatmul.f32.gmra.mxu0 %v1106
          %v6054 = vpop.f32.mrf.mxu0
          %v6055 = vadd.f32 0.0, %v6054
          %6056 = vmatmul.f32.gmra.mxu0 %v1109
          %v6057 = vpop.f32.mrf.mxu0
          %v6058 = vadd.f32 0.0, %v6057
          %6059 = vmatmul.f32.gmra.mxu0 %v1112
          %v6060 = vpop.f32.mrf.mxu0
          %v6061 = vadd.f32 0.0, %v6060
          %6062 = vmatmul.f32.gmra.mxu0 %v1115
          %v6063 = vpop.f32.mrf.mxu0
          %v6064 = vadd.f32 0.0, %v6063
          %6065 = vmatmul.f32.gmra.mxu0 %v1118
          %v6066 = vpop.f32.mrf.mxu0
          %v6067 = vadd.f32 0.0, %v6066
          %6068 = vmatmul.f32.gmra.mxu0 %v1121
          %v6069 = vpop.f32.mrf.mxu0
          %v6070 = vadd.f32 0.0, %v6069
          %6071 = vmatmul.f32.gmra.mxu0 %v1124
          %v6072 = vpop.f32.mrf.mxu0
          %v6073 = vadd.f32 0.0, %v6072
          %6074 = vmatmul.f32.gmra.mxu0 %v1127
          %v6075 = vpop.f32.mrf.mxu0
          %v6076 = vadd.f32 0.0, %v6075
          %6077 = vmatmul.f32.gmra.mxu0 %v1130
          %v6078 = vpop.f32.mrf.mxu0
          %v6079 = vadd.f32 0.0, %v6078
          %6080 = vmatmul.f32.gmra.mxu0 %v1133
          %v6081 = vpop.f32.mrf.mxu0
          %v6082 = vadd.f32 0.0, %v6081
          %6083 = vdwg.mxu0
          %s6084 = sadd.s32 %s811, 10
          %s6085 = smul.u32 %s6084, 32
          %s6086 = scalar_lea.vmem %s5, %s6085
          %v6087 = vld [vmem:[%s6086] sm:$0xff]
          %v6088 = vld [vmem:[%s6086 + $0x8] sm:$0xff]
          %v6089 = vld [vmem:[%s6086 + $0x10] sm:$0xff]
          %v6090 = vld [vmem:[%s6086 + $0x18] sm:$0xff]
          %s6091 = sadd.s32 %s811, 11
          %s6092 = smul.u32 %s6091, 32
          %s6093 = scalar_lea.vmem %s5, %s6092
          %v6094 = vld [vmem:[%s6093] sm:$0xff]
          %v6095 = vld [vmem:[%s6093 + $0x8] sm:$0xff]
          %v6096 = vld [vmem:[%s6093 + $0x10] sm:$0xff]
          %v6097 = vld [vmem:[%s6093 + $0x18] sm:$0xff]
          %v6099 = vsel %vm1086, %v6037, 0
          %v6102 = vsel %vm1086, %v6040, 0
          %v6105 = vsel %vm1086, %v6043, 0
          %v6108 = vsel %vm1086, %v6046, 0
          %v6111 = vsel %vm1086, %v6049, 0
          %v6114 = vsel %vm1086, %v6052, 0
          %v6117 = vsel %vm1086, %v6055, 0
          %v6120 = vsel %vm1086, %v6058, 0
          %v6123 = vsel %vm1086, %v6061, 0
          %v6126 = vsel %vm1086, %v6064, 0
          %v6129 = vsel %vm1086, %v6067, 0
          %v6132 = vsel %vm1086, %v6070, 0
          %v6135 = vsel %vm1086, %v6073, 0
          %v6138 = vsel %vm1086, %v6076, 0
          %v6141 = vsel %vm1086, %v6079, 0
          %v6144 = vsel %vm1086, %v6082, 0
          %6146 = vmatpush.msra.mxu0 0.0
          %6147 = vmatpush.msra.mxu0 0.0
          %6148 = vmatpush.msra.mxu0 0.0
          %6149 = vmatpush.msra.mxu0 0.0
          %6150 = vmatpush.msra.mxu0 0.0
          %6151 = vmatpush.msra.mxu0 0.0
          %6152 = vmatpush.msra.mxu0 0.0
          %6153 = vmatpush.msra.mxu0 0.0
          %6154 = vmatpush.msra.mxu0 0.0
          %6155 = vmatpush.msra.mxu0 0.0
          %6156 = vmatpush.msra.mxu0 0.0
          %6157 = vmatpush.msra.mxu0 0.0
          %6158 = vmatpush.msra.mxu0 %v6097
          %6159 = vmatpush.msra.mxu0 %v6096
          %6160 = vmatpush.msra.mxu0 %v6095
          %6161 = vmatpush.msra.mxu0 %v6094
          %6162 = vmatmul.f32.gmra.mxu0 %v6099
          %v6163 = vpop.f32.mrf.mxu0
          %v6164 = vadd.f32 0.0, %v6163
          %6165 = vmatmul.f32.gmra.mxu0 %v6102
          %v6166 = vpop.f32.mrf.mxu0
          %v6167 = vadd.f32 0.0, %v6166
          %6168 = vmatmul.f32.gmra.mxu0 %v6105
          %v6169 = vpop.f32.mrf.mxu0
          %v6170 = vadd.f32 0.0, %v6169
          %6171 = vmatmul.f32.gmra.mxu0 %v6108
          %v6172 = vpop.f32.mrf.mxu0
          %v6173 = vadd.f32 0.0, %v6172
          %6174 = vmatmul.f32.gmra.mxu0 %v6111
          %v6175 = vpop.f32.mrf.mxu0
          %v6176 = vadd.f32 0.0, %v6175
          %6177 = vmatmul.f32.gmra.mxu0 %v6114
          %v6178 = vpop.f32.mrf.mxu0
          %v6179 = vadd.f32 0.0, %v6178
          %6180 = vmatmul.f32.gmra.mxu0 %v6117
          %v6181 = vpop.f32.mrf.mxu0
          %v6182 = vadd.f32 0.0, %v6181
          %6183 = vmatmul.f32.gmra.mxu0 %v6120
          %v6184 = vpop.f32.mrf.mxu0
          %v6185 = vadd.f32 0.0, %v6184
          %6186 = vmatmul.f32.gmra.mxu0 %v6123
          %v6187 = vpop.f32.mrf.mxu0
          %v6188 = vadd.f32 0.0, %v6187
          %6189 = vmatmul.f32.gmra.mxu0 %v6126
          %v6190 = vpop.f32.mrf.mxu0
          %v6191 = vadd.f32 0.0, %v6190
          %6192 = vmatmul.f32.gmra.mxu0 %v6129
          %v6193 = vpop.f32.mrf.mxu0
          %v6194 = vadd.f32 0.0, %v6193
          %6195 = vmatmul.f32.gmra.mxu0 %v6132
          %v6196 = vpop.f32.mrf.mxu0
          %v6197 = vadd.f32 0.0, %v6196
          %6198 = vmatmul.f32.gmra.mxu0 %v6135
          %v6199 = vpop.f32.mrf.mxu0
          %v6200 = vadd.f32 0.0, %v6199
          %6201 = vmatmul.f32.gmra.mxu0 %v6138
          %v6202 = vpop.f32.mrf.mxu0
          %v6203 = vadd.f32 0.0, %v6202
          %6204 = vmatmul.f32.gmra.mxu0 %v6141
          %v6205 = vpop.f32.mrf.mxu0
          %v6206 = vadd.f32 0.0, %v6205
          %6207 = vmatmul.f32.gmra.mxu0 %v6144
          %v6208 = vpop.f32.mrf.mxu0
          %v6209 = vadd.f32 0.0, %v6208
          %6210 = vdwg.mxu0
          %v6212 = vsel %vm1086, %v5996, 0
          %v6215 = vsel %vm1086, %v5997, 0
          %v6218 = vsel %vm1086, %v5998, 0
          %v6221 = vsel %vm1086, %v5999, 0
          %v6224 = vsel %vm1086, %v6000, 0
          %v6227 = vsel %vm1086, %v6001, 0
          %v6230 = vsel %vm1086, %v6002, 0
          %v6233 = vsel %vm1086, %v6003, 0
          %v6236 = vsel %vm1086, %v6004, 0
          %v6239 = vsel %vm1086, %v6005, 0
          %v6242 = vsel %vm1086, %v6006, 0
          %v6245 = vsel %vm1086, %v6007, 0
          %v6248 = vsel %vm1086, %v6008, 0
          %v6251 = vsel %vm1086, %v6009, 0
          %v6254 = vsel %vm1086, %v6010, 0
          %v6257 = vsel %vm1086, %v6011, 0
          %6259 = vmatpush.msra.mxu0 0.0
          %6260 = vmatpush.msra.mxu0 0.0
          %6261 = vmatpush.msra.mxu0 0.0
          %6262 = vmatpush.msra.mxu0 0.0
          %6263 = vmatpush.msra.mxu0 0.0
          %6264 = vmatpush.msra.mxu0 0.0
          %6265 = vmatpush.msra.mxu0 0.0
          %6266 = vmatpush.msra.mxu0 0.0
          %6267 = vmatpush.msra.mxu0 0.0
          %6268 = vmatpush.msra.mxu0 0.0
          %6269 = vmatpush.msra.mxu0 0.0
          %6270 = vmatpush.msra.mxu0 0.0
          %6271 = vmatpush.msra.mxu0 %v6090
          %6272 = vmatpush.msra.mxu0 %v6089
          %6273 = vmatpush.msra.mxu0 %v6088
          %6274 = vmatpush.msra.mxu0 %v6087
          %6275 = vmatmul.f32.gmra.mxu0 %v6212
          %v6276 = vpop.f32.mrf.mxu0
          %v6277 = vadd.f32 %v6164, %v6276
          %6278 = vmatmul.f32.gmra.mxu0 %v6215
          %v6279 = vpop.f32.mrf.mxu0
          %v6280 = vadd.f32 %v6167, %v6279
          %6281 = vmatmul.f32.gmra.mxu0 %v6218
          %v6282 = vpop.f32.mrf.mxu0
          %v6283 = vadd.f32 %v6170, %v6282
          %6284 = vmatmul.f32.gmra.mxu0 %v6221
          %v6285 = vpop.f32.mrf.mxu0
          %v6286 = vadd.f32 %v6173, %v6285
          %6287 = vmatmul.f32.gmra.mxu0 %v6224
          %v6288 = vpop.f32.mrf.mxu0
          %v6289 = vadd.f32 %v6176, %v6288
          %6290 = vmatmul.f32.gmra.mxu0 %v6227
          %v6291 = vpop.f32.mrf.mxu0
          %v6292 = vadd.f32 %v6179, %v6291
          %6293 = vmatmul.f32.gmra.mxu0 %v6230
          %v6294 = vpop.f32.mrf.mxu0
          %v6295 = vadd.f32 %v6182, %v6294
          %6296 = vmatmul.f32.gmra.mxu0 %v6233
          %v6297 = vpop.f32.mrf.mxu0
          %v6298 = vadd.f32 %v6185, %v6297
          %6299 = vmatmul.f32.gmra.mxu0 %v6236
          %v6300 = vpop.f32.mrf.mxu0
          %v6301 = vadd.f32 %v6188, %v6300
          %6302 = vmatmul.f32.gmra.mxu0 %v6239
          %v6303 = vpop.f32.mrf.mxu0
          %v6304 = vadd.f32 %v6191, %v6303
          %6305 = vmatmul.f32.gmra.mxu0 %v6242
          %v6306 = vpop.f32.mrf.mxu0
          %v6307 = vadd.f32 %v6194, %v6306
          %6308 = vmatmul.f32.gmra.mxu0 %v6245
          %v6309 = vpop.f32.mrf.mxu0
          %v6310 = vadd.f32 %v6197, %v6309
          %6311 = vmatmul.f32.gmra.mxu0 %v6248
          %v6312 = vpop.f32.mrf.mxu0
          %v6313 = vadd.f32 %v6200, %v6312
          %6314 = vmatmul.f32.gmra.mxu0 %v6251
          %v6315 = vpop.f32.mrf.mxu0
          %v6316 = vadd.f32 %v6203, %v6315
          %6317 = vmatmul.f32.gmra.mxu0 %v6254
          %v6318 = vpop.f32.mrf.mxu0
          %v6319 = vadd.f32 %v6206, %v6318
          %6320 = vmatmul.f32.gmra.mxu0 %v6257
          %v6321 = vpop.f32.mrf.mxu0
          %v6322 = vadd.f32 %v6209, %v6321
          %6323 = vdwg.mxu0
          %v6324 = vperm.slane %v815, 7
          %v6325 = vadd.f32 %v6277, %v6324
          %v6326 = vadd.f32 %v6280, %v6324
          %v6327 = vadd.f32 %v6283, %v6324
          %v6328 = vadd.f32 %v6286, %v6324
          %v6329 = vadd.f32 %v6289, %v6324
          %v6330 = vadd.f32 %v6292, %v6324
          %v6331 = vadd.f32 %v6295, %v6324
          %v6332 = vadd.f32 %v6298, %v6324
          %v6333 = vadd.f32 %v6301, %v6324
          %v6334 = vadd.f32 %v6304, %v6324
          %v6335 = vadd.f32 %v6307, %v6324
          %v6336 = vadd.f32 %v6310, %v6324
          %v6337 = vadd.f32 %v6313, %v6324
          %v6338 = vadd.f32 %v6316, %v6324
          %v6339 = vadd.f32 %v6319, %v6324
          %v6340 = vadd.f32 %v6322, %v6324
          %v6341 = vxor.u32 %v6325, 2147483648
          %v6342 = vxor.u32 %v6326, 2147483648
          %v6343 = vxor.u32 %v6327, 2147483648
          %v6344 = vxor.u32 %v6328, 2147483648
          %v6345 = vxor.u32 %v6329, 2147483648
          %v6346 = vxor.u32 %v6330, 2147483648
          %v6347 = vxor.u32 %v6331, 2147483648
          %v6348 = vxor.u32 %v6332, 2147483648
          %v6349 = vxor.u32 %v6333, 2147483648
          %v6350 = vxor.u32 %v6334, 2147483648
          %v6351 = vxor.u32 %v6335, 2147483648
          %v6352 = vxor.u32 %v6336, 2147483648
          %v6353 = vxor.u32 %v6337, 2147483648
          %v6354 = vxor.u32 %v6338, 2147483648
          %v6355 = vxor.u32 %v6339, 2147483648
          %v6356 = vxor.u32 %v6340, 2147483648
          %v6357 = vmul.f32 %v6341, 1.442695
          %v6358 = vpow.pop %v6357
          %v6359 = vmul.f32 %v6342, 1.442695
          %v6360 = vpow.pop %v6359
          %v6361 = vmul.f32 %v6343, 1.442695
          %v6362 = vpow.pop %v6361
          %v6363 = vmul.f32 %v6344, 1.442695
          %v6364 = vpow.pop %v6363
          %v6365 = vmul.f32 %v6345, 1.442695
          %v6366 = vpow.pop %v6365
          %v6367 = vmul.f32 %v6346, 1.442695
          %v6368 = vpow.pop %v6367
          %v6369 = vmul.f32 %v6347, 1.442695
          %v6370 = vpow.pop %v6369
          %v6371 = vmul.f32 %v6348, 1.442695
          %v6372 = vpow.pop %v6371
          %v6373 = vmul.f32 %v6349, 1.442695
          %v6374 = vpow.pop %v6373
          %v6375 = vmul.f32 %v6350, 1.442695
          %v6376 = vpow.pop %v6375
          %v6377 = vmul.f32 %v6351, 1.442695
          %v6378 = vpow.pop %v6377
          %v6379 = vmul.f32 %v6352, 1.442695
          %v6380 = vpow.pop %v6379
          %v6381 = vmul.f32 %v6353, 1.442695
          %v6382 = vpow.pop %v6381
          %v6383 = vmul.f32 %v6354, 1.442695
          %v6384 = vpow.pop %v6383
          %v6385 = vmul.f32 %v6355, 1.442695
          %v6386 = vpow.pop %v6385
          %v6387 = vmul.f32 %v6356, 1.442695
          %v6388 = vpow.pop %v6387
          %v6389 = vadd.f32 %v6358, 1.0
          %v6390 = vadd.f32 %v6360, 1.0
          %v6391 = vadd.f32 %v6362, 1.0
          %v6392 = vadd.f32 %v6364, 1.0
          %v6393 = vadd.f32 %v6366, 1.0
          %v6394 = vadd.f32 %v6368, 1.0
          %v6395 = vadd.f32 %v6370, 1.0
          %v6396 = vadd.f32 %v6372, 1.0
          %v6397 = vadd.f32 %v6374, 1.0
          %v6398 = vadd.f32 %v6376, 1.0
          %v6399 = vadd.f32 %v6378, 1.0
          %v6400 = vadd.f32 %v6380, 1.0
          %v6401 = vadd.f32 %v6382, 1.0
          %v6402 = vadd.f32 %v6384, 1.0
          %v6403 = vadd.f32 %v6386, 1.0
          %v6404 = vadd.f32 %v6388, 1.0
          %v6405 = vrcp.pop %v6389
          %v6406 = vmul.f32 %v6389, %v6405
          %v6407 = vsub.f32 1.0, %v6406
          %v6408 = vmul.f32 %v6405, %v6407
          %v6409 = vadd.f32 %v6405, %v6408
          %vm6410 = vweird.f32 %v6389
          %vm6411 = vweird.f32 %v6405
          %vm6412 = vmor %vm6410, %vm6411
          %v6413 = vsel %vm6412, %v6405, %v6409
          %v6414 = vand.u32 2147483647, %v6389
          %vm6415 = vcmp.eq.f32.partialorder %v6414, 8.507059e+37
          %v6416 = vand.u32 %v6389, 2147483648
          %v6417 = vor.u32 1.1754944e-38, %v6416
          %v6418 = vsel %vm6415, %v6417, %v6413
          %v6419 = vmul.f32 1.0, %v6418
          %v6420 = vrcp.pop %v6390
          %v6421 = vmul.f32 %v6390, %v6420
          %v6422 = vsub.f32 1.0, %v6421
          %v6423 = vmul.f32 %v6420, %v6422
          %v6424 = vadd.f32 %v6420, %v6423
          %vm6425 = vweird.f32 %v6390
          %vm6426 = vweird.f32 %v6420
          %vm6427 = vmor %vm6425, %vm6426
          %v6428 = vsel %vm6427, %v6420, %v6424
          %v6429 = vand.u32 2147483647, %v6390
          %vm6430 = vcmp.eq.f32.partialorder %v6429, 8.507059e+37
          %v6431 = vand.u32 %v6390, 2147483648
          %v6432 = vor.u32 1.1754944e-38, %v6431
          %v6433 = vsel %vm6430, %v6432, %v6428
          %v6434 = vmul.f32 1.0, %v6433
          %v6435 = vrcp.pop %v6391
          %v6436 = vmul.f32 %v6391, %v6435
          %v6437 = vsub.f32 1.0, %v6436
          %v6438 = vmul.f32 %v6435, %v6437
          %v6439 = vadd.f32 %v6435, %v6438
          %vm6440 = vweird.f32 %v6391
          %vm6441 = vweird.f32 %v6435
          %vm6442 = vmor %vm6440, %vm6441
          %v6443 = vsel %vm6442, %v6435, %v6439
          %v6444 = vand.u32 2147483647, %v6391
          %vm6445 = vcmp.eq.f32.partialorder %v6444, 8.507059e+37
          %v6446 = vand.u32 %v6391, 2147483648
          %v6447 = vor.u32 1.1754944e-38, %v6446
          %v6448 = vsel %vm6445, %v6447, %v6443
          %v6449 = vmul.f32 1.0, %v6448
          %v6450 = vrcp.pop %v6392
          %v6451 = vmul.f32 %v6392, %v6450
          %v6452 = vsub.f32 1.0, %v6451
          %v6453 = vmul.f32 %v6450, %v6452
          %v6454 = vadd.f32 %v6450, %v6453
          %vm6455 = vweird.f32 %v6392
          %vm6456 = vweird.f32 %v6450
          %vm6457 = vmor %vm6455, %vm6456
          %v6458 = vsel %vm6457, %v6450, %v6454
          %v6459 = vand.u32 2147483647, %v6392
          %vm6460 = vcmp.eq.f32.partialorder %v6459, 8.507059e+37
          %v6461 = vand.u32 %v6392, 2147483648
          %v6462 = vor.u32 1.1754944e-38, %v6461
          %v6463 = vsel %vm6460, %v6462, %v6458
          %v6464 = vmul.f32 1.0, %v6463
          %v6465 = vrcp.pop %v6393
          %v6466 = vmul.f32 %v6393, %v6465
          %v6467 = vsub.f32 1.0, %v6466
          %v6468 = vmul.f32 %v6465, %v6467
          %v6469 = vadd.f32 %v6465, %v6468
          %vm6470 = vweird.f32 %v6393
          %vm6471 = vweird.f32 %v6465
          %vm6472 = vmor %vm6470, %vm6471
          %v6473 = vsel %vm6472, %v6465, %v6469
          %v6474 = vand.u32 2147483647, %v6393
          %vm6475 = vcmp.eq.f32.partialorder %v6474, 8.507059e+37
          %v6476 = vand.u32 %v6393, 2147483648
          %v6477 = vor.u32 1.1754944e-38, %v6476
          %v6478 = vsel %vm6475, %v6477, %v6473
          %v6479 = vmul.f32 1.0, %v6478
          %v6480 = vrcp.pop %v6394
          %v6481 = vmul.f32 %v6394, %v6480
          %v6482 = vsub.f32 1.0, %v6481
          %v6483 = vmul.f32 %v6480, %v6482
          %v6484 = vadd.f32 %v6480, %v6483
          %vm6485 = vweird.f32 %v6394
          %vm6486 = vweird.f32 %v6480
          %vm6487 = vmor %vm6485, %vm6486
          %v6488 = vsel %vm6487, %v6480, %v6484
          %v6489 = vand.u32 2147483647, %v6394
          %vm6490 = vcmp.eq.f32.partialorder %v6489, 8.507059e+37
          %v6491 = vand.u32 %v6394, 2147483648
          %v6492 = vor.u32 1.1754944e-38, %v6491
          %v6493 = vsel %vm6490, %v6492, %v6488
          %v6494 = vmul.f32 1.0, %v6493
          %v6495 = vrcp.pop %v6395
          %v6496 = vmul.f32 %v6395, %v6495
          %v6497 = vsub.f32 1.0, %v6496
          %v6498 = vmul.f32 %v6495, %v6497
          %v6499 = vadd.f32 %v6495, %v6498
          %vm6500 = vweird.f32 %v6395
          %vm6501 = vweird.f32 %v6495
          %vm6502 = vmor %vm6500, %vm6501
          %v6503 = vsel %vm6502, %v6495, %v6499
          %v6504 = vand.u32 2147483647, %v6395
          %vm6505 = vcmp.eq.f32.partialorder %v6504, 8.507059e+37
          %v6506 = vand.u32 %v6395, 2147483648
          %v6507 = vor.u32 1.1754944e-38, %v6506
          %v6508 = vsel %vm6505, %v6507, %v6503
          %v6509 = vmul.f32 1.0, %v6508
          %v6510 = vrcp.pop %v6396
          %v6511 = vmul.f32 %v6396, %v6510
          %v6512 = vsub.f32 1.0, %v6511
          %v6513 = vmul.f32 %v6510, %v6512
          %v6514 = vadd.f32 %v6510, %v6513
          %vm6515 = vweird.f32 %v6396
          %vm6516 = vweird.f32 %v6510
          %vm6517 = vmor %vm6515, %vm6516
          %v6518 = vsel %vm6517, %v6510, %v6514
          %v6519 = vand.u32 2147483647, %v6396
          %vm6520 = vcmp.eq.f32.partialorder %v6519, 8.507059e+37
          %v6521 = vand.u32 %v6396, 2147483648
          %v6522 = vor.u32 1.1754944e-38, %v6521
          %v6523 = vsel %vm6520, %v6522, %v6518
          %v6524 = vmul.f32 1.0, %v6523
          %v6525 = vrcp.pop %v6397
          %v6526 = vmul.f32 %v6397, %v6525
          %v6527 = vsub.f32 1.0, %v6526
          %v6528 = vmul.f32 %v6525, %v6527
          %v6529 = vadd.f32 %v6525, %v6528
          %vm6530 = vweird.f32 %v6397
          %vm6531 = vweird.f32 %v6525
          %vm6532 = vmor %vm6530, %vm6531
          %v6533 = vsel %vm6532, %v6525, %v6529
          %v6534 = vand.u32 2147483647, %v6397
          %vm6535 = vcmp.eq.f32.partialorder %v6534, 8.507059e+37
          %v6536 = vand.u32 %v6397, 2147483648
          %v6537 = vor.u32 1.1754944e-38, %v6536
          %v6538 = vsel %vm6535, %v6537, %v6533
          %v6539 = vmul.f32 1.0, %v6538
          %v6540 = vrcp.pop %v6398
          %v6541 = vmul.f32 %v6398, %v6540
          %v6542 = vsub.f32 1.0, %v6541
          %v6543 = vmul.f32 %v6540, %v6542
          %v6544 = vadd.f32 %v6540, %v6543
          %vm6545 = vweird.f32 %v6398
          %vm6546 = vweird.f32 %v6540
          %vm6547 = vmor %vm6545, %vm6546
          %v6548 = vsel %vm6547, %v6540, %v6544
          %v6549 = vand.u32 2147483647, %v6398
          %vm6550 = vcmp.eq.f32.partialorder %v6549, 8.507059e+37
          %v6551 = vand.u32 %v6398, 2147483648
          %v6552 = vor.u32 1.1754944e-38, %v6551
          %v6553 = vsel %vm6550, %v6552, %v6548
          %v6554 = vmul.f32 1.0, %v6553
          %v6555 = vrcp.pop %v6399
          %v6556 = vmul.f32 %v6399, %v6555
          %v6557 = vsub.f32 1.0, %v6556
          %v6558 = vmul.f32 %v6555, %v6557
          %v6559 = vadd.f32 %v6555, %v6558
          %vm6560 = vweird.f32 %v6399
          %vm6561 = vweird.f32 %v6555
          %vm6562 = vmor %vm6560, %vm6561
          %v6563 = vsel %vm6562, %v6555, %v6559
          %v6564 = vand.u32 2147483647, %v6399
          %vm6565 = vcmp.eq.f32.partialorder %v6564, 8.507059e+37
          %v6566 = vand.u32 %v6399, 2147483648
          %v6567 = vor.u32 1.1754944e-38, %v6566
          %v6568 = vsel %vm6565, %v6567, %v6563
          %v6569 = vmul.f32 1.0, %v6568
          %v6570 = vrcp.pop %v6400
          %v6571 = vmul.f32 %v6400, %v6570
          %v6572 = vsub.f32 1.0, %v6571
          %v6573 = vmul.f32 %v6570, %v6572
          %v6574 = vadd.f32 %v6570, %v6573
          %vm6575 = vweird.f32 %v6400
          %vm6576 = vweird.f32 %v6570
          %vm6577 = vmor %vm6575, %vm6576
          %v6578 = vsel %vm6577, %v6570, %v6574
          %v6579 = vand.u32 2147483647, %v6400
          %vm6580 = vcmp.eq.f32.partialorder %v6579, 8.507059e+37
          %v6581 = vand.u32 %v6400, 2147483648
          %v6582 = vor.u32 1.1754944e-38, %v6581
          %v6583 = vsel %vm6580, %v6582, %v6578
          %v6584 = vmul.f32 1.0, %v6583
          %v6585 = vrcp.pop %v6401
          %v6586 = vmul.f32 %v6401, %v6585
          %v6587 = vsub.f32 1.0, %v6586
          %v6588 = vmul.f32 %v6585, %v6587
          %v6589 = vadd.f32 %v6585, %v6588
          %vm6590 = vweird.f32 %v6401
          %vm6591 = vweird.f32 %v6585
          %vm6592 = vmor %vm6590, %vm6591
          %v6593 = vsel %vm6592, %v6585, %v6589
          %v6594 = vand.u32 2147483647, %v6401
          %vm6595 = vcmp.eq.f32.partialorder %v6594, 8.507059e+37
          %v6596 = vand.u32 %v6401, 2147483648
          %v6597 = vor.u32 1.1754944e-38, %v6596
          %v6598 = vsel %vm6595, %v6597, %v6593
          %v6599 = vmul.f32 1.0, %v6598
          %v6600 = vrcp.pop %v6402
          %v6601 = vmul.f32 %v6402, %v6600
          %v6602 = vsub.f32 1.0, %v6601
          %v6603 = vmul.f32 %v6600, %v6602
          %v6604 = vadd.f32 %v6600, %v6603
          %vm6605 = vweird.f32 %v6402
          %vm6606 = vweird.f32 %v6600
          %vm6607 = vmor %vm6605, %vm6606
          %v6608 = vsel %vm6607, %v6600, %v6604
          %v6609 = vand.u32 2147483647, %v6402
          %vm6610 = vcmp.eq.f32.partialorder %v6609, 8.507059e+37
          %v6611 = vand.u32 %v6402, 2147483648
          %v6612 = vor.u32 1.1754944e-38, %v6611
          %v6613 = vsel %vm6610, %v6612, %v6608
          %v6614 = vmul.f32 1.0, %v6613
          %v6615 = vrcp.pop %v6403
          %v6616 = vmul.f32 %v6403, %v6615
          %v6617 = vsub.f32 1.0, %v6616
          %v6618 = vmul.f32 %v6615, %v6617
          %v6619 = vadd.f32 %v6615, %v6618
          %vm6620 = vweird.f32 %v6403
          %vm6621 = vweird.f32 %v6615
          %vm6622 = vmor %vm6620, %vm6621
          %v6623 = vsel %vm6622, %v6615, %v6619
          %v6624 = vand.u32 2147483647, %v6403
          %vm6625 = vcmp.eq.f32.partialorder %v6624, 8.507059e+37
          %v6626 = vand.u32 %v6403, 2147483648
          %v6627 = vor.u32 1.1754944e-38, %v6626
          %v6628 = vsel %vm6625, %v6627, %v6623
          %v6629 = vmul.f32 1.0, %v6628
          %v6630 = vrcp.pop %v6404
          %v6631 = vmul.f32 %v6404, %v6630
          %v6632 = vsub.f32 1.0, %v6631
          %v6633 = vmul.f32 %v6630, %v6632
          %v6634 = vadd.f32 %v6630, %v6633
          %vm6635 = vweird.f32 %v6404
          %vm6636 = vweird.f32 %v6630
          %vm6637 = vmor %vm6635, %vm6636
          %v6638 = vsel %vm6637, %v6630, %v6634
          %v6639 = vand.u32 2147483647, %v6404
          %vm6640 = vcmp.eq.f32.partialorder %v6639, 8.507059e+37
          %v6641 = vand.u32 %v6404, 2147483648
          %v6642 = vor.u32 1.1754944e-38, %v6641
          %v6643 = vsel %vm6640, %v6642, %v6638
          %v6644 = vmul.f32 1.0, %v6643
          %v6645 = vmul.f32 %v6419, %v5996
          %v6646 = vmul.f32 %v6434, %v5997
          %v6647 = vmul.f32 %v6449, %v5998
          %v6648 = vmul.f32 %v6464, %v5999
          %v6649 = vmul.f32 %v6479, %v6000
          %v6650 = vmul.f32 %v6494, %v6001
          %v6651 = vmul.f32 %v6509, %v6002
          %v6652 = vmul.f32 %v6524, %v6003
          %v6653 = vmul.f32 %v6539, %v6004
          %v6654 = vmul.f32 %v6554, %v6005
          %v6655 = vmul.f32 %v6569, %v6006
          %v6656 = vmul.f32 %v6584, %v6007
          %v6657 = vmul.f32 %v6599, %v6008
          %v6658 = vmul.f32 %v6614, %v6009
          %v6659 = vmul.f32 %v6629, %v6010
          %v6660 = vmul.f32 %v6644, %v6011
          %v6661 = vsub.f32 1.0, %v6419
          %v6662 = vsub.f32 1.0, %v6434
          %v6663 = vsub.f32 1.0, %v6449
          %v6664 = vsub.f32 1.0, %v6464
          %v6665 = vsub.f32 1.0, %v6479
          %v6666 = vsub.f32 1.0, %v6494
          %v6667 = vsub.f32 1.0, %v6509
          %v6668 = vsub.f32 1.0, %v6524
          %v6669 = vsub.f32 1.0, %v6539
          %v6670 = vsub.f32 1.0, %v6554
          %v6671 = vsub.f32 1.0, %v6569
          %v6672 = vsub.f32 1.0, %v6584
          %v6673 = vsub.f32 1.0, %v6599
          %v6674 = vsub.f32 1.0, %v6614
          %v6675 = vsub.f32 1.0, %v6629
          %v6676 = vsub.f32 1.0, %v6644
          %v6677 = vmul.f32 %v6661, %v6037
          %v6678 = vmul.f32 %v6662, %v6040
          %v6679 = vmul.f32 %v6663, %v6043
          %v6680 = vmul.f32 %v6664, %v6046
          %v6681 = vmul.f32 %v6665, %v6049
          %v6682 = vmul.f32 %v6666, %v6052
          %v6683 = vmul.f32 %v6667, %v6055
          %v6684 = vmul.f32 %v6668, %v6058
          %v6685 = vmul.f32 %v6669, %v6061
          %v6686 = vmul.f32 %v6670, %v6064
          %v6687 = vmul.f32 %v6671, %v6067
          %v6688 = vmul.f32 %v6672, %v6070
          %v6689 = vmul.f32 %v6673, %v6073
          %v6690 = vmul.f32 %v6674, %v6076
          %v6691 = vmul.f32 %v6675, %v6079
          %v6692 = vmul.f32 %v6676, %v6082
          %v6693 = vadd.f32 %v6645, %v6677
          %v6694 = vadd.f32 %v6646, %v6678
          %v6695 = vadd.f32 %v6647, %v6679
          %v6696 = vadd.f32 %v6648, %v6680
          %v6697 = vadd.f32 %v6649, %v6681
          %v6698 = vadd.f32 %v6650, %v6682
          %v6699 = vadd.f32 %v6651, %v6683
          %v6700 = vadd.f32 %v6652, %v6684
          %v6701 = vadd.f32 %v6653, %v6685
          %v6702 = vadd.f32 %v6654, %v6686
          %v6703 = vadd.f32 %v6655, %v6687
          %v6704 = vadd.f32 %v6656, %v6688
          %v6705 = vadd.f32 %v6657, %v6689
          %v6706 = vadd.f32 %v6658, %v6690
          %v6707 = vadd.f32 %v6659, %v6691
          %v6708 = vadd.f32 %v6660, %v6692
        $region81: #{inceptlike_gcn_forward.1} parent=71 // loop_footer
          %s794 = sadd.s32 1, %s790
        $region82: #{inceptlike_gcn_forward.1} parent=71 // loop_footer_branch
          %789 = sbr.rel target = $region78
        $region83: #{inceptlike_gcn_forward.1} parent=71 // loop_exit
          _
        %v6709 = vld [vmem:[%s532] sm:$0xff]
        %v6710 = vld [vmem:[%s532 + $0x8] sm:$0xff]
        %6711 = vmatpush.msra.mxu0 %v810
        %6712 = vmatpush.msra.mxu0 %v809
        %6713 = vmatpush.msra.mxu0 %v808
        %6714 = vmatpush.msra.mxu0 %v807
        %6715 = vmatpush.msra.mxu0 %v806
        %6716 = vmatpush.msra.mxu0 %v805
        %6717 = vmatpush.msra.mxu0 %v804
        %6718 = vmatpush.msra.mxu0 %v803
        %6719 = vmatpush.msra.mxu0 %v802
        %6720 = vmatpush.msra.mxu0 %v801
        %6721 = vmatpush.msra.mxu0 %v800
        %6722 = vmatpush.msra.mxu0 %v799
        %6723 = vmatpush.msra.mxu0 %v798
        %6724 = vmatpush.msra.mxu0 %v797
        %6725 = vmatpush.msra.mxu0 %v796
        %6726 = vmatpush.msra.mxu0 %v795
        %6727 = vmatmul.f32.gmra.mxu0 %v6709
        %v6728 = vpop.f32.mrf.mxu0
        %v6729 = vadd.f32 0.0, %v6728
        %6730 = vmatmul.f32.gmra.mxu0 %v6710
        %v6731 = vpop.f32.mrf.mxu0
        %v6732 = vadd.f32 0.0, %v6731
        %6733 = vdwg.mxu0
        %v6734 = vld [vmem:[%s9] sm:$0xff]
        %v6735 = vld [vmem:[%s9 + $0x8] sm:$0xff]
        %v6736 = vld [vmem:[%s9 + $0x10] sm:$0xff]
        %v6737 = vld [vmem:[%s9 + $0x18] sm:$0xff]
        %v6738 = vld [vmem:[%s537] sm:$0xff]
        %v6739 = vld [vmem:[%s537 + $0x8] sm:$0xff]
        %v6740 = vld [vmem:[%s9 + $0x20] sm:$0xff]
        %v6741 = vld [vmem:[%s9 + $0x28] sm:$0xff]
        %v6742 = vld [vmem:[%s9 + $0x30] sm:$0xf]
        %vm6743 = vcmask 162816
        %v6745 = vsel %vm6743, %v6738, 0
        %v6748 = vsel %vm6743, %v6739, 0
        %vm6750 = vcmask 1043456
        %v6752 = vsel %vm6750, %v6742, 0
        %6754 = vmatpush.msra.mxu0 0.0
        %6755 = vmatpush.msra.mxu0 0.0
        %6756 = vmatpush.msra.mxu0 0.0
        %6757 = vmatpush.msra.mxu0 0.0
        %6758 = vmatpush.msra.mxu0 0.0
        %6759 = vmatpush.msra.mxu0 0.0
        %6760 = vmatpush.msra.mxu0 0.0
        %6761 = vmatpush.msra.mxu0 0.0
        %6762 = vmatpush.msra.mxu0 0.0
        %6763 = vmatpush.msra.mxu0 0.0
        %6764 = vmatpush.msra.mxu0 0.0
        %6765 = vmatpush.msra.mxu0 0.0
        %6766 = vmatpush.msra.mxu0 0.0
        %6767 = vmatpush.msra.mxu0 %v6752
        %6768 = vmatpush.msra.mxu0 %v6741
        %6769 = vmatpush.msra.mxu0 %v6740
        %6770 = vmatmul.f32.gmra.mxu0 %v6745
        %v6771 = vpop.f32.mrf.mxu0
        %v6772 = vadd.f32 0.0, %v6771
        %6773 = vmatmul.f32.gmra.mxu0 %v6748
        %v6774 = vpop.f32.mrf.mxu0
        %v6775 = vadd.f32 0.0, %v6774
        %6776 = vdwg.mxu0
        %vm6777 = vcmask 261120
        %v6779 = vsel %vm6777, %v6729, 0
        %v6782 = vsel %vm6777, %v6732, 0
        %6784 = vmatpush.msra.mxu0 0.0
        %6785 = vmatpush.msra.mxu0 0.0
        %6786 = vmatpush.msra.mxu0 0.0
        %6787 = vmatpush.msra.mxu0 0.0
        %6788 = vmatpush.msra.mxu0 0.0
        %6789 = vmatpush.msra.mxu0 0.0
        %6790 = vmatpush.msra.mxu0 0.0
        %6791 = vmatpush.msra.mxu0 0.0
        %6792 = vmatpush.msra.mxu0 0.0
        %6793 = vmatpush.msra.mxu0 0.0
        %6794 = vmatpush.msra.mxu0 0.0
        %6795 = vmatpush.msra.mxu0 0.0
        %6796 = vmatpush.msra.mxu0 %v6737
        %6797 = vmatpush.msra.mxu0 %v6736
        %6798 = vmatpush.msra.mxu0 %v6735
        %6799 = vmatpush.msra.mxu0 %v6734
        %6800 = vmatmul.f32.gmra.mxu0 %v6779
        %v6801 = vpop.f32.mrf.mxu0
        %v6802 = vadd.f32 %v6772, %v6801
        %6803 = vmatmul.f32.gmra.mxu0 %v6782
        %v6804 = vpop.f32.mrf.mxu0
        %v6805 = vadd.f32 %v6775, %v6804
        %6806 = vdwg.mxu0
        %v6807 = vld [vmem:[%s10] sm:$0x1]
        %v6809 = vperm.slane %v6807, 0
        %v6811 = vadd.f32 %v6802, %v6809
        %v6812 = vadd.f32 %v6805, %v6809
        %v6813 = vmax.f32 %v6811, 0.0
        %v6814 = vmax.f32 %v6812, 0.0
        %v6815 = vld [vmem:[%s11] sm:$0xff]
        %v6816 = vld [vmem:[%s11 + $0x8] sm:$0xff]
        %v6817 = vld [vmem:[%s11 + $0x10] sm:$0xff]
        %v6818 = vld [vmem:[%s11 + $0x18] sm:$0xff]
        %v6819 = vld [vmem:[%s12] sm:$0x1]
        %v6821 = vperm.slane %v6819, 0
        %v6824 = vsel %vm6777, %v6813, 0
        %v6827 = vsel %vm6777, %v6814, 0
        %6829 = vmatpush.msra.mxu0 0.0
        %6830 = vmatpush.msra.mxu0 0.0
        %6831 = vmatpush.msra.mxu0 0.0
        %6832 = vmatpush.msra.mxu0 0.0
        %6833 = vmatpush.msra.mxu0 0.0
        %6834 = vmatpush.msra.mxu0 0.0
        %6835 = vmatpush.msra.mxu0 0.0
        %6836 = vmatpush.msra.mxu0 0.0
        %6837 = vmatpush.msra.mxu0 0.0
        %6838 = vmatpush.msra.mxu0 0.0
        %6839 = vmatpush.msra.mxu0 0.0
        %6840 = vmatpush.msra.mxu0 0.0
        %6841 = vmatpush.msra.mxu0 %v6818
        %6842 = vmatpush.msra.mxu0 %v6817
        %6843 = vmatpush.msra.mxu0 %v6816
        %6844 = vmatpush.msra.mxu0 %v6815
        %6845 = vmatmul.f32.gmra.mxu0 %v6824
        %v6846 = vpop.f32.mrf.mxu0
        %v6847 = vadd.f32 %v6821, %v6846
        %6848 = vmatmul.f32.gmra.mxu0 %v6827
        %v6849 = vpop.f32.mrf.mxu0
        %v6850 = vadd.f32 %v6821, %v6849
        %6851 = vdwg.mxu0
        %vm6852 = vcmask 31744
        %6853 = vst.msk [vmem:[%s542] sm:$0xff] %vm6852, %v6847
        %6854 = vst.msk [vmem:[%s542 + $0x8] sm:$0xff] %vm6852, %v6850
        %p6855 = scmp.lt.s32.totalorder %s27, 1
        %s6856 = scalar_select %p6855, %s27, 1
        %s6857 = smul.addr %s6856, 2
        %s6858 = smul.addr %s6857, 8
        %s6859 = scalar_lea.vmem %s13, %s6858
        // Predicated region
        $region84: #{inceptlike_gcn_forward.1} parent=71 // pred_check
          %p6860 = pneg %p343
        $region85: #{inceptlike_gcn_forward.1} parent=71 // pred_check_branch
          %6862 = sbr.rel (%p6860) target = $region87
        $region86: #{inceptlike_gcn_forward.1} parent=71 // pred_region
          _
        $region87: #{inceptlike_gcn_forward.1} parent=71 // pred_fallthru
          _
      $region72: #{inceptlike_gcn_forward.1} parent=5 // pred_fallthru
        _
      %p6863 = scmp.le.s32.totalorder 2, %s22
      // Predicated region
      $region88: #{inceptlike_gcn_forward.1} parent=5 // pred_check
        %p6864 = pneg %p6863
      $region89: #{inceptlike_gcn_forward.1} parent=5 // pred_check_branch
        %6866 = sbr.rel (%p6864) target = $region91
      $region90: #{inceptlike_gcn_forward.1} parent=5 // pred_region
        %s6867 = ssub.s32 %s22, 2
        // Predicated region
        $region92: #{inceptlike_gcn_forward.1} parent=90 // pred_check
          %p6868 = pneg %p349
        $region93: #{inceptlike_gcn_forward.1} parent=90 // pred_check_branch
          %6870 = sbr.rel (%p6868) target = $region95
        $region94: #{inceptlike_gcn_forward.1} parent=90 // pred_region
          %p6871 = scmp.lt.s32.totalorder %s28, 1
          %s6872 = scalar_select %p6871, %s28, 1
          %s6873 = smul.addr %s6872, 2
          %s6874 = smul.addr %s6873, 8
          %s6875 = scalar_lea.vmem %s13, %s6874
        $region95: #{inceptlike_gcn_forward.1} parent=90 // pred_fallthru
          _
      $region91: #{inceptlike_gcn_forward.1} parent=5 // pred_fallthru
        _
    $region6: #{inceptlike_gcn_forward.1} parent=1 // loop_footer
      %s26 = sadd.s32 1, %s22
    $region7: #{inceptlike_gcn_forward.1} parent=1 // loop_footer_branch
      %21 = sbr.rel target = $region3
    $region8: #{inceptlike_gcn_forward.1} parent=1 // loop_exit
      _
    %6876 = vsyncpa [#allocation3], 1
    %s6877 = scalar_lea.sflag [#allocation3], 1
    %6878 = vsyncpa %s6877, 1

</llo_original>
